<compile_context>
chip_gen: v7x
topology: tpu7x:2x2x1
jax: 0.10.0
libtpu: 0.0.40
codegen_flags: <defaults>
</compile_context>

<pallas_src>
import functools

import numpy as np
import jax
import jax.numpy as jnp
from jax import lax
from jax.experimental import pallas as pl
from jax.experimental.pallas import tpu as pltpu

INPUT_SIZE = 5
HIDDEN = 16
LAYERS = 4
FC_OUT = 150
PAD_IN = 16  # pad input features 5 -> 16 so every layer's input width == HIDDEN


def gru_fc_kernel(x_ref, wih_ref, whh_ref, bi_ref, bh_ref, fcw_ref, fcb_ref,
                  out_ref, gi0_ref, *, T, B):
    """Whole GRU stack + final Linear in one kernel (everything resident in VMEM).

    x_ref   : [T*B, 16]      time-major flattened input (zero-padded 5 -> 16)
    wih_ref : [L, 16, 48]    per-layer input->gates weights, gates r|z|n on lane dim
    whh_ref : [L, 16, 48]    per-layer hidden->gates weights
    bi_ref  : [L, 1, 48]     combined bias: [b_ih_r+b_hh_r | b_ih_z+b_hh_z | b_ih_n]
    bh_ref  : [L, 1, 48]     recurrent bias: [0 | 0 | b_hh_n]
    fcw_ref : [64, 150]      fc weight transposed (row order == 'l b h -> b (l h)')
    fcb_ref : [1, 150]
    out_ref : [B, 150]
    gi0_ref : [T*B, 48]      scratch: precomputed layer-0 input gates
    """
    H = HIDDEN

    # --- hoist the layer-0 input projection off the serial path: one big matmul ---
    gi0_ref[...] = (
        jnp.dot(x_ref[...], wih_ref[0], preferred_element_type=jnp.float32)
        + bi_ref[0])

    # --- hoist the small weight / bias tiles out of the recurrence (loaded once) ---
    whh = [whh_ref[l] for l in range(LAYERS)]          # each [16, 48]
    wih = [wih_ref[l] for l in range(1, LAYERS)]       # layers 1..3 only
    bi = [bi_ref[l] for l in range(1, LAYERS)]
    bh = [bh_ref[l] for l in range(LAYERS)]

    def cell(gi, gh, h_prev):
        # gate order (PyTorch): r, z, n  -- elementwise math stays in f32 (v5e-safe)
        r = jax.nn.sigmoid(gi[:, :H] + gh[:, :H])
        z = jax.nn.sigmoid(gi[:, H:2 * H] + gh[:, H:2 * H])
        n = jnp.tanh(gi[:, 2 * H:] + r * gh[:, 2 * H:])
        return (1.0 - z) * n + z * h_prev

    def step(t, carry):
        hs = list(carry)
        # layer 0: input gates were precomputed outside the loop
        row = pl.multiple_of(t * B, B)
        gi = gi0_ref[pl.ds(row, B), :]                                   # [B, 48]
        gh = jnp.dot(hs[0], whh[0], preferred_element_type=jnp.float32) + bh[0]
        hs[0] = cell(gi, gh, hs[0])
        # layers 1..3: fused-gate input + recurrent matmuls (2 per cell)
        for l in range(1, LAYERS):
            gi = jnp.dot(hs[l - 1], wih[l - 1],
                         preferred_element_type=jnp.float32) + bi[l - 1]
            gh = jnp.dot(hs[l], whh[l],
                         preferred_element_type=jnp.float32) + bh[l]
            hs[l] = cell(gi, gh, hs[l])
        return tuple(hs)

    h_init = tuple(jnp.zeros((B, H), jnp.float32) for _ in range(LAYERS))
    h_fin = lax.fori_loop(0, T, step, h_init, unroll=True)

    # hidden rearranged 'l b h -> b (l h)' then fc: one [B,64] x [64,150] matmul
    h_cat = jnp.concatenate(h_fin, axis=1)                               # [B, L*H]
    out_ref[...] = (
        jnp.dot(h_cat, fcw_ref[...], preferred_element_type=jnp.float32)
        + fcb_ref[...])


def init_params(key):
    params = {}
    ks = jax.random.split(key, 4 * LAYERS + 2)
    idx = 0
    k_gru = 1.0 / np.sqrt(HIDDEN)
    for l in range(LAYERS):
        in_l = INPUT_SIZE if l == 0 else HIDDEN
        params[f"w_ih_{l}"] = jax.random.uniform(ks[idx], (3 * HIDDEN, in_l), jnp.float32, -k_gru, k_gru); idx += 1
        params[f"w_hh_{l}"] = jax.random.uniform(ks[idx], (3 * HIDDEN, HIDDEN), jnp.float32, -k_gru, k_gru); idx += 1
        params[f"b_ih_{l}"] = jax.random.uniform(ks[idx], (3 * HIDDEN,), jnp.float32, -k_gru, k_gru); idx += 1
        params[f"b_hh_{l}"] = jax.random.uniform(ks[idx], (3 * HIDDEN,), jnp.float32, -k_gru, k_gru); idx += 1
    k_fc = 1.0 / np.sqrt(LAYERS * HIDDEN)
    params["fc_w"] = jax.random.uniform(ks[idx], (FC_OUT, LAYERS * HIDDEN), jnp.float32, -k_fc, k_fc); idx += 1
    params["fc_b"] = jax.random.uniform(ks[idx], (FC_OUT,), jnp.float32, -k_fc, k_fc); idx += 1
    return params


def _pack_params(params):
    """Reorganize PyTorch-convention params into the fused-gate kernel layout."""
    wih, whh, bi, bh = [], [], [], []
    for l in range(LAYERS):
        w_i = params[f"w_ih_{l}"]                     # [3H, in_l]
        if w_i.shape[1] < PAD_IN:
            w_i = jnp.pad(w_i, ((0, 0), (0, PAD_IN - w_i.shape[1])))
        w_h = params[f"w_hh_{l}"]                     # [3H, H]
        b_i = params[f"b_ih_{l}"]                     # [3H]
        b_h = params[f"b_hh_{l}"]                     # [3H]
        wih.append(w_i.T)                             # [16, 48]  cols = r|z|n
        whh.append(w_h.T)                             # [16, 48]
        # r/z biases combined (always summed); n-gate biases kept split
        bi.append(jnp.concatenate(
            [b_i[:2 * HIDDEN] + b_h[:2 * HIDDEN], b_i[2 * HIDDEN:]])[None, :])
        bh.append(jnp.concatenate(
            [jnp.zeros((2 * HIDDEN,), jnp.float32), b_h[2 * HIDDEN:]])[None, :])
    wih = jnp.stack(wih)                              # [L, 16, 48]
    whh = jnp.stack(whh)                              # [L, 16, 48]
    bi = jnp.stack(bi)                                # [L, 1, 48]
    bh = jnp.stack(bh)                                # [L, 1, 48]
    fcw = params["fc_w"].T                            # [64, 150], rows ordered (l, h)
    fcb = params["fc_b"][None, :]                     # [1, 150]
    return wih, whh, bi, bh, fcw, fcb


def gru_base_forward(input_seq, target_seq, params):
    del target_seq  # unused in the PyTorch forward as well
    B, T, F = input_seq.shape
    x = jnp.transpose(input_seq.astype(jnp.float32), (1, 0, 2))   # [T, B, F]
    x = jnp.pad(x, ((0, 0), (0, 0), (0, PAD_IN - F)))             # [T, B, 16]
    x2d = x.reshape(T * B, PAD_IN)                                # time-major, flattened
    wih, whh, bi, bh, fcw, fcb = _pack_params(params)

    # All operands are tiny (<< VMEM on any generation), so everything is VMEM-resident.
    # TODO(synk): add a batch-tiled BlockSpec grid ('parallel') if B*T grows (v7x 64 MiB VMEM / 2 TCs).
    vmem = pl.BlockSpec(memory_space=pltpu.MemorySpace.VMEM)
    out = pl.pallas_call(
        functools.partial(gru_fc_kernel, T=T, B=B),
        out_shape=jax.ShapeDtypeStruct((B, FC_OUT), jnp.float32),
        in_specs=[vmem] * 7,
        out_specs=vmem,
        scratch_shapes=[pltpu.VMEM((T * B, 3 * HIDDEN), jnp.float32)],
    )(x2d, wih, whh, bi, bh, fcw, fcb)
    return out


def gru_base_reference(input_seq, params):
    """Pure-JAX reference mirroring torch.nn.GRU semantics."""
    B, T, _ = input_seq.shape
    x_seq = input_seq.astype(jnp.float32)
    finals = []
    for l in range(LAYERS):
        w_i = params[f"w_ih_{l}"]; w_h = params[f"w_hh_{l}"]
        b_i = params[f"b_ih_{l}"]; b_h = params[f"b_hh_{l}"]
        h = jnp.zeros((B, HIDDEN), jnp.float32)
        outs = []
        for t in range(T):
            xt = x_seq[:, t, :]
            gi = xt @ w_i.T + b_i
            gh = h @ w_h.T + b_h
            r = jax.nn.sigmoid(gi[:, :HIDDEN] + gh[:, :HIDDEN])
            z = jax.nn.sigmoid(gi[:, HIDDEN:2 * HIDDEN] + gh[:, HIDDEN:2 * HIDDEN])
            n = jnp.tanh(gi[:, 2 * HIDDEN:] + r * gh[:, 2 * HIDDEN:])
            h = (1.0 - z) * n + z * h
            outs.append(h)
        x_seq = jnp.stack(outs, axis=1)
        finals.append(h)
    hidden = jnp.stack(finals, axis=0)                                      # [L, B, H]
    hidden = jnp.transpose(hidden, (1, 0, 2)).reshape(B, LAYERS * HIDDEN)   # 'l b h -> b (l h)'
    return hidden @ params["fc_w"].T + params["fc_b"]


if __name__ == "__main__":
    key = jax.random.PRNGKey(0)
    k_params, k_in, k_tgt = jax.random.split(key, 3)

    B, T = 2, 8
    params = init_params(k_params)
    input_seq = jax.random.normal(k_in, (B, T, INPUT_SIZE), jnp.float32)
    target_seq = jax.random.normal(k_tgt, (B, T, INPUT_SIZE), jnp.float32)

    out = gru_base_forward(input_seq, target_seq, params)
    out = jax.block_until_ready(out)

    ref = gru_base_reference(input_seq, params)
    assert out.shape == (B, FC_OUT), out.shape
    assert np.allclose(np.asarray(out), np.asarray(ref), rtol=1e-2, atol=1e-2), (
        "mismatch vs reference")
    print("KERNEL_OK")
</pallas_src>

<mosaic_0001>
module attributes {stable_mosaic.version = 11 : i64} {
  func.func @gru_fc_kernel(%arg0: memref<16x16xf32, #tpu.memory_space<vmem>>, %arg1: memref<4x16x48xf32, #tpu.memory_space<vmem>>, %arg2: memref<4x16x48xf32, #tpu.memory_space<vmem>>, %arg3: memref<4x1x48xf32, #tpu.memory_space<vmem>>, %arg4: memref<4x1x48xf32, #tpu.memory_space<vmem>>, %arg5: memref<64x150xf32, #tpu.memory_space<vmem>>, %arg6: memref<1x150xf32, #tpu.memory_space<vmem>>, %arg7: memref<2x150xf32, #tpu.memory_space<vmem>>, %arg8: memref<16x48xf32, #tpu.memory_space<vmem>>) attributes {dimension_semantics = [], scalar_prefetch = 0 : i64, scratch_operands = 1 : i64, tpu.core_type = #tpu.core_type<tc>} {
    %c0 = arith.constant 0 : index
    %c0_0 = arith.constant 0 : index
    %0 = vector.load %arg0[%c0, %c0_0] : memref<16x16xf32, #tpu.memory_space<vmem>>, vector<16x16xf32>
    %c0_1 = arith.constant 0 : index
    %c0_2 = arith.constant 0 : index
    %c0_3 = arith.constant 0 : index
    %1 = vector.load %arg1[%c0_1, %c0_2, %c0_3] : memref<4x16x48xf32, #tpu.memory_space<vmem>>, vector<1x16x48xf32>
    %2 = vector.shape_cast %1 : vector<1x16x48xf32> to vector<16x48xf32>
    %cst = arith.constant dense<0.000000e+00> : vector<16x48xf32>
    %3 = tpu.matmul %0, %2, %cst {dimension_numbers = #tpu.dot_dimension_numbers<[1], [0], [0], [1], [0, 0, 1, 1], [], []>} : vector<16x16xf32>, vector<16x48xf32>, vector<16x48xf32> -> vector<16x48xf32>
    %c0_4 = arith.constant 0 : index
    %c0_5 = arith.constant 0 : index
    %c0_6 = arith.constant 0 : index
    %4 = vector.load %arg3[%c0_4, %c0_5, %c0_6] : memref<4x1x48xf32, #tpu.memory_space<vmem>>, vector<1x1x48xf32>
    %5 = vector.shape_cast %4 : vector<1x1x48xf32> to vector<1x48xf32>
    %6 = vector.broadcast %5 : vector<1x48xf32> to vector<16x48xf32>
    %7 = arith.addf %3, %6 : vector<16x48xf32>
    %c0_7 = arith.constant 0 : index
    %c0_8 = arith.constant 0 : index
    %8 = vector.load %arg8[%c0_7, %c0_8] : memref<16x48xf32, #tpu.memory_space<vmem>>, vector<16x48xf32>
    tpu.vector_store %arg8[%c0_7, %c0_8], %7 {strides = array<i32>} : memref<16x48xf32, #tpu.memory_space<vmem>>, vector<16x48xf32>,
    %c0_9 = arith.constant 0 : index
    %c0_10 = arith.constant 0 : index
    %c0_11 = arith.constant 0 : index
    %9 = vector.load %arg2[%c0_9, %c0_10, %c0_11] : memref<4x16x48xf32, #tpu.memory_space<vmem>>, vector<1x16x48xf32>
    %10 = vector.shape_cast %9 : vector<1x16x48xf32> to vector<16x48xf32>
    %c1 = arith.constant 1 : index
    %c0_12 = arith.constant 0 : index
    %c0_13 = arith.constant 0 : index
    %11 = vector.load %arg2[%c1, %c0_12, %c0_13] : memref<4x16x48xf32, #tpu.memory_space<vmem>>, vector<1x16x48xf32>
    %12 = vector.shape_cast %11 : vector<1x16x48xf32> to vector<16x48xf32>
    %c2 = arith.constant 2 : index
    %c0_14 = arith.constant 0 : index
    %c0_15 = arith.constant 0 : index
    %13 = vector.load %arg2[%c2, %c0_14, %c0_15] : memref<4x16x48xf32, #tpu.memory_space<vmem>>, vector<1x16x48xf32>
    %14 = vector.shape_cast %13 : vector<1x16x48xf32> to vector<16x48xf32>
    %c3 = arith.constant 3 : index
    %c0_16 = arith.constant 0 : index
    %c0_17 = arith.constant 0 : index
    %15 = vector.load %arg2[%c3, %c0_16, %c0_17] : memref<4x16x48xf32, #tpu.memory_space<vmem>>, vector<1x16x48xf32>
    %16 = vector.shape_cast %15 : vector<1x16x48xf32> to vector<16x48xf32>
    %c1_18 = arith.constant 1 : index
    %c0_19 = arith.constant 0 : index
    %c0_20 = arith.constant 0 : index
    %17 = vector.load %arg1[%c1_18, %c0_19, %c0_20] : memref<4x16x48xf32, #tpu.memory_space<vmem>>, vector<1x16x48xf32>
    %18 = vector.shape_cast %17 : vector<1x16x48xf32> to vector<16x48xf32>
    %c2_21 = arith.constant 2 : index
    %c0_22 = arith.constant 0 : index
    %c0_23 = arith.constant 0 : index
    %19 = vector.load %arg1[%c2_21, %c0_22, %c0_23] : memref<4x16x48xf32, #tpu.memory_space<vmem>>, vector<1x16x48xf32>
    %20 = vector.shape_cast %19 : vector<1x16x48xf32> to vector<16x48xf32>
    %c3_24 = arith.constant 3 : index
    %c0_25 = arith.constant 0 : index
    %c0_26 = arith.constant 0 : index
    %21 = vector.load %arg1[%c3_24, %c0_25, %c0_26] : memref<4x16x48xf32, #tpu.memory_space<vmem>>, vector<1x16x48xf32>
    %22 = vector.shape_cast %21 : vector<1x16x48xf32> to vector<16x48xf32>
    %c1_27 = arith.constant 1 : index
    %c0_28 = arith.constant 0 : index
    %c0_29 = arith.constant 0 : index
    %23 = vector.load %arg3[%c1_27, %c0_28, %c0_29] : memref<4x1x48xf32, #tpu.memory_space<vmem>>, vector<1x1x48xf32>
    %24 = vector.shape_cast %23 : vector<1x1x48xf32> to vector<1x48xf32>
    %c2_30 = arith.constant 2 : index
    %c0_31 = arith.constant 0 : index
    %c0_32 = arith.constant 0 : index
    %25 = vector.load %arg3[%c2_30, %c0_31, %c0_32] : memref<4x1x48xf32, #tpu.memory_space<vmem>>, vector<1x1x48xf32>
    %26 = vector.shape_cast %25 : vector<1x1x48xf32> to vector<1x48xf32>
    %c3_33 = arith.constant 3 : index
    %c0_34 = arith.constant 0 : index
    %c0_35 = arith.constant 0 : index
    %27 = vector.load %arg3[%c3_33, %c0_34, %c0_35] : memref<4x1x48xf32, #tpu.memory_space<vmem>>, vector<1x1x48xf32>
    %28 = vector.shape_cast %27 : vector<1x1x48xf32> to vector<1x48xf32>
    %c0_36 = arith.constant 0 : index
    %c0_37 = arith.constant 0 : index
    %c0_38 = arith.constant 0 : index
    %29 = vector.load %arg4[%c0_36, %c0_37, %c0_38] : memref<4x1x48xf32, #tpu.memory_space<vmem>>, vector<1x1x48xf32>
    %30 = vector.shape_cast %29 : vector<1x1x48xf32> to vector<1x48xf32>
    %c1_39 = arith.constant 1 : index
    %c0_40 = arith.constant 0 : index
    %c0_41 = arith.constant 0 : index
    %31 = vector.load %arg4[%c1_39, %c0_40, %c0_41] : memref<4x1x48xf32, #tpu.memory_space<vmem>>, vector<1x1x48xf32>
    %32 = vector.shape_cast %31 : vector<1x1x48xf32> to vector<1x48xf32>
    %c2_42 = arith.constant 2 : index
    %c0_43 = arith.constant 0 : index
    %c0_44 = arith.constant 0 : index
    %33 = vector.load %arg4[%c2_42, %c0_43, %c0_44] : memref<4x1x48xf32, #tpu.memory_space<vmem>>, vector<1x1x48xf32>
    %34 = vector.shape_cast %33 : vector<1x1x48xf32> to vector<1x48xf32>
    %c3_45 = arith.constant 3 : index
    %c0_46 = arith.constant 0 : index
    %c0_47 = arith.constant 0 : index
    %35 = vector.load %arg4[%c3_45, %c0_46, %c0_47] : memref<4x1x48xf32, #tpu.memory_space<vmem>>, vector<1x1x48xf32>
    %36 = vector.shape_cast %35 : vector<1x1x48xf32> to vector<1x48xf32>
    %cst_48 = arith.constant 0.000000e+00 : f32
    %37 = vector.broadcast %cst_48 : f32 to vector<2x16xf32>
    %cst_49 = arith.constant 0.000000e+00 : f32
    %38 = vector.broadcast %cst_49 : f32 to vector<2x16xf32>
    %cst_50 = arith.constant 0.000000e+00 : f32
    %39 = vector.broadcast %cst_50 : f32 to vector<2x16xf32>
    %cst_51 = arith.constant 0.000000e+00 : f32
    %40 = vector.broadcast %cst_51 : f32 to vector<2x16xf32>
    %c0_i32 = arith.constant 0 : i32
    %c2_i32 = arith.constant 2 : i32
    %41 = arith.muli %c0_i32, %c2_i32 : i32
    %42 = tpu.assume_multiple %41, 2 : i32
    %43 = arith.index_cast %42 : i32 to index
    %c0_52 = arith.constant 0 : index
    %44 = vector.load %arg8[%43, %c0_52] : memref<16x48xf32, #tpu.memory_space<vmem>>, vector<2x48xf32>
    %cst_53 = arith.constant dense<0.000000e+00> : vector<2x48xf32>
    %45 = tpu.matmul %37, %10, %cst_53 {dimension_numbers = #tpu.dot_dimension_numbers<[1], [0], [0], [1], [0, 0, 1, 1], [], []>} : vector<2x16xf32>, vector<16x48xf32>, vector<2x48xf32> -> vector<2x48xf32>
    %46 = vector.broadcast %30 : vector<1x48xf32> to vector<2x48xf32>
    %47 = arith.addf %45, %46 : vector<2x48xf32>
    %48 = vector.extract_strided_slice %44 {offsets = [0, 0], sizes = [2, 16], strides = [1, 1]} : vector<2x48xf32> to vector<2x16xf32>
    %49 = vector.extract_strided_slice %47 {offsets = [0, 0], sizes = [2, 16], strides = [1, 1]} : vector<2x48xf32> to vector<2x16xf32>
    %50 = arith.addf %48, %49 : vector<2x16xf32>
    %51 = arith.negf %50 : vector<2x16xf32>
    %52 = math.exp %51 : vector<2x16xf32>
    %cst_54 = arith.constant 1.000000e+00 : f32
    %53 = vector.broadcast %cst_54 : f32 to vector<2x16xf32>
    %54 = arith.addf %53, %52 : vector<2x16xf32>
    %55 = arith.divf %53, %54 : vector<2x16xf32>
    %56 = vector.extract_strided_slice %44 {offsets = [0, 16], sizes = [2, 16], strides = [1, 1]} : vector<2x48xf32> to vector<2x16xf32>
    %57 = vector.extract_strided_slice %47 {offsets = [0, 16], sizes = [2, 16], strides = [1, 1]} : vector<2x48xf32> to vector<2x16xf32>
    %58 = arith.addf %56, %57 : vector<2x16xf32>
    %59 = arith.negf %58 : vector<2x16xf32>
    %60 = math.exp %59 : vector<2x16xf32>
    %cst_55 = arith.constant 1.000000e+00 : f32
    %61 = vector.broadcast %cst_55 : f32 to vector<2x16xf32>
    %62 = arith.addf %61, %60 : vector<2x16xf32>
    %63 = arith.divf %61, %62 : vector<2x16xf32>
    %64 = vector.extract_strided_slice %44 {offsets = [0, 32], sizes = [2, 16], strides = [1, 1]} : vector<2x48xf32> to vector<2x16xf32>
    %65 = vector.extract_strided_slice %47 {offsets = [0, 32], sizes = [2, 16], strides = [1, 1]} : vector<2x48xf32> to vector<2x16xf32>
    %66 = arith.mulf %55, %65 : vector<2x16xf32>
    %67 = arith.addf %64, %66 : vector<2x16xf32>
    %68 = math.tanh %67 : vector<2x16xf32>
    %cst_56 = arith.constant 1.000000e+00 : f32
    %69 = vector.broadcast %cst_56 : f32 to vector<2x16xf32>
    %70 = arith.subf %69, %63 : vector<2x16xf32>
    %71 = arith.mulf %70, %68 : vector<2x16xf32>
    %72 = arith.mulf %63, %37 : vector<2x16xf32>
    %73 = arith.addf %71, %72 : vector<2x16xf32>
    %cst_57 = arith.constant dense<0.000000e+00> : vector<2x48xf32>
    %74 = tpu.matmul %73, %18, %cst_57 {dimension_numbers = #tpu.dot_dimension_numbers<[1], [0], [0], [1], [0, 0, 1, 1], [], []>} : vector<2x16xf32>, vector<16x48xf32>, vector<2x48xf32> -> vector<2x48xf32>
    %75 = vector.broadcast %24 : vector<1x48xf32> to vector<2x48xf32>
    %76 = arith.addf %74, %75 : vector<2x48xf32>
    %cst_58 = arith.constant dense<0.000000e+00> : vector<2x48xf32>
    %77 = tpu.matmul %38, %12, %cst_58 {dimension_numbers = #tpu.dot_dimension_numbers<[1], [0], [0], [1], [0, 0, 1, 1], [], []>} : vector<2x16xf32>, vector<16x48xf32>, vector<2x48xf32> -> vector<2x48xf32>
    %78 = vector.broadcast %32 : vector<1x48xf32> to vector<2x48xf32>
    %79 = arith.addf %77, %78 : vector<2x48xf32>
    %80 = vector.extract_strided_slice %76 {offsets = [0, 0], sizes = [2, 16], strides = [1, 1]} : vector<2x48xf32> to vector<2x16xf32>
    %81 = vector.extract_strided_slice %79 {offsets = [0, 0], sizes = [2, 16], strides = [1, 1]} : vector<2x48xf32> to vector<2x16xf32>
    %82 = arith.addf %80, %81 : vector<2x16xf32>
    %83 = arith.negf %82 : vector<2x16xf32>
    %84 = math.exp %83 : vector<2x16xf32>
    %cst_59 = arith.constant 1.000000e+00 : f32
    %85 = vector.broadcast %cst_59 : f32 to vector<2x16xf32>
    %86 = arith.addf %85, %84 : vector<2x16xf32>
    %87 = arith.divf %85, %86 : vector<2x16xf32>
    %88 = vector.extract_strided_slice %76 {offsets = [0, 16], sizes = [2, 16], strides = [1, 1]} : vector<2x48xf32> to vector<2x16xf32>
    %89 = vector.extract_strided_slice %79 {offsets = [0, 16], sizes = [2, 16], strides = [1, 1]} : vector<2x48xf32> to vector<2x16xf32>
    %90 = arith.addf %88, %89 : vector<2x16xf32>
    %91 = arith.negf %90 : vector<2x16xf32>
    %92 = math.exp %91 : vector<2x16xf32>
    %cst_60 = arith.constant 1.000000e+00 : f32
    %93 = vector.broadcast %cst_60 : f32 to vector<2x16xf32>
    %94 = arith.addf %93, %92 : vector<2x16xf32>
    %95 = arith.divf %93, %94 : vector<2x16xf32>
    %96 = vector.extract_strided_slice %76 {offsets = [0, 32], sizes = [2, 16], strides = [1, 1]} : vector<2x48xf32> to vector<2x16xf32>
    %97 = vector.extract_strided_slice %79 {offsets = [0, 32], sizes = [2, 16], strides = [1, 1]} : vector<2x48xf32> to vector<2x16xf32>
    %98 = arith.mulf %87, %97 : vector<2x16xf32>
    %99 = arith.addf %96, %98 : vector<2x16xf32>
    %100 = math.tanh %99 : vector<2x16xf32>
    %cst_61 = arith.constant 1.000000e+00 : f32
    %101 = vector.broadcast %cst_61 : f32 to vector<2x16xf32>
    %102 = arith.subf %101, %95 : vector<2x16xf32>
    %103 = arith.mulf %102, %100 : vector<2x16xf32>
    %104 = arith.mulf %95, %38 : vector<2x16xf32>
    %105 = arith.addf %103, %104 : vector<2x16xf32>
    %cst_62 = arith.constant dense<0.000000e+00> : vector<2x48xf32>
    %106 = tpu.matmul %105, %20, %cst_62 {dimension_numbers = #tpu.dot_dimension_numbers<[1], [0], [0], [1], [0, 0, 1, 1], [], []>} : vector<2x16xf32>, vector<16x48xf32>, vector<2x48xf32> -> vector<2x48xf32>
    %107 = vector.broadcast %26 : vector<1x48xf32> to vector<2x48xf32>
    %108 = arith.addf %106, %107 : vector<2x48xf32>
    %cst_63 = arith.constant dense<0.000000e+00> : vector<2x48xf32>
    %109 = tpu.matmul %39, %14, %cst_63 {dimension_numbers = #tpu.dot_dimension_numbers<[1], [0], [0], [1], [0, 0, 1, 1], [], []>} : vector<2x16xf32>, vector<16x48xf32>, vector<2x48xf32> -> vector<2x48xf32>
    %110 = vector.broadcast %34 : vector<1x48xf32> to vector<2x48xf32>
    %111 = arith.addf %109, %110 : vector<2x48xf32>
    %112 = vector.extract_strided_slice %108 {offsets = [0, 0], sizes = [2, 16], strides = [1, 1]} : vector<2x48xf32> to vector<2x16xf32>
    %113 = vector.extract_strided_slice %111 {offsets = [0, 0], sizes = [2, 16], strides = [1, 1]} : vector<2x48xf32> to vector<2x16xf32>
    %114 = arith.addf %112, %113 : vector<2x16xf32>
    %115 = arith.negf %114 : vector<2x16xf32>
    %116 = math.exp %115 : vector<2x16xf32>
    %cst_64 = arith.constant 1.000000e+00 : f32
    %117 = vector.broadcast %cst_64 : f32 to vector<2x16xf32>
    %118 = arith.addf %117, %116 : vector<2x16xf32>
    %119 = arith.divf %117, %118 : vector<2x16xf32>
    %120 = vector.extract_strided_slice %108 {offsets = [0, 16], sizes = [2, 16], strides = [1, 1]} : vector<2x48xf32> to vector<2x16xf32>
    %121 = vector.extract_strided_slice %111 {offsets = [0, 16], sizes = [2, 16], strides = [1, 1]} : vector<2x48xf32> to vector<2x16xf32>
    %122 = arith.addf %120, %121 : vector<2x16xf32>
    %123 = arith.negf %122 : vector<2x16xf32>
    %124 = math.exp %123 : vector<2x16xf32>
    %cst_65 = arith.constant 1.000000e+00 : f32
    %125 = vector.broadcast %cst_65 : f32 to vector<2x16xf32>
    %126 = arith.addf %125, %124 : vector<2x16xf32>
    %127 = arith.divf %125, %126 : vector<2x16xf32>
    %128 = vector.extract_strided_slice %108 {offsets = [0, 32], sizes = [2, 16], strides = [1, 1]} : vector<2x48xf32> to vector<2x16xf32>
    %129 = vector.extract_strided_slice %111 {offsets = [0, 32], sizes = [2, 16], strides = [1, 1]} : vector<2x48xf32> to vector<2x16xf32>
    %130 = arith.mulf %119, %129 : vector<2x16xf32>
    %131 = arith.addf %128, %130 : vector<2x16xf32>
    %132 = math.tanh %131 : vector<2x16xf32>
    %cst_66 = arith.constant 1.000000e+00 : f32
    %133 = vector.broadcast %cst_66 : f32 to vector<2x16xf32>
    %134 = arith.subf %133, %127 : vector<2x16xf32>
    %135 = arith.mulf %134, %132 : vector<2x16xf32>
    %136 = arith.mulf %127, %39 : vector<2x16xf32>
    %137 = arith.addf %135, %136 : vector<2x16xf32>
    %cst_67 = arith.constant dense<0.000000e+00> : vector<2x48xf32>
    %138 = tpu.matmul %137, %22, %cst_67 {dimension_numbers = #tpu.dot_dimension_numbers<[1], [0], [0], [1], [0, 0, 1, 1], [], []>} : vector<2x16xf32>, vector<16x48xf32>, vector<2x48xf32> -> vector<2x48xf32>
    %139 = vector.broadcast %28 : vector<1x48xf32> to vector<2x48xf32>
    %140 = arith.addf %138, %139 : vector<2x48xf32>
    %cst_68 = arith.constant dense<0.000000e+00> : vector<2x48xf32>
    %141 = tpu.matmul %40, %16, %cst_68 {dimension_numbers = #tpu.dot_dimension_numbers<[1], [0], [0], [1], [0, 0, 1, 1], [], []>} : vector<2x16xf32>, vector<16x48xf32>, vector<2x48xf32> -> vector<2x48xf32>
    %142 = vector.broadcast %36 : vector<1x48xf32> to vector<2x48xf32>
    %143 = arith.addf %141, %142 : vector<2x48xf32>
    %144 = vector.extract_strided_slice %140 {offsets = [0, 0], sizes = [2, 16], strides = [1, 1]} : vector<2x48xf32> to vector<2x16xf32>
    %145 = vector.extract_strided_slice %143 {offsets = [0, 0], sizes = [2, 16], strides = [1, 1]} : vector<2x48xf32> to vector<2x16xf32>
    %146 = arith.addf %144, %145 : vector<2x16xf32>
    %147 = arith.negf %146 : vector<2x16xf32>
    %148 = math.exp %147 : vector<2x16xf32>
    %cst_69 = arith.constant 1.000000e+00 : f32
    %149 = vector.broadcast %cst_69 : f32 to vector<2x16xf32>
    %150 = arith.addf %149, %148 : vector<2x16xf32>
    %151 = arith.divf %149, %150 : vector<2x16xf32>
    %152 = vector.extract_strided_slice %140 {offsets = [0, 16], sizes = [2, 16], strides = [1, 1]} : vector<2x48xf32> to vector<2x16xf32>
    %153 = vector.extract_strided_slice %143 {offsets = [0, 16], sizes = [2, 16], strides = [1, 1]} : vector<2x48xf32> to vector<2x16xf32>
    %154 = arith.addf %152, %153 : vector<2x16xf32>
    %155 = arith.negf %154 : vector<2x16xf32>
    %156 = math.exp %155 : vector<2x16xf32>
    %cst_70 = arith.constant 1.000000e+00 : f32
    %157 = vector.broadcast %cst_70 : f32 to vector<2x16xf32>
    %158 = arith.addf %157, %156 : vector<2x16xf32>
    %159 = arith.divf %157, %158 : vector<2x16xf32>
    %160 = vector.extract_strided_slice %140 {offsets = [0, 32], sizes = [2, 16], strides = [1, 1]} : vector<2x48xf32> to vector<2x16xf32>
    %161 = vector.extract_strided_slice %143 {offsets = [0, 32], sizes = [2, 16], strides = [1, 1]} : vector<2x48xf32> to vector<2x16xf32>
    %162 = arith.mulf %151, %161 : vector<2x16xf32>
    %163 = arith.addf %160, %162 : vector<2x16xf32>
    %164 = math.tanh %163 : vector<2x16xf32>
    %cst_71 = arith.constant 1.000000e+00 : f32
    %165 = vector.broadcast %cst_71 : f32 to vector<2x16xf32>
    %166 = arith.subf %165, %159 : vector<2x16xf32>
    %167 = arith.mulf %166, %164 : vector<2x16xf32>
    %168 = arith.mulf %159, %40 : vector<2x16xf32>
    %169 = arith.addf %167, %168 : vector<2x16xf32>
    %c1_i32 = arith.constant 1 : i32
    %c2_i32_72 = arith.constant 2 : i32
    %170 = arith.muli %c1_i32, %c2_i32_72 : i32
    %171 = tpu.assume_multiple %170, 2 : i32
    %172 = arith.index_cast %171 : i32 to index
    %c0_73 = arith.constant 0 : index
    %173 = vector.load %arg8[%172, %c0_73] : memref<16x48xf32, #tpu.memory_space<vmem>>, vector<2x48xf32>
    %cst_74 = arith.constant dense<0.000000e+00> : vector<2x48xf32>
    %174 = tpu.matmul %73, %10, %cst_74 {dimension_numbers = #tpu.dot_dimension_numbers<[1], [0], [0], [1], [0, 0, 1, 1], [], []>} : vector<2x16xf32>, vector<16x48xf32>, vector<2x48xf32> -> vector<2x48xf32>
    %175 = vector.broadcast %30 : vector<1x48xf32> to vector<2x48xf32>
    %176 = arith.addf %174, %175 : vector<2x48xf32>
    %177 = vector.extract_strided_slice %173 {offsets = [0, 0], sizes = [2, 16], strides = [1, 1]} : vector<2x48xf32> to vector<2x16xf32>
    %178 = vector.extract_strided_slice %176 {offsets = [0, 0], sizes = [2, 16], strides = [1, 1]} : vector<2x48xf32> to vector<2x16xf32>
    %179 = arith.addf %177, %178 : vector<2x16xf32>
    %180 = arith.negf %179 : vector<2x16xf32>
    %181 = math.exp %180 : vector<2x16xf32>
    %cst_75 = arith.constant 1.000000e+00 : f32
    %182 = vector.broadcast %cst_75 : f32 to vector<2x16xf32>
    %183 = arith.addf %182, %181 : vector<2x16xf32>
    %184 = arith.divf %182, %183 : vector<2x16xf32>
    %185 = vector.extract_strided_slice %173 {offsets = [0, 16], sizes = [2, 16], strides = [1, 1]} : vector<2x48xf32> to vector<2x16xf32>
    %186 = vector.extract_strided_slice %176 {offsets = [0, 16], sizes = [2, 16], strides = [1, 1]} : vector<2x48xf32> to vector<2x16xf32>
    %187 = arith.addf %185, %186 : vector<2x16xf32>
    %188 = arith.negf %187 : vector<2x16xf32>
    %189 = math.exp %188 : vector<2x16xf32>
    %cst_76 = arith.constant 1.000000e+00 : f32
    %190 = vector.broadcast %cst_76 : f32 to vector<2x16xf32>
    %191 = arith.addf %190, %189 : vector<2x16xf32>
    %192 = arith.divf %190, %191 : vector<2x16xf32>
    %193 = vector.extract_strided_slice %173 {offsets = [0, 32], sizes = [2, 16], strides = [1, 1]} : vector<2x48xf32> to vector<2x16xf32>
    %194 = vector.extract_strided_slice %176 {offsets = [0, 32], sizes = [2, 16], strides = [1, 1]} : vector<2x48xf32> to vector<2x16xf32>
    %195 = arith.mulf %184, %194 : vector<2x16xf32>
    %196 = arith.addf %193, %195 : vector<2x16xf32>
    %197 = math.tanh %196 : vector<2x16xf32>
    %cst_77 = arith.constant 1.000000e+00 : f32
    %198 = vector.broadcast %cst_77 : f32 to vector<2x16xf32>
    %199 = arith.subf %198, %192 : vector<2x16xf32>
    %200 = arith.mulf %199, %197 : vector<2x16xf32>
    %201 = arith.mulf %192, %73 : vector<2x16xf32>
    %202 = arith.addf %200, %201 : vector<2x16xf32>
    %cst_78 = arith.constant dense<0.000000e+00> : vector<2x48xf32>
    %203 = tpu.matmul %202, %18, %cst_78 {dimension_numbers = #tpu.dot_dimension_numbers<[1], [0], [0], [1], [0, 0, 1, 1], [], []>} : vector<2x16xf32>, vector<16x48xf32>, vector<2x48xf32> -> vector<2x48xf32>
    %204 = vector.broadcast %24 : vector<1x48xf32> to vector<2x48xf32>
    %205 = arith.addf %203, %204 : vector<2x48xf32>
    %cst_79 = arith.constant dense<0.000000e+00> : vector<2x48xf32>
    %206 = tpu.matmul %105, %12, %cst_79 {dimension_numbers = #tpu.dot_dimension_numbers<[1], [0], [0], [1], [0, 0, 1, 1], [], []>} : vector<2x16xf32>, vector<16x48xf32>, vector<2x48xf32> -> vector<2x48xf32>
    %207 = vector.broadcast %32 : vector<1x48xf32> to vector<2x48xf32>
    %208 = arith.addf %206, %207 : vector<2x48xf32>
    %209 = vector.extract_strided_slice %205 {offsets = [0, 0], sizes = [2, 16], strides = [1, 1]} : vector<2x48xf32> to vector<2x16xf32>
    %210 = vector.extract_strided_slice %208 {offsets = [0, 0], sizes = [2, 16], strides = [1, 1]} : vector<2x48xf32> to vector<2x16xf32>
    %211 = arith.addf %209, %210 : vector<2x16xf32>
    %212 = arith.negf %211 : vector<2x16xf32>
    %213 = math.exp %212 : vector<2x16xf32>
    %cst_80 = arith.constant 1.000000e+00 : f32
    %214 = vector.broadcast %cst_80 : f32 to vector<2x16xf32>
    %215 = arith.addf %214, %213 : vector<2x16xf32>
    %216 = arith.divf %214, %215 : vector<2x16xf32>
    %217 = vector.extract_strided_slice %205 {offsets = [0, 16], sizes = [2, 16], strides = [1, 1]} : vector<2x48xf32> to vector<2x16xf32>
    %218 = vector.extract_strided_slice %208 {offsets = [0, 16], sizes = [2, 16], strides = [1, 1]} : vector<2x48xf32> to vector<2x16xf32>
    %219 = arith.addf %217, %218 : vector<2x16xf32>
    %220 = arith.negf %219 : vector<2x16xf32>
    %221 = math.exp %220 : vector<2x16xf32>
    %cst_81 = arith.constant 1.000000e+00 : f32
    %222 = vector.broadcast %cst_81 : f32 to vector<2x16xf32>
    %223 = arith.addf %222, %221 : vector<2x16xf32>
    %224 = arith.divf %222, %223 : vector<2x16xf32>
    %225 = vector.extract_strided_slice %205 {offsets = [0, 32], sizes = [2, 16], strides = [1, 1]} : vector<2x48xf32> to vector<2x16xf32>
    %226 = vector.extract_strided_slice %208 {offsets = [0, 32], sizes = [2, 16], strides = [1, 1]} : vector<2x48xf32> to vector<2x16xf32>
    %227 = arith.mulf %216, %226 : vector<2x16xf32>
    %228 = arith.addf %225, %227 : vector<2x16xf32>
    %229 = math.tanh %228 : vector<2x16xf32>
    %cst_82 = arith.constant 1.000000e+00 : f32
    %230 = vector.broadcast %cst_82 : f32 to vector<2x16xf32>
    %231 = arith.subf %230, %224 : vector<2x16xf32>
    %232 = arith.mulf %231, %229 : vector<2x16xf32>
    %233 = arith.mulf %224, %105 : vector<2x16xf32>
    %234 = arith.addf %232, %233 : vector<2x16xf32>
    %cst_83 = arith.constant dense<0.000000e+00> : vector<2x48xf32>
    %235 = tpu.matmul %234, %20, %cst_83 {dimension_numbers = #tpu.dot_dimension_numbers<[1], [0], [0], [1], [0, 0, 1, 1], [], []>} : vector<2x16xf32>, vector<16x48xf32>, vector<2x48xf32> -> vector<2x48xf32>
    %236 = vector.broadcast %26 : vector<1x48xf32> to vector<2x48xf32>
    %237 = arith.addf %235, %236 : vector<2x48xf32>
    %cst_84 = arith.constant dense<0.000000e+00> : vector<2x48xf32>
    %238 = tpu.matmul %137, %14, %cst_84 {dimension_numbers = #tpu.dot_dimension_numbers<[1], [0], [0], [1], [0, 0, 1, 1], [], []>} : vector<2x16xf32>, vector<16x48xf32>, vector<2x48xf32> -> vector<2x48xf32>
    %239 = vector.broadcast %34 : vector<1x48xf32> to vector<2x48xf32>
    %240 = arith.addf %238, %239 : vector<2x48xf32>
    %241 = vector.extract_strided_slice %237 {offsets = [0, 0], sizes = [2, 16], strides = [1, 1]} : vector<2x48xf32> to vector<2x16xf32>
    %242 = vector.extract_strided_slice %240 {offsets = [0, 0], sizes = [2, 16], strides = [1, 1]} : vector<2x48xf32> to vector<2x16xf32>
    %243 = arith.addf %241, %242 : vector<2x16xf32>
    %244 = arith.negf %243 : vector<2x16xf32>
    %245 = math.exp %244 : vector<2x16xf32>
    %cst_85 = arith.constant 1.000000e+00 : f32
    %246 = vector.broadcast %cst_85 : f32 to vector<2x16xf32>
    %247 = arith.addf %246, %245 : vector<2x16xf32>
    %248 = arith.divf %246, %247 : vector<2x16xf32>
    %249 = vector.extract_strided_slice %237 {offsets = [0, 16], sizes = [2, 16], strides = [1, 1]} : vector<2x48xf32> to vector<2x16xf32>
    %250 = vector.extract_strided_slice %240 {offsets = [0, 16], sizes = [2, 16], strides = [1, 1]} : vector<2x48xf32> to vector<2x16xf32>
    %251 = arith.addf %249, %250 : vector<2x16xf32>
    %252 = arith.negf %251 : vector<2x16xf32>
    %253 = math.exp %252 : vector<2x16xf32>
    %cst_86 = arith.constant 1.000000e+00 : f32
    %254 = vector.broadcast %cst_86 : f32 to vector<2x16xf32>
    %255 = arith.addf %254, %253 : vector<2x16xf32>
    %256 = arith.divf %254, %255 : vector<2x16xf32>
    %257 = vector.extract_strided_slice %237 {offsets = [0, 32], sizes = [2, 16], strides = [1, 1]} : vector<2x48xf32> to vector<2x16xf32>
    %258 = vector.extract_strided_slice %240 {offsets = [0, 32], sizes = [2, 16], strides = [1, 1]} : vector<2x48xf32> to vector<2x16xf32>
    %259 = arith.mulf %248, %258 : vector<2x16xf32>
    %260 = arith.addf %257, %259 : vector<2x16xf32>
    %261 = math.tanh %260 : vector<2x16xf32>
    %cst_87 = arith.constant 1.000000e+00 : f32
    %262 = vector.broadcast %cst_87 : f32 to vector<2x16xf32>
    %263 = arith.subf %262, %256 : vector<2x16xf32>
    %264 = arith.mulf %263, %261 : vector<2x16xf32>
    %265 = arith.mulf %256, %137 : vector<2x16xf32>
    %266 = arith.addf %264, %265 : vector<2x16xf32>
    %cst_88 = arith.constant dense<0.000000e+00> : vector<2x48xf32>
    %267 = tpu.matmul %266, %22, %cst_88 {dimension_numbers = #tpu.dot_dimension_numbers<[1], [0], [0], [1], [0, 0, 1, 1], [], []>} : vector<2x16xf32>, vector<16x48xf32>, vector<2x48xf32> -> vector<2x48xf32>
    %268 = vector.broadcast %28 : vector<1x48xf32> to vector<2x48xf32>
    %269 = arith.addf %267, %268 : vector<2x48xf32>
    %cst_89 = arith.constant dense<0.000000e+00> : vector<2x48xf32>
    %270 = tpu.matmul %169, %16, %cst_89 {dimension_numbers = #tpu.dot_dimension_numbers<[1], [0], [0], [1], [0, 0, 1, 1], [], []>} : vector<2x16xf32>, vector<16x48xf32>, vector<2x48xf32> -> vector<2x48xf32>
    %271 = vector.broadcast %36 : vector<1x48xf32> to vector<2x48xf32>
    %272 = arith.addf %270, %271 : vector<2x48xf32>
    %273 = vector.extract_strided_slice %269 {offsets = [0, 0], sizes = [2, 16], strides = [1, 1]} : vector<2x48xf32> to vector<2x16xf32>
    %274 = vector.extract_strided_slice %272 {offsets = [0, 0], sizes = [2, 16], strides = [1, 1]} : vector<2x48xf32> to vector<2x16xf32>
    %275 = arith.addf %273, %274 : vector<2x16xf32>
    %276 = arith.negf %275 : vector<2x16xf32>
    %277 = math.exp %276 : vector<2x16xf32>
    %cst_90 = arith.constant 1.000000e+00 : f32
    %278 = vector.broadcast %cst_90 : f32 to vector<2x16xf32>
    %279 = arith.addf %278, %277 : vector<2x16xf32>
    %280 = arith.divf %278, %279 : vector<2x16xf32>
    %281 = vector.extract_strided_slice %269 {offsets = [0, 16], sizes = [2, 16], strides = [1, 1]} : vector<2x48xf32> to vector<2x16xf32>
    %282 = vector.extract_strided_slice %272 {offsets = [0, 16], sizes = [2, 16], strides = [1, 1]} : vector<2x48xf32> to vector<2x16xf32>
    %283 = arith.addf %281, %282 : vector<2x16xf32>
    %284 = arith.negf %283 : vector<2x16xf32>
    %285 = math.exp %284 : vector<2x16xf32>
    %cst_91 = arith.constant 1.000000e+00 : f32
    %286 = vector.broadcast %cst_91 : f32 to vector<2x16xf32>
    %287 = arith.addf %286, %285 : vector<2x16xf32>
    %288 = arith.divf %286, %287 : vector<2x16xf32>
    %289 = vector.extract_strided_slice %269 {offsets = [0, 32], sizes = [2, 16], strides = [1, 1]} : vector<2x48xf32> to vector<2x16xf32>
    %290 = vector.extract_strided_slice %272 {offsets = [0, 32], sizes = [2, 16], strides = [1, 1]} : vector<2x48xf32> to vector<2x16xf32>
    %291 = arith.mulf %280, %290 : vector<2x16xf32>
    %292 = arith.addf %289, %291 : vector<2x16xf32>
    %293 = math.tanh %292 : vector<2x16xf32>
    %cst_92 = arith.constant 1.000000e+00 : f32
    %294 = vector.broadcast %cst_92 : f32 to vector<2x16xf32>
    %295 = arith.subf %294, %288 : vector<2x16xf32>
    %296 = arith.mulf %295, %293 : vector<2x16xf32>
    %297 = arith.mulf %288, %169 : vector<2x16xf32>
    %298 = arith.addf %296, %297 : vector<2x16xf32>
    %c2_i32_93 = arith.constant 2 : i32
    %c2_i32_94 = arith.constant 2 : i32
    %299 = arith.muli %c2_i32_93, %c2_i32_94 : i32
    %300 = tpu.assume_multiple %299, 2 : i32
    %301 = arith.index_cast %300 : i32 to index
    %c0_95 = arith.constant 0 : index
    %302 = vector.load %arg8[%301, %c0_95] : memref<16x48xf32, #tpu.memory_space<vmem>>, vector<2x48xf32>
    %cst_96 = arith.constant dense<0.000000e+00> : vector<2x48xf32>
    %303 = tpu.matmul %202, %10, %cst_96 {dimension_numbers = #tpu.dot_dimension_numbers<[1], [0], [0], [1], [0, 0, 1, 1], [], []>} : vector<2x16xf32>, vector<16x48xf32>, vector<2x48xf32> -> vector<2x48xf32>
    %304 = vector.broadcast %30 : vector<1x48xf32> to vector<2x48xf32>
    %305 = arith.addf %303, %304 : vector<2x48xf32>
    %306 = vector.extract_strided_slice %302 {offsets = [0, 0], sizes = [2, 16], strides = [1, 1]} : vector<2x48xf32> to vector<2x16xf32>
    %307 = vector.extract_strided_slice %305 {offsets = [0, 0], sizes = [2, 16], strides = [1, 1]} : vector<2x48xf32> to vector<2x16xf32>
    %308 = arith.addf %306, %307 : vector<2x16xf32>
    %309 = arith.negf %308 : vector<2x16xf32>
    %310 = math.exp %309 : vector<2x16xf32>
    %cst_97 = arith.constant 1.000000e+00 : f32
    %311 = vector.broadcast %cst_97 : f32 to vector<2x16xf32>
    %312 = arith.addf %311, %310 : vector<2x16xf32>
    %313 = arith.divf %311, %312 : vector<2x16xf32>
    %314 = vector.extract_strided_slice %302 {offsets = [0, 16], sizes = [2, 16], strides = [1, 1]} : vector<2x48xf32> to vector<2x16xf32>
    %315 = vector.extract_strided_slice %305 {offsets = [0, 16], sizes = [2, 16], strides = [1, 1]} : vector<2x48xf32> to vector<2x16xf32>
    %316 = arith.addf %314, %315 : vector<2x16xf32>
    %317 = arith.negf %316 : vector<2x16xf32>
    %318 = math.exp %317 : vector<2x16xf32>
    %cst_98 = arith.constant 1.000000e+00 : f32
    %319 = vector.broadcast %cst_98 : f32 to vector<2x16xf32>
    %320 = arith.addf %319, %318 : vector<2x16xf32>
    %321 = arith.divf %319, %320 : vector<2x16xf32>
    %322 = vector.extract_strided_slice %302 {offsets = [0, 32], sizes = [2, 16], strides = [1, 1]} : vector<2x48xf32> to vector<2x16xf32>
    %323 = vector.extract_strided_slice %305 {offsets = [0, 32], sizes = [2, 16], strides = [1, 1]} : vector<2x48xf32> to vector<2x16xf32>
    %324 = arith.mulf %313, %323 : vector<2x16xf32>
    %325 = arith.addf %322, %324 : vector<2x16xf32>
    %326 = math.tanh %325 : vector<2x16xf32>
    %cst_99 = arith.constant 1.000000e+00 : f32
    %327 = vector.broadcast %cst_99 : f32 to vector<2x16xf32>
    %328 = arith.subf %327, %321 : vector<2x16xf32>
    %329 = arith.mulf %328, %326 : vector<2x16xf32>
    %330 = arith.mulf %321, %202 : vector<2x16xf32>
    %331 = arith.addf %329, %330 : vector<2x16xf32>
    %cst_100 = arith.constant dense<0.000000e+00> : vector<2x48xf32>
    %332 = tpu.matmul %331, %18, %cst_100 {dimension_numbers = #tpu.dot_dimension_numbers<[1], [0], [0], [1], [0, 0, 1, 1], [], []>} : vector<2x16xf32>, vector<16x48xf32>, vector<2x48xf32> -> vector<2x48xf32>
    %333 = vector.broadcast %24 : vector<1x48xf32> to vector<2x48xf32>
    %334 = arith.addf %332, %333 : vector<2x48xf32>
    %cst_101 = arith.constant dense<0.000000e+00> : vector<2x48xf32>
    %335 = tpu.matmul %234, %12, %cst_101 {dimension_numbers = #tpu.dot_dimension_numbers<[1], [0], [0], [1], [0, 0, 1, 1], [], []>} : vector<2x16xf32>, vector<16x48xf32>, vector<2x48xf32> -> vector<2x48xf32>
    %336 = vector.broadcast %32 : vector<1x48xf32> to vector<2x48xf32>
    %337 = arith.addf %335, %336 : vector<2x48xf32>
    %338 = vector.extract_strided_slice %334 {offsets = [0, 0], sizes = [2, 16], strides = [1, 1]} : vector<2x48xf32> to vector<2x16xf32>
    %339 = vector.extract_strided_slice %337 {offsets = [0, 0], sizes = [2, 16], strides = [1, 1]} : vector<2x48xf32> to vector<2x16xf32>
    %340 = arith.addf %338, %339 : vector<2x16xf32>
    %341 = arith.negf %340 : vector<2x16xf32>
    %342 = math.exp %341 : vector<2x16xf32>
    %cst_102 = arith.constant 1.000000e+00 : f32
    %343 = vector.broadcast %cst_102 : f32 to vector<2x16xf32>
    %344 = arith.addf %343, %342 : vector<2x16xf32>
    %345 = arith.divf %343, %344 : vector<2x16xf32>
    %346 = vector.extract_strided_slice %334 {offsets = [0, 16], sizes = [2, 16], strides = [1, 1]} : vector<2x48xf32> to vector<2x16xf32>
    %347 = vector.extract_strided_slice %337 {offsets = [0, 16], sizes = [2, 16], strides = [1, 1]} : vector<2x48xf32> to vector<2x16xf32>
    %348 = arith.addf %346, %347 : vector<2x16xf32>
    %349 = arith.negf %348 : vector<2x16xf32>
    %350 = math.exp %349 : vector<2x16xf32>
    %cst_103 = arith.constant 1.000000e+00 : f32
    %351 = vector.broadcast %cst_103 : f32 to vector<2x16xf32>
    %352 = arith.addf %351, %350 : vector<2x16xf32>
    %353 = arith.divf %351, %352 : vector<2x16xf32>
    %354 = vector.extract_strided_slice %334 {offsets = [0, 32], sizes = [2, 16], strides = [1, 1]} : vector<2x48xf32> to vector<2x16xf32>
    %355 = vector.extract_strided_slice %337 {offsets = [0, 32], sizes = [2, 16], strides = [1, 1]} : vector<2x48xf32> to vector<2x16xf32>
    %356 = arith.mulf %345, %355 : vector<2x16xf32>
    %357 = arith.addf %354, %356 : vector<2x16xf32>
    %358 = math.tanh %357 : vector<2x16xf32>
    %cst_104 = arith.constant 1.000000e+00 : f32
    %359 = vector.broadcast %cst_104 : f32 to vector<2x16xf32>
    %360 = arith.subf %359, %353 : vector<2x16xf32>
    %361 = arith.mulf %360, %358 : vector<2x16xf32>
    %362 = arith.mulf %353, %234 : vector<2x16xf32>
    %363 = arith.addf %361, %362 : vector<2x16xf32>
    %cst_105 = arith.constant dense<0.000000e+00> : vector<2x48xf32>
    %364 = tpu.matmul %363, %20, %cst_105 {dimension_numbers = #tpu.dot_dimension_numbers<[1], [0], [0], [1], [0, 0, 1, 1], [], []>} : vector<2x16xf32>, vector<16x48xf32>, vector<2x48xf32> -> vector<2x48xf32>
    %365 = vector.broadcast %26 : vector<1x48xf32> to vector<2x48xf32>
    %366 = arith.addf %364, %365 : vector<2x48xf32>
    %cst_106 = arith.constant dense<0.000000e+00> : vector<2x48xf32>
    %367 = tpu.matmul %266, %14, %cst_106 {dimension_numbers = #tpu.dot_dimension_numbers<[1], [0], [0], [1], [0, 0, 1, 1], [], []>} : vector<2x16xf32>, vector<16x48xf32>, vector<2x48xf32> -> vector<2x48xf32>
    %368 = vector.broadcast %34 : vector<1x48xf32> to vector<2x48xf32>
    %369 = arith.addf %367, %368 : vector<2x48xf32>
    %370 = vector.extract_strided_slice %366 {offsets = [0, 0], sizes = [2, 16], strides = [1, 1]} : vector<2x48xf32> to vector<2x16xf32>
    %371 = vector.extract_strided_slice %369 {offsets = [0, 0], sizes = [2, 16], strides = [1, 1]} : vector<2x48xf32> to vector<2x16xf32>
    %372 = arith.addf %370, %371 : vector<2x16xf32>
    %373 = arith.negf %372 : vector<2x16xf32>
    %374 = math.exp %373 : vector<2x16xf32>
    %cst_107 = arith.constant 1.000000e+00 : f32
    %375 = vector.broadcast %cst_107 : f32 to vector<2x16xf32>
    %376 = arith.addf %375, %374 : vector<2x16xf32>
    %377 = arith.divf %375, %376 : vector<2x16xf32>
    %378 = vector.extract_strided_slice %366 {offsets = [0, 16], sizes = [2, 16], strides = [1, 1]} : vector<2x48xf32> to vector<2x16xf32>
    %379 = vector.extract_strided_slice %369 {offsets = [0, 16], sizes = [2, 16], strides = [1, 1]} : vector<2x48xf32> to vector<2x16xf32>
    %380 = arith.addf %378, %379 : vector<2x16xf32>
    %381 = arith.negf %380 : vector<2x16xf32>
    %382 = math.exp %381 : vector<2x16xf32>
    %cst_108 = arith.constant 1.000000e+00 : f32
    %383 = vector.broadcast %cst_108 : f32 to vector<2x16xf32>
    %384 = arith.addf %383, %382 : vector<2x16xf32>
    %385 = arith.divf %383, %384 : vector<2x16xf32>
    %386 = vector.extract_strided_slice %366 {offsets = [0, 32], sizes = [2, 16], strides = [1, 1]} : vector<2x48xf32> to vector<2x16xf32>
    %387 = vector.extract_strided_slice %369 {offsets = [0, 32], sizes = [2, 16], strides = [1, 1]} : vector<2x48xf32> to vector<2x16xf32>
    %388 = arith.mulf %377, %387 : vector<2x16xf32>
    %389 = arith.addf %386, %388 : vector<2x16xf32>
    %390 = math.tanh %389 : vector<2x16xf32>
    %cst_109 = arith.constant 1.000000e+00 : f32
    %391 = vector.broadcast %cst_109 : f32 to vector<2x16xf32>
    %392 = arith.subf %391, %385 : vector<2x16xf32>
    %393 = arith.mulf %392, %390 : vector<2x16xf32>
    %394 = arith.mulf %385, %266 : vector<2x16xf32>
    %395 = arith.addf %393, %394 : vector<2x16xf32>
    %cst_110 = arith.constant dense<0.000000e+00> : vector<2x48xf32>
    %396 = tpu.matmul %395, %22, %cst_110 {dimension_numbers = #tpu.dot_dimension_numbers<[1], [0], [0], [1], [0, 0, 1, 1], [], []>} : vector<2x16xf32>, vector<16x48xf32>, vector<2x48xf32> -> vector<2x48xf32>
    %397 = vector.broadcast %28 : vector<1x48xf32> to vector<2x48xf32>
    %398 = arith.addf %396, %397 : vector<2x48xf32>
    %cst_111 = arith.constant dense<0.000000e+00> : vector<2x48xf32>
    %399 = tpu.matmul %298, %16, %cst_111 {dimension_numbers = #tpu.dot_dimension_numbers<[1], [0], [0], [1], [0, 0, 1, 1], [], []>} : vector<2x16xf32>, vector<16x48xf32>, vector<2x48xf32> -> vector<2x48xf32>
    %400 = vector.broadcast %36 : vector<1x48xf32> to vector<2x48xf32>
    %401 = arith.addf %399, %400 : vector<2x48xf32>
    %402 = vector.extract_strided_slice %398 {offsets = [0, 0], sizes = [2, 16], strides = [1, 1]} : vector<2x48xf32> to vector<2x16xf32>
    %403 = vector.extract_strided_slice %401 {offsets = [0, 0], sizes = [2, 16], strides = [1, 1]} : vector<2x48xf32> to vector<2x16xf32>
    %404 = arith.addf %402, %403 : vector<2x16xf32>
    %405 = arith.negf %404 : vector<2x16xf32>
    %406 = math.exp %405 : vector<2x16xf32>
    %cst_112 = arith.constant 1.000000e+00 : f32
    %407 = vector.broadcast %cst_112 : f32 to vector<2x16xf32>
    %408 = arith.addf %407, %406 : vector<2x16xf32>
    %409 = arith.divf %407, %408 : vector<2x16xf32>
    %410 = vector.extract_strided_slice %398 {offsets = [0, 16], sizes = [2, 16], strides = [1, 1]} : vector<2x48xf32> to vector<2x16xf32>
    %411 = vector.extract_strided_slice %401 {offsets = [0, 16], sizes = [2, 16], strides = [1, 1]} : vector<2x48xf32> to vector<2x16xf32>
    %412 = arith.addf %410, %411 : vector<2x16xf32>
    %413 = arith.negf %412 : vector<2x16xf32>
    %414 = math.exp %413 : vector<2x16xf32>
    %cst_113 = arith.constant 1.000000e+00 : f32
    %415 = vector.broadcast %cst_113 : f32 to vector<2x16xf32>
    %416 = arith.addf %415, %414 : vector<2x16xf32>
    %417 = arith.divf %415, %416 : vector<2x16xf32>
    %418 = vector.extract_strided_slice %398 {offsets = [0, 32], sizes = [2, 16], strides = [1, 1]} : vector<2x48xf32> to vector<2x16xf32>
    %419 = vector.extract_strided_slice %401 {offsets = [0, 32], sizes = [2, 16], strides = [1, 1]} : vector<2x48xf32> to vector<2x16xf32>
    %420 = arith.mulf %409, %419 : vector<2x16xf32>
    %421 = arith.addf %418, %420 : vector<2x16xf32>
    %422 = math.tanh %421 : vector<2x16xf32>
    %cst_114 = arith.constant 1.000000e+00 : f32
    %423 = vector.broadcast %cst_114 : f32 to vector<2x16xf32>
    %424 = arith.subf %423, %417 : vector<2x16xf32>
    %425 = arith.mulf %424, %422 : vector<2x16xf32>
    %426 = arith.mulf %417, %298 : vector<2x16xf32>
    %427 = arith.addf %425, %426 : vector<2x16xf32>
    %c3_i32 = arith.constant 3 : i32
    %c2_i32_115 = arith.constant 2 : i32
    %428 = arith.muli %c3_i32, %c2_i32_115 : i32
    %429 = tpu.assume_multiple %428, 2 : i32
    %430 = arith.index_cast %429 : i32 to index
    %c0_116 = arith.constant 0 : index
    %431 = vector.load %arg8[%430, %c0_116] : memref<16x48xf32, #tpu.memory_space<vmem>>, vector<2x48xf32>
    %cst_117 = arith.constant dense<0.000000e+00> : vector<2x48xf32>
    %432 = tpu.matmul %331, %10, %cst_117 {dimension_numbers = #tpu.dot_dimension_numbers<[1], [0], [0], [1], [0, 0, 1, 1], [], []>} : vector<2x16xf32>, vector<16x48xf32>, vector<2x48xf32> -> vector<2x48xf32>
    %433 = vector.broadcast %30 : vector<1x48xf32> to vector<2x48xf32>
    %434 = arith.addf %432, %433 : vector<2x48xf32>
    %435 = vector.extract_strided_slice %431 {offsets = [0, 0], sizes = [2, 16], strides = [1, 1]} : vector<2x48xf32> to vector<2x16xf32>
    %436 = vector.extract_strided_slice %434 {offsets = [0, 0], sizes = [2, 16], strides = [1, 1]} : vector<2x48xf32> to vector<2x16xf32>
    %437 = arith.addf %435, %436 : vector<2x16xf32>
    %438 = arith.negf %437 : vector<2x16xf32>
    %439 = math.exp %438 : vector<2x16xf32>
    %cst_118 = arith.constant 1.000000e+00 : f32
    %440 = vector.broadcast %cst_118 : f32 to vector<2x16xf32>
    %441 = arith.addf %440, %439 : vector<2x16xf32>
    %442 = arith.divf %440, %441 : vector<2x16xf32>
    %443 = vector.extract_strided_slice %431 {offsets = [0, 16], sizes = [2, 16], strides = [1, 1]} : vector<2x48xf32> to vector<2x16xf32>
    %444 = vector.extract_strided_slice %434 {offsets = [0, 16], sizes = [2, 16], strides = [1, 1]} : vector<2x48xf32> to vector<2x16xf32>
    %445 = arith.addf %443, %444 : vector<2x16xf32>
    %446 = arith.negf %445 : vector<2x16xf32>
    %447 = math.exp %446 : vector<2x16xf32>
    %cst_119 = arith.constant 1.000000e+00 : f32
    %448 = vector.broadcast %cst_119 : f32 to vector<2x16xf32>
    %449 = arith.addf %448, %447 : vector<2x16xf32>
    %450 = arith.divf %448, %449 : vector<2x16xf32>
    %451 = vector.extract_strided_slice %431 {offsets = [0, 32], sizes = [2, 16], strides = [1, 1]} : vector<2x48xf32> to vector<2x16xf32>
    %452 = vector.extract_strided_slice %434 {offsets = [0, 32], sizes = [2, 16], strides = [1, 1]} : vector<2x48xf32> to vector<2x16xf32>
    %453 = arith.mulf %442, %452 : vector<2x16xf32>
    %454 = arith.addf %451, %453 : vector<2x16xf32>
    %455 = math.tanh %454 : vector<2x16xf32>
    %cst_120 = arith.constant 1.000000e+00 : f32
    %456 = vector.broadcast %cst_120 : f32 to vector<2x16xf32>
    %457 = arith.subf %456, %450 : vector<2x16xf32>
    %458 = arith.mulf %457, %455 : vector<2x16xf32>
    %459 = arith.mulf %450, %331 : vector<2x16xf32>
    %460 = arith.addf %458, %459 : vector<2x16xf32>
    %cst_121 = arith.constant dense<0.000000e+00> : vector<2x48xf32>
    %461 = tpu.matmul %460, %18, %cst_121 {dimension_numbers = #tpu.dot_dimension_numbers<[1], [0], [0], [1], [0, 0, 1, 1], [], []>} : vector<2x16xf32>, vector<16x48xf32>, vector<2x48xf32> -> vector<2x48xf32>
    %462 = vector.broadcast %24 : vector<1x48xf32> to vector<2x48xf32>
    %463 = arith.addf %461, %462 : vector<2x48xf32>
    %cst_122 = arith.constant dense<0.000000e+00> : vector<2x48xf32>
    %464 = tpu.matmul %363, %12, %cst_122 {dimension_numbers = #tpu.dot_dimension_numbers<[1], [0], [0], [1], [0, 0, 1, 1], [], []>} : vector<2x16xf32>, vector<16x48xf32>, vector<2x48xf32> -> vector<2x48xf32>
    %465 = vector.broadcast %32 : vector<1x48xf32> to vector<2x48xf32>
    %466 = arith.addf %464, %465 : vector<2x48xf32>
    %467 = vector.extract_strided_slice %463 {offsets = [0, 0], sizes = [2, 16], strides = [1, 1]} : vector<2x48xf32> to vector<2x16xf32>
    %468 = vector.extract_strided_slice %466 {offsets = [0, 0], sizes = [2, 16], strides = [1, 1]} : vector<2x48xf32> to vector<2x16xf32>
    %469 = arith.addf %467, %468 : vector<2x16xf32>
    %470 = arith.negf %469 : vector<2x16xf32>
    %471 = math.exp %470 : vector<2x16xf32>
    %cst_123 = arith.constant 1.000000e+00 : f32
    %472 = vector.broadcast %cst_123 : f32 to vector<2x16xf32>
    %473 = arith.addf %472, %471 : vector<2x16xf32>
    %474 = arith.divf %472, %473 : vector<2x16xf32>
    %475 = vector.extract_strided_slice %463 {offsets = [0, 16], sizes = [2, 16], strides = [1, 1]} : vector<2x48xf32> to vector<2x16xf32>
    %476 = vector.extract_strided_slice %466 {offsets = [0, 16], sizes = [2, 16], strides = [1, 1]} : vector<2x48xf32> to vector<2x16xf32>
    %477 = arith.addf %475, %476 : vector<2x16xf32>
    %478 = arith.negf %477 : vector<2x16xf32>
    %479 = math.exp %478 : vector<2x16xf32>
    %cst_124 = arith.constant 1.000000e+00 : f32
    %480 = vector.broadcast %cst_124 : f32 to vector<2x16xf32>
    %481 = arith.addf %480, %479 : vector<2x16xf32>
    %482 = arith.divf %480, %481 : vector<2x16xf32>
    %483 = vector.extract_strided_slice %463 {offsets = [0, 32], sizes = [2, 16], strides = [1, 1]} : vector<2x48xf32> to vector<2x16xf32>
    %484 = vector.extract_strided_slice %466 {offsets = [0, 32], sizes = [2, 16], strides = [1, 1]} : vector<2x48xf32> to vector<2x16xf32>
    %485 = arith.mulf %474, %484 : vector<2x16xf32>
    %486 = arith.addf %483, %485 : vector<2x16xf32>
    %487 = math.tanh %486 : vector<2x16xf32>
    %cst_125 = arith.constant 1.000000e+00 : f32
    %488 = vector.broadcast %cst_125 : f32 to vector<2x16xf32>
    %489 = arith.subf %488, %482 : vector<2x16xf32>
    %490 = arith.mulf %489, %487 : vector<2x16xf32>
    %491 = arith.mulf %482, %363 : vector<2x16xf32>
    %492 = arith.addf %490, %491 : vector<2x16xf32>
    %cst_126 = arith.constant dense<0.000000e+00> : vector<2x48xf32>
    %493 = tpu.matmul %492, %20, %cst_126 {dimension_numbers = #tpu.dot_dimension_numbers<[1], [0], [0], [1], [0, 0, 1, 1], [], []>} : vector<2x16xf32>, vector<16x48xf32>, vector<2x48xf32> -> vector<2x48xf32>
    %494 = vector.broadcast %26 : vector<1x48xf32> to vector<2x48xf32>
    %495 = arith.addf %493, %494 : vector<2x48xf32>
    %cst_127 = arith.constant dense<0.000000e+00> : vector<2x48xf32>
    %496 = tpu.matmul %395, %14, %cst_127 {dimension_numbers = #tpu.dot_dimension_numbers<[1], [0], [0], [1], [0, 0, 1, 1], [], []>} : vector<2x16xf32>, vector<16x48xf32>, vector<2x48xf32> -> vector<2x48xf32>
    %497 = vector.broadcast %34 : vector<1x48xf32> to vector<2x48xf32>
    %498 = arith.addf %496, %497 : vector<2x48xf32>
    %499 = vector.extract_strided_slice %495 {offsets = [0, 0], sizes = [2, 16], strides = [1, 1]} : vector<2x48xf32> to vector<2x16xf32>
    %500 = vector.extract_strided_slice %498 {offsets = [0, 0], sizes = [2, 16], strides = [1, 1]} : vector<2x48xf32> to vector<2x16xf32>
    %501 = arith.addf %499, %500 : vector<2x16xf32>
    %502 = arith.negf %501 : vector<2x16xf32>
    %503 = math.exp %502 : vector<2x16xf32>
    %cst_128 = arith.constant 1.000000e+00 : f32
    %504 = vector.broadcast %cst_128 : f32 to vector<2x16xf32>
    %505 = arith.addf %504, %503 : vector<2x16xf32>
    %506 = arith.divf %504, %505 : vector<2x16xf32>
    %507 = vector.extract_strided_slice %495 {offsets = [0, 16], sizes = [2, 16], strides = [1, 1]} : vector<2x48xf32> to vector<2x16xf32>
    %508 = vector.extract_strided_slice %498 {offsets = [0, 16], sizes = [2, 16], strides = [1, 1]} : vector<2x48xf32> to vector<2x16xf32>
    %509 = arith.addf %507, %508 : vector<2x16xf32>
    %510 = arith.negf %509 : vector<2x16xf32>
    %511 = math.exp %510 : vector<2x16xf32>
    %cst_129 = arith.constant 1.000000e+00 : f32
    %512 = vector.broadcast %cst_129 : f32 to vector<2x16xf32>
    %513 = arith.addf %512, %511 : vector<2x16xf32>
    %514 = arith.divf %512, %513 : vector<2x16xf32>
    %515 = vector.extract_strided_slice %495 {offsets = [0, 32], sizes = [2, 16], strides = [1, 1]} : vector<2x48xf32> to vector<2x16xf32>
    %516 = vector.extract_strided_slice %498 {offsets = [0, 32], sizes = [2, 16], strides = [1, 1]} : vector<2x48xf32> to vector<2x16xf32>
    %517 = arith.mulf %506, %516 : vector<2x16xf32>
    %518 = arith.addf %515, %517 : vector<2x16xf32>
    %519 = math.tanh %518 : vector<2x16xf32>
    %cst_130 = arith.constant 1.000000e+00 : f32
    %520 = vector.broadcast %cst_130 : f32 to vector<2x16xf32>
    %521 = arith.subf %520, %514 : vector<2x16xf32>
    %522 = arith.mulf %521, %519 : vector<2x16xf32>
    %523 = arith.mulf %514, %395 : vector<2x16xf32>
    %524 = arith.addf %522, %523 : vector<2x16xf32>
    %cst_131 = arith.constant dense<0.000000e+00> : vector<2x48xf32>
    %525 = tpu.matmul %524, %22, %cst_131 {dimension_numbers = #tpu.dot_dimension_numbers<[1], [0], [0], [1], [0, 0, 1, 1], [], []>} : vector<2x16xf32>, vector<16x48xf32>, vector<2x48xf32> -> vector<2x48xf32>
    %526 = vector.broadcast %28 : vector<1x48xf32> to vector<2x48xf32>
    %527 = arith.addf %525, %526 : vector<2x48xf32>
    %cst_132 = arith.constant dense<0.000000e+00> : vector<2x48xf32>
    %528 = tpu.matmul %427, %16, %cst_132 {dimension_numbers = #tpu.dot_dimension_numbers<[1], [0], [0], [1], [0, 0, 1, 1], [], []>} : vector<2x16xf32>, vector<16x48xf32>, vector<2x48xf32> -> vector<2x48xf32>
    %529 = vector.broadcast %36 : vector<1x48xf32> to vector<2x48xf32>
    %530 = arith.addf %528, %529 : vector<2x48xf32>
    %531 = vector.extract_strided_slice %527 {offsets = [0, 0], sizes = [2, 16], strides = [1, 1]} : vector<2x48xf32> to vector<2x16xf32>
    %532 = vector.extract_strided_slice %530 {offsets = [0, 0], sizes = [2, 16], strides = [1, 1]} : vector<2x48xf32> to vector<2x16xf32>
    %533 = arith.addf %531, %532 : vector<2x16xf32>
    %534 = arith.negf %533 : vector<2x16xf32>
    %535 = math.exp %534 : vector<2x16xf32>
    %cst_133 = arith.constant 1.000000e+00 : f32
    %536 = vector.broadcast %cst_133 : f32 to vector<2x16xf32>
    %537 = arith.addf %536, %535 : vector<2x16xf32>
    %538 = arith.divf %536, %537 : vector<2x16xf32>
    %539 = vector.extract_strided_slice %527 {offsets = [0, 16], sizes = [2, 16], strides = [1, 1]} : vector<2x48xf32> to vector<2x16xf32>
    %540 = vector.extract_strided_slice %530 {offsets = [0, 16], sizes = [2, 16], strides = [1, 1]} : vector<2x48xf32> to vector<2x16xf32>
    %541 = arith.addf %539, %540 : vector<2x16xf32>
    %542 = arith.negf %541 : vector<2x16xf32>
    %543 = math.exp %542 : vector<2x16xf32>
    %cst_134 = arith.constant 1.000000e+00 : f32
    %544 = vector.broadcast %cst_134 : f32 to vector<2x16xf32>
    %545 = arith.addf %544, %543 : vector<2x16xf32>
    %546 = arith.divf %544, %545 : vector<2x16xf32>
    %547 = vector.extract_strided_slice %527 {offsets = [0, 32], sizes = [2, 16], strides = [1, 1]} : vector<2x48xf32> to vector<2x16xf32>
    %548 = vector.extract_strided_slice %530 {offsets = [0, 32], sizes = [2, 16], strides = [1, 1]} : vector<2x48xf32> to vector<2x16xf32>
    %549 = arith.mulf %538, %548 : vector<2x16xf32>
    %550 = arith.addf %547, %549 : vector<2x16xf32>
    %551 = math.tanh %550 : vector<2x16xf32>
    %cst_135 = arith.constant 1.000000e+00 : f32
    %552 = vector.broadcast %cst_135 : f32 to vector<2x16xf32>
    %553 = arith.subf %552, %546 : vector<2x16xf32>
    %554 = arith.mulf %553, %551 : vector<2x16xf32>
    %555 = arith.mulf %546, %427 : vector<2x16xf32>
    %556 = arith.addf %554, %555 : vector<2x16xf32>
    %c4_i32 = arith.constant 4 : i32
    %c2_i32_136 = arith.constant 2 : i32
    %557 = arith.muli %c4_i32, %c2_i32_136 : i32
    %558 = tpu.assume_multiple %557, 2 : i32
    %559 = arith.index_cast %558 : i32 to index
    %c0_137 = arith.constant 0 : index
    %560 = vector.load %arg8[%559, %c0_137] : memref<16x48xf32, #tpu.memory_space<vmem>>, vector<2x48xf32>
    %cst_138 = arith.constant dense<0.000000e+00> : vector<2x48xf32>
    %561 = tpu.matmul %460, %10, %cst_138 {dimension_numbers = #tpu.dot_dimension_numbers<[1], [0], [0], [1], [0, 0, 1, 1], [], []>} : vector<2x16xf32>, vector<16x48xf32>, vector<2x48xf32> -> vector<2x48xf32>
    %562 = vector.broadcast %30 : vector<1x48xf32> to vector<2x48xf32>
    %563 = arith.addf %561, %562 : vector<2x48xf32>
    %564 = vector.extract_strided_slice %560 {offsets = [0, 0], sizes = [2, 16], strides = [1, 1]} : vector<2x48xf32> to vector<2x16xf32>
    %565 = vector.extract_strided_slice %563 {offsets = [0, 0], sizes = [2, 16], strides = [1, 1]} : vector<2x48xf32> to vector<2x16xf32>
    %566 = arith.addf %564, %565 : vector<2x16xf32>
    %567 = arith.negf %566 : vector<2x16xf32>
    %568 = math.exp %567 : vector<2x16xf32>
    %cst_139 = arith.constant 1.000000e+00 : f32
    %569 = vector.broadcast %cst_139 : f32 to vector<2x16xf32>
    %570 = arith.addf %569, %568 : vector<2x16xf32>
    %571 = arith.divf %569, %570 : vector<2x16xf32>
    %572 = vector.extract_strided_slice %560 {offsets = [0, 16], sizes = [2, 16], strides = [1, 1]} : vector<2x48xf32> to vector<2x16xf32>
    %573 = vector.extract_strided_slice %563 {offsets = [0, 16], sizes = [2, 16], strides = [1, 1]} : vector<2x48xf32> to vector<2x16xf32>
    %574 = arith.addf %572, %573 : vector<2x16xf32>
    %575 = arith.negf %574 : vector<2x16xf32>
    %576 = math.exp %575 : vector<2x16xf32>
    %cst_140 = arith.constant 1.000000e+00 : f32
    %577 = vector.broadcast %cst_140 : f32 to vector<2x16xf32>
    %578 = arith.addf %577, %576 : vector<2x16xf32>
    %579 = arith.divf %577, %578 : vector<2x16xf32>
    %580 = vector.extract_strided_slice %560 {offsets = [0, 32], sizes = [2, 16], strides = [1, 1]} : vector<2x48xf32> to vector<2x16xf32>
    %581 = vector.extract_strided_slice %563 {offsets = [0, 32], sizes = [2, 16], strides = [1, 1]} : vector<2x48xf32> to vector<2x16xf32>
    %582 = arith.mulf %571, %581 : vector<2x16xf32>
    %583 = arith.addf %580, %582 : vector<2x16xf32>
    %584 = math.tanh %583 : vector<2x16xf32>
    %cst_141 = arith.constant 1.000000e+00 : f32
    %585 = vector.broadcast %cst_141 : f32 to vector<2x16xf32>
    %586 = arith.subf %585, %579 : vector<2x16xf32>
    %587 = arith.mulf %586, %584 : vector<2x16xf32>
    %588 = arith.mulf %579, %460 : vector<2x16xf32>
    %589 = arith.addf %587, %588 : vector<2x16xf32>
    %cst_142 = arith.constant dense<0.000000e+00> : vector<2x48xf32>
    %590 = tpu.matmul %589, %18, %cst_142 {dimension_numbers = #tpu.dot_dimension_numbers<[1], [0], [0], [1], [0, 0, 1, 1], [], []>} : vector<2x16xf32>, vector<16x48xf32>, vector<2x48xf32> -> vector<2x48xf32>
    %591 = vector.broadcast %24 : vector<1x48xf32> to vector<2x48xf32>
    %592 = arith.addf %590, %591 : vector<2x48xf32>
    %cst_143 = arith.constant dense<0.000000e+00> : vector<2x48xf32>
    %593 = tpu.matmul %492, %12, %cst_143 {dimension_numbers = #tpu.dot_dimension_numbers<[1], [0], [0], [1], [0, 0, 1, 1], [], []>} : vector<2x16xf32>, vector<16x48xf32>, vector<2x48xf32> -> vector<2x48xf32>
    %594 = vector.broadcast %32 : vector<1x48xf32> to vector<2x48xf32>
    %595 = arith.addf %593, %594 : vector<2x48xf32>
    %596 = vector.extract_strided_slice %592 {offsets = [0, 0], sizes = [2, 16], strides = [1, 1]} : vector<2x48xf32> to vector<2x16xf32>
    %597 = vector.extract_strided_slice %595 {offsets = [0, 0], sizes = [2, 16], strides = [1, 1]} : vector<2x48xf32> to vector<2x16xf32>
    %598 = arith.addf %596, %597 : vector<2x16xf32>
    %599 = arith.negf %598 : vector<2x16xf32>
    %600 = math.exp %599 : vector<2x16xf32>
    %cst_144 = arith.constant 1.000000e+00 : f32
    %601 = vector.broadcast %cst_144 : f32 to vector<2x16xf32>
    %602 = arith.addf %601, %600 : vector<2x16xf32>
    %603 = arith.divf %601, %602 : vector<2x16xf32>
    %604 = vector.extract_strided_slice %592 {offsets = [0, 16], sizes = [2, 16], strides = [1, 1]} : vector<2x48xf32> to vector<2x16xf32>
    %605 = vector.extract_strided_slice %595 {offsets = [0, 16], sizes = [2, 16], strides = [1, 1]} : vector<2x48xf32> to vector<2x16xf32>
    %606 = arith.addf %604, %605 : vector<2x16xf32>
    %607 = arith.negf %606 : vector<2x16xf32>
    %608 = math.exp %607 : vector<2x16xf32>
    %cst_145 = arith.constant 1.000000e+00 : f32
    %609 = vector.broadcast %cst_145 : f32 to vector<2x16xf32>
    %610 = arith.addf %609, %608 : vector<2x16xf32>
    %611 = arith.divf %609, %610 : vector<2x16xf32>
    %612 = vector.extract_strided_slice %592 {offsets = [0, 32], sizes = [2, 16], strides = [1, 1]} : vector<2x48xf32> to vector<2x16xf32>
    %613 = vector.extract_strided_slice %595 {offsets = [0, 32], sizes = [2, 16], strides = [1, 1]} : vector<2x48xf32> to vector<2x16xf32>
    %614 = arith.mulf %603, %613 : vector<2x16xf32>
    %615 = arith.addf %612, %614 : vector<2x16xf32>
    %616 = math.tanh %615 : vector<2x16xf32>
    %cst_146 = arith.constant 1.000000e+00 : f32
    %617 = vector.broadcast %cst_146 : f32 to vector<2x16xf32>
    %618 = arith.subf %617, %611 : vector<2x16xf32>
    %619 = arith.mulf %618, %616 : vector<2x16xf32>
    %620 = arith.mulf %611, %492 : vector<2x16xf32>
    %621 = arith.addf %619, %620 : vector<2x16xf32>
    %cst_147 = arith.constant dense<0.000000e+00> : vector<2x48xf32>
    %622 = tpu.matmul %621, %20, %cst_147 {dimension_numbers = #tpu.dot_dimension_numbers<[1], [0], [0], [1], [0, 0, 1, 1], [], []>} : vector<2x16xf32>, vector<16x48xf32>, vector<2x48xf32> -> vector<2x48xf32>
    %623 = vector.broadcast %26 : vector<1x48xf32> to vector<2x48xf32>
    %624 = arith.addf %622, %623 : vector<2x48xf32>
    %cst_148 = arith.constant dense<0.000000e+00> : vector<2x48xf32>
    %625 = tpu.matmul %524, %14, %cst_148 {dimension_numbers = #tpu.dot_dimension_numbers<[1], [0], [0], [1], [0, 0, 1, 1], [], []>} : vector<2x16xf32>, vector<16x48xf32>, vector<2x48xf32> -> vector<2x48xf32>
    %626 = vector.broadcast %34 : vector<1x48xf32> to vector<2x48xf32>
    %627 = arith.addf %625, %626 : vector<2x48xf32>
    %628 = vector.extract_strided_slice %624 {offsets = [0, 0], sizes = [2, 16], strides = [1, 1]} : vector<2x48xf32> to vector<2x16xf32>
    %629 = vector.extract_strided_slice %627 {offsets = [0, 0], sizes = [2, 16], strides = [1, 1]} : vector<2x48xf32> to vector<2x16xf32>
    %630 = arith.addf %628, %629 : vector<2x16xf32>
    %631 = arith.negf %630 : vector<2x16xf32>
    %632 = math.exp %631 : vector<2x16xf32>
    %cst_149 = arith.constant 1.000000e+00 : f32
    %633 = vector.broadcast %cst_149 : f32 to vector<2x16xf32>
    %634 = arith.addf %633, %632 : vector<2x16xf32>
    %635 = arith.divf %633, %634 : vector<2x16xf32>
    %636 = vector.extract_strided_slice %624 {offsets = [0, 16], sizes = [2, 16], strides = [1, 1]} : vector<2x48xf32> to vector<2x16xf32>
    %637 = vector.extract_strided_slice %627 {offsets = [0, 16], sizes = [2, 16], strides = [1, 1]} : vector<2x48xf32> to vector<2x16xf32>
    %638 = arith.addf %636, %637 : vector<2x16xf32>
    %639 = arith.negf %638 : vector<2x16xf32>
    %640 = math.exp %639 : vector<2x16xf32>
    %cst_150 = arith.constant 1.000000e+00 : f32
    %641 = vector.broadcast %cst_150 : f32 to vector<2x16xf32>
    %642 = arith.addf %641, %640 : vector<2x16xf32>
    %643 = arith.divf %641, %642 : vector<2x16xf32>
    %644 = vector.extract_strided_slice %624 {offsets = [0, 32], sizes = [2, 16], strides = [1, 1]} : vector<2x48xf32> to vector<2x16xf32>
    %645 = vector.extract_strided_slice %627 {offsets = [0, 32], sizes = [2, 16], strides = [1, 1]} : vector<2x48xf32> to vector<2x16xf32>
    %646 = arith.mulf %635, %645 : vector<2x16xf32>
    %647 = arith.addf %644, %646 : vector<2x16xf32>
    %648 = math.tanh %647 : vector<2x16xf32>
    %cst_151 = arith.constant 1.000000e+00 : f32
    %649 = vector.broadcast %cst_151 : f32 to vector<2x16xf32>
    %650 = arith.subf %649, %643 : vector<2x16xf32>
    %651 = arith.mulf %650, %648 : vector<2x16xf32>
    %652 = arith.mulf %643, %524 : vector<2x16xf32>
    %653 = arith.addf %651, %652 : vector<2x16xf32>
    %cst_152 = arith.constant dense<0.000000e+00> : vector<2x48xf32>
    %654 = tpu.matmul %653, %22, %cst_152 {dimension_numbers = #tpu.dot_dimension_numbers<[1], [0], [0], [1], [0, 0, 1, 1], [], []>} : vector<2x16xf32>, vector<16x48xf32>, vector<2x48xf32> -> vector<2x48xf32>
    %655 = vector.broadcast %28 : vector<1x48xf32> to vector<2x48xf32>
    %656 = arith.addf %654, %655 : vector<2x48xf32>
    %cst_153 = arith.constant dense<0.000000e+00> : vector<2x48xf32>
    %657 = tpu.matmul %556, %16, %cst_153 {dimension_numbers = #tpu.dot_dimension_numbers<[1], [0], [0], [1], [0, 0, 1, 1], [], []>} : vector<2x16xf32>, vector<16x48xf32>, vector<2x48xf32> -> vector<2x48xf32>
    %658 = vector.broadcast %36 : vector<1x48xf32> to vector<2x48xf32>
    %659 = arith.addf %657, %658 : vector<2x48xf32>
    %660 = vector.extract_strided_slice %656 {offsets = [0, 0], sizes = [2, 16], strides = [1, 1]} : vector<2x48xf32> to vector<2x16xf32>
    %661 = vector.extract_strided_slice %659 {offsets = [0, 0], sizes = [2, 16], strides = [1, 1]} : vector<2x48xf32> to vector<2x16xf32>
    %662 = arith.addf %660, %661 : vector<2x16xf32>
    %663 = arith.negf %662 : vector<2x16xf32>
    %664 = math.exp %663 : vector<2x16xf32>
    %cst_154 = arith.constant 1.000000e+00 : f32
    %665 = vector.broadcast %cst_154 : f32 to vector<2x16xf32>
    %666 = arith.addf %665, %664 : vector<2x16xf32>
    %667 = arith.divf %665, %666 : vector<2x16xf32>
    %668 = vector.extract_strided_slice %656 {offsets = [0, 16], sizes = [2, 16], strides = [1, 1]} : vector<2x48xf32> to vector<2x16xf32>
    %669 = vector.extract_strided_slice %659 {offsets = [0, 16], sizes = [2, 16], strides = [1, 1]} : vector<2x48xf32> to vector<2x16xf32>
    %670 = arith.addf %668, %669 : vector<2x16xf32>
    %671 = arith.negf %670 : vector<2x16xf32>
    %672 = math.exp %671 : vector<2x16xf32>
    %cst_155 = arith.constant 1.000000e+00 : f32
    %673 = vector.broadcast %cst_155 : f32 to vector<2x16xf32>
    %674 = arith.addf %673, %672 : vector<2x16xf32>
    %675 = arith.divf %673, %674 : vector<2x16xf32>
    %676 = vector.extract_strided_slice %656 {offsets = [0, 32], sizes = [2, 16], strides = [1, 1]} : vector<2x48xf32> to vector<2x16xf32>
    %677 = vector.extract_strided_slice %659 {offsets = [0, 32], sizes = [2, 16], strides = [1, 1]} : vector<2x48xf32> to vector<2x16xf32>
    %678 = arith.mulf %667, %677 : vector<2x16xf32>
    %679 = arith.addf %676, %678 : vector<2x16xf32>
    %680 = math.tanh %679 : vector<2x16xf32>
    %cst_156 = arith.constant 1.000000e+00 : f32
    %681 = vector.broadcast %cst_156 : f32 to vector<2x16xf32>
    %682 = arith.subf %681, %675 : vector<2x16xf32>
    %683 = arith.mulf %682, %680 : vector<2x16xf32>
    %684 = arith.mulf %675, %556 : vector<2x16xf32>
    %685 = arith.addf %683, %684 : vector<2x16xf32>
    %c5_i32 = arith.constant 5 : i32
    %c2_i32_157 = arith.constant 2 : i32
    %686 = arith.muli %c5_i32, %c2_i32_157 : i32
    %687 = tpu.assume_multiple %686, 2 : i32
    %688 = arith.index_cast %687 : i32 to index
    %c0_158 = arith.constant 0 : index
    %689 = vector.load %arg8[%688, %c0_158] : memref<16x48xf32, #tpu.memory_space<vmem>>, vector<2x48xf32>
    %cst_159 = arith.constant dense<0.000000e+00> : vector<2x48xf32>
    %690 = tpu.matmul %589, %10, %cst_159 {dimension_numbers = #tpu.dot_dimension_numbers<[1], [0], [0], [1], [0, 0, 1, 1], [], []>} : vector<2x16xf32>, vector<16x48xf32>, vector<2x48xf32> -> vector<2x48xf32>
    %691 = vector.broadcast %30 : vector<1x48xf32> to vector<2x48xf32>
    %692 = arith.addf %690, %691 : vector<2x48xf32>
    %693 = vector.extract_strided_slice %689 {offsets = [0, 0], sizes = [2, 16], strides = [1, 1]} : vector<2x48xf32> to vector<2x16xf32>
    %694 = vector.extract_strided_slice %692 {offsets = [0, 0], sizes = [2, 16], strides = [1, 1]} : vector<2x48xf32> to vector<2x16xf32>
    %695 = arith.addf %693, %694 : vector<2x16xf32>
    %696 = arith.negf %695 : vector<2x16xf32>
    %697 = math.exp %696 : vector<2x16xf32>
    %cst_160 = arith.constant 1.000000e+00 : f32
    %698 = vector.broadcast %cst_160 : f32 to vector<2x16xf32>
    %699 = arith.addf %698, %697 : vector<2x16xf32>
    %700 = arith.divf %698, %699 : vector<2x16xf32>
    %701 = vector.extract_strided_slice %689 {offsets = [0, 16], sizes = [2, 16], strides = [1, 1]} : vector<2x48xf32> to vector<2x16xf32>
    %702 = vector.extract_strided_slice %692 {offsets = [0, 16], sizes = [2, 16], strides = [1, 1]} : vector<2x48xf32> to vector<2x16xf32>
    %703 = arith.addf %701, %702 : vector<2x16xf32>
    %704 = arith.negf %703 : vector<2x16xf32>
    %705 = math.exp %704 : vector<2x16xf32>
    %cst_161 = arith.constant 1.000000e+00 : f32
    %706 = vector.broadcast %cst_161 : f32 to vector<2x16xf32>
    %707 = arith.addf %706, %705 : vector<2x16xf32>
    %708 = arith.divf %706, %707 : vector<2x16xf32>
    %709 = vector.extract_strided_slice %689 {offsets = [0, 32], sizes = [2, 16], strides = [1, 1]} : vector<2x48xf32> to vector<2x16xf32>
    %710 = vector.extract_strided_slice %692 {offsets = [0, 32], sizes = [2, 16], strides = [1, 1]} : vector<2x48xf32> to vector<2x16xf32>
    %711 = arith.mulf %700, %710 : vector<2x16xf32>
    %712 = arith.addf %709, %711 : vector<2x16xf32>
    %713 = math.tanh %712 : vector<2x16xf32>
    %cst_162 = arith.constant 1.000000e+00 : f32
    %714 = vector.broadcast %cst_162 : f32 to vector<2x16xf32>
    %715 = arith.subf %714, %708 : vector<2x16xf32>
    %716 = arith.mulf %715, %713 : vector<2x16xf32>
    %717 = arith.mulf %708, %589 : vector<2x16xf32>
    %718 = arith.addf %716, %717 : vector<2x16xf32>
    %cst_163 = arith.constant dense<0.000000e+00> : vector<2x48xf32>
    %719 = tpu.matmul %718, %18, %cst_163 {dimension_numbers = #tpu.dot_dimension_numbers<[1], [0], [0], [1], [0, 0, 1, 1], [], []>} : vector<2x16xf32>, vector<16x48xf32>, vector<2x48xf32> -> vector<2x48xf32>
    %720 = vector.broadcast %24 : vector<1x48xf32> to vector<2x48xf32>
    %721 = arith.addf %719, %720 : vector<2x48xf32>
    %cst_164 = arith.constant dense<0.000000e+00> : vector<2x48xf32>
    %722 = tpu.matmul %621, %12, %cst_164 {dimension_numbers = #tpu.dot_dimension_numbers<[1], [0], [0], [1], [0, 0, 1, 1], [], []>} : vector<2x16xf32>, vector<16x48xf32>, vector<2x48xf32> -> vector<2x48xf32>
    %723 = vector.broadcast %32 : vector<1x48xf32> to vector<2x48xf32>
    %724 = arith.addf %722, %723 : vector<2x48xf32>
    %725 = vector.extract_strided_slice %721 {offsets = [0, 0], sizes = [2, 16], strides = [1, 1]} : vector<2x48xf32> to vector<2x16xf32>
    %726 = vector.extract_strided_slice %724 {offsets = [0, 0], sizes = [2, 16], strides = [1, 1]} : vector<2x48xf32> to vector<2x16xf32>
    %727 = arith.addf %725, %726 : vector<2x16xf32>
    %728 = arith.negf %727 : vector<2x16xf32>
    %729 = math.exp %728 : vector<2x16xf32>
    %cst_165 = arith.constant 1.000000e+00 : f32
    %730 = vector.broadcast %cst_165 : f32 to vector<2x16xf32>
    %731 = arith.addf %730, %729 : vector<2x16xf32>
    %732 = arith.divf %730, %731 : vector<2x16xf32>
    %733 = vector.extract_strided_slice %721 {offsets = [0, 16], sizes = [2, 16], strides = [1, 1]} : vector<2x48xf32> to vector<2x16xf32>
    %734 = vector.extract_strided_slice %724 {offsets = [0, 16], sizes = [2, 16], strides = [1, 1]} : vector<2x48xf32> to vector<2x16xf32>
    %735 = arith.addf %733, %734 : vector<2x16xf32>
    %736 = arith.negf %735 : vector<2x16xf32>
    %737 = math.exp %736 : vector<2x16xf32>
    %cst_166 = arith.constant 1.000000e+00 : f32
    %738 = vector.broadcast %cst_166 : f32 to vector<2x16xf32>
    %739 = arith.addf %738, %737 : vector<2x16xf32>
    %740 = arith.divf %738, %739 : vector<2x16xf32>
    %741 = vector.extract_strided_slice %721 {offsets = [0, 32], sizes = [2, 16], strides = [1, 1]} : vector<2x48xf32> to vector<2x16xf32>
    %742 = vector.extract_strided_slice %724 {offsets = [0, 32], sizes = [2, 16], strides = [1, 1]} : vector<2x48xf32> to vector<2x16xf32>
    %743 = arith.mulf %732, %742 : vector<2x16xf32>
    %744 = arith.addf %741, %743 : vector<2x16xf32>
    %745 = math.tanh %744 : vector<2x16xf32>
    %cst_167 = arith.constant 1.000000e+00 : f32
    %746 = vector.broadcast %cst_167 : f32 to vector<2x16xf32>
    %747 = arith.subf %746, %740 : vector<2x16xf32>
    %748 = arith.mulf %747, %745 : vector<2x16xf32>
    %749 = arith.mulf %740, %621 : vector<2x16xf32>
    %750 = arith.addf %748, %749 : vector<2x16xf32>
    %cst_168 = arith.constant dense<0.000000e+00> : vector<2x48xf32>
    %751 = tpu.matmul %750, %20, %cst_168 {dimension_numbers = #tpu.dot_dimension_numbers<[1], [0], [0], [1], [0, 0, 1, 1], [], []>} : vector<2x16xf32>, vector<16x48xf32>, vector<2x48xf32> -> vector<2x48xf32>
    %752 = vector.broadcast %26 : vector<1x48xf32> to vector<2x48xf32>
    %753 = arith.addf %751, %752 : vector<2x48xf32>
    %cst_169 = arith.constant dense<0.000000e+00> : vector<2x48xf32>
    %754 = tpu.matmul %653, %14, %cst_169 {dimension_numbers = #tpu.dot_dimension_numbers<[1], [0], [0], [1], [0, 0, 1, 1], [], []>} : vector<2x16xf32>, vector<16x48xf32>, vector<2x48xf32> -> vector<2x48xf32>
    %755 = vector.broadcast %34 : vector<1x48xf32> to vector<2x48xf32>
    %756 = arith.addf %754, %755 : vector<2x48xf32>
    %757 = vector.extract_strided_slice %753 {offsets = [0, 0], sizes = [2, 16], strides = [1, 1]} : vector<2x48xf32> to vector<2x16xf32>
    %758 = vector.extract_strided_slice %756 {offsets = [0, 0], sizes = [2, 16], strides = [1, 1]} : vector<2x48xf32> to vector<2x16xf32>
    %759 = arith.addf %757, %758 : vector<2x16xf32>
    %760 = arith.negf %759 : vector<2x16xf32>
    %761 = math.exp %760 : vector<2x16xf32>
    %cst_170 = arith.constant 1.000000e+00 : f32
    %762 = vector.broadcast %cst_170 : f32 to vector<2x16xf32>
    %763 = arith.addf %762, %761 : vector<2x16xf32>
    %764 = arith.divf %762, %763 : vector<2x16xf32>
    %765 = vector.extract_strided_slice %753 {offsets = [0, 16], sizes = [2, 16], strides = [1, 1]} : vector<2x48xf32> to vector<2x16xf32>
    %766 = vector.extract_strided_slice %756 {offsets = [0, 16], sizes = [2, 16], strides = [1, 1]} : vector<2x48xf32> to vector<2x16xf32>
    %767 = arith.addf %765, %766 : vector<2x16xf32>
    %768 = arith.negf %767 : vector<2x16xf32>
    %769 = math.exp %768 : vector<2x16xf32>
    %cst_171 = arith.constant 1.000000e+00 : f32
    %770 = vector.broadcast %cst_171 : f32 to vector<2x16xf32>
    %771 = arith.addf %770, %769 : vector<2x16xf32>
    %772 = arith.divf %770, %771 : vector<2x16xf32>
    %773 = vector.extract_strided_slice %753 {offsets = [0, 32], sizes = [2, 16], strides = [1, 1]} : vector<2x48xf32> to vector<2x16xf32>
    %774 = vector.extract_strided_slice %756 {offsets = [0, 32], sizes = [2, 16], strides = [1, 1]} : vector<2x48xf32> to vector<2x16xf32>
    %775 = arith.mulf %764, %774 : vector<2x16xf32>
    %776 = arith.addf %773, %775 : vector<2x16xf32>
    %777 = math.tanh %776 : vector<2x16xf32>
    %cst_172 = arith.constant 1.000000e+00 : f32
    %778 = vector.broadcast %cst_172 : f32 to vector<2x16xf32>
    %779 = arith.subf %778, %772 : vector<2x16xf32>
    %780 = arith.mulf %779, %777 : vector<2x16xf32>
    %781 = arith.mulf %772, %653 : vector<2x16xf32>
    %782 = arith.addf %780, %781 : vector<2x16xf32>
    %cst_173 = arith.constant dense<0.000000e+00> : vector<2x48xf32>
    %783 = tpu.matmul %782, %22, %cst_173 {dimension_numbers = #tpu.dot_dimension_numbers<[1], [0], [0], [1], [0, 0, 1, 1], [], []>} : vector<2x16xf32>, vector<16x48xf32>, vector<2x48xf32> -> vector<2x48xf32>
    %784 = vector.broadcast %28 : vector<1x48xf32> to vector<2x48xf32>
    %785 = arith.addf %783, %784 : vector<2x48xf32>
    %cst_174 = arith.constant dense<0.000000e+00> : vector<2x48xf32>
    %786 = tpu.matmul %685, %16, %cst_174 {dimension_numbers = #tpu.dot_dimension_numbers<[1], [0], [0], [1], [0, 0, 1, 1], [], []>} : vector<2x16xf32>, vector<16x48xf32>, vector<2x48xf32> -> vector<2x48xf32>
    %787 = vector.broadcast %36 : vector<1x48xf32> to vector<2x48xf32>
    %788 = arith.addf %786, %787 : vector<2x48xf32>
    %789 = vector.extract_strided_slice %785 {offsets = [0, 0], sizes = [2, 16], strides = [1, 1]} : vector<2x48xf32> to vector<2x16xf32>
    %790 = vector.extract_strided_slice %788 {offsets = [0, 0], sizes = [2, 16], strides = [1, 1]} : vector<2x48xf32> to vector<2x16xf32>
    %791 = arith.addf %789, %790 : vector<2x16xf32>
    %792 = arith.negf %791 : vector<2x16xf32>
    %793 = math.exp %792 : vector<2x16xf32>
    %cst_175 = arith.constant 1.000000e+00 : f32
    %794 = vector.broadcast %cst_175 : f32 to vector<2x16xf32>
    %795 = arith.addf %794, %793 : vector<2x16xf32>
    %796 = arith.divf %794, %795 : vector<2x16xf32>
    %797 = vector.extract_strided_slice %785 {offsets = [0, 16], sizes = [2, 16], strides = [1, 1]} : vector<2x48xf32> to vector<2x16xf32>
    %798 = vector.extract_strided_slice %788 {offsets = [0, 16], sizes = [2, 16], strides = [1, 1]} : vector<2x48xf32> to vector<2x16xf32>
    %799 = arith.addf %797, %798 : vector<2x16xf32>
    %800 = arith.negf %799 : vector<2x16xf32>
    %801 = math.exp %800 : vector<2x16xf32>
    %cst_176 = arith.constant 1.000000e+00 : f32
    %802 = vector.broadcast %cst_176 : f32 to vector<2x16xf32>
    %803 = arith.addf %802, %801 : vector<2x16xf32>
    %804 = arith.divf %802, %803 : vector<2x16xf32>
    %805 = vector.extract_strided_slice %785 {offsets = [0, 32], sizes = [2, 16], strides = [1, 1]} : vector<2x48xf32> to vector<2x16xf32>
    %806 = vector.extract_strided_slice %788 {offsets = [0, 32], sizes = [2, 16], strides = [1, 1]} : vector<2x48xf32> to vector<2x16xf32>
    %807 = arith.mulf %796, %806 : vector<2x16xf32>
    %808 = arith.addf %805, %807 : vector<2x16xf32>
    %809 = math.tanh %808 : vector<2x16xf32>
    %cst_177 = arith.constant 1.000000e+00 : f32
    %810 = vector.broadcast %cst_177 : f32 to vector<2x16xf32>
    %811 = arith.subf %810, %804 : vector<2x16xf32>
    %812 = arith.mulf %811, %809 : vector<2x16xf32>
    %813 = arith.mulf %804, %685 : vector<2x16xf32>
    %814 = arith.addf %812, %813 : vector<2x16xf32>
    %c6_i32 = arith.constant 6 : i32
    %c2_i32_178 = arith.constant 2 : i32
    %815 = arith.muli %c6_i32, %c2_i32_178 : i32
    %816 = tpu.assume_multiple %815, 2 : i32
    %817 = arith.index_cast %816 : i32 to index
    %c0_179 = arith.constant 0 : index
    %818 = vector.load %arg8[%817, %c0_179] : memref<16x48xf32, #tpu.memory_space<vmem>>, vector<2x48xf32>
    %cst_180 = arith.constant dense<0.000000e+00> : vector<2x48xf32>
    %819 = tpu.matmul %718, %10, %cst_180 {dimension_numbers = #tpu.dot_dimension_numbers<[1], [0], [0], [1], [0, 0, 1, 1], [], []>} : vector<2x16xf32>, vector<16x48xf32>, vector<2x48xf32> -> vector<2x48xf32>
    %820 = vector.broadcast %30 : vector<1x48xf32> to vector<2x48xf32>
    %821 = arith.addf %819, %820 : vector<2x48xf32>
    %822 = vector.extract_strided_slice %818 {offsets = [0, 0], sizes = [2, 16], strides = [1, 1]} : vector<2x48xf32> to vector<2x16xf32>
    %823 = vector.extract_strided_slice %821 {offsets = [0, 0], sizes = [2, 16], strides = [1, 1]} : vector<2x48xf32> to vector<2x16xf32>
    %824 = arith.addf %822, %823 : vector<2x16xf32>
    %825 = arith.negf %824 : vector<2x16xf32>
    %826 = math.exp %825 : vector<2x16xf32>
    %cst_181 = arith.constant 1.000000e+00 : f32
    %827 = vector.broadcast %cst_181 : f32 to vector<2x16xf32>
    %828 = arith.addf %827, %826 : vector<2x16xf32>
    %829 = arith.divf %827, %828 : vector<2x16xf32>
    %830 = vector.extract_strided_slice %818 {offsets = [0, 16], sizes = [2, 16], strides = [1, 1]} : vector<2x48xf32> to vector<2x16xf32>
    %831 = vector.extract_strided_slice %821 {offsets = [0, 16], sizes = [2, 16], strides = [1, 1]} : vector<2x48xf32> to vector<2x16xf32>
    %832 = arith.addf %830, %831 : vector<2x16xf32>
    %833 = arith.negf %832 : vector<2x16xf32>
    %834 = math.exp %833 : vector<2x16xf32>
    %cst_182 = arith.constant 1.000000e+00 : f32
    %835 = vector.broadcast %cst_182 : f32 to vector<2x16xf32>
    %836 = arith.addf %835, %834 : vector<2x16xf32>
    %837 = arith.divf %835, %836 : vector<2x16xf32>
    %838 = vector.extract_strided_slice %818 {offsets = [0, 32], sizes = [2, 16], strides = [1, 1]} : vector<2x48xf32> to vector<2x16xf32>
    %839 = vector.extract_strided_slice %821 {offsets = [0, 32], sizes = [2, 16], strides = [1, 1]} : vector<2x48xf32> to vector<2x16xf32>
    %840 = arith.mulf %829, %839 : vector<2x16xf32>
    %841 = arith.addf %838, %840 : vector<2x16xf32>
    %842 = math.tanh %841 : vector<2x16xf32>
    %cst_183 = arith.constant 1.000000e+00 : f32
    %843 = vector.broadcast %cst_183 : f32 to vector<2x16xf32>
    %844 = arith.subf %843, %837 : vector<2x16xf32>
    %845 = arith.mulf %844, %842 : vector<2x16xf32>
    %846 = arith.mulf %837, %718 : vector<2x16xf32>
    %847 = arith.addf %845, %846 : vector<2x16xf32>
    %cst_184 = arith.constant dense<0.000000e+00> : vector<2x48xf32>
    %848 = tpu.matmul %847, %18, %cst_184 {dimension_numbers = #tpu.dot_dimension_numbers<[1], [0], [0], [1], [0, 0, 1, 1], [], []>} : vector<2x16xf32>, vector<16x48xf32>, vector<2x48xf32> -> vector<2x48xf32>
    %849 = vector.broadcast %24 : vector<1x48xf32> to vector<2x48xf32>
    %850 = arith.addf %848, %849 : vector<2x48xf32>
    %cst_185 = arith.constant dense<0.000000e+00> : vector<2x48xf32>
    %851 = tpu.matmul %750, %12, %cst_185 {dimension_numbers = #tpu.dot_dimension_numbers<[1], [0], [0], [1], [0, 0, 1, 1], [], []>} : vector<2x16xf32>, vector<16x48xf32>, vector<2x48xf32> -> vector<2x48xf32>
    %852 = vector.broadcast %32 : vector<1x48xf32> to vector<2x48xf32>
    %853 = arith.addf %851, %852 : vector<2x48xf32>
    %854 = vector.extract_strided_slice %850 {offsets = [0, 0], sizes = [2, 16], strides = [1, 1]} : vector<2x48xf32> to vector<2x16xf32>
    %855 = vector.extract_strided_slice %853 {offsets = [0, 0], sizes = [2, 16], strides = [1, 1]} : vector<2x48xf32> to vector<2x16xf32>
    %856 = arith.addf %854, %855 : vector<2x16xf32>
    %857 = arith.negf %856 : vector<2x16xf32>
    %858 = math.exp %857 : vector<2x16xf32>
    %cst_186 = arith.constant 1.000000e+00 : f32
    %859 = vector.broadcast %cst_186 : f32 to vector<2x16xf32>
    %860 = arith.addf %859, %858 : vector<2x16xf32>
    %861 = arith.divf %859, %860 : vector<2x16xf32>
    %862 = vector.extract_strided_slice %850 {offsets = [0, 16], sizes = [2, 16], strides = [1, 1]} : vector<2x48xf32> to vector<2x16xf32>
    %863 = vector.extract_strided_slice %853 {offsets = [0, 16], sizes = [2, 16], strides = [1, 1]} : vector<2x48xf32> to vector<2x16xf32>
    %864 = arith.addf %862, %863 : vector<2x16xf32>
    %865 = arith.negf %864 : vector<2x16xf32>
    %866 = math.exp %865 : vector<2x16xf32>
    %cst_187 = arith.constant 1.000000e+00 : f32
    %867 = vector.broadcast %cst_187 : f32 to vector<2x16xf32>
    %868 = arith.addf %867, %866 : vector<2x16xf32>
    %869 = arith.divf %867, %868 : vector<2x16xf32>
    %870 = vector.extract_strided_slice %850 {offsets = [0, 32], sizes = [2, 16], strides = [1, 1]} : vector<2x48xf32> to vector<2x16xf32>
    %871 = vector.extract_strided_slice %853 {offsets = [0, 32], sizes = [2, 16], strides = [1, 1]} : vector<2x48xf32> to vector<2x16xf32>
    %872 = arith.mulf %861, %871 : vector<2x16xf32>
    %873 = arith.addf %870, %872 : vector<2x16xf32>
    %874 = math.tanh %873 : vector<2x16xf32>
    %cst_188 = arith.constant 1.000000e+00 : f32
    %875 = vector.broadcast %cst_188 : f32 to vector<2x16xf32>
    %876 = arith.subf %875, %869 : vector<2x16xf32>
    %877 = arith.mulf %876, %874 : vector<2x16xf32>
    %878 = arith.mulf %869, %750 : vector<2x16xf32>
    %879 = arith.addf %877, %878 : vector<2x16xf32>
    %cst_189 = arith.constant dense<0.000000e+00> : vector<2x48xf32>
    %880 = tpu.matmul %879, %20, %cst_189 {dimension_numbers = #tpu.dot_dimension_numbers<[1], [0], [0], [1], [0, 0, 1, 1], [], []>} : vector<2x16xf32>, vector<16x48xf32>, vector<2x48xf32> -> vector<2x48xf32>
    %881 = vector.broadcast %26 : vector<1x48xf32> to vector<2x48xf32>
    %882 = arith.addf %880, %881 : vector<2x48xf32>
    %cst_190 = arith.constant dense<0.000000e+00> : vector<2x48xf32>
    %883 = tpu.matmul %782, %14, %cst_190 {dimension_numbers = #tpu.dot_dimension_numbers<[1], [0], [0], [1], [0, 0, 1, 1], [], []>} : vector<2x16xf32>, vector<16x48xf32>, vector<2x48xf32> -> vector<2x48xf32>
    %884 = vector.broadcast %34 : vector<1x48xf32> to vector<2x48xf32>
    %885 = arith.addf %883, %884 : vector<2x48xf32>
    %886 = vector.extract_strided_slice %882 {offsets = [0, 0], sizes = [2, 16], strides = [1, 1]} : vector<2x48xf32> to vector<2x16xf32>
    %887 = vector.extract_strided_slice %885 {offsets = [0, 0], sizes = [2, 16], strides = [1, 1]} : vector<2x48xf32> to vector<2x16xf32>
    %888 = arith.addf %886, %887 : vector<2x16xf32>
    %889 = arith.negf %888 : vector<2x16xf32>
    %890 = math.exp %889 : vector<2x16xf32>
    %cst_191 = arith.constant 1.000000e+00 : f32
    %891 = vector.broadcast %cst_191 : f32 to vector<2x16xf32>
    %892 = arith.addf %891, %890 : vector<2x16xf32>
    %893 = arith.divf %891, %892 : vector<2x16xf32>
    %894 = vector.extract_strided_slice %882 {offsets = [0, 16], sizes = [2, 16], strides = [1, 1]} : vector<2x48xf32> to vector<2x16xf32>
    %895 = vector.extract_strided_slice %885 {offsets = [0, 16], sizes = [2, 16], strides = [1, 1]} : vector<2x48xf32> to vector<2x16xf32>
    %896 = arith.addf %894, %895 : vector<2x16xf32>
    %897 = arith.negf %896 : vector<2x16xf32>
    %898 = math.exp %897 : vector<2x16xf32>
    %cst_192 = arith.constant 1.000000e+00 : f32
    %899 = vector.broadcast %cst_192 : f32 to vector<2x16xf32>
    %900 = arith.addf %899, %898 : vector<2x16xf32>
    %901 = arith.divf %899, %900 : vector<2x16xf32>
    %902 = vector.extract_strided_slice %882 {offsets = [0, 32], sizes = [2, 16], strides = [1, 1]} : vector<2x48xf32> to vector<2x16xf32>
    %903 = vector.extract_strided_slice %885 {offsets = [0, 32], sizes = [2, 16], strides = [1, 1]} : vector<2x48xf32> to vector<2x16xf32>
    %904 = arith.mulf %893, %903 : vector<2x16xf32>
    %905 = arith.addf %902, %904 : vector<2x16xf32>
    %906 = math.tanh %905 : vector<2x16xf32>
    %cst_193 = arith.constant 1.000000e+00 : f32
    %907 = vector.broadcast %cst_193 : f32 to vector<2x16xf32>
    %908 = arith.subf %907, %901 : vector<2x16xf32>
    %909 = arith.mulf %908, %906 : vector<2x16xf32>
    %910 = arith.mulf %901, %782 : vector<2x16xf32>
    %911 = arith.addf %909, %910 : vector<2x16xf32>
    %cst_194 = arith.constant dense<0.000000e+00> : vector<2x48xf32>
    %912 = tpu.matmul %911, %22, %cst_194 {dimension_numbers = #tpu.dot_dimension_numbers<[1], [0], [0], [1], [0, 0, 1, 1], [], []>} : vector<2x16xf32>, vector<16x48xf32>, vector<2x48xf32> -> vector<2x48xf32>
    %913 = vector.broadcast %28 : vector<1x48xf32> to vector<2x48xf32>
    %914 = arith.addf %912, %913 : vector<2x48xf32>
    %cst_195 = arith.constant dense<0.000000e+00> : vector<2x48xf32>
    %915 = tpu.matmul %814, %16, %cst_195 {dimension_numbers = #tpu.dot_dimension_numbers<[1], [0], [0], [1], [0, 0, 1, 1], [], []>} : vector<2x16xf32>, vector<16x48xf32>, vector<2x48xf32> -> vector<2x48xf32>
    %916 = vector.broadcast %36 : vector<1x48xf32> to vector<2x48xf32>
    %917 = arith.addf %915, %916 : vector<2x48xf32>
    %918 = vector.extract_strided_slice %914 {offsets = [0, 0], sizes = [2, 16], strides = [1, 1]} : vector<2x48xf32> to vector<2x16xf32>
    %919 = vector.extract_strided_slice %917 {offsets = [0, 0], sizes = [2, 16], strides = [1, 1]} : vector<2x48xf32> to vector<2x16xf32>
    %920 = arith.addf %918, %919 : vector<2x16xf32>
    %921 = arith.negf %920 : vector<2x16xf32>
    %922 = math.exp %921 : vector<2x16xf32>
    %cst_196 = arith.constant 1.000000e+00 : f32
    %923 = vector.broadcast %cst_196 : f32 to vector<2x16xf32>
    %924 = arith.addf %923, %922 : vector<2x16xf32>
    %925 = arith.divf %923, %924 : vector<2x16xf32>
    %926 = vector.extract_strided_slice %914 {offsets = [0, 16], sizes = [2, 16], strides = [1, 1]} : vector<2x48xf32> to vector<2x16xf32>
    %927 = vector.extract_strided_slice %917 {offsets = [0, 16], sizes = [2, 16], strides = [1, 1]} : vector<2x48xf32> to vector<2x16xf32>
    %928 = arith.addf %926, %927 : vector<2x16xf32>
    %929 = arith.negf %928 : vector<2x16xf32>
    %930 = math.exp %929 : vector<2x16xf32>
    %cst_197 = arith.constant 1.000000e+00 : f32
    %931 = vector.broadcast %cst_197 : f32 to vector<2x16xf32>
    %932 = arith.addf %931, %930 : vector<2x16xf32>
    %933 = arith.divf %931, %932 : vector<2x16xf32>
    %934 = vector.extract_strided_slice %914 {offsets = [0, 32], sizes = [2, 16], strides = [1, 1]} : vector<2x48xf32> to vector<2x16xf32>
    %935 = vector.extract_strided_slice %917 {offsets = [0, 32], sizes = [2, 16], strides = [1, 1]} : vector<2x48xf32> to vector<2x16xf32>
    %936 = arith.mulf %925, %935 : vector<2x16xf32>
    %937 = arith.addf %934, %936 : vector<2x16xf32>
    %938 = math.tanh %937 : vector<2x16xf32>
    %cst_198 = arith.constant 1.000000e+00 : f32
    %939 = vector.broadcast %cst_198 : f32 to vector<2x16xf32>
    %940 = arith.subf %939, %933 : vector<2x16xf32>
    %941 = arith.mulf %940, %938 : vector<2x16xf32>
    %942 = arith.mulf %933, %814 : vector<2x16xf32>
    %943 = arith.addf %941, %942 : vector<2x16xf32>
    %c7_i32 = arith.constant 7 : i32
    %c2_i32_199 = arith.constant 2 : i32
    %944 = arith.muli %c7_i32, %c2_i32_199 : i32
    %945 = tpu.assume_multiple %944, 2 : i32
    %946 = arith.index_cast %945 : i32 to index
    %c0_200 = arith.constant 0 : index
    %947 = vector.load %arg8[%946, %c0_200] : memref<16x48xf32, #tpu.memory_space<vmem>>, vector<2x48xf32>
    %cst_201 = arith.constant dense<0.000000e+00> : vector<2x48xf32>
    %948 = tpu.matmul %847, %10, %cst_201 {dimension_numbers = #tpu.dot_dimension_numbers<[1], [0], [0], [1], [0, 0, 1, 1], [], []>} : vector<2x16xf32>, vector<16x48xf32>, vector<2x48xf32> -> vector<2x48xf32>
    %949 = vector.broadcast %30 : vector<1x48xf32> to vector<2x48xf32>
    %950 = arith.addf %948, %949 : vector<2x48xf32>
    %951 = vector.extract_strided_slice %947 {offsets = [0, 0], sizes = [2, 16], strides = [1, 1]} : vector<2x48xf32> to vector<2x16xf32>
    %952 = vector.extract_strided_slice %950 {offsets = [0, 0], sizes = [2, 16], strides = [1, 1]} : vector<2x48xf32> to vector<2x16xf32>
    %953 = arith.addf %951, %952 : vector<2x16xf32>
    %954 = arith.negf %953 : vector<2x16xf32>
    %955 = math.exp %954 : vector<2x16xf32>
    %cst_202 = arith.constant 1.000000e+00 : f32
    %956 = vector.broadcast %cst_202 : f32 to vector<2x16xf32>
    %957 = arith.addf %956, %955 : vector<2x16xf32>
    %958 = arith.divf %956, %957 : vector<2x16xf32>
    %959 = vector.extract_strided_slice %947 {offsets = [0, 16], sizes = [2, 16], strides = [1, 1]} : vector<2x48xf32> to vector<2x16xf32>
    %960 = vector.extract_strided_slice %950 {offsets = [0, 16], sizes = [2, 16], strides = [1, 1]} : vector<2x48xf32> to vector<2x16xf32>
    %961 = arith.addf %959, %960 : vector<2x16xf32>
    %962 = arith.negf %961 : vector<2x16xf32>
    %963 = math.exp %962 : vector<2x16xf32>
    %cst_203 = arith.constant 1.000000e+00 : f32
    %964 = vector.broadcast %cst_203 : f32 to vector<2x16xf32>
    %965 = arith.addf %964, %963 : vector<2x16xf32>
    %966 = arith.divf %964, %965 : vector<2x16xf32>
    %967 = vector.extract_strided_slice %947 {offsets = [0, 32], sizes = [2, 16], strides = [1, 1]} : vector<2x48xf32> to vector<2x16xf32>
    %968 = vector.extract_strided_slice %950 {offsets = [0, 32], sizes = [2, 16], strides = [1, 1]} : vector<2x48xf32> to vector<2x16xf32>
    %969 = arith.mulf %958, %968 : vector<2x16xf32>
    %970 = arith.addf %967, %969 : vector<2x16xf32>
    %971 = math.tanh %970 : vector<2x16xf32>
    %cst_204 = arith.constant 1.000000e+00 : f32
    %972 = vector.broadcast %cst_204 : f32 to vector<2x16xf32>
    %973 = arith.subf %972, %966 : vector<2x16xf32>
    %974 = arith.mulf %973, %971 : vector<2x16xf32>
    %975 = arith.mulf %966, %847 : vector<2x16xf32>
    %976 = arith.addf %974, %975 : vector<2x16xf32>
    %cst_205 = arith.constant dense<0.000000e+00> : vector<2x48xf32>
    %977 = tpu.matmul %976, %18, %cst_205 {dimension_numbers = #tpu.dot_dimension_numbers<[1], [0], [0], [1], [0, 0, 1, 1], [], []>} : vector<2x16xf32>, vector<16x48xf32>, vector<2x48xf32> -> vector<2x48xf32>
    %978 = vector.broadcast %24 : vector<1x48xf32> to vector<2x48xf32>
    %979 = arith.addf %977, %978 : vector<2x48xf32>
    %cst_206 = arith.constant dense<0.000000e+00> : vector<2x48xf32>
    %980 = tpu.matmul %879, %12, %cst_206 {dimension_numbers = #tpu.dot_dimension_numbers<[1], [0], [0], [1], [0, 0, 1, 1], [], []>} : vector<2x16xf32>, vector<16x48xf32>, vector<2x48xf32> -> vector<2x48xf32>
    %981 = vector.broadcast %32 : vector<1x48xf32> to vector<2x48xf32>
    %982 = arith.addf %980, %981 : vector<2x48xf32>
    %983 = vector.extract_strided_slice %979 {offsets = [0, 0], sizes = [2, 16], strides = [1, 1]} : vector<2x48xf32> to vector<2x16xf32>
    %984 = vector.extract_strided_slice %982 {offsets = [0, 0], sizes = [2, 16], strides = [1, 1]} : vector<2x48xf32> to vector<2x16xf32>
    %985 = arith.addf %983, %984 : vector<2x16xf32>
    %986 = arith.negf %985 : vector<2x16xf32>
    %987 = math.exp %986 : vector<2x16xf32>
    %cst_207 = arith.constant 1.000000e+00 : f32
    %988 = vector.broadcast %cst_207 : f32 to vector<2x16xf32>
    %989 = arith.addf %988, %987 : vector<2x16xf32>
    %990 = arith.divf %988, %989 : vector<2x16xf32>
    %991 = vector.extract_strided_slice %979 {offsets = [0, 16], sizes = [2, 16], strides = [1, 1]} : vector<2x48xf32> to vector<2x16xf32>
    %992 = vector.extract_strided_slice %982 {offsets = [0, 16], sizes = [2, 16], strides = [1, 1]} : vector<2x48xf32> to vector<2x16xf32>
    %993 = arith.addf %991, %992 : vector<2x16xf32>
    %994 = arith.negf %993 : vector<2x16xf32>
    %995 = math.exp %994 : vector<2x16xf32>
    %cst_208 = arith.constant 1.000000e+00 : f32
    %996 = vector.broadcast %cst_208 : f32 to vector<2x16xf32>
    %997 = arith.addf %996, %995 : vector<2x16xf32>
    %998 = arith.divf %996, %997 : vector<2x16xf32>
    %999 = vector.extract_strided_slice %979 {offsets = [0, 32], sizes = [2, 16], strides = [1, 1]} : vector<2x48xf32> to vector<2x16xf32>
    %1000 = vector.extract_strided_slice %982 {offsets = [0, 32], sizes = [2, 16], strides = [1, 1]} : vector<2x48xf32> to vector<2x16xf32>
    %1001 = arith.mulf %990, %1000 : vector<2x16xf32>
    %1002 = arith.addf %999, %1001 : vector<2x16xf32>
    %1003 = math.tanh %1002 : vector<2x16xf32>
    %cst_209 = arith.constant 1.000000e+00 : f32
    %1004 = vector.broadcast %cst_209 : f32 to vector<2x16xf32>
    %1005 = arith.subf %1004, %998 : vector<2x16xf32>
    %1006 = arith.mulf %1005, %1003 : vector<2x16xf32>
    %1007 = arith.mulf %998, %879 : vector<2x16xf32>
    %1008 = arith.addf %1006, %1007 : vector<2x16xf32>
    %cst_210 = arith.constant dense<0.000000e+00> : vector<2x48xf32>
    %1009 = tpu.matmul %1008, %20, %cst_210 {dimension_numbers = #tpu.dot_dimension_numbers<[1], [0], [0], [1], [0, 0, 1, 1], [], []>} : vector<2x16xf32>, vector<16x48xf32>, vector<2x48xf32> -> vector<2x48xf32>
    %1010 = vector.broadcast %26 : vector<1x48xf32> to vector<2x48xf32>
    %1011 = arith.addf %1009, %1010 : vector<2x48xf32>
    %cst_211 = arith.constant dense<0.000000e+00> : vector<2x48xf32>
    %1012 = tpu.matmul %911, %14, %cst_211 {dimension_numbers = #tpu.dot_dimension_numbers<[1], [0], [0], [1], [0, 0, 1, 1], [], []>} : vector<2x16xf32>, vector<16x48xf32>, vector<2x48xf32> -> vector<2x48xf32>
    %1013 = vector.broadcast %34 : vector<1x48xf32> to vector<2x48xf32>
    %1014 = arith.addf %1012, %1013 : vector<2x48xf32>
    %1015 = vector.extract_strided_slice %1011 {offsets = [0, 0], sizes = [2, 16], strides = [1, 1]} : vector<2x48xf32> to vector<2x16xf32>
    %1016 = vector.extract_strided_slice %1014 {offsets = [0, 0], sizes = [2, 16], strides = [1, 1]} : vector<2x48xf32> to vector<2x16xf32>
    %1017 = arith.addf %1015, %1016 : vector<2x16xf32>
    %1018 = arith.negf %1017 : vector<2x16xf32>
    %1019 = math.exp %1018 : vector<2x16xf32>
    %cst_212 = arith.constant 1.000000e+00 : f32
    %1020 = vector.broadcast %cst_212 : f32 to vector<2x16xf32>
    %1021 = arith.addf %1020, %1019 : vector<2x16xf32>
    %1022 = arith.divf %1020, %1021 : vector<2x16xf32>
    %1023 = vector.extract_strided_slice %1011 {offsets = [0, 16], sizes = [2, 16], strides = [1, 1]} : vector<2x48xf32> to vector<2x16xf32>
    %1024 = vector.extract_strided_slice %1014 {offsets = [0, 16], sizes = [2, 16], strides = [1, 1]} : vector<2x48xf32> to vector<2x16xf32>
    %1025 = arith.addf %1023, %1024 : vector<2x16xf32>
    %1026 = arith.negf %1025 : vector<2x16xf32>
    %1027 = math.exp %1026 : vector<2x16xf32>
    %cst_213 = arith.constant 1.000000e+00 : f32
    %1028 = vector.broadcast %cst_213 : f32 to vector<2x16xf32>
    %1029 = arith.addf %1028, %1027 : vector<2x16xf32>
    %1030 = arith.divf %1028, %1029 : vector<2x16xf32>
    %1031 = vector.extract_strided_slice %1011 {offsets = [0, 32], sizes = [2, 16], strides = [1, 1]} : vector<2x48xf32> to vector<2x16xf32>
    %1032 = vector.extract_strided_slice %1014 {offsets = [0, 32], sizes = [2, 16], strides = [1, 1]} : vector<2x48xf32> to vector<2x16xf32>
    %1033 = arith.mulf %1022, %1032 : vector<2x16xf32>
    %1034 = arith.addf %1031, %1033 : vector<2x16xf32>
    %1035 = math.tanh %1034 : vector<2x16xf32>
    %cst_214 = arith.constant 1.000000e+00 : f32
    %1036 = vector.broadcast %cst_214 : f32 to vector<2x16xf32>
    %1037 = arith.subf %1036, %1030 : vector<2x16xf32>
    %1038 = arith.mulf %1037, %1035 : vector<2x16xf32>
    %1039 = arith.mulf %1030, %911 : vector<2x16xf32>
    %1040 = arith.addf %1038, %1039 : vector<2x16xf32>
    %cst_215 = arith.constant dense<0.000000e+00> : vector<2x48xf32>
    %1041 = tpu.matmul %1040, %22, %cst_215 {dimension_numbers = #tpu.dot_dimension_numbers<[1], [0], [0], [1], [0, 0, 1, 1], [], []>} : vector<2x16xf32>, vector<16x48xf32>, vector<2x48xf32> -> vector<2x48xf32>
    %1042 = vector.broadcast %28 : vector<1x48xf32> to vector<2x48xf32>
    %1043 = arith.addf %1041, %1042 : vector<2x48xf32>
    %cst_216 = arith.constant dense<0.000000e+00> : vector<2x48xf32>
    %1044 = tpu.matmul %943, %16, %cst_216 {dimension_numbers = #tpu.dot_dimension_numbers<[1], [0], [0], [1], [0, 0, 1, 1], [], []>} : vector<2x16xf32>, vector<16x48xf32>, vector<2x48xf32> -> vector<2x48xf32>
    %1045 = vector.broadcast %36 : vector<1x48xf32> to vector<2x48xf32>
    %1046 = arith.addf %1044, %1045 : vector<2x48xf32>
    %1047 = vector.extract_strided_slice %1043 {offsets = [0, 0], sizes = [2, 16], strides = [1, 1]} : vector<2x48xf32> to vector<2x16xf32>
    %1048 = vector.extract_strided_slice %1046 {offsets = [0, 0], sizes = [2, 16], strides = [1, 1]} : vector<2x48xf32> to vector<2x16xf32>
    %1049 = arith.addf %1047, %1048 : vector<2x16xf32>
    %1050 = arith.negf %1049 : vector<2x16xf32>
    %1051 = math.exp %1050 : vector<2x16xf32>
    %cst_217 = arith.constant 1.000000e+00 : f32
    %1052 = vector.broadcast %cst_217 : f32 to vector<2x16xf32>
    %1053 = arith.addf %1052, %1051 : vector<2x16xf32>
    %1054 = arith.divf %1052, %1053 : vector<2x16xf32>
    %1055 = vector.extract_strided_slice %1043 {offsets = [0, 16], sizes = [2, 16], strides = [1, 1]} : vector<2x48xf32> to vector<2x16xf32>
    %1056 = vector.extract_strided_slice %1046 {offsets = [0, 16], sizes = [2, 16], strides = [1, 1]} : vector<2x48xf32> to vector<2x16xf32>
    %1057 = arith.addf %1055, %1056 : vector<2x16xf32>
    %1058 = arith.negf %1057 : vector<2x16xf32>
    %1059 = math.exp %1058 : vector<2x16xf32>
    %cst_218 = arith.constant 1.000000e+00 : f32
    %1060 = vector.broadcast %cst_218 : f32 to vector<2x16xf32>
    %1061 = arith.addf %1060, %1059 : vector<2x16xf32>
    %1062 = arith.divf %1060, %1061 : vector<2x16xf32>
    %1063 = vector.extract_strided_slice %1043 {offsets = [0, 32], sizes = [2, 16], strides = [1, 1]} : vector<2x48xf32> to vector<2x16xf32>
    %1064 = vector.extract_strided_slice %1046 {offsets = [0, 32], sizes = [2, 16], strides = [1, 1]} : vector<2x48xf32> to vector<2x16xf32>
    %1065 = arith.mulf %1054, %1064 : vector<2x16xf32>
    %1066 = arith.addf %1063, %1065 : vector<2x16xf32>
    %1067 = math.tanh %1066 : vector<2x16xf32>
    %cst_219 = arith.constant 1.000000e+00 : f32
    %1068 = vector.broadcast %cst_219 : f32 to vector<2x16xf32>
    %1069 = arith.subf %1068, %1062 : vector<2x16xf32>
    %1070 = arith.mulf %1069, %1067 : vector<2x16xf32>
    %1071 = arith.mulf %1062, %943 : vector<2x16xf32>
    %1072 = arith.addf %1070, %1071 : vector<2x16xf32>
    %c8_i32 = arith.constant 8 : i32
    %1073 = tpu.concatenate %976, %1008, %1040, %1072 in 1 : vector<2x16xf32>, vector<2x16xf32>, vector<2x16xf32>, vector<2x16xf32> -> vector<2x64xf32>
    %c0_220 = arith.constant 0 : index
    %c0_221 = arith.constant 0 : index
    %1074 = vector.load %arg5[%c0_220, %c0_221] : memref<64x150xf32, #tpu.memory_space<vmem>>, vector<64x150xf32>
    %cst_222 = arith.constant dense<0.000000e+00> : vector<2x150xf32>
    %1075 = tpu.matmul %1073, %1074, %cst_222 {dimension_numbers = #tpu.dot_dimension_numbers<[1], [0], [0], [1], [0, 0, 1, 1], [], []>} : vector<2x64xf32>, vector<64x150xf32>, vector<2x150xf32> -> vector<2x150xf32>
    %c0_223 = arith.constant 0 : index
    %c0_224 = arith.constant 0 : index
    %1076 = vector.load %arg6[%c0_223, %c0_224] : memref<1x150xf32, #tpu.memory_space<vmem>>, vector<1x150xf32>
    %1077 = vector.broadcast %1076 : vector<1x150xf32> to vector<2x150xf32>
    %1078 = arith.addf %1075, %1077 : vector<2x150xf32>
    %c0_225 = arith.constant 0 : index
    %c0_226 = arith.constant 0 : index
    %1079 = vector.load %arg7[%c0_225, %c0_226] : memref<2x150xf32, #tpu.memory_space<vmem>>, vector<2x150xf32>
    tpu.vector_store %arg7[%c0_225, %c0_226], %1078 {strides = array<i32>} : memref<2x150xf32, #tpu.memory_space<vmem>>, vector<2x150xf32>,
    return
  }
}

</mosaic_0001>

<llo_original>
// kernel: tpu_custom_call.1
$region0: #{tpu_custom_call.1}
  #allocation0 [shape = 'u32[]', space=smem, size = 0x4, offset = 0x4, fixed_abs, tag = 'smem constant byte address 0x4 - core index']
  #allocation1 [shape = 'u32[144,128]{1,0:T(1,128)}', space=vmem, size = 0x12000, scoped, tag = 'internal scratch']
  #allocation2 [shape = 'f32[16,48]{1,0:T(8,128)}', space=vmem, size = 0x2000, scoped, tag = 'scratch operand']
  %s0 = inlined_call_operand.hbm [shape: f32[16,16], index: 0, kind: input, shape index: {}]
  %s1 = inlined_call_operand.hbm [shape: f32[4,16,48], index: 1, kind: input, shape index: {}]
  %s2 = inlined_call_operand.hbm [shape: f32[4,16,48], index: 2, kind: input, shape index: {}]
  %s3 = inlined_call_operand.vmem [shape: f32[4,1,48], index: 3, kind: input, shape index: {}]
  %s4 = inlined_call_operand.vmem [shape: f32[4,1,48], index: 4, kind: input, shape index: {}]
  %s5 = inlined_call_operand.hbm [shape: f32[64,150], index: 5, kind: input, shape index: {}]
  %s6 = inlined_call_operand.vmem [shape: f32[1,150], index: 6, kind: input, shape index: {}]
  %s7 = inlined_call_operand.hbm [shape: f32[2,150], index: 7, kind: output, shape index: {}]
  %s8 = sld [smem:[#allocation0]]
  $region54: #{tpu_custom_call.1} parent=0
    _
  %s10 = ssub.s32 1, %s8
  %s11 = scalar_select 0, %s10, %s8
  $region1: #{tpu_custom_call.1} parent=0
    #allocation3 [shape = 'u8[8192]{0}', space=vmem, size = 0x2000, scoped, tag = 'input window, operand 0, single buffered']
    #allocation4 [shape = 's32[1]{0}', space=sflag, size = 0x4, scoped, tag = 'scoped memory for tpu_custom_call.1']
    #allocation5 [shape = 's32[1]{0}', space=sflag, size = 0x4, scoped, tag = 'scoped memory for tpu_custom_call.1']
    #allocation6 [shape = 'u8[32768]{0}', space=vmem, size = 0x8000, scoped, tag = 'input window, operand 1, single buffered']
    #allocation7 [shape = 's32[1]{0}', space=sflag, size = 0x4, scoped, tag = 'scoped memory for tpu_custom_call.1']
    #allocation8 [shape = 'u8[32768]{0}', space=vmem, size = 0x8000, scoped, tag = 'input window, operand 2, single buffered']
    #allocation9 [shape = 'u8[65536]{0}', space=vmem, size = 0x10000, scoped, tag = 'input window, operand 5, single buffered']
    #allocation10 [shape = 's32[1]{0}', space=sflag, size = 0x4, scoped, tag = 'scoped memory for tpu_custom_call.1']
    #allocation11 [shape = 'u8[2048]{0}', space=vmem, size = 0x800, scoped, tag = 'output window, operand 0, single buffered']
    %12 = vsyncpa [#allocation4], 0
    %13 = vsyncpa [#allocation7], 0
    %14 = vsyncpa [#allocation10], 0
    %15 = vsyncpa [#allocation5], 0
    // Predicated region
    $region2: #{tpu_custom_call.1} parent=1 // pred_check
      _
    $region3: #{tpu_custom_call.1} parent=1 // pred_check_branch
      %17 = sbr.rel (0) target = $region5
    $region4: #{tpu_custom_call.1} parent=1 // pred_region
      %s19 = ssub.s32 256, 256
      %20 = vsyncadd [#allocation4], %s19
      %s21 = sshll.u32 [#allocation3], 4
      %s22 = int_to_ptr.vmem [resolvable:$true] %s21
      %27 = dma.hbm_to_vmem [thread:$0]  %s0, 256, %s22, [#allocation4], 128, 128, 8
    $region5: #{tpu_custom_call.1} parent=1 // pred_fallthru
      _
    // Predicated region
    $region6: #{tpu_custom_call.1} parent=1 // pred_check
      _
    $region7: #{tpu_custom_call.1} parent=1 // pred_check_branch
      %29 = sbr.rel (0) target = $region9
    $region8: #{tpu_custom_call.1} parent=1 // pred_region
      %s31 = ssub.s32 1024, 1024
      %32 = vsyncadd [#allocation7], %s31
      %s33 = sshll.u32 [#allocation6], 4
      %s34 = int_to_ptr.vmem [resolvable:$true] %s33
      %39 = dma.hbm_to_vmem [thread:$0]  %s1, 1024, %s34, [#allocation7], 128, 128, 8
    $region9: #{tpu_custom_call.1} parent=1 // pred_fallthru
      _
    // Predicated region
    $region10: #{tpu_custom_call.1} parent=1 // pred_check
      _
    $region11: #{tpu_custom_call.1} parent=1 // pred_check_branch
      %41 = sbr.rel (0) target = $region13
    $region12: #{tpu_custom_call.1} parent=1 // pred_region
      %s43 = ssub.s32 1024, 1024
      %44 = vsyncadd [#allocation7], %s43
      %s45 = sshll.u32 [#allocation8], 4
      %s46 = int_to_ptr.vmem [resolvable:$true] %s45
      %51 = dma.hbm_to_vmem [thread:$0]  %s2, 1024, %s46, [#allocation7], 128, 128, 8
    $region13: #{tpu_custom_call.1} parent=1 // pred_fallthru
      _
    // Predicated region
    $region14: #{tpu_custom_call.1} parent=1 // pred_check
      _
    $region15: #{tpu_custom_call.1} parent=1 // pred_check_branch
      %53 = sbr.rel (0) target = $region17
    $region16: #{tpu_custom_call.1} parent=1 // pred_region
      _
    $region17: #{tpu_custom_call.1} parent=1 // pred_fallthru
      _
    // Predicated region
    $region18: #{tpu_custom_call.1} parent=1 // pred_check
      _
    $region19: #{tpu_custom_call.1} parent=1 // pred_check_branch
      %55 = sbr.rel (0) target = $region21
    $region20: #{tpu_custom_call.1} parent=1 // pred_region
      _
    $region21: #{tpu_custom_call.1} parent=1 // pred_fallthru
      _
    // Predicated region
    $region22: #{tpu_custom_call.1} parent=1 // pred_check
      _
    $region23: #{tpu_custom_call.1} parent=1 // pred_check_branch
      %57 = sbr.rel (0) target = $region25
    $region24: #{tpu_custom_call.1} parent=1 // pred_region
      %s59 = ssub.s32 2048, 2048
      %60 = vsyncadd [#allocation10], %s59
      %s61 = sshll.u32 [#allocation9], 4
      %s62 = int_to_ptr.vmem [resolvable:$true] %s61
      %67 = dma.hbm_to_vmem [thread:$0]  %s5, 2048, %s62, [#allocation10], 256, 256, 16
    $region25: #{tpu_custom_call.1} parent=1 // pred_fallthru
      _
    // Predicated region
    $region26: #{tpu_custom_call.1} parent=1 // pred_check
      _
    $region27: #{tpu_custom_call.1} parent=1 // pred_check_branch
      %69 = sbr.rel (0) target = $region29
    $region28: #{tpu_custom_call.1} parent=1 // pred_region
      _
    $region29: #{tpu_custom_call.1} parent=1 // pred_fallthru
      _
    // Predicated region
    $region30: #{tpu_custom_call.1} parent=1 // pred_check
      _
    $region31: #{tpu_custom_call.1} parent=1 // pred_check_branch
      %71 = sbr.rel (0) target = $region33
    $region32: #{tpu_custom_call.1} parent=1 // pred_region
      %72 = dma.done [#allocation4], 256
    $region33: #{tpu_custom_call.1} parent=1 // pred_fallthru
      _
    // Predicated region
    $region34: #{tpu_custom_call.1} parent=1 // pred_check
      _
    $region35: #{tpu_custom_call.1} parent=1 // pred_check_branch
      %74 = sbr.rel (0) target = $region37
    $region36: #{tpu_custom_call.1} parent=1 // pred_region
      %75 = dma.done [#allocation7], 1024
    $region37: #{tpu_custom_call.1} parent=1 // pred_fallthru
      _
    // Predicated region
    $region38: #{tpu_custom_call.1} parent=1 // pred_check
      _
    $region39: #{tpu_custom_call.1} parent=1 // pred_check_branch
      %77 = sbr.rel (0) target = $region41
    $region40: #{tpu_custom_call.1} parent=1 // pred_region
      %78 = dma.done [#allocation7], 1024
    $region41: #{tpu_custom_call.1} parent=1 // pred_fallthru
      _
    // Predicated region
    $region42: #{tpu_custom_call.1} parent=1 // pred_check
      _
    $region43: #{tpu_custom_call.1} parent=1 // pred_check_branch
      %80 = sbr.rel (0) target = $region45
    $region44: #{tpu_custom_call.1} parent=1 // pred_region
      %81 = dma.done [#allocation10], 2048
    $region45: #{tpu_custom_call.1} parent=1 // pred_fallthru
      _
    %v82 = vld [vmem:[#allocation3] sm:$0xff]
    %v83 = vld [vmem:[#allocation3 + $0x8] sm:$0xff]
    %v84 = vld [vmem:[#allocation6] sm:$0xff]
    %v85 = vld [vmem:[#allocation6 + $0x8] sm:$0xff]
    %v86 = vld [vmem:[%s3] sm:$0x1]
    %v88 = vlaneseq
    %v89 = vshrl.u32 %v88, 7
    %v90 = vsub.s32 0, %v89
    %v91 = vrot.slane %v86, %v90
    %vm93 = vcmask 130048
    %v95 = vsel %vm93, %v82, 0
    %v98 = vsel %vm93, %v83, 0
    %100 = vmatprep.subr.mxu0 0.0
    %101 = vmatpush1.msra.mxu0 %v84
    %102 = vmatprep.subr.mxu0 0.0
    %103 = vmatpush1.msra.mxu0 %v85
    %104 = vmatprep.subr.mxu0 0.0
    %105 = vmatpush1.msra.mxu0 0.0
    %106 = vmatprep.subr.mxu0 0.0
    %107 = vmatpush1.msra.mxu0 0.0
    %108 = vmatprep.subr.mxu0 0.0
    %109 = vmatpush1.msra.mxu0 0.0
    %110 = vmatprep.subr.mxu0 0.0
    %111 = vmatpush1.msra.mxu0 0.0
    %112 = vmatprep.subr.mxu0 0.0
    %113 = vmatpush1.msra.mxu0 0.0
    %114 = vmatprep.subr.mxu0 0.0
    %115 = vmatpush1.msra.mxu0 0.0
    %116 = vmatprep.subr.mxu0 0.0
    %117 = vmatpush1.msra.mxu0 0.0
    %118 = vmatprep.subr.mxu0 0.0
    %119 = vmatpush1.msra.mxu0 0.0
    %120 = vmatprep.subr.mxu0 0.0
    %121 = vmatpush1.msra.mxu0 0.0
    %122 = vmatprep.subr.mxu0 0.0
    %123 = vmatpush1.msra.mxu0 0.0
    %124 = vmatprep.subr.mxu0 0.0
    %125 = vmatpush1.msra.mxu0 0.0
    %126 = vmatprep.subr.mxu0 0.0
    %127 = vmatpush1.msra.mxu0 0.0
    %128 = vmatprep.subr.mxu0 0.0
    %129 = vmatpush1.msra.mxu0 0.0
    %130 = vmatprep.subr.mxu0 0.0
    %131 = vmatpush1.msra.mxu0 0.0
    %132 = vmatprep.subr.mxu0 0.0
    %133 = vmatpush1.msra.mxu0 0.0
    %134 = vmatprep.subr.mxu0 0.0
    %135 = vmatpush1.msra.mxu0 0.0
    %136 = vmatprep.subr.mxu0 0.0
    %137 = vmatpush1.msra.mxu0 0.0
    %138 = vmatprep.subr.mxu0 0.0
    %139 = vmatpush1.msra.mxu0 0.0
    %140 = vmatprep.subr.mxu0 0.0
    %141 = vmatpush1.msra.mxu0 0.0
    %142 = vmatprep.subr.mxu0 0.0
    %143 = vmatpush1.msra.mxu0 0.0
    %144 = vmatprep.subr.mxu0 0.0
    %145 = vmatpush1.msra.mxu0 0.0
    %146 = vmatprep.subr.mxu0 0.0
    %147 = vmatpush1.msra.mxu0 0.0
    %148 = vmatprep.subr.mxu0 0.0
    %149 = vmatpush1.msra.mxu0 0.0
    %150 = vmatprep.subr.mxu0 0.0
    %151 = vmatpush1.msra.mxu0 0.0
    %152 = vmatprep.subr.mxu0 0.0
    %153 = vmatpush1.msra.mxu0 0.0
    %154 = vmatprep.subr.mxu0 0.0
    %155 = vmatpush1.msra.mxu0 0.0
    %156 = vmatprep.subr.mxu0 0.0
    %157 = vmatpush1.msra.mxu0 0.0
    %158 = vmatprep.subr.mxu0 0.0
    %159 = vmatpush1.msra.mxu0 0.0
    %160 = vmatprep.subr.mxu0 0.0
    %161 = vmatpush1.msra.mxu0 0.0
    %162 = vmatprep.subr.mxu0 0.0
    %163 = vmatpush1.msra.mxu0 0.0
    %164 = vmatprep.mubr.f32.mxu0 0.0
    %165 = vmatmul.mubr.f32.gmra.mrb[0].mxu0 %v95
    %v166 = vpop.f32.mrb[0].mxu0
    %v167 = vadd.f32 %v91, %v166
    %v168 = vpop.f32.mrb[0].mxu0
    %169 = vmatprep.mubr.f32.mxu0 0.0
    %170 = vmatmul.mubr.f32.gmra.mrb[0].mxu0 %v98
    %v171 = vpop.f32.mrb[0].mxu0
    %v172 = vadd.f32 %v91, %v171
    %v173 = vpop.f32.mrb[0].mxu0
    %174 = vdwg.mxu0
    %vm175 = vcmask 392192
    %176 = vst.msk [vmem:[#allocation2] sm:$0xff] %vm175, %v167
    %177 = vst.msk [vmem:[#allocation2 + $0x8] sm:$0xff] %vm175, %v172
    %v178 = vld [vmem:[#allocation8] sm:$0xff]
    %v179 = vld [vmem:[#allocation8 + $0x8] sm:$0xff]
    %s180 = scalar_lea.vmem [#allocation8], 16
    %v181 = vld [vmem:[%s180] sm:$0xff]
    %v182 = vld [vmem:[%s180 + $0x8] sm:$0xff]
    %s183 = scalar_lea.vmem [#allocation8], 32
    %v184 = vld [vmem:[%s183] sm:$0xff]
    %v185 = vld [vmem:[%s183 + $0x8] sm:$0xff]
    %s186 = scalar_lea.vmem [#allocation8], 48
    %v187 = vld [vmem:[%s186] sm:$0xff]
    %v188 = vld [vmem:[%s186 + $0x8] sm:$0xff]
    %s189 = scalar_lea.vmem [#allocation6], 16
    %v190 = vld [vmem:[%s189] sm:$0xff]
    %v191 = vld [vmem:[%s189 + $0x8] sm:$0xff]
    %s192 = scalar_lea.vmem [#allocation6], 32
    %v193 = vld [vmem:[%s192] sm:$0xff]
    %v194 = vld [vmem:[%s192 + $0x8] sm:$0xff]
    %s195 = scalar_lea.vmem [#allocation6], 48
    %v196 = vld [vmem:[%s195] sm:$0xff]
    %v197 = vld [vmem:[%s195 + $0x8] sm:$0xff]
    %s198 = scalar_lea.vmem %s3, 1
    %v199 = vld [vmem:[%s198] sm:$0x1]
    %s200 = scalar_lea.vmem %s3, 2
    %v201 = vld [vmem:[%s200] sm:$0x1]
    %s202 = scalar_lea.vmem %s3, 3
    %v203 = vld [vmem:[%s202] sm:$0x1]
    %v204 = vld [vmem:[%s4] sm:$0x1]
    %s205 = scalar_lea.vmem %s4, 1
    %v206 = vld [vmem:[%s205] sm:$0x1]
    %s207 = scalar_lea.vmem %s4, 2
    %v208 = vld [vmem:[%s207] sm:$0x1]
    %s209 = scalar_lea.vmem %s4, 3
    %v210 = vld [vmem:[%s209] sm:$0x1]
    %v211 = vld [vmem:[#allocation2] sm:$0x3]
    %v213 = vlaneseq
    %v214 = vshrl.u32 %v213, 7
    %v215 = vsub.s32 0, %v214
    %v216 = vrot.slane %v204, %v215
    %v219 = vsel %vm93, 0.0, 0
    %221 = vmatprep.subr.mxu0 0.0
    %222 = vmatpush1.msra.mxu0 %v178
    %223 = vmatprep.subr.mxu0 0.0
    %224 = vmatpush1.msra.mxu0 %v179
    %225 = vmatprep.subr.mxu0 0.0
    %226 = vmatpush1.msra.mxu0 0.0
    %227 = vmatprep.subr.mxu0 0.0
    %228 = vmatpush1.msra.mxu0 0.0
    %229 = vmatprep.subr.mxu0 0.0
    %230 = vmatpush1.msra.mxu0 0.0
    %231 = vmatprep.subr.mxu0 0.0
    %232 = vmatpush1.msra.mxu0 0.0
    %233 = vmatprep.subr.mxu0 0.0
    %234 = vmatpush1.msra.mxu0 0.0
    %235 = vmatprep.subr.mxu0 0.0
    %236 = vmatpush1.msra.mxu0 0.0
    %237 = vmatprep.subr.mxu0 0.0
    %238 = vmatpush1.msra.mxu0 0.0
    %239 = vmatprep.subr.mxu0 0.0
    %240 = vmatpush1.msra.mxu0 0.0
    %241 = vmatprep.subr.mxu0 0.0
    %242 = vmatpush1.msra.mxu0 0.0
    %243 = vmatprep.subr.mxu0 0.0
    %244 = vmatpush1.msra.mxu0 0.0
    %245 = vmatprep.subr.mxu0 0.0
    %246 = vmatpush1.msra.mxu0 0.0
    %247 = vmatprep.subr.mxu0 0.0
    %248 = vmatpush1.msra.mxu0 0.0
    %249 = vmatprep.subr.mxu0 0.0
    %250 = vmatpush1.msra.mxu0 0.0
    %251 = vmatprep.subr.mxu0 0.0
    %252 = vmatpush1.msra.mxu0 0.0
    %253 = vmatprep.subr.mxu0 0.0
    %254 = vmatpush1.msra.mxu0 0.0
    %255 = vmatprep.subr.mxu0 0.0
    %256 = vmatpush1.msra.mxu0 0.0
    %257 = vmatprep.subr.mxu0 0.0
    %258 = vmatpush1.msra.mxu0 0.0
    %259 = vmatprep.subr.mxu0 0.0
    %260 = vmatpush1.msra.mxu0 0.0
    %261 = vmatprep.subr.mxu0 0.0
    %262 = vmatpush1.msra.mxu0 0.0
    %263 = vmatprep.subr.mxu0 0.0
    %264 = vmatpush1.msra.mxu0 0.0
    %265 = vmatprep.subr.mxu0 0.0
    %266 = vmatpush1.msra.mxu0 0.0
    %267 = vmatprep.subr.mxu0 0.0
    %268 = vmatpush1.msra.mxu0 0.0
    %269 = vmatprep.subr.mxu0 0.0
    %270 = vmatpush1.msra.mxu0 0.0
    %271 = vmatprep.subr.mxu0 0.0
    %272 = vmatpush1.msra.mxu0 0.0
    %273 = vmatprep.subr.mxu0 0.0
    %274 = vmatpush1.msra.mxu0 0.0
    %275 = vmatprep.subr.mxu0 0.0
    %276 = vmatpush1.msra.mxu0 0.0
    %277 = vmatprep.subr.mxu0 0.0
    %278 = vmatpush1.msra.mxu0 0.0
    %279 = vmatprep.subr.mxu0 0.0
    %280 = vmatpush1.msra.mxu0 0.0
    %281 = vmatprep.subr.mxu0 0.0
    %282 = vmatpush1.msra.mxu0 0.0
    %283 = vmatprep.subr.mxu0 0.0
    %284 = vmatpush1.msra.mxu0 0.0
    %285 = vmatprep.mubr.f32.mxu0 0.0
    %286 = vmatmul.mubr.f32.gmra.mrb[0].mxu0 %v219
    %v287 = vpop.f32.mrb[0].mxu0
    %v288 = vadd.f32 %v216, %v287
    %v289 = vpop.f32.mrb[0].mxu0
    %290 = vdwg.mxu0
    %v291 = vadd.f32 %v211, %v288
    %v292 = vxor.u32 %v291, 2147483648
    %v293 = vmul.f32 %v292, 1.442695
    %v294 = vpow.pop %v293
    %v295 = vadd.f32 %v294, 1.0
    %v296 = vrcp.pop %v295
    %v297 = vmul.f32 1.0, %v296
    %299 = vrot.lane.b32.xlu0 %v288, 96
    %v300 = vpop.permute.xlu0 %299
    %v302 = vmul.f32 %v297, %v300
    %304 = vrot.lane.b32.xlu0 %v302, 32
    %v305 = vpop.permute.xlu0 %304
    %v307 = vadd.f32 %v211, %v305
    %v308 = vtanh.pop %v307
    %v309 = vsub.f32 1.0, %v297
    %311 = vrot.lane.b32.xlu0 %v308, 112
    %v312 = vpop.permute.xlu0 %311
    %v314 = vmul.f32 %v309, %v312
    %v315 = vmul.f32 %v297, 0.0
    %v316 = vadd.f32 %v314, %v315
    %v318 = vlaneseq
    %v319 = vshrl.u32 %v318, 7
    %v320 = vsub.s32 0, %v319
    %v321 = vrot.slane %v199, %v320
    %324 = vrot.lane.b32.xlu0 %v316, 112
    %v325 = vpop.permute.xlu0 %324
    %v326 = vsel %vm93, %v325, 0
    %328 = vmatprep.subr.mxu0 0.0
    %329 = vmatpush1.msra.mxu0 %v190
    %330 = vmatprep.subr.mxu0 0.0
    %331 = vmatpush1.msra.mxu0 %v191
    %332 = vmatprep.subr.mxu0 0.0
    %333 = vmatpush1.msra.mxu0 0.0
    %334 = vmatprep.subr.mxu0 0.0
    %335 = vmatpush1.msra.mxu0 0.0
    %336 = vmatprep.subr.mxu0 0.0
    %337 = vmatpush1.msra.mxu0 0.0
    %338 = vmatprep.subr.mxu0 0.0
    %339 = vmatpush1.msra.mxu0 0.0
    %340 = vmatprep.subr.mxu0 0.0
    %341 = vmatpush1.msra.mxu0 0.0
    %342 = vmatprep.subr.mxu0 0.0
    %343 = vmatpush1.msra.mxu0 0.0
    %344 = vmatprep.subr.mxu0 0.0
    %345 = vmatpush1.msra.mxu0 0.0
    %346 = vmatprep.subr.mxu0 0.0
    %347 = vmatpush1.msra.mxu0 0.0
    %348 = vmatprep.subr.mxu0 0.0
    %349 = vmatpush1.msra.mxu0 0.0
    %350 = vmatprep.subr.mxu0 0.0
    %351 = vmatpush1.msra.mxu0 0.0
    %352 = vmatprep.subr.mxu0 0.0
    %353 = vmatpush1.msra.mxu0 0.0
    %354 = vmatprep.subr.mxu0 0.0
    %355 = vmatpush1.msra.mxu0 0.0
    %356 = vmatprep.subr.mxu0 0.0
    %357 = vmatpush1.msra.mxu0 0.0
    %358 = vmatprep.subr.mxu0 0.0
    %359 = vmatpush1.msra.mxu0 0.0
    %360 = vmatprep.subr.mxu0 0.0
    %361 = vmatpush1.msra.mxu0 0.0
    %362 = vmatprep.subr.mxu0 0.0
    %363 = vmatpush1.msra.mxu0 0.0
    %364 = vmatprep.subr.mxu0 0.0
    %365 = vmatpush1.msra.mxu0 0.0
    %366 = vmatprep.subr.mxu0 0.0
    %367 = vmatpush1.msra.mxu0 0.0
    %368 = vmatprep.subr.mxu0 0.0
    %369 = vmatpush1.msra.mxu0 0.0
    %370 = vmatprep.subr.mxu0 0.0
    %371 = vmatpush1.msra.mxu0 0.0
    %372 = vmatprep.subr.mxu0 0.0
    %373 = vmatpush1.msra.mxu0 0.0
    %374 = vmatprep.subr.mxu0 0.0
    %375 = vmatpush1.msra.mxu0 0.0
    %376 = vmatprep.subr.mxu0 0.0
    %377 = vmatpush1.msra.mxu0 0.0
    %378 = vmatprep.subr.mxu0 0.0
    %379 = vmatpush1.msra.mxu0 0.0
    %380 = vmatprep.subr.mxu0 0.0
    %381 = vmatpush1.msra.mxu0 0.0
    %382 = vmatprep.subr.mxu0 0.0
    %383 = vmatpush1.msra.mxu0 0.0
    %384 = vmatprep.subr.mxu0 0.0
    %385 = vmatpush1.msra.mxu0 0.0
    %386 = vmatprep.subr.mxu0 0.0
    %387 = vmatpush1.msra.mxu0 0.0
    %388 = vmatprep.subr.mxu0 0.0
    %389 = vmatpush1.msra.mxu0 0.0
    %390 = vmatprep.subr.mxu0 0.0
    %391 = vmatpush1.msra.mxu0 0.0
    %392 = vmatprep.mubr.f32.mxu0 0.0
    %393 = vmatmul.mubr.f32.gmra.mrb[0].mxu0 %v326
    %v394 = vpop.f32.mrb[0].mxu0
    %v395 = vadd.f32 %v321, %v394
    %v396 = vpop.f32.mrb[0].mxu0
    %397 = vdwg.mxu0
    %v399 = vlaneseq
    %v400 = vshrl.u32 %v399, 7
    %v401 = vsub.s32 0, %v400
    %v402 = vrot.slane %v206, %v401
    %404 = vmatprep.subr.mxu0 0.0
    %405 = vmatpush1.msra.mxu0 %v181
    %406 = vmatprep.subr.mxu0 0.0
    %407 = vmatpush1.msra.mxu0 %v182
    %408 = vmatprep.subr.mxu0 0.0
    %409 = vmatpush1.msra.mxu0 0.0
    %410 = vmatprep.subr.mxu0 0.0
    %411 = vmatpush1.msra.mxu0 0.0
    %412 = vmatprep.subr.mxu0 0.0
    %413 = vmatpush1.msra.mxu0 0.0
    %414 = vmatprep.subr.mxu0 0.0
    %415 = vmatpush1.msra.mxu0 0.0
    %416 = vmatprep.subr.mxu0 0.0
    %417 = vmatpush1.msra.mxu0 0.0
    %418 = vmatprep.subr.mxu0 0.0
    %419 = vmatpush1.msra.mxu0 0.0
    %420 = vmatprep.subr.mxu0 0.0
    %421 = vmatpush1.msra.mxu0 0.0
    %422 = vmatprep.subr.mxu0 0.0
    %423 = vmatpush1.msra.mxu0 0.0
    %424 = vmatprep.subr.mxu0 0.0
    %425 = vmatpush1.msra.mxu0 0.0
    %426 = vmatprep.subr.mxu0 0.0
    %427 = vmatpush1.msra.mxu0 0.0
    %428 = vmatprep.subr.mxu0 0.0
    %429 = vmatpush1.msra.mxu0 0.0
    %430 = vmatprep.subr.mxu0 0.0
    %431 = vmatpush1.msra.mxu0 0.0
    %432 = vmatprep.subr.mxu0 0.0
    %433 = vmatpush1.msra.mxu0 0.0
    %434 = vmatprep.subr.mxu0 0.0
    %435 = vmatpush1.msra.mxu0 0.0
    %436 = vmatprep.subr.mxu0 0.0
    %437 = vmatpush1.msra.mxu0 0.0
    %438 = vmatprep.subr.mxu0 0.0
    %439 = vmatpush1.msra.mxu0 0.0
    %440 = vmatprep.subr.mxu0 0.0
    %441 = vmatpush1.msra.mxu0 0.0
    %442 = vmatprep.subr.mxu0 0.0
    %443 = vmatpush1.msra.mxu0 0.0
    %444 = vmatprep.subr.mxu0 0.0
    %445 = vmatpush1.msra.mxu0 0.0
    %446 = vmatprep.subr.mxu0 0.0
    %447 = vmatpush1.msra.mxu0 0.0
    %448 = vmatprep.subr.mxu0 0.0
    %449 = vmatpush1.msra.mxu0 0.0
    %450 = vmatprep.subr.mxu0 0.0
    %451 = vmatpush1.msra.mxu0 0.0
    %452 = vmatprep.subr.mxu0 0.0
    %453 = vmatpush1.msra.mxu0 0.0
    %454 = vmatprep.subr.mxu0 0.0
    %455 = vmatpush1.msra.mxu0 0.0
    %456 = vmatprep.subr.mxu0 0.0
    %457 = vmatpush1.msra.mxu0 0.0
    %458 = vmatprep.subr.mxu0 0.0
    %459 = vmatpush1.msra.mxu0 0.0
    %460 = vmatprep.subr.mxu0 0.0
    %461 = vmatpush1.msra.mxu0 0.0
    %462 = vmatprep.subr.mxu0 0.0
    %463 = vmatpush1.msra.mxu0 0.0
    %464 = vmatprep.subr.mxu0 0.0
    %465 = vmatpush1.msra.mxu0 0.0
    %466 = vmatprep.subr.mxu0 0.0
    %467 = vmatpush1.msra.mxu0 0.0
    %468 = vmatprep.mubr.f32.mxu0 0.0
    %469 = vmatmul.mubr.f32.gmra.mrb[0].mxu0 %v219
    %v470 = vpop.f32.mrb[0].mxu0
    %v471 = vadd.f32 %v402, %v470
    %v472 = vpop.f32.mrb[0].mxu0
    %473 = vdwg.mxu0
    %v474 = vadd.f32 %v395, %v471
    %v475 = vxor.u32 %v474, 2147483648
    %v476 = vmul.f32 %v475, 1.442695
    %v477 = vpow.pop %v476
    %v478 = vadd.f32 %v477, 1.0
    %v479 = vrcp.pop %v478
    %v480 = vmul.f32 1.0, %v479
    %482 = vrot.lane.b32.xlu0 %v471, 96
    %v483 = vpop.permute.xlu0 %482
    %v485 = vmul.f32 %v480, %v483
    %487 = vrot.lane.b32.xlu0 %v485, 32
    %v488 = vpop.permute.xlu0 %487
    %v490 = vadd.f32 %v395, %v488
    %v491 = vtanh.pop %v490
    %v492 = vsub.f32 1.0, %v480
    %494 = vrot.lane.b32.xlu0 %v491, 112
    %v495 = vpop.permute.xlu0 %494
    %v497 = vmul.f32 %v492, %v495
    %v498 = vmul.f32 %v480, 0.0
    %v499 = vadd.f32 %v497, %v498
    %v501 = vlaneseq
    %v502 = vshrl.u32 %v501, 7
    %v503 = vsub.s32 0, %v502
    %v504 = vrot.slane %v201, %v503
    %507 = vrot.lane.b32.xlu0 %v499, 112
    %v508 = vpop.permute.xlu0 %507
    %v509 = vsel %vm93, %v508, 0
    %511 = vmatprep.subr.mxu0 0.0
    %512 = vmatpush1.msra.mxu0 %v193
    %513 = vmatprep.subr.mxu0 0.0
    %514 = vmatpush1.msra.mxu0 %v194
    %515 = vmatprep.subr.mxu0 0.0
    %516 = vmatpush1.msra.mxu0 0.0
    %517 = vmatprep.subr.mxu0 0.0
    %518 = vmatpush1.msra.mxu0 0.0
    %519 = vmatprep.subr.mxu0 0.0
    %520 = vmatpush1.msra.mxu0 0.0
    %521 = vmatprep.subr.mxu0 0.0
    %522 = vmatpush1.msra.mxu0 0.0
    %523 = vmatprep.subr.mxu0 0.0
    %524 = vmatpush1.msra.mxu0 0.0
    %525 = vmatprep.subr.mxu0 0.0
    %526 = vmatpush1.msra.mxu0 0.0
    %527 = vmatprep.subr.mxu0 0.0
    %528 = vmatpush1.msra.mxu0 0.0
    %529 = vmatprep.subr.mxu0 0.0
    %530 = vmatpush1.msra.mxu0 0.0
    %531 = vmatprep.subr.mxu0 0.0
    %532 = vmatpush1.msra.mxu0 0.0
    %533 = vmatprep.subr.mxu0 0.0
    %534 = vmatpush1.msra.mxu0 0.0
    %535 = vmatprep.subr.mxu0 0.0
    %536 = vmatpush1.msra.mxu0 0.0
    %537 = vmatprep.subr.mxu0 0.0
    %538 = vmatpush1.msra.mxu0 0.0
    %539 = vmatprep.subr.mxu0 0.0
    %540 = vmatpush1.msra.mxu0 0.0
    %541 = vmatprep.subr.mxu0 0.0
    %542 = vmatpush1.msra.mxu0 0.0
    %543 = vmatprep.subr.mxu0 0.0
    %544 = vmatpush1.msra.mxu0 0.0
    %545 = vmatprep.subr.mxu0 0.0
    %546 = vmatpush1.msra.mxu0 0.0
    %547 = vmatprep.subr.mxu0 0.0
    %548 = vmatpush1.msra.mxu0 0.0
    %549 = vmatprep.subr.mxu0 0.0
    %550 = vmatpush1.msra.mxu0 0.0
    %551 = vmatprep.subr.mxu0 0.0
    %552 = vmatpush1.msra.mxu0 0.0
    %553 = vmatprep.subr.mxu0 0.0
    %554 = vmatpush1.msra.mxu0 0.0
    %555 = vmatprep.subr.mxu0 0.0
    %556 = vmatpush1.msra.mxu0 0.0
    %557 = vmatprep.subr.mxu0 0.0
    %558 = vmatpush1.msra.mxu0 0.0
    %559 = vmatprep.subr.mxu0 0.0
    %560 = vmatpush1.msra.mxu0 0.0
    %561 = vmatprep.subr.mxu0 0.0
    %562 = vmatpush1.msra.mxu0 0.0
    %563 = vmatprep.subr.mxu0 0.0
    %564 = vmatpush1.msra.mxu0 0.0
    %565 = vmatprep.subr.mxu0 0.0
    %566 = vmatpush1.msra.mxu0 0.0
    %567 = vmatprep.subr.mxu0 0.0
    %568 = vmatpush1.msra.mxu0 0.0
    %569 = vmatprep.subr.mxu0 0.0
    %570 = vmatpush1.msra.mxu0 0.0
    %571 = vmatprep.subr.mxu0 0.0
    %572 = vmatpush1.msra.mxu0 0.0
    %573 = vmatprep.subr.mxu0 0.0
    %574 = vmatpush1.msra.mxu0 0.0
    %575 = vmatprep.mubr.f32.mxu0 0.0
    %576 = vmatmul.mubr.f32.gmra.mrb[0].mxu0 %v509
    %v577 = vpop.f32.mrb[0].mxu0
    %v578 = vadd.f32 %v504, %v577
    %v579 = vpop.f32.mrb[0].mxu0
    %580 = vdwg.mxu0
    %v582 = vlaneseq
    %v583 = vshrl.u32 %v582, 7
    %v584 = vsub.s32 0, %v583
    %v585 = vrot.slane %v208, %v584
    %587 = vmatprep.subr.mxu0 0.0
    %588 = vmatpush1.msra.mxu0 %v184
    %589 = vmatprep.subr.mxu0 0.0
    %590 = vmatpush1.msra.mxu0 %v185
    %591 = vmatprep.subr.mxu0 0.0
    %592 = vmatpush1.msra.mxu0 0.0
    %593 = vmatprep.subr.mxu0 0.0
    %594 = vmatpush1.msra.mxu0 0.0
    %595 = vmatprep.subr.mxu0 0.0
    %596 = vmatpush1.msra.mxu0 0.0
    %597 = vmatprep.subr.mxu0 0.0
    %598 = vmatpush1.msra.mxu0 0.0
    %599 = vmatprep.subr.mxu0 0.0
    %600 = vmatpush1.msra.mxu0 0.0
    %601 = vmatprep.subr.mxu0 0.0
    %602 = vmatpush1.msra.mxu0 0.0
    %603 = vmatprep.subr.mxu0 0.0
    %604 = vmatpush1.msra.mxu0 0.0
    %605 = vmatprep.subr.mxu0 0.0
    %606 = vmatpush1.msra.mxu0 0.0
    %607 = vmatprep.subr.mxu0 0.0
    %608 = vmatpush1.msra.mxu0 0.0
    %609 = vmatprep.subr.mxu0 0.0
    %610 = vmatpush1.msra.mxu0 0.0
    %611 = vmatprep.subr.mxu0 0.0
    %612 = vmatpush1.msra.mxu0 0.0
    %613 = vmatprep.subr.mxu0 0.0
    %614 = vmatpush1.msra.mxu0 0.0
    %615 = vmatprep.subr.mxu0 0.0
    %616 = vmatpush1.msra.mxu0 0.0
    %617 = vmatprep.subr.mxu0 0.0
    %618 = vmatpush1.msra.mxu0 0.0
    %619 = vmatprep.subr.mxu0 0.0
    %620 = vmatpush1.msra.mxu0 0.0
    %621 = vmatprep.subr.mxu0 0.0
    %622 = vmatpush1.msra.mxu0 0.0
    %623 = vmatprep.subr.mxu0 0.0
    %624 = vmatpush1.msra.mxu0 0.0
    %625 = vmatprep.subr.mxu0 0.0
    %626 = vmatpush1.msra.mxu0 0.0
    %627 = vmatprep.subr.mxu0 0.0
    %628 = vmatpush1.msra.mxu0 0.0
    %629 = vmatprep.subr.mxu0 0.0
    %630 = vmatpush1.msra.mxu0 0.0
    %631 = vmatprep.subr.mxu0 0.0
    %632 = vmatpush1.msra.mxu0 0.0
    %633 = vmatprep.subr.mxu0 0.0
    %634 = vmatpush1.msra.mxu0 0.0
    %635 = vmatprep.subr.mxu0 0.0
    %636 = vmatpush1.msra.mxu0 0.0
    %637 = vmatprep.subr.mxu0 0.0
    %638 = vmatpush1.msra.mxu0 0.0
    %639 = vmatprep.subr.mxu0 0.0
    %640 = vmatpush1.msra.mxu0 0.0
    %641 = vmatprep.subr.mxu0 0.0
    %642 = vmatpush1.msra.mxu0 0.0
    %643 = vmatprep.subr.mxu0 0.0
    %644 = vmatpush1.msra.mxu0 0.0
    %645 = vmatprep.subr.mxu0 0.0
    %646 = vmatpush1.msra.mxu0 0.0
    %647 = vmatprep.subr.mxu0 0.0
    %648 = vmatpush1.msra.mxu0 0.0
    %649 = vmatprep.subr.mxu0 0.0
    %650 = vmatpush1.msra.mxu0 0.0
    %651 = vmatprep.mubr.f32.mxu0 0.0
    %652 = vmatmul.mubr.f32.gmra.mrb[0].mxu0 %v219
    %v653 = vpop.f32.mrb[0].mxu0
    %v654 = vadd.f32 %v585, %v653
    %v655 = vpop.f32.mrb[0].mxu0
    %656 = vdwg.mxu0
    %v657 = vadd.f32 %v578, %v654
    %v658 = vxor.u32 %v657, 2147483648
    %v659 = vmul.f32 %v658, 1.442695
    %v660 = vpow.pop %v659
    %v661 = vadd.f32 %v660, 1.0
    %v662 = vrcp.pop %v661
    %v663 = vmul.f32 1.0, %v662
    %665 = vrot.lane.b32.xlu0 %v654, 96
    %v666 = vpop.permute.xlu0 %665
    %v668 = vmul.f32 %v663, %v666
    %670 = vrot.lane.b32.xlu0 %v668, 32
    %v671 = vpop.permute.xlu0 %670
    %v673 = vadd.f32 %v578, %v671
    %v674 = vtanh.pop %v673
    %v675 = vsub.f32 1.0, %v663
    %677 = vrot.lane.b32.xlu0 %v674, 112
    %v678 = vpop.permute.xlu0 %677
    %v680 = vmul.f32 %v675, %v678
    %v681 = vmul.f32 %v663, 0.0
    %v682 = vadd.f32 %v680, %v681
    %v684 = vlaneseq
    %v685 = vshrl.u32 %v684, 7
    %v686 = vsub.s32 0, %v685
    %v687 = vrot.slane %v203, %v686
    %690 = vrot.lane.b32.xlu0 %v682, 112
    %v691 = vpop.permute.xlu0 %690
    %v692 = vsel %vm93, %v691, 0
    %694 = vmatprep.subr.mxu0 0.0
    %695 = vmatpush1.msra.mxu0 %v196
    %696 = vmatprep.subr.mxu0 0.0
    %697 = vmatpush1.msra.mxu0 %v197
    %698 = vmatprep.subr.mxu0 0.0
    %699 = vmatpush1.msra.mxu0 0.0
    %700 = vmatprep.subr.mxu0 0.0
    %701 = vmatpush1.msra.mxu0 0.0
    %702 = vmatprep.subr.mxu0 0.0
    %703 = vmatpush1.msra.mxu0 0.0
    %704 = vmatprep.subr.mxu0 0.0
    %705 = vmatpush1.msra.mxu0 0.0
    %706 = vmatprep.subr.mxu0 0.0
    %707 = vmatpush1.msra.mxu0 0.0
    %708 = vmatprep.subr.mxu0 0.0
    %709 = vmatpush1.msra.mxu0 0.0
    %710 = vmatprep.subr.mxu0 0.0
    %711 = vmatpush1.msra.mxu0 0.0
    %712 = vmatprep.subr.mxu0 0.0
    %713 = vmatpush1.msra.mxu0 0.0
    %714 = vmatprep.subr.mxu0 0.0
    %715 = vmatpush1.msra.mxu0 0.0
    %716 = vmatprep.subr.mxu0 0.0
    %717 = vmatpush1.msra.mxu0 0.0
    %718 = vmatprep.subr.mxu0 0.0
    %719 = vmatpush1.msra.mxu0 0.0
    %720 = vmatprep.subr.mxu0 0.0
    %721 = vmatpush1.msra.mxu0 0.0
    %722 = vmatprep.subr.mxu0 0.0
    %723 = vmatpush1.msra.mxu0 0.0
    %724 = vmatprep.subr.mxu0 0.0
    %725 = vmatpush1.msra.mxu0 0.0
    %726 = vmatprep.subr.mxu0 0.0
    %727 = vmatpush1.msra.mxu0 0.0
    %728 = vmatprep.subr.mxu0 0.0
    %729 = vmatpush1.msra.mxu0 0.0
    %730 = vmatprep.subr.mxu0 0.0
    %731 = vmatpush1.msra.mxu0 0.0
    %732 = vmatprep.subr.mxu0 0.0
    %733 = vmatpush1.msra.mxu0 0.0
    %734 = vmatprep.subr.mxu0 0.0
    %735 = vmatpush1.msra.mxu0 0.0
    %736 = vmatprep.subr.mxu0 0.0
    %737 = vmatpush1.msra.mxu0 0.0
    %738 = vmatprep.subr.mxu0 0.0
    %739 = vmatpush1.msra.mxu0 0.0
    %740 = vmatprep.subr.mxu0 0.0
    %741 = vmatpush1.msra.mxu0 0.0
    %742 = vmatprep.subr.mxu0 0.0
    %743 = vmatpush1.msra.mxu0 0.0
    %744 = vmatprep.subr.mxu0 0.0
    %745 = vmatpush1.msra.mxu0 0.0
    %746 = vmatprep.subr.mxu0 0.0
    %747 = vmatpush1.msra.mxu0 0.0
    %748 = vmatprep.subr.mxu0 0.0
    %749 = vmatpush1.msra.mxu0 0.0
    %750 = vmatprep.subr.mxu0 0.0
    %751 = vmatpush1.msra.mxu0 0.0
    %752 = vmatprep.subr.mxu0 0.0
    %753 = vmatpush1.msra.mxu0 0.0
    %754 = vmatprep.subr.mxu0 0.0
    %755 = vmatpush1.msra.mxu0 0.0
    %756 = vmatprep.subr.mxu0 0.0
    %757 = vmatpush1.msra.mxu0 0.0
    %758 = vmatprep.mubr.f32.mxu0 0.0
    %759 = vmatmul.mubr.f32.gmra.mrb[0].mxu0 %v692
    %v760 = vpop.f32.mrb[0].mxu0
    %v761 = vadd.f32 %v687, %v760
    %v762 = vpop.f32.mrb[0].mxu0
    %763 = vdwg.mxu0
    %v765 = vlaneseq
    %v766 = vshrl.u32 %v765, 7
    %v767 = vsub.s32 0, %v766
    %v768 = vrot.slane %v210, %v767
    %770 = vmatprep.subr.mxu0 0.0
    %771 = vmatpush1.msra.mxu0 %v187
    %772 = vmatprep.subr.mxu0 0.0
    %773 = vmatpush1.msra.mxu0 %v188
    %774 = vmatprep.subr.mxu0 0.0
    %775 = vmatpush1.msra.mxu0 0.0
    %776 = vmatprep.subr.mxu0 0.0
    %777 = vmatpush1.msra.mxu0 0.0
    %778 = vmatprep.subr.mxu0 0.0
    %779 = vmatpush1.msra.mxu0 0.0
    %780 = vmatprep.subr.mxu0 0.0
    %781 = vmatpush1.msra.mxu0 0.0
    %782 = vmatprep.subr.mxu0 0.0
    %783 = vmatpush1.msra.mxu0 0.0
    %784 = vmatprep.subr.mxu0 0.0
    %785 = vmatpush1.msra.mxu0 0.0
    %786 = vmatprep.subr.mxu0 0.0
    %787 = vmatpush1.msra.mxu0 0.0
    %788 = vmatprep.subr.mxu0 0.0
    %789 = vmatpush1.msra.mxu0 0.0
    %790 = vmatprep.subr.mxu0 0.0
    %791 = vmatpush1.msra.mxu0 0.0
    %792 = vmatprep.subr.mxu0 0.0
    %793 = vmatpush1.msra.mxu0 0.0
    %794 = vmatprep.subr.mxu0 0.0
    %795 = vmatpush1.msra.mxu0 0.0
    %796 = vmatprep.subr.mxu0 0.0
    %797 = vmatpush1.msra.mxu0 0.0
    %798 = vmatprep.subr.mxu0 0.0
    %799 = vmatpush1.msra.mxu0 0.0
    %800 = vmatprep.subr.mxu0 0.0
    %801 = vmatpush1.msra.mxu0 0.0
    %802 = vmatprep.subr.mxu0 0.0
    %803 = vmatpush1.msra.mxu0 0.0
    %804 = vmatprep.subr.mxu0 0.0
    %805 = vmatpush1.msra.mxu0 0.0
    %806 = vmatprep.subr.mxu0 0.0
    %807 = vmatpush1.msra.mxu0 0.0
    %808 = vmatprep.subr.mxu0 0.0
    %809 = vmatpush1.msra.mxu0 0.0
    %810 = vmatprep.subr.mxu0 0.0
    %811 = vmatpush1.msra.mxu0 0.0
    %812 = vmatprep.subr.mxu0 0.0
    %813 = vmatpush1.msra.mxu0 0.0
    %814 = vmatprep.subr.mxu0 0.0
    %815 = vmatpush1.msra.mxu0 0.0
    %816 = vmatprep.subr.mxu0 0.0
    %817 = vmatpush1.msra.mxu0 0.0
    %818 = vmatprep.subr.mxu0 0.0
    %819 = vmatpush1.msra.mxu0 0.0
    %820 = vmatprep.subr.mxu0 0.0
    %821 = vmatpush1.msra.mxu0 0.0
    %822 = vmatprep.subr.mxu0 0.0
    %823 = vmatpush1.msra.mxu0 0.0
    %824 = vmatprep.subr.mxu0 0.0
    %825 = vmatpush1.msra.mxu0 0.0
    %826 = vmatprep.subr.mxu0 0.0
    %827 = vmatpush1.msra.mxu0 0.0
    %828 = vmatprep.subr.mxu0 0.0
    %829 = vmatpush1.msra.mxu0 0.0
    %830 = vmatprep.subr.mxu0 0.0
    %831 = vmatpush1.msra.mxu0 0.0
    %832 = vmatprep.subr.mxu0 0.0
    %833 = vmatpush1.msra.mxu0 0.0
    %834 = vmatprep.mubr.f32.mxu0 0.0
    %835 = vmatmul.mubr.f32.gmra.mrb[0].mxu0 %v219
    %v836 = vpop.f32.mrb[0].mxu0
    %v837 = vadd.f32 %v768, %v836
    %v838 = vpop.f32.mrb[0].mxu0
    %839 = vdwg.mxu0
    %v840 = vadd.f32 %v761, %v837
    %v841 = vxor.u32 %v840, 2147483648
    %v842 = vmul.f32 %v841, 1.442695
    %v843 = vpow.pop %v842
    %v844 = vadd.f32 %v843, 1.0
    %v845 = vrcp.pop %v844
    %v846 = vmul.f32 1.0, %v845
    %848 = vrot.lane.b32.xlu0 %v837, 96
    %v849 = vpop.permute.xlu0 %848
    %v851 = vmul.f32 %v846, %v849
    %853 = vrot.lane.b32.xlu0 %v851, 32
    %v854 = vpop.permute.xlu0 %853
    %v856 = vadd.f32 %v761, %v854
    %v857 = vtanh.pop %v856
    %v858 = vsub.f32 1.0, %v846
    %860 = vrot.lane.b32.xlu0 %v857, 112
    %v861 = vpop.permute.xlu0 %860
    %v863 = vmul.f32 %v858, %v861
    %v864 = vmul.f32 %v846, 0.0
    %v865 = vadd.f32 %v863, %v864
    %s866 = scalar_lea.vmem [#allocation2], 2
    %v867 = vld [vmem:[%s866] sm:$0x3]
    %868 = vmatprep.subr.mxu0 0.0
    %869 = vmatpush1.msra.mxu0 %v178
    %870 = vmatprep.subr.mxu0 0.0
    %871 = vmatpush1.msra.mxu0 %v179
    %872 = vmatprep.subr.mxu0 0.0
    %873 = vmatpush1.msra.mxu0 0.0
    %874 = vmatprep.subr.mxu0 0.0
    %875 = vmatpush1.msra.mxu0 0.0
    %876 = vmatprep.subr.mxu0 0.0
    %877 = vmatpush1.msra.mxu0 0.0
    %878 = vmatprep.subr.mxu0 0.0
    %879 = vmatpush1.msra.mxu0 0.0
    %880 = vmatprep.subr.mxu0 0.0
    %881 = vmatpush1.msra.mxu0 0.0
    %882 = vmatprep.subr.mxu0 0.0
    %883 = vmatpush1.msra.mxu0 0.0
    %884 = vmatprep.subr.mxu0 0.0
    %885 = vmatpush1.msra.mxu0 0.0
    %886 = vmatprep.subr.mxu0 0.0
    %887 = vmatpush1.msra.mxu0 0.0
    %888 = vmatprep.subr.mxu0 0.0
    %889 = vmatpush1.msra.mxu0 0.0
    %890 = vmatprep.subr.mxu0 0.0
    %891 = vmatpush1.msra.mxu0 0.0
    %892 = vmatprep.subr.mxu0 0.0
    %893 = vmatpush1.msra.mxu0 0.0
    %894 = vmatprep.subr.mxu0 0.0
    %895 = vmatpush1.msra.mxu0 0.0
    %896 = vmatprep.subr.mxu0 0.0
    %897 = vmatpush1.msra.mxu0 0.0
    %898 = vmatprep.subr.mxu0 0.0
    %899 = vmatpush1.msra.mxu0 0.0
    %900 = vmatprep.subr.mxu0 0.0
    %901 = vmatpush1.msra.mxu0 0.0
    %902 = vmatprep.subr.mxu0 0.0
    %903 = vmatpush1.msra.mxu0 0.0
    %904 = vmatprep.subr.mxu0 0.0
    %905 = vmatpush1.msra.mxu0 0.0
    %906 = vmatprep.subr.mxu0 0.0
    %907 = vmatpush1.msra.mxu0 0.0
    %908 = vmatprep.subr.mxu0 0.0
    %909 = vmatpush1.msra.mxu0 0.0
    %910 = vmatprep.subr.mxu0 0.0
    %911 = vmatpush1.msra.mxu0 0.0
    %912 = vmatprep.subr.mxu0 0.0
    %913 = vmatpush1.msra.mxu0 0.0
    %914 = vmatprep.subr.mxu0 0.0
    %915 = vmatpush1.msra.mxu0 0.0
    %916 = vmatprep.subr.mxu0 0.0
    %917 = vmatpush1.msra.mxu0 0.0
    %918 = vmatprep.subr.mxu0 0.0
    %919 = vmatpush1.msra.mxu0 0.0
    %920 = vmatprep.subr.mxu0 0.0
    %921 = vmatpush1.msra.mxu0 0.0
    %922 = vmatprep.subr.mxu0 0.0
    %923 = vmatpush1.msra.mxu0 0.0
    %924 = vmatprep.subr.mxu0 0.0
    %925 = vmatpush1.msra.mxu0 0.0
    %926 = vmatprep.subr.mxu0 0.0
    %927 = vmatpush1.msra.mxu0 0.0
    %928 = vmatprep.subr.mxu0 0.0
    %929 = vmatpush1.msra.mxu0 0.0
    %930 = vmatprep.subr.mxu0 0.0
    %931 = vmatpush1.msra.mxu0 0.0
    %932 = vmatprep.mubr.f32.mxu0 0.0
    %933 = vmatmul.mubr.f32.gmra.mrb[0].mxu0 %v326
    %v934 = vpop.f32.mrb[0].mxu0
    %v935 = vadd.f32 %v216, %v934
    %v936 = vpop.f32.mrb[0].mxu0
    %937 = vdwg.mxu0
    %v938 = vadd.f32 %v867, %v935
    %v939 = vxor.u32 %v938, 2147483648
    %v940 = vmul.f32 %v939, 1.442695
    %v941 = vpow.pop %v940
    %v942 = vadd.f32 %v941, 1.0
    %v943 = vrcp.pop %v942
    %v944 = vmul.f32 1.0, %v943
    %946 = vrot.lane.b32.xlu0 %v935, 96
    %v947 = vpop.permute.xlu0 %946
    %v949 = vmul.f32 %v944, %v947
    %951 = vrot.lane.b32.xlu0 %v949, 32
    %v952 = vpop.permute.xlu0 %951
    %v954 = vadd.f32 %v867, %v952
    %v955 = vtanh.pop %v954
    %v956 = vsub.f32 1.0, %v944
    %958 = vrot.lane.b32.xlu0 %v955, 112
    %v959 = vpop.permute.xlu0 %958
    %v961 = vmul.f32 %v956, %v959
    %v962 = vmul.f32 %v944, %v316
    %v963 = vadd.f32 %v961, %v962
    %965 = vrot.lane.b32.xlu0 %v963, 112
    %v966 = vpop.permute.xlu0 %965
    %v967 = vsel %vm93, %v966, 0
    %969 = vmatprep.subr.mxu0 0.0
    %970 = vmatpush1.msra.mxu0 %v190
    %971 = vmatprep.subr.mxu0 0.0
    %972 = vmatpush1.msra.mxu0 %v191
    %973 = vmatprep.subr.mxu0 0.0
    %974 = vmatpush1.msra.mxu0 0.0
    %975 = vmatprep.subr.mxu0 0.0
    %976 = vmatpush1.msra.mxu0 0.0
    %977 = vmatprep.subr.mxu0 0.0
    %978 = vmatpush1.msra.mxu0 0.0
    %979 = vmatprep.subr.mxu0 0.0
    %980 = vmatpush1.msra.mxu0 0.0
    %981 = vmatprep.subr.mxu0 0.0
    %982 = vmatpush1.msra.mxu0 0.0
    %983 = vmatprep.subr.mxu0 0.0
    %984 = vmatpush1.msra.mxu0 0.0
    %985 = vmatprep.subr.mxu0 0.0
    %986 = vmatpush1.msra.mxu0 0.0
    %987 = vmatprep.subr.mxu0 0.0
    %988 = vmatpush1.msra.mxu0 0.0
    %989 = vmatprep.subr.mxu0 0.0
    %990 = vmatpush1.msra.mxu0 0.0
    %991 = vmatprep.subr.mxu0 0.0
    %992 = vmatpush1.msra.mxu0 0.0
    %993 = vmatprep.subr.mxu0 0.0
    %994 = vmatpush1.msra.mxu0 0.0
    %995 = vmatprep.subr.mxu0 0.0
    %996 = vmatpush1.msra.mxu0 0.0
    %997 = vmatprep.subr.mxu0 0.0
    %998 = vmatpush1.msra.mxu0 0.0
    %999 = vmatprep.subr.mxu0 0.0
    %1000 = vmatpush1.msra.mxu0 0.0
    %1001 = vmatprep.subr.mxu0 0.0
    %1002 = vmatpush1.msra.mxu0 0.0
    %1003 = vmatprep.subr.mxu0 0.0
    %1004 = vmatpush1.msra.mxu0 0.0
    %1005 = vmatprep.subr.mxu0 0.0
    %1006 = vmatpush1.msra.mxu0 0.0
    %1007 = vmatprep.subr.mxu0 0.0
    %1008 = vmatpush1.msra.mxu0 0.0
    %1009 = vmatprep.subr.mxu0 0.0
    %1010 = vmatpush1.msra.mxu0 0.0
    %1011 = vmatprep.subr.mxu0 0.0
    %1012 = vmatpush1.msra.mxu0 0.0
    %1013 = vmatprep.subr.mxu0 0.0
    %1014 = vmatpush1.msra.mxu0 0.0
    %1015 = vmatprep.subr.mxu0 0.0
    %1016 = vmatpush1.msra.mxu0 0.0
    %1017 = vmatprep.subr.mxu0 0.0
    %1018 = vmatpush1.msra.mxu0 0.0
    %1019 = vmatprep.subr.mxu0 0.0
    %1020 = vmatpush1.msra.mxu0 0.0
    %1021 = vmatprep.subr.mxu0 0.0
    %1022 = vmatpush1.msra.mxu0 0.0
    %1023 = vmatprep.subr.mxu0 0.0
    %1024 = vmatpush1.msra.mxu0 0.0
    %1025 = vmatprep.subr.mxu0 0.0
    %1026 = vmatpush1.msra.mxu0 0.0
    %1027 = vmatprep.subr.mxu0 0.0
    %1028 = vmatpush1.msra.mxu0 0.0
    %1029 = vmatprep.subr.mxu0 0.0
    %1030 = vmatpush1.msra.mxu0 0.0
    %1031 = vmatprep.subr.mxu0 0.0
    %1032 = vmatpush1.msra.mxu0 0.0
    %1033 = vmatprep.mubr.f32.mxu0 0.0
    %1034 = vmatmul.mubr.f32.gmra.mrb[0].mxu0 %v967
    %v1035 = vpop.f32.mrb[0].mxu0
    %v1036 = vadd.f32 %v321, %v1035
    %v1037 = vpop.f32.mrb[0].mxu0
    %1038 = vdwg.mxu0
    %1039 = vmatprep.subr.mxu0 0.0
    %1040 = vmatpush1.msra.mxu0 %v181
    %1041 = vmatprep.subr.mxu0 0.0
    %1042 = vmatpush1.msra.mxu0 %v182
    %1043 = vmatprep.subr.mxu0 0.0
    %1044 = vmatpush1.msra.mxu0 0.0
    %1045 = vmatprep.subr.mxu0 0.0
    %1046 = vmatpush1.msra.mxu0 0.0
    %1047 = vmatprep.subr.mxu0 0.0
    %1048 = vmatpush1.msra.mxu0 0.0
    %1049 = vmatprep.subr.mxu0 0.0
    %1050 = vmatpush1.msra.mxu0 0.0
    %1051 = vmatprep.subr.mxu0 0.0
    %1052 = vmatpush1.msra.mxu0 0.0
    %1053 = vmatprep.subr.mxu0 0.0
    %1054 = vmatpush1.msra.mxu0 0.0
    %1055 = vmatprep.subr.mxu0 0.0
    %1056 = vmatpush1.msra.mxu0 0.0
    %1057 = vmatprep.subr.mxu0 0.0
    %1058 = vmatpush1.msra.mxu0 0.0
    %1059 = vmatprep.subr.mxu0 0.0
    %1060 = vmatpush1.msra.mxu0 0.0
    %1061 = vmatprep.subr.mxu0 0.0
    %1062 = vmatpush1.msra.mxu0 0.0
    %1063 = vmatprep.subr.mxu0 0.0
    %1064 = vmatpush1.msra.mxu0 0.0
    %1065 = vmatprep.subr.mxu0 0.0
    %1066 = vmatpush1.msra.mxu0 0.0
    %1067 = vmatprep.subr.mxu0 0.0
    %1068 = vmatpush1.msra.mxu0 0.0
    %1069 = vmatprep.subr.mxu0 0.0
    %1070 = vmatpush1.msra.mxu0 0.0
    %1071 = vmatprep.subr.mxu0 0.0
    %1072 = vmatpush1.msra.mxu0 0.0
    %1073 = vmatprep.subr.mxu0 0.0
    %1074 = vmatpush1.msra.mxu0 0.0
    %1075 = vmatprep.subr.mxu0 0.0
    %1076 = vmatpush1.msra.mxu0 0.0
    %1077 = vmatprep.subr.mxu0 0.0
    %1078 = vmatpush1.msra.mxu0 0.0
    %1079 = vmatprep.subr.mxu0 0.0
    %1080 = vmatpush1.msra.mxu0 0.0
    %1081 = vmatprep.subr.mxu0 0.0
    %1082 = vmatpush1.msra.mxu0 0.0
    %1083 = vmatprep.subr.mxu0 0.0
    %1084 = vmatpush1.msra.mxu0 0.0
    %1085 = vmatprep.subr.mxu0 0.0
    %1086 = vmatpush1.msra.mxu0 0.0
    %1087 = vmatprep.subr.mxu0 0.0
    %1088 = vmatpush1.msra.mxu0 0.0
    %1089 = vmatprep.subr.mxu0 0.0
    %1090 = vmatpush1.msra.mxu0 0.0
    %1091 = vmatprep.subr.mxu0 0.0
    %1092 = vmatpush1.msra.mxu0 0.0
    %1093 = vmatprep.subr.mxu0 0.0
    %1094 = vmatpush1.msra.mxu0 0.0
    %1095 = vmatprep.subr.mxu0 0.0
    %1096 = vmatpush1.msra.mxu0 0.0
    %1097 = vmatprep.subr.mxu0 0.0
    %1098 = vmatpush1.msra.mxu0 0.0
    %1099 = vmatprep.subr.mxu0 0.0
    %1100 = vmatpush1.msra.mxu0 0.0
    %1101 = vmatprep.subr.mxu0 0.0
    %1102 = vmatpush1.msra.mxu0 0.0
    %1103 = vmatprep.mubr.f32.mxu0 0.0
    %1104 = vmatmul.mubr.f32.gmra.mrb[0].mxu0 %v509
    %v1105 = vpop.f32.mrb[0].mxu0
    %v1106 = vadd.f32 %v402, %v1105
    %v1107 = vpop.f32.mrb[0].mxu0
    %1108 = vdwg.mxu0
    %v1109 = vadd.f32 %v1036, %v1106
    %v1110 = vxor.u32 %v1109, 2147483648
    %v1111 = vmul.f32 %v1110, 1.442695
    %v1112 = vpow.pop %v1111
    %v1113 = vadd.f32 %v1112, 1.0
    %v1114 = vrcp.pop %v1113
    %v1115 = vmul.f32 1.0, %v1114
    %1117 = vrot.lane.b32.xlu0 %v1106, 96
    %v1118 = vpop.permute.xlu0 %1117
    %v1120 = vmul.f32 %v1115, %v1118
    %1122 = vrot.lane.b32.xlu0 %v1120, 32
    %v1123 = vpop.permute.xlu0 %1122
    %v1125 = vadd.f32 %v1036, %v1123
    %v1126 = vtanh.pop %v1125
    %v1127 = vsub.f32 1.0, %v1115
    %1129 = vrot.lane.b32.xlu0 %v1126, 112
    %v1130 = vpop.permute.xlu0 %1129
    %v1132 = vmul.f32 %v1127, %v1130
    %v1133 = vmul.f32 %v1115, %v499
    %v1134 = vadd.f32 %v1132, %v1133
    %1136 = vrot.lane.b32.xlu0 %v1134, 112
    %v1137 = vpop.permute.xlu0 %1136
    %v1138 = vsel %vm93, %v1137, 0
    %1140 = vmatprep.subr.mxu0 0.0
    %1141 = vmatpush1.msra.mxu0 %v193
    %1142 = vmatprep.subr.mxu0 0.0
    %1143 = vmatpush1.msra.mxu0 %v194
    %1144 = vmatprep.subr.mxu0 0.0
    %1145 = vmatpush1.msra.mxu0 0.0
    %1146 = vmatprep.subr.mxu0 0.0
    %1147 = vmatpush1.msra.mxu0 0.0
    %1148 = vmatprep.subr.mxu0 0.0
    %1149 = vmatpush1.msra.mxu0 0.0
    %1150 = vmatprep.subr.mxu0 0.0
    %1151 = vmatpush1.msra.mxu0 0.0
    %1152 = vmatprep.subr.mxu0 0.0
    %1153 = vmatpush1.msra.mxu0 0.0
    %1154 = vmatprep.subr.mxu0 0.0
    %1155 = vmatpush1.msra.mxu0 0.0
    %1156 = vmatprep.subr.mxu0 0.0
    %1157 = vmatpush1.msra.mxu0 0.0
    %1158 = vmatprep.subr.mxu0 0.0
    %1159 = vmatpush1.msra.mxu0 0.0
    %1160 = vmatprep.subr.mxu0 0.0
    %1161 = vmatpush1.msra.mxu0 0.0
    %1162 = vmatprep.subr.mxu0 0.0
    %1163 = vmatpush1.msra.mxu0 0.0
    %1164 = vmatprep.subr.mxu0 0.0
    %1165 = vmatpush1.msra.mxu0 0.0
    %1166 = vmatprep.subr.mxu0 0.0
    %1167 = vmatpush1.msra.mxu0 0.0
    %1168 = vmatprep.subr.mxu0 0.0
    %1169 = vmatpush1.msra.mxu0 0.0
    %1170 = vmatprep.subr.mxu0 0.0
    %1171 = vmatpush1.msra.mxu0 0.0
    %1172 = vmatprep.subr.mxu0 0.0
    %1173 = vmatpush1.msra.mxu0 0.0
    %1174 = vmatprep.subr.mxu0 0.0
    %1175 = vmatpush1.msra.mxu0 0.0
    %1176 = vmatprep.subr.mxu0 0.0
    %1177 = vmatpush1.msra.mxu0 0.0
    %1178 = vmatprep.subr.mxu0 0.0
    %1179 = vmatpush1.msra.mxu0 0.0
    %1180 = vmatprep.subr.mxu0 0.0
    %1181 = vmatpush1.msra.mxu0 0.0
    %1182 = vmatprep.subr.mxu0 0.0
    %1183 = vmatpush1.msra.mxu0 0.0
    %1184 = vmatprep.subr.mxu0 0.0
    %1185 = vmatpush1.msra.mxu0 0.0
    %1186 = vmatprep.subr.mxu0 0.0
    %1187 = vmatpush1.msra.mxu0 0.0
    %1188 = vmatprep.subr.mxu0 0.0
    %1189 = vmatpush1.msra.mxu0 0.0
    %1190 = vmatprep.subr.mxu0 0.0
    %1191 = vmatpush1.msra.mxu0 0.0
    %1192 = vmatprep.subr.mxu0 0.0
    %1193 = vmatpush1.msra.mxu0 0.0
    %1194 = vmatprep.subr.mxu0 0.0
    %1195 = vmatpush1.msra.mxu0 0.0
    %1196 = vmatprep.subr.mxu0 0.0
    %1197 = vmatpush1.msra.mxu0 0.0
    %1198 = vmatprep.subr.mxu0 0.0
    %1199 = vmatpush1.msra.mxu0 0.0
    %1200 = vmatprep.subr.mxu0 0.0
    %1201 = vmatpush1.msra.mxu0 0.0
    %1202 = vmatprep.subr.mxu0 0.0
    %1203 = vmatpush1.msra.mxu0 0.0
    %1204 = vmatprep.mubr.f32.mxu0 0.0
    %1205 = vmatmul.mubr.f32.gmra.mrb[0].mxu0 %v1138
    %v1206 = vpop.f32.mrb[0].mxu0
    %v1207 = vadd.f32 %v504, %v1206
    %v1208 = vpop.f32.mrb[0].mxu0
    %1209 = vdwg.mxu0
    %1210 = vmatprep.subr.mxu0 0.0
    %1211 = vmatpush1.msra.mxu0 %v184
    %1212 = vmatprep.subr.mxu0 0.0
    %1213 = vmatpush1.msra.mxu0 %v185
    %1214 = vmatprep.subr.mxu0 0.0
    %1215 = vmatpush1.msra.mxu0 0.0
    %1216 = vmatprep.subr.mxu0 0.0
    %1217 = vmatpush1.msra.mxu0 0.0
    %1218 = vmatprep.subr.mxu0 0.0
    %1219 = vmatpush1.msra.mxu0 0.0
    %1220 = vmatprep.subr.mxu0 0.0
    %1221 = vmatpush1.msra.mxu0 0.0
    %1222 = vmatprep.subr.mxu0 0.0
    %1223 = vmatpush1.msra.mxu0 0.0
    %1224 = vmatprep.subr.mxu0 0.0
    %1225 = vmatpush1.msra.mxu0 0.0
    %1226 = vmatprep.subr.mxu0 0.0
    %1227 = vmatpush1.msra.mxu0 0.0
    %1228 = vmatprep.subr.mxu0 0.0
    %1229 = vmatpush1.msra.mxu0 0.0
    %1230 = vmatprep.subr.mxu0 0.0
    %1231 = vmatpush1.msra.mxu0 0.0
    %1232 = vmatprep.subr.mxu0 0.0
    %1233 = vmatpush1.msra.mxu0 0.0
    %1234 = vmatprep.subr.mxu0 0.0
    %1235 = vmatpush1.msra.mxu0 0.0
    %1236 = vmatprep.subr.mxu0 0.0
    %1237 = vmatpush1.msra.mxu0 0.0
    %1238 = vmatprep.subr.mxu0 0.0
    %1239 = vmatpush1.msra.mxu0 0.0
    %1240 = vmatprep.subr.mxu0 0.0
    %1241 = vmatpush1.msra.mxu0 0.0
    %1242 = vmatprep.subr.mxu0 0.0
    %1243 = vmatpush1.msra.mxu0 0.0
    %1244 = vmatprep.subr.mxu0 0.0
    %1245 = vmatpush1.msra.mxu0 0.0
    %1246 = vmatprep.subr.mxu0 0.0
    %1247 = vmatpush1.msra.mxu0 0.0
    %1248 = vmatprep.subr.mxu0 0.0
    %1249 = vmatpush1.msra.mxu0 0.0
    %1250 = vmatprep.subr.mxu0 0.0
    %1251 = vmatpush1.msra.mxu0 0.0
    %1252 = vmatprep.subr.mxu0 0.0
    %1253 = vmatpush1.msra.mxu0 0.0
    %1254 = vmatprep.subr.mxu0 0.0
    %1255 = vmatpush1.msra.mxu0 0.0
    %1256 = vmatprep.subr.mxu0 0.0
    %1257 = vmatpush1.msra.mxu0 0.0
    %1258 = vmatprep.subr.mxu0 0.0
    %1259 = vmatpush1.msra.mxu0 0.0
    %1260 = vmatprep.subr.mxu0 0.0
    %1261 = vmatpush1.msra.mxu0 0.0
    %1262 = vmatprep.subr.mxu0 0.0
    %1263 = vmatpush1.msra.mxu0 0.0
    %1264 = vmatprep.subr.mxu0 0.0
    %1265 = vmatpush1.msra.mxu0 0.0
    %1266 = vmatprep.subr.mxu0 0.0
    %1267 = vmatpush1.msra.mxu0 0.0
    %1268 = vmatprep.subr.mxu0 0.0
    %1269 = vmatpush1.msra.mxu0 0.0
    %1270 = vmatprep.subr.mxu0 0.0
    %1271 = vmatpush1.msra.mxu0 0.0
    %1272 = vmatprep.subr.mxu0 0.0
    %1273 = vmatpush1.msra.mxu0 0.0
    %1274 = vmatprep.mubr.f32.mxu0 0.0
    %1275 = vmatmul.mubr.f32.gmra.mrb[0].mxu0 %v692
    %v1276 = vpop.f32.mrb[0].mxu0
    %v1277 = vadd.f32 %v585, %v1276
    %v1278 = vpop.f32.mrb[0].mxu0
    %1279 = vdwg.mxu0
    %v1280 = vadd.f32 %v1207, %v1277
    %v1281 = vxor.u32 %v1280, 2147483648
    %v1282 = vmul.f32 %v1281, 1.442695
    %v1283 = vpow.pop %v1282
    %v1284 = vadd.f32 %v1283, 1.0
    %v1285 = vrcp.pop %v1284
    %v1286 = vmul.f32 1.0, %v1285
    %1288 = vrot.lane.b32.xlu0 %v1277, 96
    %v1289 = vpop.permute.xlu0 %1288
    %v1291 = vmul.f32 %v1286, %v1289
    %1293 = vrot.lane.b32.xlu0 %v1291, 32
    %v1294 = vpop.permute.xlu0 %1293
    %v1296 = vadd.f32 %v1207, %v1294
    %v1297 = vtanh.pop %v1296
    %v1298 = vsub.f32 1.0, %v1286
    %1300 = vrot.lane.b32.xlu0 %v1297, 112
    %v1301 = vpop.permute.xlu0 %1300
    %v1303 = vmul.f32 %v1298, %v1301
    %v1304 = vmul.f32 %v1286, %v682
    %v1305 = vadd.f32 %v1303, %v1304
    %1307 = vrot.lane.b32.xlu0 %v1305, 112
    %v1308 = vpop.permute.xlu0 %1307
    %v1309 = vsel %vm93, %v1308, 0
    %1311 = vmatprep.subr.mxu0 0.0
    %1312 = vmatpush1.msra.mxu0 %v196
    %1313 = vmatprep.subr.mxu0 0.0
    %1314 = vmatpush1.msra.mxu0 %v197
    %1315 = vmatprep.subr.mxu0 0.0
    %1316 = vmatpush1.msra.mxu0 0.0
    %1317 = vmatprep.subr.mxu0 0.0
    %1318 = vmatpush1.msra.mxu0 0.0
    %1319 = vmatprep.subr.mxu0 0.0
    %1320 = vmatpush1.msra.mxu0 0.0
    %1321 = vmatprep.subr.mxu0 0.0
    %1322 = vmatpush1.msra.mxu0 0.0
    %1323 = vmatprep.subr.mxu0 0.0
    %1324 = vmatpush1.msra.mxu0 0.0
    %1325 = vmatprep.subr.mxu0 0.0
    %1326 = vmatpush1.msra.mxu0 0.0
    %1327 = vmatprep.subr.mxu0 0.0
    %1328 = vmatpush1.msra.mxu0 0.0
    %1329 = vmatprep.subr.mxu0 0.0
    %1330 = vmatpush1.msra.mxu0 0.0
    %1331 = vmatprep.subr.mxu0 0.0
    %1332 = vmatpush1.msra.mxu0 0.0
    %1333 = vmatprep.subr.mxu0 0.0
    %1334 = vmatpush1.msra.mxu0 0.0
    %1335 = vmatprep.subr.mxu0 0.0
    %1336 = vmatpush1.msra.mxu0 0.0
    %1337 = vmatprep.subr.mxu0 0.0
    %1338 = vmatpush1.msra.mxu0 0.0
    %1339 = vmatprep.subr.mxu0 0.0
    %1340 = vmatpush1.msra.mxu0 0.0
    %1341 = vmatprep.subr.mxu0 0.0
    %1342 = vmatpush1.msra.mxu0 0.0
    %1343 = vmatprep.subr.mxu0 0.0
    %1344 = vmatpush1.msra.mxu0 0.0
    %1345 = vmatprep.subr.mxu0 0.0
    %1346 = vmatpush1.msra.mxu0 0.0
    %1347 = vmatprep.subr.mxu0 0.0
    %1348 = vmatpush1.msra.mxu0 0.0
    %1349 = vmatprep.subr.mxu0 0.0
    %1350 = vmatpush1.msra.mxu0 0.0
    %1351 = vmatprep.subr.mxu0 0.0
    %1352 = vmatpush1.msra.mxu0 0.0
    %1353 = vmatprep.subr.mxu0 0.0
    %1354 = vmatpush1.msra.mxu0 0.0
    %1355 = vmatprep.subr.mxu0 0.0
    %1356 = vmatpush1.msra.mxu0 0.0
    %1357 = vmatprep.subr.mxu0 0.0
    %1358 = vmatpush1.msra.mxu0 0.0
    %1359 = vmatprep.subr.mxu0 0.0
    %1360 = vmatpush1.msra.mxu0 0.0
    %1361 = vmatprep.subr.mxu0 0.0
    %1362 = vmatpush1.msra.mxu0 0.0
    %1363 = vmatprep.subr.mxu0 0.0
    %1364 = vmatpush1.msra.mxu0 0.0
    %1365 = vmatprep.subr.mxu0 0.0
    %1366 = vmatpush1.msra.mxu0 0.0
    %1367 = vmatprep.subr.mxu0 0.0
    %1368 = vmatpush1.msra.mxu0 0.0
    %1369 = vmatprep.subr.mxu0 0.0
    %1370 = vmatpush1.msra.mxu0 0.0
    %1371 = vmatprep.subr.mxu0 0.0
    %1372 = vmatpush1.msra.mxu0 0.0
    %1373 = vmatprep.subr.mxu0 0.0
    %1374 = vmatpush1.msra.mxu0 0.0
    %1375 = vmatprep.mubr.f32.mxu0 0.0
    %1376 = vmatmul.mubr.f32.gmra.mrb[0].mxu0 %v1309
    %v1377 = vpop.f32.mrb[0].mxu0
    %v1378 = vadd.f32 %v687, %v1377
    %v1379 = vpop.f32.mrb[0].mxu0
    %1380 = vdwg.mxu0
    %1382 = vrot.lane.b32.xlu0 %v865, 112
    %v1383 = vpop.permute.xlu0 %1382
    %v1384 = vsel %vm93, %v1383, 0
    %1386 = vmatprep.subr.mxu0 0.0
    %1387 = vmatpush1.msra.mxu0 %v187
    %1388 = vmatprep.subr.mxu0 0.0
    %1389 = vmatpush1.msra.mxu0 %v188
    %1390 = vmatprep.subr.mxu0 0.0
    %1391 = vmatpush1.msra.mxu0 0.0
    %1392 = vmatprep.subr.mxu0 0.0
    %1393 = vmatpush1.msra.mxu0 0.0
    %1394 = vmatprep.subr.mxu0 0.0
    %1395 = vmatpush1.msra.mxu0 0.0
    %1396 = vmatprep.subr.mxu0 0.0
    %1397 = vmatpush1.msra.mxu0 0.0
    %1398 = vmatprep.subr.mxu0 0.0
    %1399 = vmatpush1.msra.mxu0 0.0
    %1400 = vmatprep.subr.mxu0 0.0
    %1401 = vmatpush1.msra.mxu0 0.0
    %1402 = vmatprep.subr.mxu0 0.0
    %1403 = vmatpush1.msra.mxu0 0.0
    %1404 = vmatprep.subr.mxu0 0.0
    %1405 = vmatpush1.msra.mxu0 0.0
    %1406 = vmatprep.subr.mxu0 0.0
    %1407 = vmatpush1.msra.mxu0 0.0
    %1408 = vmatprep.subr.mxu0 0.0
    %1409 = vmatpush1.msra.mxu0 0.0
    %1410 = vmatprep.subr.mxu0 0.0
    %1411 = vmatpush1.msra.mxu0 0.0
    %1412 = vmatprep.subr.mxu0 0.0
    %1413 = vmatpush1.msra.mxu0 0.0
    %1414 = vmatprep.subr.mxu0 0.0
    %1415 = vmatpush1.msra.mxu0 0.0
    %1416 = vmatprep.subr.mxu0 0.0
    %1417 = vmatpush1.msra.mxu0 0.0
    %1418 = vmatprep.subr.mxu0 0.0
    %1419 = vmatpush1.msra.mxu0 0.0
    %1420 = vmatprep.subr.mxu0 0.0
    %1421 = vmatpush1.msra.mxu0 0.0
    %1422 = vmatprep.subr.mxu0 0.0
    %1423 = vmatpush1.msra.mxu0 0.0
    %1424 = vmatprep.subr.mxu0 0.0
    %1425 = vmatpush1.msra.mxu0 0.0
    %1426 = vmatprep.subr.mxu0 0.0
    %1427 = vmatpush1.msra.mxu0 0.0
    %1428 = vmatprep.subr.mxu0 0.0
    %1429 = vmatpush1.msra.mxu0 0.0
    %1430 = vmatprep.subr.mxu0 0.0
    %1431 = vmatpush1.msra.mxu0 0.0
    %1432 = vmatprep.subr.mxu0 0.0
    %1433 = vmatpush1.msra.mxu0 0.0
    %1434 = vmatprep.subr.mxu0 0.0
    %1435 = vmatpush1.msra.mxu0 0.0
    %1436 = vmatprep.subr.mxu0 0.0
    %1437 = vmatpush1.msra.mxu0 0.0
    %1438 = vmatprep.subr.mxu0 0.0
    %1439 = vmatpush1.msra.mxu0 0.0
    %1440 = vmatprep.subr.mxu0 0.0
    %1441 = vmatpush1.msra.mxu0 0.0
    %1442 = vmatprep.subr.mxu0 0.0
    %1443 = vmatpush1.msra.mxu0 0.0
    %1444 = vmatprep.subr.mxu0 0.0
    %1445 = vmatpush1.msra.mxu0 0.0
    %1446 = vmatprep.subr.mxu0 0.0
    %1447 = vmatpush1.msra.mxu0 0.0
    %1448 = vmatprep.subr.mxu0 0.0
    %1449 = vmatpush1.msra.mxu0 0.0
    %1450 = vmatprep.mubr.f32.mxu0 0.0
    %1451 = vmatmul.mubr.f32.gmra.mrb[0].mxu0 %v1384
    %v1452 = vpop.f32.mrb[0].mxu0
    %v1453 = vadd.f32 %v768, %v1452
    %v1454 = vpop.f32.mrb[0].mxu0
    %1455 = vdwg.mxu0
    %v1456 = vadd.f32 %v1378, %v1453
    %v1457 = vxor.u32 %v1456, 2147483648
    %v1458 = vmul.f32 %v1457, 1.442695
    %v1459 = vpow.pop %v1458
    %v1460 = vadd.f32 %v1459, 1.0
    %v1461 = vrcp.pop %v1460
    %v1462 = vmul.f32 1.0, %v1461
    %1464 = vrot.lane.b32.xlu0 %v1453, 96
    %v1465 = vpop.permute.xlu0 %1464
    %v1467 = vmul.f32 %v1462, %v1465
    %1469 = vrot.lane.b32.xlu0 %v1467, 32
    %v1470 = vpop.permute.xlu0 %1469
    %v1472 = vadd.f32 %v1378, %v1470
    %v1473 = vtanh.pop %v1472
    %v1474 = vsub.f32 1.0, %v1462
    %1476 = vrot.lane.b32.xlu0 %v1473, 112
    %v1477 = vpop.permute.xlu0 %1476
    %v1479 = vmul.f32 %v1474, %v1477
    %v1480 = vmul.f32 %v1462, %v865
    %v1481 = vadd.f32 %v1479, %v1480
    %s1482 = scalar_lea.vmem [#allocation2], 4
    %v1483 = vld [vmem:[%s1482] sm:$0x3]
    %1484 = vmatprep.subr.mxu0 0.0
    %1485 = vmatpush1.msra.mxu0 %v178
    %1486 = vmatprep.subr.mxu0 0.0
    %1487 = vmatpush1.msra.mxu0 %v179
    %1488 = vmatprep.subr.mxu0 0.0
    %1489 = vmatpush1.msra.mxu0 0.0
    %1490 = vmatprep.subr.mxu0 0.0
    %1491 = vmatpush1.msra.mxu0 0.0
    %1492 = vmatprep.subr.mxu0 0.0
    %1493 = vmatpush1.msra.mxu0 0.0
    %1494 = vmatprep.subr.mxu0 0.0
    %1495 = vmatpush1.msra.mxu0 0.0
    %1496 = vmatprep.subr.mxu0 0.0
    %1497 = vmatpush1.msra.mxu0 0.0
    %1498 = vmatprep.subr.mxu0 0.0
    %1499 = vmatpush1.msra.mxu0 0.0
    %1500 = vmatprep.subr.mxu0 0.0
    %1501 = vmatpush1.msra.mxu0 0.0
    %1502 = vmatprep.subr.mxu0 0.0
    %1503 = vmatpush1.msra.mxu0 0.0
    %1504 = vmatprep.subr.mxu0 0.0
    %1505 = vmatpush1.msra.mxu0 0.0
    %1506 = vmatprep.subr.mxu0 0.0
    %1507 = vmatpush1.msra.mxu0 0.0
    %1508 = vmatprep.subr.mxu0 0.0
    %1509 = vmatpush1.msra.mxu0 0.0
    %1510 = vmatprep.subr.mxu0 0.0
    %1511 = vmatpush1.msra.mxu0 0.0
    %1512 = vmatprep.subr.mxu0 0.0
    %1513 = vmatpush1.msra.mxu0 0.0
    %1514 = vmatprep.subr.mxu0 0.0
    %1515 = vmatpush1.msra.mxu0 0.0
    %1516 = vmatprep.subr.mxu0 0.0
    %1517 = vmatpush1.msra.mxu0 0.0
    %1518 = vmatprep.subr.mxu0 0.0
    %1519 = vmatpush1.msra.mxu0 0.0
    %1520 = vmatprep.subr.mxu0 0.0
    %1521 = vmatpush1.msra.mxu0 0.0
    %1522 = vmatprep.subr.mxu0 0.0
    %1523 = vmatpush1.msra.mxu0 0.0
    %1524 = vmatprep.subr.mxu0 0.0
    %1525 = vmatpush1.msra.mxu0 0.0
    %1526 = vmatprep.subr.mxu0 0.0
    %1527 = vmatpush1.msra.mxu0 0.0
    %1528 = vmatprep.subr.mxu0 0.0
    %1529 = vmatpush1.msra.mxu0 0.0
    %1530 = vmatprep.subr.mxu0 0.0
    %1531 = vmatpush1.msra.mxu0 0.0
    %1532 = vmatprep.subr.mxu0 0.0
    %1533 = vmatpush1.msra.mxu0 0.0
    %1534 = vmatprep.subr.mxu0 0.0
    %1535 = vmatpush1.msra.mxu0 0.0
    %1536 = vmatprep.subr.mxu0 0.0
    %1537 = vmatpush1.msra.mxu0 0.0
    %1538 = vmatprep.subr.mxu0 0.0
    %1539 = vmatpush1.msra.mxu0 0.0
    %1540 = vmatprep.subr.mxu0 0.0
    %1541 = vmatpush1.msra.mxu0 0.0
    %1542 = vmatprep.subr.mxu0 0.0
    %1543 = vmatpush1.msra.mxu0 0.0
    %1544 = vmatprep.subr.mxu0 0.0
    %1545 = vmatpush1.msra.mxu0 0.0
    %1546 = vmatprep.subr.mxu0 0.0
    %1547 = vmatpush1.msra.mxu0 0.0
    %1548 = vmatprep.mubr.f32.mxu0 0.0
    %1549 = vmatmul.mubr.f32.gmra.mrb[0].mxu0 %v967
    %v1550 = vpop.f32.mrb[0].mxu0
    %v1551 = vadd.f32 %v216, %v1550
    %v1552 = vpop.f32.mrb[0].mxu0
    %1553 = vdwg.mxu0
    %v1554 = vadd.f32 %v1483, %v1551
    %v1555 = vxor.u32 %v1554, 2147483648
    %v1556 = vmul.f32 %v1555, 1.442695
    %v1557 = vpow.pop %v1556
    %v1558 = vadd.f32 %v1557, 1.0
    %v1559 = vrcp.pop %v1558
    %v1560 = vmul.f32 1.0, %v1559
    %1562 = vrot.lane.b32.xlu0 %v1551, 96
    %v1563 = vpop.permute.xlu0 %1562
    %v1565 = vmul.f32 %v1560, %v1563
    %1567 = vrot.lane.b32.xlu0 %v1565, 32
    %v1568 = vpop.permute.xlu0 %1567
    %v1570 = vadd.f32 %v1483, %v1568
    %v1571 = vtanh.pop %v1570
    %v1572 = vsub.f32 1.0, %v1560
    %1574 = vrot.lane.b32.xlu0 %v1571, 112
    %v1575 = vpop.permute.xlu0 %1574
    %v1577 = vmul.f32 %v1572, %v1575
    %v1578 = vmul.f32 %v1560, %v963
    %v1579 = vadd.f32 %v1577, %v1578
    %1581 = vrot.lane.b32.xlu0 %v1579, 112
    %v1582 = vpop.permute.xlu0 %1581
    %v1583 = vsel %vm93, %v1582, 0
    %1585 = vmatprep.subr.mxu0 0.0
    %1586 = vmatpush1.msra.mxu0 %v190
    %1587 = vmatprep.subr.mxu0 0.0
    %1588 = vmatpush1.msra.mxu0 %v191
    %1589 = vmatprep.subr.mxu0 0.0
    %1590 = vmatpush1.msra.mxu0 0.0
    %1591 = vmatprep.subr.mxu0 0.0
    %1592 = vmatpush1.msra.mxu0 0.0
    %1593 = vmatprep.subr.mxu0 0.0
    %1594 = vmatpush1.msra.mxu0 0.0
    %1595 = vmatprep.subr.mxu0 0.0
    %1596 = vmatpush1.msra.mxu0 0.0
    %1597 = vmatprep.subr.mxu0 0.0
    %1598 = vmatpush1.msra.mxu0 0.0
    %1599 = vmatprep.subr.mxu0 0.0
    %1600 = vmatpush1.msra.mxu0 0.0
    %1601 = vmatprep.subr.mxu0 0.0
    %1602 = vmatpush1.msra.mxu0 0.0
    %1603 = vmatprep.subr.mxu0 0.0
    %1604 = vmatpush1.msra.mxu0 0.0
    %1605 = vmatprep.subr.mxu0 0.0
    %1606 = vmatpush1.msra.mxu0 0.0
    %1607 = vmatprep.subr.mxu0 0.0
    %1608 = vmatpush1.msra.mxu0 0.0
    %1609 = vmatprep.subr.mxu0 0.0
    %1610 = vmatpush1.msra.mxu0 0.0
    %1611 = vmatprep.subr.mxu0 0.0
    %1612 = vmatpush1.msra.mxu0 0.0
    %1613 = vmatprep.subr.mxu0 0.0
    %1614 = vmatpush1.msra.mxu0 0.0
    %1615 = vmatprep.subr.mxu0 0.0
    %1616 = vmatpush1.msra.mxu0 0.0
    %1617 = vmatprep.subr.mxu0 0.0
    %1618 = vmatpush1.msra.mxu0 0.0
    %1619 = vmatprep.subr.mxu0 0.0
    %1620 = vmatpush1.msra.mxu0 0.0
    %1621 = vmatprep.subr.mxu0 0.0
    %1622 = vmatpush1.msra.mxu0 0.0
    %1623 = vmatprep.subr.mxu0 0.0
    %1624 = vmatpush1.msra.mxu0 0.0
    %1625 = vmatprep.subr.mxu0 0.0
    %1626 = vmatpush1.msra.mxu0 0.0
    %1627 = vmatprep.subr.mxu0 0.0
    %1628 = vmatpush1.msra.mxu0 0.0
    %1629 = vmatprep.subr.mxu0 0.0
    %1630 = vmatpush1.msra.mxu0 0.0
    %1631 = vmatprep.subr.mxu0 0.0
    %1632 = vmatpush1.msra.mxu0 0.0
    %1633 = vmatprep.subr.mxu0 0.0
    %1634 = vmatpush1.msra.mxu0 0.0
    %1635 = vmatprep.subr.mxu0 0.0
    %1636 = vmatpush1.msra.mxu0 0.0
    %1637 = vmatprep.subr.mxu0 0.0
    %1638 = vmatpush1.msra.mxu0 0.0
    %1639 = vmatprep.subr.mxu0 0.0
    %1640 = vmatpush1.msra.mxu0 0.0
    %1641 = vmatprep.subr.mxu0 0.0
    %1642 = vmatpush1.msra.mxu0 0.0
    %1643 = vmatprep.subr.mxu0 0.0
    %1644 = vmatpush1.msra.mxu0 0.0
    %1645 = vmatprep.subr.mxu0 0.0
    %1646 = vmatpush1.msra.mxu0 0.0
    %1647 = vmatprep.subr.mxu0 0.0
    %1648 = vmatpush1.msra.mxu0 0.0
    %1649 = vmatprep.mubr.f32.mxu0 0.0
    %1650 = vmatmul.mubr.f32.gmra.mrb[0].mxu0 %v1583
    %v1651 = vpop.f32.mrb[0].mxu0
    %v1652 = vadd.f32 %v321, %v1651
    %v1653 = vpop.f32.mrb[0].mxu0
    %1654 = vdwg.mxu0
    %1655 = vmatprep.subr.mxu0 0.0
    %1656 = vmatpush1.msra.mxu0 %v181
    %1657 = vmatprep.subr.mxu0 0.0
    %1658 = vmatpush1.msra.mxu0 %v182
    %1659 = vmatprep.subr.mxu0 0.0
    %1660 = vmatpush1.msra.mxu0 0.0
    %1661 = vmatprep.subr.mxu0 0.0
    %1662 = vmatpush1.msra.mxu0 0.0
    %1663 = vmatprep.subr.mxu0 0.0
    %1664 = vmatpush1.msra.mxu0 0.0
    %1665 = vmatprep.subr.mxu0 0.0
    %1666 = vmatpush1.msra.mxu0 0.0
    %1667 = vmatprep.subr.mxu0 0.0
    %1668 = vmatpush1.msra.mxu0 0.0
    %1669 = vmatprep.subr.mxu0 0.0
    %1670 = vmatpush1.msra.mxu0 0.0
    %1671 = vmatprep.subr.mxu0 0.0
    %1672 = vmatpush1.msra.mxu0 0.0
    %1673 = vmatprep.subr.mxu0 0.0
    %1674 = vmatpush1.msra.mxu0 0.0
    %1675 = vmatprep.subr.mxu0 0.0
    %1676 = vmatpush1.msra.mxu0 0.0
    %1677 = vmatprep.subr.mxu0 0.0
    %1678 = vmatpush1.msra.mxu0 0.0
    %1679 = vmatprep.subr.mxu0 0.0
    %1680 = vmatpush1.msra.mxu0 0.0
    %1681 = vmatprep.subr.mxu0 0.0
    %1682 = vmatpush1.msra.mxu0 0.0
    %1683 = vmatprep.subr.mxu0 0.0
    %1684 = vmatpush1.msra.mxu0 0.0
    %1685 = vmatprep.subr.mxu0 0.0
    %1686 = vmatpush1.msra.mxu0 0.0
    %1687 = vmatprep.subr.mxu0 0.0
    %1688 = vmatpush1.msra.mxu0 0.0
    %1689 = vmatprep.subr.mxu0 0.0
    %1690 = vmatpush1.msra.mxu0 0.0
    %1691 = vmatprep.subr.mxu0 0.0
    %1692 = vmatpush1.msra.mxu0 0.0
    %1693 = vmatprep.subr.mxu0 0.0
    %1694 = vmatpush1.msra.mxu0 0.0
    %1695 = vmatprep.subr.mxu0 0.0
    %1696 = vmatpush1.msra.mxu0 0.0
    %1697 = vmatprep.subr.mxu0 0.0
    %1698 = vmatpush1.msra.mxu0 0.0
    %1699 = vmatprep.subr.mxu0 0.0
    %1700 = vmatpush1.msra.mxu0 0.0
    %1701 = vmatprep.subr.mxu0 0.0
    %1702 = vmatpush1.msra.mxu0 0.0
    %1703 = vmatprep.subr.mxu0 0.0
    %1704 = vmatpush1.msra.mxu0 0.0
    %1705 = vmatprep.subr.mxu0 0.0
    %1706 = vmatpush1.msra.mxu0 0.0
    %1707 = vmatprep.subr.mxu0 0.0
    %1708 = vmatpush1.msra.mxu0 0.0
    %1709 = vmatprep.subr.mxu0 0.0
    %1710 = vmatpush1.msra.mxu0 0.0
    %1711 = vmatprep.subr.mxu0 0.0
    %1712 = vmatpush1.msra.mxu0 0.0
    %1713 = vmatprep.subr.mxu0 0.0
    %1714 = vmatpush1.msra.mxu0 0.0
    %1715 = vmatprep.subr.mxu0 0.0
    %1716 = vmatpush1.msra.mxu0 0.0
    %1717 = vmatprep.subr.mxu0 0.0
    %1718 = vmatpush1.msra.mxu0 0.0
    %1719 = vmatprep.mubr.f32.mxu0 0.0
    %1720 = vmatmul.mubr.f32.gmra.mrb[0].mxu0 %v1138
    %v1721 = vpop.f32.mrb[0].mxu0
    %v1722 = vadd.f32 %v402, %v1721
    %v1723 = vpop.f32.mrb[0].mxu0
    %1724 = vdwg.mxu0
    %v1725 = vadd.f32 %v1652, %v1722
    %v1726 = vxor.u32 %v1725, 2147483648
    %v1727 = vmul.f32 %v1726, 1.442695
    %v1728 = vpow.pop %v1727
    %v1729 = vadd.f32 %v1728, 1.0
    %v1730 = vrcp.pop %v1729
    %v1731 = vmul.f32 1.0, %v1730
    %1733 = vrot.lane.b32.xlu0 %v1722, 96
    %v1734 = vpop.permute.xlu0 %1733
    %v1736 = vmul.f32 %v1731, %v1734
    %1738 = vrot.lane.b32.xlu0 %v1736, 32
    %v1739 = vpop.permute.xlu0 %1738
    %v1741 = vadd.f32 %v1652, %v1739
    %v1742 = vtanh.pop %v1741
    %v1743 = vsub.f32 1.0, %v1731
    %1745 = vrot.lane.b32.xlu0 %v1742, 112
    %v1746 = vpop.permute.xlu0 %1745
    %v1748 = vmul.f32 %v1743, %v1746
    %v1749 = vmul.f32 %v1731, %v1134
    %v1750 = vadd.f32 %v1748, %v1749
    %1752 = vrot.lane.b32.xlu0 %v1750, 112
    %v1753 = vpop.permute.xlu0 %1752
    %v1754 = vsel %vm93, %v1753, 0
    %1756 = vmatprep.subr.mxu0 0.0
    %1757 = vmatpush1.msra.mxu0 %v193
    %1758 = vmatprep.subr.mxu0 0.0
    %1759 = vmatpush1.msra.mxu0 %v194
    %1760 = vmatprep.subr.mxu0 0.0
    %1761 = vmatpush1.msra.mxu0 0.0
    %1762 = vmatprep.subr.mxu0 0.0
    %1763 = vmatpush1.msra.mxu0 0.0
    %1764 = vmatprep.subr.mxu0 0.0
    %1765 = vmatpush1.msra.mxu0 0.0
    %1766 = vmatprep.subr.mxu0 0.0
    %1767 = vmatpush1.msra.mxu0 0.0
    %1768 = vmatprep.subr.mxu0 0.0
    %1769 = vmatpush1.msra.mxu0 0.0
    %1770 = vmatprep.subr.mxu0 0.0
    %1771 = vmatpush1.msra.mxu0 0.0
    %1772 = vmatprep.subr.mxu0 0.0
    %1773 = vmatpush1.msra.mxu0 0.0
    %1774 = vmatprep.subr.mxu0 0.0
    %1775 = vmatpush1.msra.mxu0 0.0
    %1776 = vmatprep.subr.mxu0 0.0
    %1777 = vmatpush1.msra.mxu0 0.0
    %1778 = vmatprep.subr.mxu0 0.0
    %1779 = vmatpush1.msra.mxu0 0.0
    %1780 = vmatprep.subr.mxu0 0.0
    %1781 = vmatpush1.msra.mxu0 0.0
    %1782 = vmatprep.subr.mxu0 0.0
    %1783 = vmatpush1.msra.mxu0 0.0
    %1784 = vmatprep.subr.mxu0 0.0
    %1785 = vmatpush1.msra.mxu0 0.0
    %1786 = vmatprep.subr.mxu0 0.0
    %1787 = vmatpush1.msra.mxu0 0.0
    %1788 = vmatprep.subr.mxu0 0.0
    %1789 = vmatpush1.msra.mxu0 0.0
    %1790 = vmatprep.subr.mxu0 0.0
    %1791 = vmatpush1.msra.mxu0 0.0
    %1792 = vmatprep.subr.mxu0 0.0
    %1793 = vmatpush1.msra.mxu0 0.0
    %1794 = vmatprep.subr.mxu0 0.0
    %1795 = vmatpush1.msra.mxu0 0.0
    %1796 = vmatprep.subr.mxu0 0.0
    %1797 = vmatpush1.msra.mxu0 0.0
    %1798 = vmatprep.subr.mxu0 0.0
    %1799 = vmatpush1.msra.mxu0 0.0
    %1800 = vmatprep.subr.mxu0 0.0
    %1801 = vmatpush1.msra.mxu0 0.0
    %1802 = vmatprep.subr.mxu0 0.0
    %1803 = vmatpush1.msra.mxu0 0.0
    %1804 = vmatprep.subr.mxu0 0.0
    %1805 = vmatpush1.msra.mxu0 0.0
    %1806 = vmatprep.subr.mxu0 0.0
    %1807 = vmatpush1.msra.mxu0 0.0
    %1808 = vmatprep.subr.mxu0 0.0
    %1809 = vmatpush1.msra.mxu0 0.0
    %1810 = vmatprep.subr.mxu0 0.0
    %1811 = vmatpush1.msra.mxu0 0.0
    %1812 = vmatprep.subr.mxu0 0.0
    %1813 = vmatpush1.msra.mxu0 0.0
    %1814 = vmatprep.subr.mxu0 0.0
    %1815 = vmatpush1.msra.mxu0 0.0
    %1816 = vmatprep.subr.mxu0 0.0
    %1817 = vmatpush1.msra.mxu0 0.0
    %1818 = vmatprep.subr.mxu0 0.0
    %1819 = vmatpush1.msra.mxu0 0.0
    %1820 = vmatprep.mubr.f32.mxu0 0.0
    %1821 = vmatmul.mubr.f32.gmra.mrb[0].mxu0 %v1754
    %v1822 = vpop.f32.mrb[0].mxu0
    %v1823 = vadd.f32 %v504, %v1822
    %v1824 = vpop.f32.mrb[0].mxu0
    %1825 = vdwg.mxu0
    %1826 = vmatprep.subr.mxu0 0.0
    %1827 = vmatpush1.msra.mxu0 %v184
    %1828 = vmatprep.subr.mxu0 0.0
    %1829 = vmatpush1.msra.mxu0 %v185
    %1830 = vmatprep.subr.mxu0 0.0
    %1831 = vmatpush1.msra.mxu0 0.0
    %1832 = vmatprep.subr.mxu0 0.0
    %1833 = vmatpush1.msra.mxu0 0.0
    %1834 = vmatprep.subr.mxu0 0.0
    %1835 = vmatpush1.msra.mxu0 0.0
    %1836 = vmatprep.subr.mxu0 0.0
    %1837 = vmatpush1.msra.mxu0 0.0
    %1838 = vmatprep.subr.mxu0 0.0
    %1839 = vmatpush1.msra.mxu0 0.0
    %1840 = vmatprep.subr.mxu0 0.0
    %1841 = vmatpush1.msra.mxu0 0.0
    %1842 = vmatprep.subr.mxu0 0.0
    %1843 = vmatpush1.msra.mxu0 0.0
    %1844 = vmatprep.subr.mxu0 0.0
    %1845 = vmatpush1.msra.mxu0 0.0
    %1846 = vmatprep.subr.mxu0 0.0
    %1847 = vmatpush1.msra.mxu0 0.0
    %1848 = vmatprep.subr.mxu0 0.0
    %1849 = vmatpush1.msra.mxu0 0.0
    %1850 = vmatprep.subr.mxu0 0.0
    %1851 = vmatpush1.msra.mxu0 0.0
    %1852 = vmatprep.subr.mxu0 0.0
    %1853 = vmatpush1.msra.mxu0 0.0
    %1854 = vmatprep.subr.mxu0 0.0
    %1855 = vmatpush1.msra.mxu0 0.0
    %1856 = vmatprep.subr.mxu0 0.0
    %1857 = vmatpush1.msra.mxu0 0.0
    %1858 = vmatprep.subr.mxu0 0.0
    %1859 = vmatpush1.msra.mxu0 0.0
    %1860 = vmatprep.subr.mxu0 0.0
    %1861 = vmatpush1.msra.mxu0 0.0
    %1862 = vmatprep.subr.mxu0 0.0
    %1863 = vmatpush1.msra.mxu0 0.0
    %1864 = vmatprep.subr.mxu0 0.0
    %1865 = vmatpush1.msra.mxu0 0.0
    %1866 = vmatprep.subr.mxu0 0.0
    %1867 = vmatpush1.msra.mxu0 0.0
    %1868 = vmatprep.subr.mxu0 0.0
    %1869 = vmatpush1.msra.mxu0 0.0
    %1870 = vmatprep.subr.mxu0 0.0
    %1871 = vmatpush1.msra.mxu0 0.0
    %1872 = vmatprep.subr.mxu0 0.0
    %1873 = vmatpush1.msra.mxu0 0.0
    %1874 = vmatprep.subr.mxu0 0.0
    %1875 = vmatpush1.msra.mxu0 0.0
    %1876 = vmatprep.subr.mxu0 0.0
    %1877 = vmatpush1.msra.mxu0 0.0
    %1878 = vmatprep.subr.mxu0 0.0
    %1879 = vmatpush1.msra.mxu0 0.0
    %1880 = vmatprep.subr.mxu0 0.0
    %1881 = vmatpush1.msra.mxu0 0.0
    %1882 = vmatprep.subr.mxu0 0.0
    %1883 = vmatpush1.msra.mxu0 0.0
    %1884 = vmatprep.subr.mxu0 0.0
    %1885 = vmatpush1.msra.mxu0 0.0
    %1886 = vmatprep.subr.mxu0 0.0
    %1887 = vmatpush1.msra.mxu0 0.0
    %1888 = vmatprep.subr.mxu0 0.0
    %1889 = vmatpush1.msra.mxu0 0.0
    %1890 = vmatprep.mubr.f32.mxu0 0.0
    %1891 = vmatmul.mubr.f32.gmra.mrb[0].mxu0 %v1309
    %v1892 = vpop.f32.mrb[0].mxu0
    %v1893 = vadd.f32 %v585, %v1892
    %v1894 = vpop.f32.mrb[0].mxu0
    %1895 = vdwg.mxu0
    %v1896 = vadd.f32 %v1823, %v1893
    %v1897 = vxor.u32 %v1896, 2147483648
    %v1898 = vmul.f32 %v1897, 1.442695
    %v1899 = vpow.pop %v1898
    %v1900 = vadd.f32 %v1899, 1.0
    %v1901 = vrcp.pop %v1900
    %v1902 = vmul.f32 1.0, %v1901
    %1904 = vrot.lane.b32.xlu0 %v1893, 96
    %v1905 = vpop.permute.xlu0 %1904
    %v1907 = vmul.f32 %v1902, %v1905
    %1909 = vrot.lane.b32.xlu0 %v1907, 32
    %v1910 = vpop.permute.xlu0 %1909
    %v1912 = vadd.f32 %v1823, %v1910
    %v1913 = vtanh.pop %v1912
    %v1914 = vsub.f32 1.0, %v1902
    %1916 = vrot.lane.b32.xlu0 %v1913, 112
    %v1917 = vpop.permute.xlu0 %1916
    %v1919 = vmul.f32 %v1914, %v1917
    %v1920 = vmul.f32 %v1902, %v1305
    %v1921 = vadd.f32 %v1919, %v1920
    %1923 = vrot.lane.b32.xlu0 %v1921, 112
    %v1924 = vpop.permute.xlu0 %1923
    %v1925 = vsel %vm93, %v1924, 0
    %1927 = vmatprep.subr.mxu0 0.0
    %1928 = vmatpush1.msra.mxu0 %v196
    %1929 = vmatprep.subr.mxu0 0.0
    %1930 = vmatpush1.msra.mxu0 %v197
    %1931 = vmatprep.subr.mxu0 0.0
    %1932 = vmatpush1.msra.mxu0 0.0
    %1933 = vmatprep.subr.mxu0 0.0
    %1934 = vmatpush1.msra.mxu0 0.0
    %1935 = vmatprep.subr.mxu0 0.0
    %1936 = vmatpush1.msra.mxu0 0.0
    %1937 = vmatprep.subr.mxu0 0.0
    %1938 = vmatpush1.msra.mxu0 0.0
    %1939 = vmatprep.subr.mxu0 0.0
    %1940 = vmatpush1.msra.mxu0 0.0
    %1941 = vmatprep.subr.mxu0 0.0
    %1942 = vmatpush1.msra.mxu0 0.0
    %1943 = vmatprep.subr.mxu0 0.0
    %1944 = vmatpush1.msra.mxu0 0.0
    %1945 = vmatprep.subr.mxu0 0.0
    %1946 = vmatpush1.msra.mxu0 0.0
    %1947 = vmatprep.subr.mxu0 0.0
    %1948 = vmatpush1.msra.mxu0 0.0
    %1949 = vmatprep.subr.mxu0 0.0
    %1950 = vmatpush1.msra.mxu0 0.0
    %1951 = vmatprep.subr.mxu0 0.0
    %1952 = vmatpush1.msra.mxu0 0.0
    %1953 = vmatprep.subr.mxu0 0.0
    %1954 = vmatpush1.msra.mxu0 0.0
    %1955 = vmatprep.subr.mxu0 0.0
    %1956 = vmatpush1.msra.mxu0 0.0
    %1957 = vmatprep.subr.mxu0 0.0
    %1958 = vmatpush1.msra.mxu0 0.0
    %1959 = vmatprep.subr.mxu0 0.0
    %1960 = vmatpush1.msra.mxu0 0.0
    %1961 = vmatprep.subr.mxu0 0.0
    %1962 = vmatpush1.msra.mxu0 0.0
    %1963 = vmatprep.subr.mxu0 0.0
    %1964 = vmatpush1.msra.mxu0 0.0
    %1965 = vmatprep.subr.mxu0 0.0
    %1966 = vmatpush1.msra.mxu0 0.0
    %1967 = vmatprep.subr.mxu0 0.0
    %1968 = vmatpush1.msra.mxu0 0.0
    %1969 = vmatprep.subr.mxu0 0.0
    %1970 = vmatpush1.msra.mxu0 0.0
    %1971 = vmatprep.subr.mxu0 0.0
    %1972 = vmatpush1.msra.mxu0 0.0
    %1973 = vmatprep.subr.mxu0 0.0
    %1974 = vmatpush1.msra.mxu0 0.0
    %1975 = vmatprep.subr.mxu0 0.0
    %1976 = vmatpush1.msra.mxu0 0.0
    %1977 = vmatprep.subr.mxu0 0.0
    %1978 = vmatpush1.msra.mxu0 0.0
    %1979 = vmatprep.subr.mxu0 0.0
    %1980 = vmatpush1.msra.mxu0 0.0
    %1981 = vmatprep.subr.mxu0 0.0
    %1982 = vmatpush1.msra.mxu0 0.0
    %1983 = vmatprep.subr.mxu0 0.0
    %1984 = vmatpush1.msra.mxu0 0.0
    %1985 = vmatprep.subr.mxu0 0.0
    %1986 = vmatpush1.msra.mxu0 0.0
    %1987 = vmatprep.subr.mxu0 0.0
    %1988 = vmatpush1.msra.mxu0 0.0
    %1989 = vmatprep.subr.mxu0 0.0
    %1990 = vmatpush1.msra.mxu0 0.0
    %1991 = vmatprep.mubr.f32.mxu0 0.0
    %1992 = vmatmul.mubr.f32.gmra.mrb[0].mxu0 %v1925
    %v1993 = vpop.f32.mrb[0].mxu0
    %v1994 = vadd.f32 %v687, %v1993
    %v1995 = vpop.f32.mrb[0].mxu0
    %1996 = vdwg.mxu0
    %1998 = vrot.lane.b32.xlu0 %v1481, 112
    %v1999 = vpop.permute.xlu0 %1998
    %v2000 = vsel %vm93, %v1999, 0
    %2002 = vmatprep.subr.mxu0 0.0
    %2003 = vmatpush1.msra.mxu0 %v187
    %2004 = vmatprep.subr.mxu0 0.0
    %2005 = vmatpush1.msra.mxu0 %v188
    %2006 = vmatprep.subr.mxu0 0.0
    %2007 = vmatpush1.msra.mxu0 0.0
    %2008 = vmatprep.subr.mxu0 0.0
    %2009 = vmatpush1.msra.mxu0 0.0
    %2010 = vmatprep.subr.mxu0 0.0
    %2011 = vmatpush1.msra.mxu0 0.0
    %2012 = vmatprep.subr.mxu0 0.0
    %2013 = vmatpush1.msra.mxu0 0.0
    %2014 = vmatprep.subr.mxu0 0.0
    %2015 = vmatpush1.msra.mxu0 0.0
    %2016 = vmatprep.subr.mxu0 0.0
    %2017 = vmatpush1.msra.mxu0 0.0
    %2018 = vmatprep.subr.mxu0 0.0
    %2019 = vmatpush1.msra.mxu0 0.0
    %2020 = vmatprep.subr.mxu0 0.0
    %2021 = vmatpush1.msra.mxu0 0.0
    %2022 = vmatprep.subr.mxu0 0.0
    %2023 = vmatpush1.msra.mxu0 0.0
    %2024 = vmatprep.subr.mxu0 0.0
    %2025 = vmatpush1.msra.mxu0 0.0
    %2026 = vmatprep.subr.mxu0 0.0
    %2027 = vmatpush1.msra.mxu0 0.0
    %2028 = vmatprep.subr.mxu0 0.0
    %2029 = vmatpush1.msra.mxu0 0.0
    %2030 = vmatprep.subr.mxu0 0.0
    %2031 = vmatpush1.msra.mxu0 0.0
    %2032 = vmatprep.subr.mxu0 0.0
    %2033 = vmatpush1.msra.mxu0 0.0
    %2034 = vmatprep.subr.mxu0 0.0
    %2035 = vmatpush1.msra.mxu0 0.0
    %2036 = vmatprep.subr.mxu0 0.0
    %2037 = vmatpush1.msra.mxu0 0.0
    %2038 = vmatprep.subr.mxu0 0.0
    %2039 = vmatpush1.msra.mxu0 0.0
    %2040 = vmatprep.subr.mxu0 0.0
    %2041 = vmatpush1.msra.mxu0 0.0
    %2042 = vmatprep.subr.mxu0 0.0
    %2043 = vmatpush1.msra.mxu0 0.0
    %2044 = vmatprep.subr.mxu0 0.0
    %2045 = vmatpush1.msra.mxu0 0.0
    %2046 = vmatprep.subr.mxu0 0.0
    %2047 = vmatpush1.msra.mxu0 0.0
    %2048 = vmatprep.subr.mxu0 0.0
    %2049 = vmatpush1.msra.mxu0 0.0
    %2050 = vmatprep.subr.mxu0 0.0
    %2051 = vmatpush1.msra.mxu0 0.0
    %2052 = vmatprep.subr.mxu0 0.0
    %2053 = vmatpush1.msra.mxu0 0.0
    %2054 = vmatprep.subr.mxu0 0.0
    %2055 = vmatpush1.msra.mxu0 0.0
    %2056 = vmatprep.subr.mxu0 0.0
    %2057 = vmatpush1.msra.mxu0 0.0
    %2058 = vmatprep.subr.mxu0 0.0
    %2059 = vmatpush1.msra.mxu0 0.0
    %2060 = vmatprep.subr.mxu0 0.0
    %2061 = vmatpush1.msra.mxu0 0.0
    %2062 = vmatprep.subr.mxu0 0.0
    %2063 = vmatpush1.msra.mxu0 0.0
    %2064 = vmatprep.subr.mxu0 0.0
    %2065 = vmatpush1.msra.mxu0 0.0
    %2066 = vmatprep.mubr.f32.mxu0 0.0
    %2067 = vmatmul.mubr.f32.gmra.mrb[0].mxu0 %v2000
    %v2068 = vpop.f32.mrb[0].mxu0
    %v2069 = vadd.f32 %v768, %v2068
    %v2070 = vpop.f32.mrb[0].mxu0
    %2071 = vdwg.mxu0
    %v2072 = vadd.f32 %v1994, %v2069
    %v2073 = vxor.u32 %v2072, 2147483648
    %v2074 = vmul.f32 %v2073, 1.442695
    %v2075 = vpow.pop %v2074
    %v2076 = vadd.f32 %v2075, 1.0
    %v2077 = vrcp.pop %v2076
    %v2078 = vmul.f32 1.0, %v2077
    %2080 = vrot.lane.b32.xlu0 %v2069, 96
    %v2081 = vpop.permute.xlu0 %2080
    %v2083 = vmul.f32 %v2078, %v2081
    %2085 = vrot.lane.b32.xlu0 %v2083, 32
    %v2086 = vpop.permute.xlu0 %2085
    %v2088 = vadd.f32 %v1994, %v2086
    %v2089 = vtanh.pop %v2088
    %v2090 = vsub.f32 1.0, %v2078
    %2092 = vrot.lane.b32.xlu0 %v2089, 112
    %v2093 = vpop.permute.xlu0 %2092
    %v2095 = vmul.f32 %v2090, %v2093
    %v2096 = vmul.f32 %v2078, %v1481
    %v2097 = vadd.f32 %v2095, %v2096
    %s2098 = scalar_lea.vmem [#allocation2], 6
    %v2099 = vld [vmem:[%s2098] sm:$0x3]
    %2100 = vmatprep.subr.mxu0 0.0
    %2101 = vmatpush1.msra.mxu0 %v178
    %2102 = vmatprep.subr.mxu0 0.0
    %2103 = vmatpush1.msra.mxu0 %v179
    %2104 = vmatprep.subr.mxu0 0.0
    %2105 = vmatpush1.msra.mxu0 0.0
    %2106 = vmatprep.subr.mxu0 0.0
    %2107 = vmatpush1.msra.mxu0 0.0
    %2108 = vmatprep.subr.mxu0 0.0
    %2109 = vmatpush1.msra.mxu0 0.0
    %2110 = vmatprep.subr.mxu0 0.0
    %2111 = vmatpush1.msra.mxu0 0.0
    %2112 = vmatprep.subr.mxu0 0.0
    %2113 = vmatpush1.msra.mxu0 0.0
    %2114 = vmatprep.subr.mxu0 0.0
    %2115 = vmatpush1.msra.mxu0 0.0
    %2116 = vmatprep.subr.mxu0 0.0
    %2117 = vmatpush1.msra.mxu0 0.0
    %2118 = vmatprep.subr.mxu0 0.0
    %2119 = vmatpush1.msra.mxu0 0.0
    %2120 = vmatprep.subr.mxu0 0.0
    %2121 = vmatpush1.msra.mxu0 0.0
    %2122 = vmatprep.subr.mxu0 0.0
    %2123 = vmatpush1.msra.mxu0 0.0
    %2124 = vmatprep.subr.mxu0 0.0
    %2125 = vmatpush1.msra.mxu0 0.0
    %2126 = vmatprep.subr.mxu0 0.0
    %2127 = vmatpush1.msra.mxu0 0.0
    %2128 = vmatprep.subr.mxu0 0.0
    %2129 = vmatpush1.msra.mxu0 0.0
    %2130 = vmatprep.subr.mxu0 0.0
    %2131 = vmatpush1.msra.mxu0 0.0
    %2132 = vmatprep.subr.mxu0 0.0
    %2133 = vmatpush1.msra.mxu0 0.0
    %2134 = vmatprep.subr.mxu0 0.0
    %2135 = vmatpush1.msra.mxu0 0.0
    %2136 = vmatprep.subr.mxu0 0.0
    %2137 = vmatpush1.msra.mxu0 0.0
    %2138 = vmatprep.subr.mxu0 0.0
    %2139 = vmatpush1.msra.mxu0 0.0
    %2140 = vmatprep.subr.mxu0 0.0
    %2141 = vmatpush1.msra.mxu0 0.0
    %2142 = vmatprep.subr.mxu0 0.0
    %2143 = vmatpush1.msra.mxu0 0.0
    %2144 = vmatprep.subr.mxu0 0.0
    %2145 = vmatpush1.msra.mxu0 0.0
    %2146 = vmatprep.subr.mxu0 0.0
    %2147 = vmatpush1.msra.mxu0 0.0
    %2148 = vmatprep.subr.mxu0 0.0
    %2149 = vmatpush1.msra.mxu0 0.0
    %2150 = vmatprep.subr.mxu0 0.0
    %2151 = vmatpush1.msra.mxu0 0.0
    %2152 = vmatprep.subr.mxu0 0.0
    %2153 = vmatpush1.msra.mxu0 0.0
    %2154 = vmatprep.subr.mxu0 0.0
    %2155 = vmatpush1.msra.mxu0 0.0
    %2156 = vmatprep.subr.mxu0 0.0
    %2157 = vmatpush1.msra.mxu0 0.0
    %2158 = vmatprep.subr.mxu0 0.0
    %2159 = vmatpush1.msra.mxu0 0.0
    %2160 = vmatprep.subr.mxu0 0.0
    %2161 = vmatpush1.msra.mxu0 0.0
    %2162 = vmatprep.subr.mxu0 0.0
    %2163 = vmatpush1.msra.mxu0 0.0
    %2164 = vmatprep.mubr.f32.mxu0 0.0
    %2165 = vmatmul.mubr.f32.gmra.mrb[0].mxu0 %v1583
    %v2166 = vpop.f32.mrb[0].mxu0
    %v2167 = vadd.f32 %v216, %v2166
    %v2168 = vpop.f32.mrb[0].mxu0
    %2169 = vdwg.mxu0
    %v2170 = vadd.f32 %v2099, %v2167
    %v2171 = vxor.u32 %v2170, 2147483648
    %v2172 = vmul.f32 %v2171, 1.442695
    %v2173 = vpow.pop %v2172
    %v2174 = vadd.f32 %v2173, 1.0
    %v2175 = vrcp.pop %v2174
    %v2176 = vmul.f32 1.0, %v2175
    %2178 = vrot.lane.b32.xlu0 %v2167, 96
    %v2179 = vpop.permute.xlu0 %2178
    %v2181 = vmul.f32 %v2176, %v2179
    %2183 = vrot.lane.b32.xlu0 %v2181, 32
    %v2184 = vpop.permute.xlu0 %2183
    %v2186 = vadd.f32 %v2099, %v2184
    %v2187 = vtanh.pop %v2186
    %v2188 = vsub.f32 1.0, %v2176
    %2190 = vrot.lane.b32.xlu0 %v2187, 112
    %v2191 = vpop.permute.xlu0 %2190
    %v2193 = vmul.f32 %v2188, %v2191
    %v2194 = vmul.f32 %v2176, %v1579
    %v2195 = vadd.f32 %v2193, %v2194
    %2197 = vrot.lane.b32.xlu0 %v2195, 112
    %v2198 = vpop.permute.xlu0 %2197
    %v2199 = vsel %vm93, %v2198, 0
    %2201 = vmatprep.subr.mxu0 0.0
    %2202 = vmatpush1.msra.mxu0 %v190
    %2203 = vmatprep.subr.mxu0 0.0
    %2204 = vmatpush1.msra.mxu0 %v191
    %2205 = vmatprep.subr.mxu0 0.0
    %2206 = vmatpush1.msra.mxu0 0.0
    %2207 = vmatprep.subr.mxu0 0.0
    %2208 = vmatpush1.msra.mxu0 0.0
    %2209 = vmatprep.subr.mxu0 0.0
    %2210 = vmatpush1.msra.mxu0 0.0
    %2211 = vmatprep.subr.mxu0 0.0
    %2212 = vmatpush1.msra.mxu0 0.0
    %2213 = vmatprep.subr.mxu0 0.0
    %2214 = vmatpush1.msra.mxu0 0.0
    %2215 = vmatprep.subr.mxu0 0.0
    %2216 = vmatpush1.msra.mxu0 0.0
    %2217 = vmatprep.subr.mxu0 0.0
    %2218 = vmatpush1.msra.mxu0 0.0
    %2219 = vmatprep.subr.mxu0 0.0
    %2220 = vmatpush1.msra.mxu0 0.0
    %2221 = vmatprep.subr.mxu0 0.0
    %2222 = vmatpush1.msra.mxu0 0.0
    %2223 = vmatprep.subr.mxu0 0.0
    %2224 = vmatpush1.msra.mxu0 0.0
    %2225 = vmatprep.subr.mxu0 0.0
    %2226 = vmatpush1.msra.mxu0 0.0
    %2227 = vmatprep.subr.mxu0 0.0
    %2228 = vmatpush1.msra.mxu0 0.0
    %2229 = vmatprep.subr.mxu0 0.0
    %2230 = vmatpush1.msra.mxu0 0.0
    %2231 = vmatprep.subr.mxu0 0.0
    %2232 = vmatpush1.msra.mxu0 0.0
    %2233 = vmatprep.subr.mxu0 0.0
    %2234 = vmatpush1.msra.mxu0 0.0
    %2235 = vmatprep.subr.mxu0 0.0
    %2236 = vmatpush1.msra.mxu0 0.0
    %2237 = vmatprep.subr.mxu0 0.0
    %2238 = vmatpush1.msra.mxu0 0.0
    %2239 = vmatprep.subr.mxu0 0.0
    %2240 = vmatpush1.msra.mxu0 0.0
    %2241 = vmatprep.subr.mxu0 0.0
    %2242 = vmatpush1.msra.mxu0 0.0
    %2243 = vmatprep.subr.mxu0 0.0
    %2244 = vmatpush1.msra.mxu0 0.0
    %2245 = vmatprep.subr.mxu0 0.0
    %2246 = vmatpush1.msra.mxu0 0.0
    %2247 = vmatprep.subr.mxu0 0.0
    %2248 = vmatpush1.msra.mxu0 0.0
    %2249 = vmatprep.subr.mxu0 0.0
    %2250 = vmatpush1.msra.mxu0 0.0
    %2251 = vmatprep.subr.mxu0 0.0
    %2252 = vmatpush1.msra.mxu0 0.0
    %2253 = vmatprep.subr.mxu0 0.0
    %2254 = vmatpush1.msra.mxu0 0.0
    %2255 = vmatprep.subr.mxu0 0.0
    %2256 = vmatpush1.msra.mxu0 0.0
    %2257 = vmatprep.subr.mxu0 0.0
    %2258 = vmatpush1.msra.mxu0 0.0
    %2259 = vmatprep.subr.mxu0 0.0
    %2260 = vmatpush1.msra.mxu0 0.0
    %2261 = vmatprep.subr.mxu0 0.0
    %2262 = vmatpush1.msra.mxu0 0.0
    %2263 = vmatprep.subr.mxu0 0.0
    %2264 = vmatpush1.msra.mxu0 0.0
    %2265 = vmatprep.mubr.f32.mxu0 0.0
    %2266 = vmatmul.mubr.f32.gmra.mrb[0].mxu0 %v2199
    %v2267 = vpop.f32.mrb[0].mxu0
    %v2268 = vadd.f32 %v321, %v2267
    %v2269 = vpop.f32.mrb[0].mxu0
    %2270 = vdwg.mxu0
    %2271 = vmatprep.subr.mxu0 0.0
    %2272 = vmatpush1.msra.mxu0 %v181
    %2273 = vmatprep.subr.mxu0 0.0
    %2274 = vmatpush1.msra.mxu0 %v182
    %2275 = vmatprep.subr.mxu0 0.0
    %2276 = vmatpush1.msra.mxu0 0.0
    %2277 = vmatprep.subr.mxu0 0.0
    %2278 = vmatpush1.msra.mxu0 0.0
    %2279 = vmatprep.subr.mxu0 0.0
    %2280 = vmatpush1.msra.mxu0 0.0
    %2281 = vmatprep.subr.mxu0 0.0
    %2282 = vmatpush1.msra.mxu0 0.0
    %2283 = vmatprep.subr.mxu0 0.0
    %2284 = vmatpush1.msra.mxu0 0.0
    %2285 = vmatprep.subr.mxu0 0.0
    %2286 = vmatpush1.msra.mxu0 0.0
    %2287 = vmatprep.subr.mxu0 0.0
    %2288 = vmatpush1.msra.mxu0 0.0
    %2289 = vmatprep.subr.mxu0 0.0
    %2290 = vmatpush1.msra.mxu0 0.0
    %2291 = vmatprep.subr.mxu0 0.0
    %2292 = vmatpush1.msra.mxu0 0.0
    %2293 = vmatprep.subr.mxu0 0.0
    %2294 = vmatpush1.msra.mxu0 0.0
    %2295 = vmatprep.subr.mxu0 0.0
    %2296 = vmatpush1.msra.mxu0 0.0
    %2297 = vmatprep.subr.mxu0 0.0
    %2298 = vmatpush1.msra.mxu0 0.0
    %2299 = vmatprep.subr.mxu0 0.0
    %2300 = vmatpush1.msra.mxu0 0.0
    %2301 = vmatprep.subr.mxu0 0.0
    %2302 = vmatpush1.msra.mxu0 0.0
    %2303 = vmatprep.subr.mxu0 0.0
    %2304 = vmatpush1.msra.mxu0 0.0
    %2305 = vmatprep.subr.mxu0 0.0
    %2306 = vmatpush1.msra.mxu0 0.0
    %2307 = vmatprep.subr.mxu0 0.0
    %2308 = vmatpush1.msra.mxu0 0.0
    %2309 = vmatprep.subr.mxu0 0.0
    %2310 = vmatpush1.msra.mxu0 0.0
    %2311 = vmatprep.subr.mxu0 0.0
    %2312 = vmatpush1.msra.mxu0 0.0
    %2313 = vmatprep.subr.mxu0 0.0
    %2314 = vmatpush1.msra.mxu0 0.0
    %2315 = vmatprep.subr.mxu0 0.0
    %2316 = vmatpush1.msra.mxu0 0.0
    %2317 = vmatprep.subr.mxu0 0.0
    %2318 = vmatpush1.msra.mxu0 0.0
    %2319 = vmatprep.subr.mxu0 0.0
    %2320 = vmatpush1.msra.mxu0 0.0
    %2321 = vmatprep.subr.mxu0 0.0
    %2322 = vmatpush1.msra.mxu0 0.0
    %2323 = vmatprep.subr.mxu0 0.0
    %2324 = vmatpush1.msra.mxu0 0.0
    %2325 = vmatprep.subr.mxu0 0.0
    %2326 = vmatpush1.msra.mxu0 0.0
    %2327 = vmatprep.subr.mxu0 0.0
    %2328 = vmatpush1.msra.mxu0 0.0
    %2329 = vmatprep.subr.mxu0 0.0
    %2330 = vmatpush1.msra.mxu0 0.0
    %2331 = vmatprep.subr.mxu0 0.0
    %2332 = vmatpush1.msra.mxu0 0.0
    %2333 = vmatprep.subr.mxu0 0.0
    %2334 = vmatpush1.msra.mxu0 0.0
    %2335 = vmatprep.mubr.f32.mxu0 0.0
    %2336 = vmatmul.mubr.f32.gmra.mrb[0].mxu0 %v1754
    %v2337 = vpop.f32.mrb[0].mxu0
    %v2338 = vadd.f32 %v402, %v2337
    %v2339 = vpop.f32.mrb[0].mxu0
    %2340 = vdwg.mxu0
    %v2341 = vadd.f32 %v2268, %v2338
    %v2342 = vxor.u32 %v2341, 2147483648
    %v2343 = vmul.f32 %v2342, 1.442695
    %v2344 = vpow.pop %v2343
    %v2345 = vadd.f32 %v2344, 1.0
    %v2346 = vrcp.pop %v2345
    %v2347 = vmul.f32 1.0, %v2346
    %2349 = vrot.lane.b32.xlu0 %v2338, 96
    %v2350 = vpop.permute.xlu0 %2349
    %v2352 = vmul.f32 %v2347, %v2350
    %2354 = vrot.lane.b32.xlu0 %v2352, 32
    %v2355 = vpop.permute.xlu0 %2354
    %v2357 = vadd.f32 %v2268, %v2355
    %v2358 = vtanh.pop %v2357
    %v2359 = vsub.f32 1.0, %v2347
    %2361 = vrot.lane.b32.xlu0 %v2358, 112
    %v2362 = vpop.permute.xlu0 %2361
    %v2364 = vmul.f32 %v2359, %v2362
    %v2365 = vmul.f32 %v2347, %v1750
    %v2366 = vadd.f32 %v2364, %v2365
    %2368 = vrot.lane.b32.xlu0 %v2366, 112
    %v2369 = vpop.permute.xlu0 %2368
    %v2370 = vsel %vm93, %v2369, 0
    %2372 = vmatprep.subr.mxu0 0.0
    %2373 = vmatpush1.msra.mxu0 %v193
    %2374 = vmatprep.subr.mxu0 0.0
    %2375 = vmatpush1.msra.mxu0 %v194
    %2376 = vmatprep.subr.mxu0 0.0
    %2377 = vmatpush1.msra.mxu0 0.0
    %2378 = vmatprep.subr.mxu0 0.0
    %2379 = vmatpush1.msra.mxu0 0.0
    %2380 = vmatprep.subr.mxu0 0.0
    %2381 = vmatpush1.msra.mxu0 0.0
    %2382 = vmatprep.subr.mxu0 0.0
    %2383 = vmatpush1.msra.mxu0 0.0
    %2384 = vmatprep.subr.mxu0 0.0
    %2385 = vmatpush1.msra.mxu0 0.0
    %2386 = vmatprep.subr.mxu0 0.0
    %2387 = vmatpush1.msra.mxu0 0.0
    %2388 = vmatprep.subr.mxu0 0.0
    %2389 = vmatpush1.msra.mxu0 0.0
    %2390 = vmatprep.subr.mxu0 0.0
    %2391 = vmatpush1.msra.mxu0 0.0
    %2392 = vmatprep.subr.mxu0 0.0
    %2393 = vmatpush1.msra.mxu0 0.0
    %2394 = vmatprep.subr.mxu0 0.0
    %2395 = vmatpush1.msra.mxu0 0.0
    %2396 = vmatprep.subr.mxu0 0.0
    %2397 = vmatpush1.msra.mxu0 0.0
    %2398 = vmatprep.subr.mxu0 0.0
    %2399 = vmatpush1.msra.mxu0 0.0
    %2400 = vmatprep.subr.mxu0 0.0
    %2401 = vmatpush1.msra.mxu0 0.0
    %2402 = vmatprep.subr.mxu0 0.0
    %2403 = vmatpush1.msra.mxu0 0.0
    %2404 = vmatprep.subr.mxu0 0.0
    %2405 = vmatpush1.msra.mxu0 0.0
    %2406 = vmatprep.subr.mxu0 0.0
    %2407 = vmatpush1.msra.mxu0 0.0
    %2408 = vmatprep.subr.mxu0 0.0
    %2409 = vmatpush1.msra.mxu0 0.0
    %2410 = vmatprep.subr.mxu0 0.0
    %2411 = vmatpush1.msra.mxu0 0.0
    %2412 = vmatprep.subr.mxu0 0.0
    %2413 = vmatpush1.msra.mxu0 0.0
    %2414 = vmatprep.subr.mxu0 0.0
    %2415 = vmatpush1.msra.mxu0 0.0
    %2416 = vmatprep.subr.mxu0 0.0
    %2417 = vmatpush1.msra.mxu0 0.0
    %2418 = vmatprep.subr.mxu0 0.0
    %2419 = vmatpush1.msra.mxu0 0.0
    %2420 = vmatprep.subr.mxu0 0.0
    %2421 = vmatpush1.msra.mxu0 0.0
    %2422 = vmatprep.subr.mxu0 0.0
    %2423 = vmatpush1.msra.mxu0 0.0
    %2424 = vmatprep.subr.mxu0 0.0
    %2425 = vmatpush1.msra.mxu0 0.0
    %2426 = vmatprep.subr.mxu0 0.0
    %2427 = vmatpush1.msra.mxu0 0.0
    %2428 = vmatprep.subr.mxu0 0.0
    %2429 = vmatpush1.msra.mxu0 0.0
    %2430 = vmatprep.subr.mxu0 0.0
    %2431 = vmatpush1.msra.mxu0 0.0
    %2432 = vmatprep.subr.mxu0 0.0
    %2433 = vmatpush1.msra.mxu0 0.0
    %2434 = vmatprep.subr.mxu0 0.0
    %2435 = vmatpush1.msra.mxu0 0.0
    %2436 = vmatprep.mubr.f32.mxu0 0.0
    %2437 = vmatmul.mubr.f32.gmra.mrb[0].mxu0 %v2370
    %v2438 = vpop.f32.mrb[0].mxu0
    %v2439 = vadd.f32 %v504, %v2438
    %v2440 = vpop.f32.mrb[0].mxu0
    %2441 = vdwg.mxu0
    %2442 = vmatprep.subr.mxu0 0.0
    %2443 = vmatpush1.msra.mxu0 %v184
    %2444 = vmatprep.subr.mxu0 0.0
    %2445 = vmatpush1.msra.mxu0 %v185
    %2446 = vmatprep.subr.mxu0 0.0
    %2447 = vmatpush1.msra.mxu0 0.0
    %2448 = vmatprep.subr.mxu0 0.0
    %2449 = vmatpush1.msra.mxu0 0.0
    %2450 = vmatprep.subr.mxu0 0.0
    %2451 = vmatpush1.msra.mxu0 0.0
    %2452 = vmatprep.subr.mxu0 0.0
    %2453 = vmatpush1.msra.mxu0 0.0
    %2454 = vmatprep.subr.mxu0 0.0
    %2455 = vmatpush1.msra.mxu0 0.0
    %2456 = vmatprep.subr.mxu0 0.0
    %2457 = vmatpush1.msra.mxu0 0.0
    %2458 = vmatprep.subr.mxu0 0.0
    %2459 = vmatpush1.msra.mxu0 0.0
    %2460 = vmatprep.subr.mxu0 0.0
    %2461 = vmatpush1.msra.mxu0 0.0
    %2462 = vmatprep.subr.mxu0 0.0
    %2463 = vmatpush1.msra.mxu0 0.0
    %2464 = vmatprep.subr.mxu0 0.0
    %2465 = vmatpush1.msra.mxu0 0.0
    %2466 = vmatprep.subr.mxu0 0.0
    %2467 = vmatpush1.msra.mxu0 0.0
    %2468 = vmatprep.subr.mxu0 0.0
    %2469 = vmatpush1.msra.mxu0 0.0
    %2470 = vmatprep.subr.mxu0 0.0
    %2471 = vmatpush1.msra.mxu0 0.0
    %2472 = vmatprep.subr.mxu0 0.0
    %2473 = vmatpush1.msra.mxu0 0.0
    %2474 = vmatprep.subr.mxu0 0.0
    %2475 = vmatpush1.msra.mxu0 0.0
    %2476 = vmatprep.subr.mxu0 0.0
    %2477 = vmatpush1.msra.mxu0 0.0
    %2478 = vmatprep.subr.mxu0 0.0
    %2479 = vmatpush1.msra.mxu0 0.0
    %2480 = vmatprep.subr.mxu0 0.0
    %2481 = vmatpush1.msra.mxu0 0.0
    %2482 = vmatprep.subr.mxu0 0.0
    %2483 = vmatpush1.msra.mxu0 0.0
    %2484 = vmatprep.subr.mxu0 0.0
    %2485 = vmatpush1.msra.mxu0 0.0
    %2486 = vmatprep.subr.mxu0 0.0
    %2487 = vmatpush1.msra.mxu0 0.0
    %2488 = vmatprep.subr.mxu0 0.0
    %2489 = vmatpush1.msra.mxu0 0.0
    %2490 = vmatprep.subr.mxu0 0.0
    %2491 = vmatpush1.msra.mxu0 0.0
    %2492 = vmatprep.subr.mxu0 0.0
    %2493 = vmatpush1.msra.mxu0 0.0
    %2494 = vmatprep.subr.mxu0 0.0
    %2495 = vmatpush1.msra.mxu0 0.0
    %2496 = vmatprep.subr.mxu0 0.0
    %2497 = vmatpush1.msra.mxu0 0.0
    %2498 = vmatprep.subr.mxu0 0.0
    %2499 = vmatpush1.msra.mxu0 0.0
    %2500 = vmatprep.subr.mxu0 0.0
    %2501 = vmatpush1.msra.mxu0 0.0
    %2502 = vmatprep.subr.mxu0 0.0
    %2503 = vmatpush1.msra.mxu0 0.0
    %2504 = vmatprep.subr.mxu0 0.0
    %2505 = vmatpush1.msra.mxu0 0.0
    %2506 = vmatprep.mubr.f32.mxu0 0.0
    %2507 = vmatmul.mubr.f32.gmra.mrb[0].mxu0 %v1925
    %v2508 = vpop.f32.mrb[0].mxu0
    %v2509 = vadd.f32 %v585, %v2508
    %v2510 = vpop.f32.mrb[0].mxu0
    %2511 = vdwg.mxu0
    %v2512 = vadd.f32 %v2439, %v2509
    %v2513 = vxor.u32 %v2512, 2147483648
    %v2514 = vmul.f32 %v2513, 1.442695
    %v2515 = vpow.pop %v2514
    %v2516 = vadd.f32 %v2515, 1.0
    %v2517 = vrcp.pop %v2516
    %v2518 = vmul.f32 1.0, %v2517
    %2520 = vrot.lane.b32.xlu0 %v2509, 96
    %v2521 = vpop.permute.xlu0 %2520
    %v2523 = vmul.f32 %v2518, %v2521
    %2525 = vrot.lane.b32.xlu0 %v2523, 32
    %v2526 = vpop.permute.xlu0 %2525
    %v2528 = vadd.f32 %v2439, %v2526
    %v2529 = vtanh.pop %v2528
    %v2530 = vsub.f32 1.0, %v2518
    %2532 = vrot.lane.b32.xlu0 %v2529, 112
    %v2533 = vpop.permute.xlu0 %2532
    %v2535 = vmul.f32 %v2530, %v2533
    %v2536 = vmul.f32 %v2518, %v1921
    %v2537 = vadd.f32 %v2535, %v2536
    %2539 = vrot.lane.b32.xlu0 %v2537, 112
    %v2540 = vpop.permute.xlu0 %2539
    %v2541 = vsel %vm93, %v2540, 0
    %2543 = vmatprep.subr.mxu0 0.0
    %2544 = vmatpush1.msra.mxu0 %v196
    %2545 = vmatprep.subr.mxu0 0.0
    %2546 = vmatpush1.msra.mxu0 %v197
    %2547 = vmatprep.subr.mxu0 0.0
    %2548 = vmatpush1.msra.mxu0 0.0
    %2549 = vmatprep.subr.mxu0 0.0
    %2550 = vmatpush1.msra.mxu0 0.0
    %2551 = vmatprep.subr.mxu0 0.0
    %2552 = vmatpush1.msra.mxu0 0.0
    %2553 = vmatprep.subr.mxu0 0.0
    %2554 = vmatpush1.msra.mxu0 0.0
    %2555 = vmatprep.subr.mxu0 0.0
    %2556 = vmatpush1.msra.mxu0 0.0
    %2557 = vmatprep.subr.mxu0 0.0
    %2558 = vmatpush1.msra.mxu0 0.0
    %2559 = vmatprep.subr.mxu0 0.0
    %2560 = vmatpush1.msra.mxu0 0.0
    %2561 = vmatprep.subr.mxu0 0.0
    %2562 = vmatpush1.msra.mxu0 0.0
    %2563 = vmatprep.subr.mxu0 0.0
    %2564 = vmatpush1.msra.mxu0 0.0
    %2565 = vmatprep.subr.mxu0 0.0
    %2566 = vmatpush1.msra.mxu0 0.0
    %2567 = vmatprep.subr.mxu0 0.0
    %2568 = vmatpush1.msra.mxu0 0.0
    %2569 = vmatprep.subr.mxu0 0.0
    %2570 = vmatpush1.msra.mxu0 0.0
    %2571 = vmatprep.subr.mxu0 0.0
    %2572 = vmatpush1.msra.mxu0 0.0
    %2573 = vmatprep.subr.mxu0 0.0
    %2574 = vmatpush1.msra.mxu0 0.0
    %2575 = vmatprep.subr.mxu0 0.0
    %2576 = vmatpush1.msra.mxu0 0.0
    %2577 = vmatprep.subr.mxu0 0.0
    %2578 = vmatpush1.msra.mxu0 0.0
    %2579 = vmatprep.subr.mxu0 0.0
    %2580 = vmatpush1.msra.mxu0 0.0
    %2581 = vmatprep.subr.mxu0 0.0
    %2582 = vmatpush1.msra.mxu0 0.0
    %2583 = vmatprep.subr.mxu0 0.0
    %2584 = vmatpush1.msra.mxu0 0.0
    %2585 = vmatprep.subr.mxu0 0.0
    %2586 = vmatpush1.msra.mxu0 0.0
    %2587 = vmatprep.subr.mxu0 0.0
    %2588 = vmatpush1.msra.mxu0 0.0
    %2589 = vmatprep.subr.mxu0 0.0
    %2590 = vmatpush1.msra.mxu0 0.0
    %2591 = vmatprep.subr.mxu0 0.0
    %2592 = vmatpush1.msra.mxu0 0.0
    %2593 = vmatprep.subr.mxu0 0.0
    %2594 = vmatpush1.msra.mxu0 0.0
    %2595 = vmatprep.subr.mxu0 0.0
    %2596 = vmatpush1.msra.mxu0 0.0
    %2597 = vmatprep.subr.mxu0 0.0
    %2598 = vmatpush1.msra.mxu0 0.0
    %2599 = vmatprep.subr.mxu0 0.0
    %2600 = vmatpush1.msra.mxu0 0.0
    %2601 = vmatprep.subr.mxu0 0.0
    %2602 = vmatpush1.msra.mxu0 0.0
    %2603 = vmatprep.subr.mxu0 0.0
    %2604 = vmatpush1.msra.mxu0 0.0
    %2605 = vmatprep.subr.mxu0 0.0
    %2606 = vmatpush1.msra.mxu0 0.0
    %2607 = vmatprep.mubr.f32.mxu0 0.0
    %2608 = vmatmul.mubr.f32.gmra.mrb[0].mxu0 %v2541
    %v2609 = vpop.f32.mrb[0].mxu0
    %v2610 = vadd.f32 %v687, %v2609
    %v2611 = vpop.f32.mrb[0].mxu0
    %2612 = vdwg.mxu0
    %2614 = vrot.lane.b32.xlu0 %v2097, 112
    %v2615 = vpop.permute.xlu0 %2614
    %v2616 = vsel %vm93, %v2615, 0
    %2618 = vmatprep.subr.mxu0 0.0
    %2619 = vmatpush1.msra.mxu0 %v187
    %2620 = vmatprep.subr.mxu0 0.0
    %2621 = vmatpush1.msra.mxu0 %v188
    %2622 = vmatprep.subr.mxu0 0.0
    %2623 = vmatpush1.msra.mxu0 0.0
    %2624 = vmatprep.subr.mxu0 0.0
    %2625 = vmatpush1.msra.mxu0 0.0
    %2626 = vmatprep.subr.mxu0 0.0
    %2627 = vmatpush1.msra.mxu0 0.0
    %2628 = vmatprep.subr.mxu0 0.0
    %2629 = vmatpush1.msra.mxu0 0.0
    %2630 = vmatprep.subr.mxu0 0.0
    %2631 = vmatpush1.msra.mxu0 0.0
    %2632 = vmatprep.subr.mxu0 0.0
    %2633 = vmatpush1.msra.mxu0 0.0
    %2634 = vmatprep.subr.mxu0 0.0
    %2635 = vmatpush1.msra.mxu0 0.0
    %2636 = vmatprep.subr.mxu0 0.0
    %2637 = vmatpush1.msra.mxu0 0.0
    %2638 = vmatprep.subr.mxu0 0.0
    %2639 = vmatpush1.msra.mxu0 0.0
    %2640 = vmatprep.subr.mxu0 0.0
    %2641 = vmatpush1.msra.mxu0 0.0
    %2642 = vmatprep.subr.mxu0 0.0
    %2643 = vmatpush1.msra.mxu0 0.0
    %2644 = vmatprep.subr.mxu0 0.0
    %2645 = vmatpush1.msra.mxu0 0.0
    %2646 = vmatprep.subr.mxu0 0.0
    %2647 = vmatpush1.msra.mxu0 0.0
    %2648 = vmatprep.subr.mxu0 0.0
    %2649 = vmatpush1.msra.mxu0 0.0
    %2650 = vmatprep.subr.mxu0 0.0
    %2651 = vmatpush1.msra.mxu0 0.0
    %2652 = vmatprep.subr.mxu0 0.0
    %2653 = vmatpush1.msra.mxu0 0.0
    %2654 = vmatprep.subr.mxu0 0.0
    %2655 = vmatpush1.msra.mxu0 0.0
    %2656 = vmatprep.subr.mxu0 0.0
    %2657 = vmatpush1.msra.mxu0 0.0
    %2658 = vmatprep.subr.mxu0 0.0
    %2659 = vmatpush1.msra.mxu0 0.0
    %2660 = vmatprep.subr.mxu0 0.0
    %2661 = vmatpush1.msra.mxu0 0.0
    %2662 = vmatprep.subr.mxu0 0.0
    %2663 = vmatpush1.msra.mxu0 0.0
    %2664 = vmatprep.subr.mxu0 0.0
    %2665 = vmatpush1.msra.mxu0 0.0
    %2666 = vmatprep.subr.mxu0 0.0
    %2667 = vmatpush1.msra.mxu0 0.0
    %2668 = vmatprep.subr.mxu0 0.0
    %2669 = vmatpush1.msra.mxu0 0.0
    %2670 = vmatprep.subr.mxu0 0.0
    %2671 = vmatpush1.msra.mxu0 0.0
    %2672 = vmatprep.subr.mxu0 0.0
    %2673 = vmatpush1.msra.mxu0 0.0
    %2674 = vmatprep.subr.mxu0 0.0
    %2675 = vmatpush1.msra.mxu0 0.0
    %2676 = vmatprep.subr.mxu0 0.0
    %2677 = vmatpush1.msra.mxu0 0.0
    %2678 = vmatprep.subr.mxu0 0.0
    %2679 = vmatpush1.msra.mxu0 0.0
    %2680 = vmatprep.subr.mxu0 0.0
    %2681 = vmatpush1.msra.mxu0 0.0
    %2682 = vmatprep.mubr.f32.mxu0 0.0
    %2683 = vmatmul.mubr.f32.gmra.mrb[0].mxu0 %v2616
    %v2684 = vpop.f32.mrb[0].mxu0
    %v2685 = vadd.f32 %v768, %v2684
    %v2686 = vpop.f32.mrb[0].mxu0
    %2687 = vdwg.mxu0
    %v2688 = vadd.f32 %v2610, %v2685
    %v2689 = vxor.u32 %v2688, 2147483648
    %v2690 = vmul.f32 %v2689, 1.442695
    %v2691 = vpow.pop %v2690
    %v2692 = vadd.f32 %v2691, 1.0
    %v2693 = vrcp.pop %v2692
    %v2694 = vmul.f32 1.0, %v2693
    %2696 = vrot.lane.b32.xlu0 %v2685, 96
    %v2697 = vpop.permute.xlu0 %2696
    %v2699 = vmul.f32 %v2694, %v2697
    %2701 = vrot.lane.b32.xlu0 %v2699, 32
    %v2702 = vpop.permute.xlu0 %2701
    %v2704 = vadd.f32 %v2610, %v2702
    %v2705 = vtanh.pop %v2704
    %v2706 = vsub.f32 1.0, %v2694
    %2708 = vrot.lane.b32.xlu0 %v2705, 112
    %v2709 = vpop.permute.xlu0 %2708
    %v2711 = vmul.f32 %v2706, %v2709
    %v2712 = vmul.f32 %v2694, %v2097
    %v2713 = vadd.f32 %v2711, %v2712
    %s2714 = scalar_lea.vmem [#allocation2], 8
    %v2715 = vld [vmem:[%s2714] sm:$0x3]
    %2716 = vmatprep.subr.mxu0 0.0
    %2717 = vmatpush1.msra.mxu0 %v178
    %2718 = vmatprep.subr.mxu0 0.0
    %2719 = vmatpush1.msra.mxu0 %v179
    %2720 = vmatprep.subr.mxu0 0.0
    %2721 = vmatpush1.msra.mxu0 0.0
    %2722 = vmatprep.subr.mxu0 0.0
    %2723 = vmatpush1.msra.mxu0 0.0
    %2724 = vmatprep.subr.mxu0 0.0
    %2725 = vmatpush1.msra.mxu0 0.0
    %2726 = vmatprep.subr.mxu0 0.0
    %2727 = vmatpush1.msra.mxu0 0.0
    %2728 = vmatprep.subr.mxu0 0.0
    %2729 = vmatpush1.msra.mxu0 0.0
    %2730 = vmatprep.subr.mxu0 0.0
    %2731 = vmatpush1.msra.mxu0 0.0
    %2732 = vmatprep.subr.mxu0 0.0
    %2733 = vmatpush1.msra.mxu0 0.0
    %2734 = vmatprep.subr.mxu0 0.0
    %2735 = vmatpush1.msra.mxu0 0.0
    %2736 = vmatprep.subr.mxu0 0.0
    %2737 = vmatpush1.msra.mxu0 0.0
    %2738 = vmatprep.subr.mxu0 0.0
    %2739 = vmatpush1.msra.mxu0 0.0
    %2740 = vmatprep.subr.mxu0 0.0
    %2741 = vmatpush1.msra.mxu0 0.0
    %2742 = vmatprep.subr.mxu0 0.0
    %2743 = vmatpush1.msra.mxu0 0.0
    %2744 = vmatprep.subr.mxu0 0.0
    %2745 = vmatpush1.msra.mxu0 0.0
    %2746 = vmatprep.subr.mxu0 0.0
    %2747 = vmatpush1.msra.mxu0 0.0
    %2748 = vmatprep.subr.mxu0 0.0
    %2749 = vmatpush1.msra.mxu0 0.0
    %2750 = vmatprep.subr.mxu0 0.0
    %2751 = vmatpush1.msra.mxu0 0.0
    %2752 = vmatprep.subr.mxu0 0.0
    %2753 = vmatpush1.msra.mxu0 0.0
    %2754 = vmatprep.subr.mxu0 0.0
    %2755 = vmatpush1.msra.mxu0 0.0
    %2756 = vmatprep.subr.mxu0 0.0
    %2757 = vmatpush1.msra.mxu0 0.0
    %2758 = vmatprep.subr.mxu0 0.0
    %2759 = vmatpush1.msra.mxu0 0.0
    %2760 = vmatprep.subr.mxu0 0.0
    %2761 = vmatpush1.msra.mxu0 0.0
    %2762 = vmatprep.subr.mxu0 0.0
    %2763 = vmatpush1.msra.mxu0 0.0
    %2764 = vmatprep.subr.mxu0 0.0
    %2765 = vmatpush1.msra.mxu0 0.0
    %2766 = vmatprep.subr.mxu0 0.0
    %2767 = vmatpush1.msra.mxu0 0.0
    %2768 = vmatprep.subr.mxu0 0.0
    %2769 = vmatpush1.msra.mxu0 0.0
    %2770 = vmatprep.subr.mxu0 0.0
    %2771 = vmatpush1.msra.mxu0 0.0
    %2772 = vmatprep.subr.mxu0 0.0
    %2773 = vmatpush1.msra.mxu0 0.0
    %2774 = vmatprep.subr.mxu0 0.0
    %2775 = vmatpush1.msra.mxu0 0.0
    %2776 = vmatprep.subr.mxu0 0.0
    %2777 = vmatpush1.msra.mxu0 0.0
    %2778 = vmatprep.subr.mxu0 0.0
    %2779 = vmatpush1.msra.mxu0 0.0
    %2780 = vmatprep.mubr.f32.mxu0 0.0
    %2781 = vmatmul.mubr.f32.gmra.mrb[0].mxu0 %v2199
    %v2782 = vpop.f32.mrb[0].mxu0
    %v2783 = vadd.f32 %v216, %v2782
    %v2784 = vpop.f32.mrb[0].mxu0
    %2785 = vdwg.mxu0
    %v2786 = vadd.f32 %v2715, %v2783
    %v2787 = vxor.u32 %v2786, 2147483648
    %v2788 = vmul.f32 %v2787, 1.442695
    %v2789 = vpow.pop %v2788
    %v2790 = vadd.f32 %v2789, 1.0
    %v2791 = vrcp.pop %v2790
    %v2792 = vmul.f32 1.0, %v2791
    %2794 = vrot.lane.b32.xlu0 %v2783, 96
    %v2795 = vpop.permute.xlu0 %2794
    %v2797 = vmul.f32 %v2792, %v2795
    %2799 = vrot.lane.b32.xlu0 %v2797, 32
    %v2800 = vpop.permute.xlu0 %2799
    %v2802 = vadd.f32 %v2715, %v2800
    %v2803 = vtanh.pop %v2802
    %v2804 = vsub.f32 1.0, %v2792
    %2806 = vrot.lane.b32.xlu0 %v2803, 112
    %v2807 = vpop.permute.xlu0 %2806
    %v2809 = vmul.f32 %v2804, %v2807
    %v2810 = vmul.f32 %v2792, %v2195
    %v2811 = vadd.f32 %v2809, %v2810
    %2813 = vrot.lane.b32.xlu0 %v2811, 112
    %v2814 = vpop.permute.xlu0 %2813
    %v2815 = vsel %vm93, %v2814, 0
    %2817 = vmatprep.subr.mxu0 0.0
    %2818 = vmatpush1.msra.mxu0 %v190
    %2819 = vmatprep.subr.mxu0 0.0
    %2820 = vmatpush1.msra.mxu0 %v191
    %2821 = vmatprep.subr.mxu0 0.0
    %2822 = vmatpush1.msra.mxu0 0.0
    %2823 = vmatprep.subr.mxu0 0.0
    %2824 = vmatpush1.msra.mxu0 0.0
    %2825 = vmatprep.subr.mxu0 0.0
    %2826 = vmatpush1.msra.mxu0 0.0
    %2827 = vmatprep.subr.mxu0 0.0
    %2828 = vmatpush1.msra.mxu0 0.0
    %2829 = vmatprep.subr.mxu0 0.0
    %2830 = vmatpush1.msra.mxu0 0.0
    %2831 = vmatprep.subr.mxu0 0.0
    %2832 = vmatpush1.msra.mxu0 0.0
    %2833 = vmatprep.subr.mxu0 0.0
    %2834 = vmatpush1.msra.mxu0 0.0
    %2835 = vmatprep.subr.mxu0 0.0
    %2836 = vmatpush1.msra.mxu0 0.0
    %2837 = vmatprep.subr.mxu0 0.0
    %2838 = vmatpush1.msra.mxu0 0.0
    %2839 = vmatprep.subr.mxu0 0.0
    %2840 = vmatpush1.msra.mxu0 0.0
    %2841 = vmatprep.subr.mxu0 0.0
    %2842 = vmatpush1.msra.mxu0 0.0
    %2843 = vmatprep.subr.mxu0 0.0
    %2844 = vmatpush1.msra.mxu0 0.0
    %2845 = vmatprep.subr.mxu0 0.0
    %2846 = vmatpush1.msra.mxu0 0.0
    %2847 = vmatprep.subr.mxu0 0.0
    %2848 = vmatpush1.msra.mxu0 0.0
    %2849 = vmatprep.subr.mxu0 0.0
    %2850 = vmatpush1.msra.mxu0 0.0
    %2851 = vmatprep.subr.mxu0 0.0
    %2852 = vmatpush1.msra.mxu0 0.0
    %2853 = vmatprep.subr.mxu0 0.0
    %2854 = vmatpush1.msra.mxu0 0.0
    %2855 = vmatprep.subr.mxu0 0.0
    %2856 = vmatpush1.msra.mxu0 0.0
    %2857 = vmatprep.subr.mxu0 0.0
    %2858 = vmatpush1.msra.mxu0 0.0
    %2859 = vmatprep.subr.mxu0 0.0
    %2860 = vmatpush1.msra.mxu0 0.0
    %2861 = vmatprep.subr.mxu0 0.0
    %2862 = vmatpush1.msra.mxu0 0.0
    %2863 = vmatprep.subr.mxu0 0.0
    %2864 = vmatpush1.msra.mxu0 0.0
    %2865 = vmatprep.subr.mxu0 0.0
    %2866 = vmatpush1.msra.mxu0 0.0
    %2867 = vmatprep.subr.mxu0 0.0
    %2868 = vmatpush1.msra.mxu0 0.0
    %2869 = vmatprep.subr.mxu0 0.0
    %2870 = vmatpush1.msra.mxu0 0.0
    %2871 = vmatprep.subr.mxu0 0.0
    %2872 = vmatpush1.msra.mxu0 0.0
    %2873 = vmatprep.subr.mxu0 0.0
    %2874 = vmatpush1.msra.mxu0 0.0
    %2875 = vmatprep.subr.mxu0 0.0
    %2876 = vmatpush1.msra.mxu0 0.0
    %2877 = vmatprep.subr.mxu0 0.0
    %2878 = vmatpush1.msra.mxu0 0.0
    %2879 = vmatprep.subr.mxu0 0.0
    %2880 = vmatpush1.msra.mxu0 0.0
    %2881 = vmatprep.mubr.f32.mxu0 0.0
    %2882 = vmatmul.mubr.f32.gmra.mrb[0].mxu0 %v2815
    %v2883 = vpop.f32.mrb[0].mxu0
    %v2884 = vadd.f32 %v321, %v2883
    %v2885 = vpop.f32.mrb[0].mxu0
    %2886 = vdwg.mxu0
    %2887 = vmatprep.subr.mxu0 0.0
    %2888 = vmatpush1.msra.mxu0 %v181
    %2889 = vmatprep.subr.mxu0 0.0
    %2890 = vmatpush1.msra.mxu0 %v182
    %2891 = vmatprep.subr.mxu0 0.0
    %2892 = vmatpush1.msra.mxu0 0.0
    %2893 = vmatprep.subr.mxu0 0.0
    %2894 = vmatpush1.msra.mxu0 0.0
    %2895 = vmatprep.subr.mxu0 0.0
    %2896 = vmatpush1.msra.mxu0 0.0
    %2897 = vmatprep.subr.mxu0 0.0
    %2898 = vmatpush1.msra.mxu0 0.0
    %2899 = vmatprep.subr.mxu0 0.0
    %2900 = vmatpush1.msra.mxu0 0.0
    %2901 = vmatprep.subr.mxu0 0.0
    %2902 = vmatpush1.msra.mxu0 0.0
    %2903 = vmatprep.subr.mxu0 0.0
    %2904 = vmatpush1.msra.mxu0 0.0
    %2905 = vmatprep.subr.mxu0 0.0
    %2906 = vmatpush1.msra.mxu0 0.0
    %2907 = vmatprep.subr.mxu0 0.0
    %2908 = vmatpush1.msra.mxu0 0.0
    %2909 = vmatprep.subr.mxu0 0.0
    %2910 = vmatpush1.msra.mxu0 0.0
    %2911 = vmatprep.subr.mxu0 0.0
    %2912 = vmatpush1.msra.mxu0 0.0
    %2913 = vmatprep.subr.mxu0 0.0
    %2914 = vmatpush1.msra.mxu0 0.0
    %2915 = vmatprep.subr.mxu0 0.0
    %2916 = vmatpush1.msra.mxu0 0.0
    %2917 = vmatprep.subr.mxu0 0.0
    %2918 = vmatpush1.msra.mxu0 0.0
    %2919 = vmatprep.subr.mxu0 0.0
    %2920 = vmatpush1.msra.mxu0 0.0
    %2921 = vmatprep.subr.mxu0 0.0
    %2922 = vmatpush1.msra.mxu0 0.0
    %2923 = vmatprep.subr.mxu0 0.0
    %2924 = vmatpush1.msra.mxu0 0.0
    %2925 = vmatprep.subr.mxu0 0.0
    %2926 = vmatpush1.msra.mxu0 0.0
    %2927 = vmatprep.subr.mxu0 0.0
    %2928 = vmatpush1.msra.mxu0 0.0
    %2929 = vmatprep.subr.mxu0 0.0
    %2930 = vmatpush1.msra.mxu0 0.0
    %2931 = vmatprep.subr.mxu0 0.0
    %2932 = vmatpush1.msra.mxu0 0.0
    %2933 = vmatprep.subr.mxu0 0.0
    %2934 = vmatpush1.msra.mxu0 0.0
    %2935 = vmatprep.subr.mxu0 0.0
    %2936 = vmatpush1.msra.mxu0 0.0
    %2937 = vmatprep.subr.mxu0 0.0
    %2938 = vmatpush1.msra.mxu0 0.0
    %2939 = vmatprep.subr.mxu0 0.0
    %2940 = vmatpush1.msra.mxu0 0.0
    %2941 = vmatprep.subr.mxu0 0.0
    %2942 = vmatpush1.msra.mxu0 0.0
    %2943 = vmatprep.subr.mxu0 0.0
    %2944 = vmatpush1.msra.mxu0 0.0
    %2945 = vmatprep.subr.mxu0 0.0
    %2946 = vmatpush1.msra.mxu0 0.0
    %2947 = vmatprep.subr.mxu0 0.0
    %2948 = vmatpush1.msra.mxu0 0.0
    %2949 = vmatprep.subr.mxu0 0.0
    %2950 = vmatpush1.msra.mxu0 0.0
    %2951 = vmatprep.mubr.f32.mxu0 0.0
    %2952 = vmatmul.mubr.f32.gmra.mrb[0].mxu0 %v2370
    %v2953 = vpop.f32.mrb[0].mxu0
    %v2954 = vadd.f32 %v402, %v2953
    %v2955 = vpop.f32.mrb[0].mxu0
    %2956 = vdwg.mxu0
    %v2957 = vadd.f32 %v2884, %v2954
    %v2958 = vxor.u32 %v2957, 2147483648
    %v2959 = vmul.f32 %v2958, 1.442695
    %v2960 = vpow.pop %v2959
    %v2961 = vadd.f32 %v2960, 1.0
    %v2962 = vrcp.pop %v2961
    %v2963 = vmul.f32 1.0, %v2962
    %2965 = vrot.lane.b32.xlu0 %v2954, 96
    %v2966 = vpop.permute.xlu0 %2965
    %v2968 = vmul.f32 %v2963, %v2966
    %2970 = vrot.lane.b32.xlu0 %v2968, 32
    %v2971 = vpop.permute.xlu0 %2970
    %v2973 = vadd.f32 %v2884, %v2971
    %v2974 = vtanh.pop %v2973
    %v2975 = vsub.f32 1.0, %v2963
    %2977 = vrot.lane.b32.xlu0 %v2974, 112
    %v2978 = vpop.permute.xlu0 %2977
    %v2980 = vmul.f32 %v2975, %v2978
    %v2981 = vmul.f32 %v2963, %v2366
    %v2982 = vadd.f32 %v2980, %v2981
    %2984 = vrot.lane.b32.xlu0 %v2982, 112
    %v2985 = vpop.permute.xlu0 %2984
    %v2986 = vsel %vm93, %v2985, 0
    %2988 = vmatprep.subr.mxu0 0.0
    %2989 = vmatpush1.msra.mxu0 %v193
    %2990 = vmatprep.subr.mxu0 0.0
    %2991 = vmatpush1.msra.mxu0 %v194
    %2992 = vmatprep.subr.mxu0 0.0
    %2993 = vmatpush1.msra.mxu0 0.0
    %2994 = vmatprep.subr.mxu0 0.0
    %2995 = vmatpush1.msra.mxu0 0.0
    %2996 = vmatprep.subr.mxu0 0.0
    %2997 = vmatpush1.msra.mxu0 0.0
    %2998 = vmatprep.subr.mxu0 0.0
    %2999 = vmatpush1.msra.mxu0 0.0
    %3000 = vmatprep.subr.mxu0 0.0
    %3001 = vmatpush1.msra.mxu0 0.0
    %3002 = vmatprep.subr.mxu0 0.0
    %3003 = vmatpush1.msra.mxu0 0.0
    %3004 = vmatprep.subr.mxu0 0.0
    %3005 = vmatpush1.msra.mxu0 0.0
    %3006 = vmatprep.subr.mxu0 0.0
    %3007 = vmatpush1.msra.mxu0 0.0
    %3008 = vmatprep.subr.mxu0 0.0
    %3009 = vmatpush1.msra.mxu0 0.0
    %3010 = vmatprep.subr.mxu0 0.0
    %3011 = vmatpush1.msra.mxu0 0.0
    %3012 = vmatprep.subr.mxu0 0.0
    %3013 = vmatpush1.msra.mxu0 0.0
    %3014 = vmatprep.subr.mxu0 0.0
    %3015 = vmatpush1.msra.mxu0 0.0
    %3016 = vmatprep.subr.mxu0 0.0
    %3017 = vmatpush1.msra.mxu0 0.0
    %3018 = vmatprep.subr.mxu0 0.0
    %3019 = vmatpush1.msra.mxu0 0.0
    %3020 = vmatprep.subr.mxu0 0.0
    %3021 = vmatpush1.msra.mxu0 0.0
    %3022 = vmatprep.subr.mxu0 0.0
    %3023 = vmatpush1.msra.mxu0 0.0
    %3024 = vmatprep.subr.mxu0 0.0
    %3025 = vmatpush1.msra.mxu0 0.0
    %3026 = vmatprep.subr.mxu0 0.0
    %3027 = vmatpush1.msra.mxu0 0.0
    %3028 = vmatprep.subr.mxu0 0.0
    %3029 = vmatpush1.msra.mxu0 0.0
    %3030 = vmatprep.subr.mxu0 0.0
    %3031 = vmatpush1.msra.mxu0 0.0
    %3032 = vmatprep.subr.mxu0 0.0
    %3033 = vmatpush1.msra.mxu0 0.0
    %3034 = vmatprep.subr.mxu0 0.0
    %3035 = vmatpush1.msra.mxu0 0.0
    %3036 = vmatprep.subr.mxu0 0.0
    %3037 = vmatpush1.msra.mxu0 0.0
    %3038 = vmatprep.subr.mxu0 0.0
    %3039 = vmatpush1.msra.mxu0 0.0
    %3040 = vmatprep.subr.mxu0 0.0
    %3041 = vmatpush1.msra.mxu0 0.0
    %3042 = vmatprep.subr.mxu0 0.0
    %3043 = vmatpush1.msra.mxu0 0.0
    %3044 = vmatprep.subr.mxu0 0.0
    %3045 = vmatpush1.msra.mxu0 0.0
    %3046 = vmatprep.subr.mxu0 0.0
    %3047 = vmatpush1.msra.mxu0 0.0
    %3048 = vmatprep.subr.mxu0 0.0
    %3049 = vmatpush1.msra.mxu0 0.0
    %3050 = vmatprep.subr.mxu0 0.0
    %3051 = vmatpush1.msra.mxu0 0.0
    %3052 = vmatprep.mubr.f32.mxu0 0.0
    %3053 = vmatmul.mubr.f32.gmra.mrb[0].mxu0 %v2986
    %v3054 = vpop.f32.mrb[0].mxu0
    %v3055 = vadd.f32 %v504, %v3054
    %v3056 = vpop.f32.mrb[0].mxu0
    %3057 = vdwg.mxu0
    %3058 = vmatprep.subr.mxu0 0.0
    %3059 = vmatpush1.msra.mxu0 %v184
    %3060 = vmatprep.subr.mxu0 0.0
    %3061 = vmatpush1.msra.mxu0 %v185
    %3062 = vmatprep.subr.mxu0 0.0
    %3063 = vmatpush1.msra.mxu0 0.0
    %3064 = vmatprep.subr.mxu0 0.0
    %3065 = vmatpush1.msra.mxu0 0.0
    %3066 = vmatprep.subr.mxu0 0.0
    %3067 = vmatpush1.msra.mxu0 0.0
    %3068 = vmatprep.subr.mxu0 0.0
    %3069 = vmatpush1.msra.mxu0 0.0
    %3070 = vmatprep.subr.mxu0 0.0
    %3071 = vmatpush1.msra.mxu0 0.0
    %3072 = vmatprep.subr.mxu0 0.0
    %3073 = vmatpush1.msra.mxu0 0.0
    %3074 = vmatprep.subr.mxu0 0.0
    %3075 = vmatpush1.msra.mxu0 0.0
    %3076 = vmatprep.subr.mxu0 0.0
    %3077 = vmatpush1.msra.mxu0 0.0
    %3078 = vmatprep.subr.mxu0 0.0
    %3079 = vmatpush1.msra.mxu0 0.0
    %3080 = vmatprep.subr.mxu0 0.0
    %3081 = vmatpush1.msra.mxu0 0.0
    %3082 = vmatprep.subr.mxu0 0.0
    %3083 = vmatpush1.msra.mxu0 0.0
    %3084 = vmatprep.subr.mxu0 0.0
    %3085 = vmatpush1.msra.mxu0 0.0
    %3086 = vmatprep.subr.mxu0 0.0
    %3087 = vmatpush1.msra.mxu0 0.0
    %3088 = vmatprep.subr.mxu0 0.0
    %3089 = vmatpush1.msra.mxu0 0.0
    %3090 = vmatprep.subr.mxu0 0.0
    %3091 = vmatpush1.msra.mxu0 0.0
    %3092 = vmatprep.subr.mxu0 0.0
    %3093 = vmatpush1.msra.mxu0 0.0
    %3094 = vmatprep.subr.mxu0 0.0
    %3095 = vmatpush1.msra.mxu0 0.0
    %3096 = vmatprep.subr.mxu0 0.0
    %3097 = vmatpush1.msra.mxu0 0.0
    %3098 = vmatprep.subr.mxu0 0.0
    %3099 = vmatpush1.msra.mxu0 0.0
    %3100 = vmatprep.subr.mxu0 0.0
    %3101 = vmatpush1.msra.mxu0 0.0
    %3102 = vmatprep.subr.mxu0 0.0
    %3103 = vmatpush1.msra.mxu0 0.0
    %3104 = vmatprep.subr.mxu0 0.0
    %3105 = vmatpush1.msra.mxu0 0.0
    %3106 = vmatprep.subr.mxu0 0.0
    %3107 = vmatpush1.msra.mxu0 0.0
    %3108 = vmatprep.subr.mxu0 0.0
    %3109 = vmatpush1.msra.mxu0 0.0
    %3110 = vmatprep.subr.mxu0 0.0
    %3111 = vmatpush1.msra.mxu0 0.0
    %3112 = vmatprep.subr.mxu0 0.0
    %3113 = vmatpush1.msra.mxu0 0.0
    %3114 = vmatprep.subr.mxu0 0.0
    %3115 = vmatpush1.msra.mxu0 0.0
    %3116 = vmatprep.subr.mxu0 0.0
    %3117 = vmatpush1.msra.mxu0 0.0
    %3118 = vmatprep.subr.mxu0 0.0
    %3119 = vmatpush1.msra.mxu0 0.0
    %3120 = vmatprep.subr.mxu0 0.0
    %3121 = vmatpush1.msra.mxu0 0.0
    %3122 = vmatprep.mubr.f32.mxu0 0.0
    %3123 = vmatmul.mubr.f32.gmra.mrb[0].mxu0 %v2541
    %v3124 = vpop.f32.mrb[0].mxu0
    %v3125 = vadd.f32 %v585, %v3124
    %v3126 = vpop.f32.mrb[0].mxu0
    %3127 = vdwg.mxu0
    %v3128 = vadd.f32 %v3055, %v3125
    %v3129 = vxor.u32 %v3128, 2147483648
    %v3130 = vmul.f32 %v3129, 1.442695
    %v3131 = vpow.pop %v3130
    %v3132 = vadd.f32 %v3131, 1.0
    %v3133 = vrcp.pop %v3132
    %v3134 = vmul.f32 1.0, %v3133
    %3136 = vrot.lane.b32.xlu0 %v3125, 96
    %v3137 = vpop.permute.xlu0 %3136
    %v3139 = vmul.f32 %v3134, %v3137
    %3141 = vrot.lane.b32.xlu0 %v3139, 32
    %v3142 = vpop.permute.xlu0 %3141
    %v3144 = vadd.f32 %v3055, %v3142
    %v3145 = vtanh.pop %v3144
    %v3146 = vsub.f32 1.0, %v3134
    %3148 = vrot.lane.b32.xlu0 %v3145, 112
    %v3149 = vpop.permute.xlu0 %3148
    %v3151 = vmul.f32 %v3146, %v3149
    %v3152 = vmul.f32 %v3134, %v2537
    %v3153 = vadd.f32 %v3151, %v3152
    %3155 = vrot.lane.b32.xlu0 %v3153, 112
    %v3156 = vpop.permute.xlu0 %3155
    %v3157 = vsel %vm93, %v3156, 0
    %3159 = vmatprep.subr.mxu0 0.0
    %3160 = vmatpush1.msra.mxu0 %v196
    %3161 = vmatprep.subr.mxu0 0.0
    %3162 = vmatpush1.msra.mxu0 %v197
    %3163 = vmatprep.subr.mxu0 0.0
    %3164 = vmatpush1.msra.mxu0 0.0
    %3165 = vmatprep.subr.mxu0 0.0
    %3166 = vmatpush1.msra.mxu0 0.0
    %3167 = vmatprep.subr.mxu0 0.0
    %3168 = vmatpush1.msra.mxu0 0.0
    %3169 = vmatprep.subr.mxu0 0.0
    %3170 = vmatpush1.msra.mxu0 0.0
    %3171 = vmatprep.subr.mxu0 0.0
    %3172 = vmatpush1.msra.mxu0 0.0
    %3173 = vmatprep.subr.mxu0 0.0
    %3174 = vmatpush1.msra.mxu0 0.0
    %3175 = vmatprep.subr.mxu0 0.0
    %3176 = vmatpush1.msra.mxu0 0.0
    %3177 = vmatprep.subr.mxu0 0.0
    %3178 = vmatpush1.msra.mxu0 0.0
    %3179 = vmatprep.subr.mxu0 0.0
    %3180 = vmatpush1.msra.mxu0 0.0
    %3181 = vmatprep.subr.mxu0 0.0
    %3182 = vmatpush1.msra.mxu0 0.0
    %3183 = vmatprep.subr.mxu0 0.0
    %3184 = vmatpush1.msra.mxu0 0.0
    %3185 = vmatprep.subr.mxu0 0.0
    %3186 = vmatpush1.msra.mxu0 0.0
    %3187 = vmatprep.subr.mxu0 0.0
    %3188 = vmatpush1.msra.mxu0 0.0
    %3189 = vmatprep.subr.mxu0 0.0
    %3190 = vmatpush1.msra.mxu0 0.0
    %3191 = vmatprep.subr.mxu0 0.0
    %3192 = vmatpush1.msra.mxu0 0.0
    %3193 = vmatprep.subr.mxu0 0.0
    %3194 = vmatpush1.msra.mxu0 0.0
    %3195 = vmatprep.subr.mxu0 0.0
    %3196 = vmatpush1.msra.mxu0 0.0
    %3197 = vmatprep.subr.mxu0 0.0
    %3198 = vmatpush1.msra.mxu0 0.0
    %3199 = vmatprep.subr.mxu0 0.0
    %3200 = vmatpush1.msra.mxu0 0.0
    %3201 = vmatprep.subr.mxu0 0.0
    %3202 = vmatpush1.msra.mxu0 0.0
    %3203 = vmatprep.subr.mxu0 0.0
    %3204 = vmatpush1.msra.mxu0 0.0
    %3205 = vmatprep.subr.mxu0 0.0
    %3206 = vmatpush1.msra.mxu0 0.0
    %3207 = vmatprep.subr.mxu0 0.0
    %3208 = vmatpush1.msra.mxu0 0.0
    %3209 = vmatprep.subr.mxu0 0.0
    %3210 = vmatpush1.msra.mxu0 0.0
    %3211 = vmatprep.subr.mxu0 0.0
    %3212 = vmatpush1.msra.mxu0 0.0
    %3213 = vmatprep.subr.mxu0 0.0
    %3214 = vmatpush1.msra.mxu0 0.0
    %3215 = vmatprep.subr.mxu0 0.0
    %3216 = vmatpush1.msra.mxu0 0.0
    %3217 = vmatprep.subr.mxu0 0.0
    %3218 = vmatpush1.msra.mxu0 0.0
    %3219 = vmatprep.subr.mxu0 0.0
    %3220 = vmatpush1.msra.mxu0 0.0
    %3221 = vmatprep.subr.mxu0 0.0
    %3222 = vmatpush1.msra.mxu0 0.0
    %3223 = vmatprep.mubr.f32.mxu0 0.0
    %3224 = vmatmul.mubr.f32.gmra.mrb[0].mxu0 %v3157
    %v3225 = vpop.f32.mrb[0].mxu0
    %v3226 = vadd.f32 %v687, %v3225
    %v3227 = vpop.f32.mrb[0].mxu0
    %3228 = vdwg.mxu0
    %3230 = vrot.lane.b32.xlu0 %v2713, 112
    %v3231 = vpop.permute.xlu0 %3230
    %v3232 = vsel %vm93, %v3231, 0
    %3234 = vmatprep.subr.mxu0 0.0
    %3235 = vmatpush1.msra.mxu0 %v187
    %3236 = vmatprep.subr.mxu0 0.0
    %3237 = vmatpush1.msra.mxu0 %v188
    %3238 = vmatprep.subr.mxu0 0.0
    %3239 = vmatpush1.msra.mxu0 0.0
    %3240 = vmatprep.subr.mxu0 0.0
    %3241 = vmatpush1.msra.mxu0 0.0
    %3242 = vmatprep.subr.mxu0 0.0
    %3243 = vmatpush1.msra.mxu0 0.0
    %3244 = vmatprep.subr.mxu0 0.0
    %3245 = vmatpush1.msra.mxu0 0.0
    %3246 = vmatprep.subr.mxu0 0.0
    %3247 = vmatpush1.msra.mxu0 0.0
    %3248 = vmatprep.subr.mxu0 0.0
    %3249 = vmatpush1.msra.mxu0 0.0
    %3250 = vmatprep.subr.mxu0 0.0
    %3251 = vmatpush1.msra.mxu0 0.0
    %3252 = vmatprep.subr.mxu0 0.0
    %3253 = vmatpush1.msra.mxu0 0.0
    %3254 = vmatprep.subr.mxu0 0.0
    %3255 = vmatpush1.msra.mxu0 0.0
    %3256 = vmatprep.subr.mxu0 0.0
    %3257 = vmatpush1.msra.mxu0 0.0
    %3258 = vmatprep.subr.mxu0 0.0
    %3259 = vmatpush1.msra.mxu0 0.0
    %3260 = vmatprep.subr.mxu0 0.0
    %3261 = vmatpush1.msra.mxu0 0.0
    %3262 = vmatprep.subr.mxu0 0.0
    %3263 = vmatpush1.msra.mxu0 0.0
    %3264 = vmatprep.subr.mxu0 0.0
    %3265 = vmatpush1.msra.mxu0 0.0
    %3266 = vmatprep.subr.mxu0 0.0
    %3267 = vmatpush1.msra.mxu0 0.0
    %3268 = vmatprep.subr.mxu0 0.0
    %3269 = vmatpush1.msra.mxu0 0.0
    %3270 = vmatprep.subr.mxu0 0.0
    %3271 = vmatpush1.msra.mxu0 0.0
    %3272 = vmatprep.subr.mxu0 0.0
    %3273 = vmatpush1.msra.mxu0 0.0
    %3274 = vmatprep.subr.mxu0 0.0
    %3275 = vmatpush1.msra.mxu0 0.0
    %3276 = vmatprep.subr.mxu0 0.0
    %3277 = vmatpush1.msra.mxu0 0.0
    %3278 = vmatprep.subr.mxu0 0.0
    %3279 = vmatpush1.msra.mxu0 0.0
    %3280 = vmatprep.subr.mxu0 0.0
    %3281 = vmatpush1.msra.mxu0 0.0
    %3282 = vmatprep.subr.mxu0 0.0
    %3283 = vmatpush1.msra.mxu0 0.0
    %3284 = vmatprep.subr.mxu0 0.0
    %3285 = vmatpush1.msra.mxu0 0.0
    %3286 = vmatprep.subr.mxu0 0.0
    %3287 = vmatpush1.msra.mxu0 0.0
    %3288 = vmatprep.subr.mxu0 0.0
    %3289 = vmatpush1.msra.mxu0 0.0
    %3290 = vmatprep.subr.mxu0 0.0
    %3291 = vmatpush1.msra.mxu0 0.0
    %3292 = vmatprep.subr.mxu0 0.0
    %3293 = vmatpush1.msra.mxu0 0.0
    %3294 = vmatprep.subr.mxu0 0.0
    %3295 = vmatpush1.msra.mxu0 0.0
    %3296 = vmatprep.subr.mxu0 0.0
    %3297 = vmatpush1.msra.mxu0 0.0
    %3298 = vmatprep.mubr.f32.mxu0 0.0
    %3299 = vmatmul.mubr.f32.gmra.mrb[0].mxu0 %v3232
    %v3300 = vpop.f32.mrb[0].mxu0
    %v3301 = vadd.f32 %v768, %v3300
    %v3302 = vpop.f32.mrb[0].mxu0
    %3303 = vdwg.mxu0
    %v3304 = vadd.f32 %v3226, %v3301
    %v3305 = vxor.u32 %v3304, 2147483648
    %v3306 = vmul.f32 %v3305, 1.442695
    %v3307 = vpow.pop %v3306
    %v3308 = vadd.f32 %v3307, 1.0
    %v3309 = vrcp.pop %v3308
    %v3310 = vmul.f32 1.0, %v3309
    %3312 = vrot.lane.b32.xlu0 %v3301, 96
    %v3313 = vpop.permute.xlu0 %3312
    %v3315 = vmul.f32 %v3310, %v3313
    %3317 = vrot.lane.b32.xlu0 %v3315, 32
    %v3318 = vpop.permute.xlu0 %3317
    %v3320 = vadd.f32 %v3226, %v3318
    %v3321 = vtanh.pop %v3320
    %v3322 = vsub.f32 1.0, %v3310
    %3324 = vrot.lane.b32.xlu0 %v3321, 112
    %v3325 = vpop.permute.xlu0 %3324
    %v3327 = vmul.f32 %v3322, %v3325
    %v3328 = vmul.f32 %v3310, %v2713
    %v3329 = vadd.f32 %v3327, %v3328
    %s3330 = scalar_lea.vmem [#allocation2], 10
    %v3331 = vld [vmem:[%s3330] sm:$0x3]
    %3332 = vmatprep.subr.mxu0 0.0
    %3333 = vmatpush1.msra.mxu0 %v178
    %3334 = vmatprep.subr.mxu0 0.0
    %3335 = vmatpush1.msra.mxu0 %v179
    %3336 = vmatprep.subr.mxu0 0.0
    %3337 = vmatpush1.msra.mxu0 0.0
    %3338 = vmatprep.subr.mxu0 0.0
    %3339 = vmatpush1.msra.mxu0 0.0
    %3340 = vmatprep.subr.mxu0 0.0
    %3341 = vmatpush1.msra.mxu0 0.0
    %3342 = vmatprep.subr.mxu0 0.0
    %3343 = vmatpush1.msra.mxu0 0.0
    %3344 = vmatprep.subr.mxu0 0.0
    %3345 = vmatpush1.msra.mxu0 0.0
    %3346 = vmatprep.subr.mxu0 0.0
    %3347 = vmatpush1.msra.mxu0 0.0
    %3348 = vmatprep.subr.mxu0 0.0
    %3349 = vmatpush1.msra.mxu0 0.0
    %3350 = vmatprep.subr.mxu0 0.0
    %3351 = vmatpush1.msra.mxu0 0.0
    %3352 = vmatprep.subr.mxu0 0.0
    %3353 = vmatpush1.msra.mxu0 0.0
    %3354 = vmatprep.subr.mxu0 0.0
    %3355 = vmatpush1.msra.mxu0 0.0
    %3356 = vmatprep.subr.mxu0 0.0
    %3357 = vmatpush1.msra.mxu0 0.0
    %3358 = vmatprep.subr.mxu0 0.0
    %3359 = vmatpush1.msra.mxu0 0.0
    %3360 = vmatprep.subr.mxu0 0.0
    %3361 = vmatpush1.msra.mxu0 0.0
    %3362 = vmatprep.subr.mxu0 0.0
    %3363 = vmatpush1.msra.mxu0 0.0
    %3364 = vmatprep.subr.mxu0 0.0
    %3365 = vmatpush1.msra.mxu0 0.0
    %3366 = vmatprep.subr.mxu0 0.0
    %3367 = vmatpush1.msra.mxu0 0.0
    %3368 = vmatprep.subr.mxu0 0.0
    %3369 = vmatpush1.msra.mxu0 0.0
    %3370 = vmatprep.subr.mxu0 0.0
    %3371 = vmatpush1.msra.mxu0 0.0
    %3372 = vmatprep.subr.mxu0 0.0
    %3373 = vmatpush1.msra.mxu0 0.0
    %3374 = vmatprep.subr.mxu0 0.0
    %3375 = vmatpush1.msra.mxu0 0.0
    %3376 = vmatprep.subr.mxu0 0.0
    %3377 = vmatpush1.msra.mxu0 0.0
    %3378 = vmatprep.subr.mxu0 0.0
    %3379 = vmatpush1.msra.mxu0 0.0
    %3380 = vmatprep.subr.mxu0 0.0
    %3381 = vmatpush1.msra.mxu0 0.0
    %3382 = vmatprep.subr.mxu0 0.0
    %3383 = vmatpush1.msra.mxu0 0.0
    %3384 = vmatprep.subr.mxu0 0.0
    %3385 = vmatpush1.msra.mxu0 0.0
    %3386 = vmatprep.subr.mxu0 0.0
    %3387 = vmatpush1.msra.mxu0 0.0
    %3388 = vmatprep.subr.mxu0 0.0
    %3389 = vmatpush1.msra.mxu0 0.0
    %3390 = vmatprep.subr.mxu0 0.0
    %3391 = vmatpush1.msra.mxu0 0.0
    %3392 = vmatprep.subr.mxu0 0.0
    %3393 = vmatpush1.msra.mxu0 0.0
    %3394 = vmatprep.subr.mxu0 0.0
    %3395 = vmatpush1.msra.mxu0 0.0
    %3396 = vmatprep.mubr.f32.mxu0 0.0
    %3397 = vmatmul.mubr.f32.gmra.mrb[0].mxu0 %v2815
    %v3398 = vpop.f32.mrb[0].mxu0
    %v3399 = vadd.f32 %v216, %v3398
    %v3400 = vpop.f32.mrb[0].mxu0
    %3401 = vdwg.mxu0
    %v3402 = vadd.f32 %v3331, %v3399
    %v3403 = vxor.u32 %v3402, 2147483648
    %v3404 = vmul.f32 %v3403, 1.442695
    %v3405 = vpow.pop %v3404
    %v3406 = vadd.f32 %v3405, 1.0
    %v3407 = vrcp.pop %v3406
    %v3408 = vmul.f32 1.0, %v3407
    %3410 = vrot.lane.b32.xlu0 %v3399, 96
    %v3411 = vpop.permute.xlu0 %3410
    %v3413 = vmul.f32 %v3408, %v3411
    %3415 = vrot.lane.b32.xlu0 %v3413, 32
    %v3416 = vpop.permute.xlu0 %3415
    %v3418 = vadd.f32 %v3331, %v3416
    %v3419 = vtanh.pop %v3418
    %v3420 = vsub.f32 1.0, %v3408
    %3422 = vrot.lane.b32.xlu0 %v3419, 112
    %v3423 = vpop.permute.xlu0 %3422
    %v3425 = vmul.f32 %v3420, %v3423
    %v3426 = vmul.f32 %v3408, %v2811
    %v3427 = vadd.f32 %v3425, %v3426
    %3429 = vrot.lane.b32.xlu0 %v3427, 112
    %v3430 = vpop.permute.xlu0 %3429
    %v3431 = vsel %vm93, %v3430, 0
    %3433 = vmatprep.subr.mxu0 0.0
    %3434 = vmatpush1.msra.mxu0 %v190
    %3435 = vmatprep.subr.mxu0 0.0
    %3436 = vmatpush1.msra.mxu0 %v191
    %3437 = vmatprep.subr.mxu0 0.0
    %3438 = vmatpush1.msra.mxu0 0.0
    %3439 = vmatprep.subr.mxu0 0.0
    %3440 = vmatpush1.msra.mxu0 0.0
    %3441 = vmatprep.subr.mxu0 0.0
    %3442 = vmatpush1.msra.mxu0 0.0
    %3443 = vmatprep.subr.mxu0 0.0
    %3444 = vmatpush1.msra.mxu0 0.0
    %3445 = vmatprep.subr.mxu0 0.0
    %3446 = vmatpush1.msra.mxu0 0.0
    %3447 = vmatprep.subr.mxu0 0.0
    %3448 = vmatpush1.msra.mxu0 0.0
    %3449 = vmatprep.subr.mxu0 0.0
    %3450 = vmatpush1.msra.mxu0 0.0
    %3451 = vmatprep.subr.mxu0 0.0
    %3452 = vmatpush1.msra.mxu0 0.0
    %3453 = vmatprep.subr.mxu0 0.0
    %3454 = vmatpush1.msra.mxu0 0.0
    %3455 = vmatprep.subr.mxu0 0.0
    %3456 = vmatpush1.msra.mxu0 0.0
    %3457 = vmatprep.subr.mxu0 0.0
    %3458 = vmatpush1.msra.mxu0 0.0
    %3459 = vmatprep.subr.mxu0 0.0
    %3460 = vmatpush1.msra.mxu0 0.0
    %3461 = vmatprep.subr.mxu0 0.0
    %3462 = vmatpush1.msra.mxu0 0.0
    %3463 = vmatprep.subr.mxu0 0.0
    %3464 = vmatpush1.msra.mxu0 0.0
    %3465 = vmatprep.subr.mxu0 0.0
    %3466 = vmatpush1.msra.mxu0 0.0
    %3467 = vmatprep.subr.mxu0 0.0
    %3468 = vmatpush1.msra.mxu0 0.0
    %3469 = vmatprep.subr.mxu0 0.0
    %3470 = vmatpush1.msra.mxu0 0.0
    %3471 = vmatprep.subr.mxu0 0.0
    %3472 = vmatpush1.msra.mxu0 0.0
    %3473 = vmatprep.subr.mxu0 0.0
    %3474 = vmatpush1.msra.mxu0 0.0
    %3475 = vmatprep.subr.mxu0 0.0
    %3476 = vmatpush1.msra.mxu0 0.0
    %3477 = vmatprep.subr.mxu0 0.0
    %3478 = vmatpush1.msra.mxu0 0.0
    %3479 = vmatprep.subr.mxu0 0.0
    %3480 = vmatpush1.msra.mxu0 0.0
    %3481 = vmatprep.subr.mxu0 0.0
    %3482 = vmatpush1.msra.mxu0 0.0
    %3483 = vmatprep.subr.mxu0 0.0
    %3484 = vmatpush1.msra.mxu0 0.0
    %3485 = vmatprep.subr.mxu0 0.0
    %3486 = vmatpush1.msra.mxu0 0.0
    %3487 = vmatprep.subr.mxu0 0.0
    %3488 = vmatpush1.msra.mxu0 0.0
    %3489 = vmatprep.subr.mxu0 0.0
    %3490 = vmatpush1.msra.mxu0 0.0
    %3491 = vmatprep.subr.mxu0 0.0
    %3492 = vmatpush1.msra.mxu0 0.0
    %3493 = vmatprep.subr.mxu0 0.0
    %3494 = vmatpush1.msra.mxu0 0.0
    %3495 = vmatprep.subr.mxu0 0.0
    %3496 = vmatpush1.msra.mxu0 0.0
    %3497 = vmatprep.mubr.f32.mxu0 0.0
    %3498 = vmatmul.mubr.f32.gmra.mrb[0].mxu0 %v3431
    %v3499 = vpop.f32.mrb[0].mxu0
    %v3500 = vadd.f32 %v321, %v3499
    %v3501 = vpop.f32.mrb[0].mxu0
    %3502 = vdwg.mxu0
    %3503 = vmatprep.subr.mxu0 0.0
    %3504 = vmatpush1.msra.mxu0 %v181
    %3505 = vmatprep.subr.mxu0 0.0
    %3506 = vmatpush1.msra.mxu0 %v182
    %3507 = vmatprep.subr.mxu0 0.0
    %3508 = vmatpush1.msra.mxu0 0.0
    %3509 = vmatprep.subr.mxu0 0.0
    %3510 = vmatpush1.msra.mxu0 0.0
    %3511 = vmatprep.subr.mxu0 0.0
    %3512 = vmatpush1.msra.mxu0 0.0
    %3513 = vmatprep.subr.mxu0 0.0
    %3514 = vmatpush1.msra.mxu0 0.0
    %3515 = vmatprep.subr.mxu0 0.0
    %3516 = vmatpush1.msra.mxu0 0.0
    %3517 = vmatprep.subr.mxu0 0.0
    %3518 = vmatpush1.msra.mxu0 0.0
    %3519 = vmatprep.subr.mxu0 0.0
    %3520 = vmatpush1.msra.mxu0 0.0
    %3521 = vmatprep.subr.mxu0 0.0
    %3522 = vmatpush1.msra.mxu0 0.0
    %3523 = vmatprep.subr.mxu0 0.0
    %3524 = vmatpush1.msra.mxu0 0.0
    %3525 = vmatprep.subr.mxu0 0.0
    %3526 = vmatpush1.msra.mxu0 0.0
    %3527 = vmatprep.subr.mxu0 0.0
    %3528 = vmatpush1.msra.mxu0 0.0
    %3529 = vmatprep.subr.mxu0 0.0
    %3530 = vmatpush1.msra.mxu0 0.0
    %3531 = vmatprep.subr.mxu0 0.0
    %3532 = vmatpush1.msra.mxu0 0.0
    %3533 = vmatprep.subr.mxu0 0.0
    %3534 = vmatpush1.msra.mxu0 0.0
    %3535 = vmatprep.subr.mxu0 0.0
    %3536 = vmatpush1.msra.mxu0 0.0
    %3537 = vmatprep.subr.mxu0 0.0
    %3538 = vmatpush1.msra.mxu0 0.0
    %3539 = vmatprep.subr.mxu0 0.0
    %3540 = vmatpush1.msra.mxu0 0.0
    %3541 = vmatprep.subr.mxu0 0.0
    %3542 = vmatpush1.msra.mxu0 0.0
    %3543 = vmatprep.subr.mxu0 0.0
    %3544 = vmatpush1.msra.mxu0 0.0
    %3545 = vmatprep.subr.mxu0 0.0
    %3546 = vmatpush1.msra.mxu0 0.0
    %3547 = vmatprep.subr.mxu0 0.0
    %3548 = vmatpush1.msra.mxu0 0.0
    %3549 = vmatprep.subr.mxu0 0.0
    %3550 = vmatpush1.msra.mxu0 0.0
    %3551 = vmatprep.subr.mxu0 0.0
    %3552 = vmatpush1.msra.mxu0 0.0
    %3553 = vmatprep.subr.mxu0 0.0
    %3554 = vmatpush1.msra.mxu0 0.0
    %3555 = vmatprep.subr.mxu0 0.0
    %3556 = vmatpush1.msra.mxu0 0.0
    %3557 = vmatprep.subr.mxu0 0.0
    %3558 = vmatpush1.msra.mxu0 0.0
    %3559 = vmatprep.subr.mxu0 0.0
    %3560 = vmatpush1.msra.mxu0 0.0
    %3561 = vmatprep.subr.mxu0 0.0
    %3562 = vmatpush1.msra.mxu0 0.0
    %3563 = vmatprep.subr.mxu0 0.0
    %3564 = vmatpush1.msra.mxu0 0.0
    %3565 = vmatprep.subr.mxu0 0.0
    %3566 = vmatpush1.msra.mxu0 0.0
    %3567 = vmatprep.mubr.f32.mxu0 0.0
    %3568 = vmatmul.mubr.f32.gmra.mrb[0].mxu0 %v2986
    %v3569 = vpop.f32.mrb[0].mxu0
    %v3570 = vadd.f32 %v402, %v3569
    %v3571 = vpop.f32.mrb[0].mxu0
    %3572 = vdwg.mxu0
    %v3573 = vadd.f32 %v3500, %v3570
    %v3574 = vxor.u32 %v3573, 2147483648
    %v3575 = vmul.f32 %v3574, 1.442695
    %v3576 = vpow.pop %v3575
    %v3577 = vadd.f32 %v3576, 1.0
    %v3578 = vrcp.pop %v3577
    %v3579 = vmul.f32 1.0, %v3578
    %3581 = vrot.lane.b32.xlu0 %v3570, 96
    %v3582 = vpop.permute.xlu0 %3581
    %v3584 = vmul.f32 %v3579, %v3582
    %3586 = vrot.lane.b32.xlu0 %v3584, 32
    %v3587 = vpop.permute.xlu0 %3586
    %v3589 = vadd.f32 %v3500, %v3587
    %v3590 = vtanh.pop %v3589
    %v3591 = vsub.f32 1.0, %v3579
    %3593 = vrot.lane.b32.xlu0 %v3590, 112
    %v3594 = vpop.permute.xlu0 %3593
    %v3596 = vmul.f32 %v3591, %v3594
    %v3597 = vmul.f32 %v3579, %v2982
    %v3598 = vadd.f32 %v3596, %v3597
    %3600 = vrot.lane.b32.xlu0 %v3598, 112
    %v3601 = vpop.permute.xlu0 %3600
    %v3602 = vsel %vm93, %v3601, 0
    %3604 = vmatprep.subr.mxu0 0.0
    %3605 = vmatpush1.msra.mxu0 %v193
    %3606 = vmatprep.subr.mxu0 0.0
    %3607 = vmatpush1.msra.mxu0 %v194
    %3608 = vmatprep.subr.mxu0 0.0
    %3609 = vmatpush1.msra.mxu0 0.0
    %3610 = vmatprep.subr.mxu0 0.0
    %3611 = vmatpush1.msra.mxu0 0.0
    %3612 = vmatprep.subr.mxu0 0.0
    %3613 = vmatpush1.msra.mxu0 0.0
    %3614 = vmatprep.subr.mxu0 0.0
    %3615 = vmatpush1.msra.mxu0 0.0
    %3616 = vmatprep.subr.mxu0 0.0
    %3617 = vmatpush1.msra.mxu0 0.0
    %3618 = vmatprep.subr.mxu0 0.0
    %3619 = vmatpush1.msra.mxu0 0.0
    %3620 = vmatprep.subr.mxu0 0.0
    %3621 = vmatpush1.msra.mxu0 0.0
    %3622 = vmatprep.subr.mxu0 0.0
    %3623 = vmatpush1.msra.mxu0 0.0
    %3624 = vmatprep.subr.mxu0 0.0
    %3625 = vmatpush1.msra.mxu0 0.0
    %3626 = vmatprep.subr.mxu0 0.0
    %3627 = vmatpush1.msra.mxu0 0.0
    %3628 = vmatprep.subr.mxu0 0.0
    %3629 = vmatpush1.msra.mxu0 0.0
    %3630 = vmatprep.subr.mxu0 0.0
    %3631 = vmatpush1.msra.mxu0 0.0
    %3632 = vmatprep.subr.mxu0 0.0
    %3633 = vmatpush1.msra.mxu0 0.0
    %3634 = vmatprep.subr.mxu0 0.0
    %3635 = vmatpush1.msra.mxu0 0.0
    %3636 = vmatprep.subr.mxu0 0.0
    %3637 = vmatpush1.msra.mxu0 0.0
    %3638 = vmatprep.subr.mxu0 0.0
    %3639 = vmatpush1.msra.mxu0 0.0
    %3640 = vmatprep.subr.mxu0 0.0
    %3641 = vmatpush1.msra.mxu0 0.0
    %3642 = vmatprep.subr.mxu0 0.0
    %3643 = vmatpush1.msra.mxu0 0.0
    %3644 = vmatprep.subr.mxu0 0.0
    %3645 = vmatpush1.msra.mxu0 0.0
    %3646 = vmatprep.subr.mxu0 0.0
    %3647 = vmatpush1.msra.mxu0 0.0
    %3648 = vmatprep.subr.mxu0 0.0
    %3649 = vmatpush1.msra.mxu0 0.0
    %3650 = vmatprep.subr.mxu0 0.0
    %3651 = vmatpush1.msra.mxu0 0.0
    %3652 = vmatprep.subr.mxu0 0.0
    %3653 = vmatpush1.msra.mxu0 0.0
    %3654 = vmatprep.subr.mxu0 0.0
    %3655 = vmatpush1.msra.mxu0 0.0
    %3656 = vmatprep.subr.mxu0 0.0
    %3657 = vmatpush1.msra.mxu0 0.0
    %3658 = vmatprep.subr.mxu0 0.0
    %3659 = vmatpush1.msra.mxu0 0.0
    %3660 = vmatprep.subr.mxu0 0.0
    %3661 = vmatpush1.msra.mxu0 0.0
    %3662 = vmatprep.subr.mxu0 0.0
    %3663 = vmatpush1.msra.mxu0 0.0
    %3664 = vmatprep.subr.mxu0 0.0
    %3665 = vmatpush1.msra.mxu0 0.0
    %3666 = vmatprep.subr.mxu0 0.0
    %3667 = vmatpush1.msra.mxu0 0.0
    %3668 = vmatprep.mubr.f32.mxu0 0.0
    %3669 = vmatmul.mubr.f32.gmra.mrb[0].mxu0 %v3602
    %v3670 = vpop.f32.mrb[0].mxu0
    %v3671 = vadd.f32 %v504, %v3670
    %v3672 = vpop.f32.mrb[0].mxu0
    %3673 = vdwg.mxu0
    %3674 = vmatprep.subr.mxu0 0.0
    %3675 = vmatpush1.msra.mxu0 %v184
    %3676 = vmatprep.subr.mxu0 0.0
    %3677 = vmatpush1.msra.mxu0 %v185
    %3678 = vmatprep.subr.mxu0 0.0
    %3679 = vmatpush1.msra.mxu0 0.0
    %3680 = vmatprep.subr.mxu0 0.0
    %3681 = vmatpush1.msra.mxu0 0.0
    %3682 = vmatprep.subr.mxu0 0.0
    %3683 = vmatpush1.msra.mxu0 0.0
    %3684 = vmatprep.subr.mxu0 0.0
    %3685 = vmatpush1.msra.mxu0 0.0
    %3686 = vmatprep.subr.mxu0 0.0
    %3687 = vmatpush1.msra.mxu0 0.0
    %3688 = vmatprep.subr.mxu0 0.0
    %3689 = vmatpush1.msra.mxu0 0.0
    %3690 = vmatprep.subr.mxu0 0.0
    %3691 = vmatpush1.msra.mxu0 0.0
    %3692 = vmatprep.subr.mxu0 0.0
    %3693 = vmatpush1.msra.mxu0 0.0
    %3694 = vmatprep.subr.mxu0 0.0
    %3695 = vmatpush1.msra.mxu0 0.0
    %3696 = vmatprep.subr.mxu0 0.0
    %3697 = vmatpush1.msra.mxu0 0.0
    %3698 = vmatprep.subr.mxu0 0.0
    %3699 = vmatpush1.msra.mxu0 0.0
    %3700 = vmatprep.subr.mxu0 0.0
    %3701 = vmatpush1.msra.mxu0 0.0
    %3702 = vmatprep.subr.mxu0 0.0
    %3703 = vmatpush1.msra.mxu0 0.0
    %3704 = vmatprep.subr.mxu0 0.0
    %3705 = vmatpush1.msra.mxu0 0.0
    %3706 = vmatprep.subr.mxu0 0.0
    %3707 = vmatpush1.msra.mxu0 0.0
    %3708 = vmatprep.subr.mxu0 0.0
    %3709 = vmatpush1.msra.mxu0 0.0
    %3710 = vmatprep.subr.mxu0 0.0
    %3711 = vmatpush1.msra.mxu0 0.0
    %3712 = vmatprep.subr.mxu0 0.0
    %3713 = vmatpush1.msra.mxu0 0.0
    %3714 = vmatprep.subr.mxu0 0.0
    %3715 = vmatpush1.msra.mxu0 0.0
    %3716 = vmatprep.subr.mxu0 0.0
    %3717 = vmatpush1.msra.mxu0 0.0
    %3718 = vmatprep.subr.mxu0 0.0
    %3719 = vmatpush1.msra.mxu0 0.0
    %3720 = vmatprep.subr.mxu0 0.0
    %3721 = vmatpush1.msra.mxu0 0.0
    %3722 = vmatprep.subr.mxu0 0.0
    %3723 = vmatpush1.msra.mxu0 0.0
    %3724 = vmatprep.subr.mxu0 0.0
    %3725 = vmatpush1.msra.mxu0 0.0
    %3726 = vmatprep.subr.mxu0 0.0
    %3727 = vmatpush1.msra.mxu0 0.0
    %3728 = vmatprep.subr.mxu0 0.0
    %3729 = vmatpush1.msra.mxu0 0.0
    %3730 = vmatprep.subr.mxu0 0.0
    %3731 = vmatpush1.msra.mxu0 0.0
    %3732 = vmatprep.subr.mxu0 0.0
    %3733 = vmatpush1.msra.mxu0 0.0
    %3734 = vmatprep.subr.mxu0 0.0
    %3735 = vmatpush1.msra.mxu0 0.0
    %3736 = vmatprep.subr.mxu0 0.0
    %3737 = vmatpush1.msra.mxu0 0.0
    %3738 = vmatprep.mubr.f32.mxu0 0.0
    %3739 = vmatmul.mubr.f32.gmra.mrb[0].mxu0 %v3157
    %v3740 = vpop.f32.mrb[0].mxu0
    %v3741 = vadd.f32 %v585, %v3740
    %v3742 = vpop.f32.mrb[0].mxu0
    %3743 = vdwg.mxu0
    %v3744 = vadd.f32 %v3671, %v3741
    %v3745 = vxor.u32 %v3744, 2147483648
    %v3746 = vmul.f32 %v3745, 1.442695
    %v3747 = vpow.pop %v3746
    %v3748 = vadd.f32 %v3747, 1.0
    %v3749 = vrcp.pop %v3748
    %v3750 = vmul.f32 1.0, %v3749
    %3752 = vrot.lane.b32.xlu0 %v3741, 96
    %v3753 = vpop.permute.xlu0 %3752
    %v3755 = vmul.f32 %v3750, %v3753
    %3757 = vrot.lane.b32.xlu0 %v3755, 32
    %v3758 = vpop.permute.xlu0 %3757
    %v3760 = vadd.f32 %v3671, %v3758
    %v3761 = vtanh.pop %v3760
    %v3762 = vsub.f32 1.0, %v3750
    %3764 = vrot.lane.b32.xlu0 %v3761, 112
    %v3765 = vpop.permute.xlu0 %3764
    %v3767 = vmul.f32 %v3762, %v3765
    %v3768 = vmul.f32 %v3750, %v3153
    %v3769 = vadd.f32 %v3767, %v3768
    %3771 = vrot.lane.b32.xlu0 %v3769, 112
    %v3772 = vpop.permute.xlu0 %3771
    %v3773 = vsel %vm93, %v3772, 0
    %3775 = vmatprep.subr.mxu0 0.0
    %3776 = vmatpush1.msra.mxu0 %v196
    %3777 = vmatprep.subr.mxu0 0.0
    %3778 = vmatpush1.msra.mxu0 %v197
    %3779 = vmatprep.subr.mxu0 0.0
    %3780 = vmatpush1.msra.mxu0 0.0
    %3781 = vmatprep.subr.mxu0 0.0
    %3782 = vmatpush1.msra.mxu0 0.0
    %3783 = vmatprep.subr.mxu0 0.0
    %3784 = vmatpush1.msra.mxu0 0.0
    %3785 = vmatprep.subr.mxu0 0.0
    %3786 = vmatpush1.msra.mxu0 0.0
    %3787 = vmatprep.subr.mxu0 0.0
    %3788 = vmatpush1.msra.mxu0 0.0
    %3789 = vmatprep.subr.mxu0 0.0
    %3790 = vmatpush1.msra.mxu0 0.0
    %3791 = vmatprep.subr.mxu0 0.0
    %3792 = vmatpush1.msra.mxu0 0.0
    %3793 = vmatprep.subr.mxu0 0.0
    %3794 = vmatpush1.msra.mxu0 0.0
    %3795 = vmatprep.subr.mxu0 0.0
    %3796 = vmatpush1.msra.mxu0 0.0
    %3797 = vmatprep.subr.mxu0 0.0
    %3798 = vmatpush1.msra.mxu0 0.0
    %3799 = vmatprep.subr.mxu0 0.0
    %3800 = vmatpush1.msra.mxu0 0.0
    %3801 = vmatprep.subr.mxu0 0.0
    %3802 = vmatpush1.msra.mxu0 0.0
    %3803 = vmatprep.subr.mxu0 0.0
    %3804 = vmatpush1.msra.mxu0 0.0
    %3805 = vmatprep.subr.mxu0 0.0
    %3806 = vmatpush1.msra.mxu0 0.0
    %3807 = vmatprep.subr.mxu0 0.0
    %3808 = vmatpush1.msra.mxu0 0.0
    %3809 = vmatprep.subr.mxu0 0.0
    %3810 = vmatpush1.msra.mxu0 0.0
    %3811 = vmatprep.subr.mxu0 0.0
    %3812 = vmatpush1.msra.mxu0 0.0
    %3813 = vmatprep.subr.mxu0 0.0
    %3814 = vmatpush1.msra.mxu0 0.0
    %3815 = vmatprep.subr.mxu0 0.0
    %3816 = vmatpush1.msra.mxu0 0.0
    %3817 = vmatprep.subr.mxu0 0.0
    %3818 = vmatpush1.msra.mxu0 0.0
    %3819 = vmatprep.subr.mxu0 0.0
    %3820 = vmatpush1.msra.mxu0 0.0
    %3821 = vmatprep.subr.mxu0 0.0
    %3822 = vmatpush1.msra.mxu0 0.0
    %3823 = vmatprep.subr.mxu0 0.0
    %3824 = vmatpush1.msra.mxu0 0.0
    %3825 = vmatprep.subr.mxu0 0.0
    %3826 = vmatpush1.msra.mxu0 0.0
    %3827 = vmatprep.subr.mxu0 0.0
    %3828 = vmatpush1.msra.mxu0 0.0
    %3829 = vmatprep.subr.mxu0 0.0
    %3830 = vmatpush1.msra.mxu0 0.0
    %3831 = vmatprep.subr.mxu0 0.0
    %3832 = vmatpush1.msra.mxu0 0.0
    %3833 = vmatprep.subr.mxu0 0.0
    %3834 = vmatpush1.msra.mxu0 0.0
    %3835 = vmatprep.subr.mxu0 0.0
    %3836 = vmatpush1.msra.mxu0 0.0
    %3837 = vmatprep.subr.mxu0 0.0
    %3838 = vmatpush1.msra.mxu0 0.0
    %3839 = vmatprep.mubr.f32.mxu0 0.0
    %3840 = vmatmul.mubr.f32.gmra.mrb[0].mxu0 %v3773
    %v3841 = vpop.f32.mrb[0].mxu0
    %v3842 = vadd.f32 %v687, %v3841
    %v3843 = vpop.f32.mrb[0].mxu0
    %3844 = vdwg.mxu0
    %3846 = vrot.lane.b32.xlu0 %v3329, 112
    %v3847 = vpop.permute.xlu0 %3846
    %v3848 = vsel %vm93, %v3847, 0
    %3850 = vmatprep.subr.mxu0 0.0
    %3851 = vmatpush1.msra.mxu0 %v187
    %3852 = vmatprep.subr.mxu0 0.0
    %3853 = vmatpush1.msra.mxu0 %v188
    %3854 = vmatprep.subr.mxu0 0.0
    %3855 = vmatpush1.msra.mxu0 0.0
    %3856 = vmatprep.subr.mxu0 0.0
    %3857 = vmatpush1.msra.mxu0 0.0
    %3858 = vmatprep.subr.mxu0 0.0
    %3859 = vmatpush1.msra.mxu0 0.0
    %3860 = vmatprep.subr.mxu0 0.0
    %3861 = vmatpush1.msra.mxu0 0.0
    %3862 = vmatprep.subr.mxu0 0.0
    %3863 = vmatpush1.msra.mxu0 0.0
    %3864 = vmatprep.subr.mxu0 0.0
    %3865 = vmatpush1.msra.mxu0 0.0
    %3866 = vmatprep.subr.mxu0 0.0
    %3867 = vmatpush1.msra.mxu0 0.0
    %3868 = vmatprep.subr.mxu0 0.0
    %3869 = vmatpush1.msra.mxu0 0.0
    %3870 = vmatprep.subr.mxu0 0.0
    %3871 = vmatpush1.msra.mxu0 0.0
    %3872 = vmatprep.subr.mxu0 0.0
    %3873 = vmatpush1.msra.mxu0 0.0
    %3874 = vmatprep.subr.mxu0 0.0
    %3875 = vmatpush1.msra.mxu0 0.0
    %3876 = vmatprep.subr.mxu0 0.0
    %3877 = vmatpush1.msra.mxu0 0.0
    %3878 = vmatprep.subr.mxu0 0.0
    %3879 = vmatpush1.msra.mxu0 0.0
    %3880 = vmatprep.subr.mxu0 0.0
    %3881 = vmatpush1.msra.mxu0 0.0
    %3882 = vmatprep.subr.mxu0 0.0
    %3883 = vmatpush1.msra.mxu0 0.0
    %3884 = vmatprep.subr.mxu0 0.0
    %3885 = vmatpush1.msra.mxu0 0.0
    %3886 = vmatprep.subr.mxu0 0.0
    %3887 = vmatpush1.msra.mxu0 0.0
    %3888 = vmatprep.subr.mxu0 0.0
    %3889 = vmatpush1.msra.mxu0 0.0
    %3890 = vmatprep.subr.mxu0 0.0
    %3891 = vmatpush1.msra.mxu0 0.0
    %3892 = vmatprep.subr.mxu0 0.0
    %3893 = vmatpush1.msra.mxu0 0.0
    %3894 = vmatprep.subr.mxu0 0.0
    %3895 = vmatpush1.msra.mxu0 0.0
    %3896 = vmatprep.subr.mxu0 0.0
    %3897 = vmatpush1.msra.mxu0 0.0
    %3898 = vmatprep.subr.mxu0 0.0
    %3899 = vmatpush1.msra.mxu0 0.0
    %3900 = vmatprep.subr.mxu0 0.0
    %3901 = vmatpush1.msra.mxu0 0.0
    %3902 = vmatprep.subr.mxu0 0.0
    %3903 = vmatpush1.msra.mxu0 0.0
    %3904 = vmatprep.subr.mxu0 0.0
    %3905 = vmatpush1.msra.mxu0 0.0
    %3906 = vmatprep.subr.mxu0 0.0
    %3907 = vmatpush1.msra.mxu0 0.0
    %3908 = vmatprep.subr.mxu0 0.0
    %3909 = vmatpush1.msra.mxu0 0.0
    %3910 = vmatprep.subr.mxu0 0.0
    %3911 = vmatpush1.msra.mxu0 0.0
    %3912 = vmatprep.subr.mxu0 0.0
    %3913 = vmatpush1.msra.mxu0 0.0
    %3914 = vmatprep.mubr.f32.mxu0 0.0
    %3915 = vmatmul.mubr.f32.gmra.mrb[0].mxu0 %v3848
    %v3916 = vpop.f32.mrb[0].mxu0
    %v3917 = vadd.f32 %v768, %v3916
    %v3918 = vpop.f32.mrb[0].mxu0
    %3919 = vdwg.mxu0
    %v3920 = vadd.f32 %v3842, %v3917
    %v3921 = vxor.u32 %v3920, 2147483648
    %v3922 = vmul.f32 %v3921, 1.442695
    %v3923 = vpow.pop %v3922
    %v3924 = vadd.f32 %v3923, 1.0
    %v3925 = vrcp.pop %v3924
    %v3926 = vmul.f32 1.0, %v3925
    %3928 = vrot.lane.b32.xlu0 %v3917, 96
    %v3929 = vpop.permute.xlu0 %3928
    %v3931 = vmul.f32 %v3926, %v3929
    %3933 = vrot.lane.b32.xlu0 %v3931, 32
    %v3934 = vpop.permute.xlu0 %3933
    %v3936 = vadd.f32 %v3842, %v3934
    %v3937 = vtanh.pop %v3936
    %v3938 = vsub.f32 1.0, %v3926
    %3940 = vrot.lane.b32.xlu0 %v3937, 112
    %v3941 = vpop.permute.xlu0 %3940
    %v3943 = vmul.f32 %v3938, %v3941
    %v3944 = vmul.f32 %v3926, %v3329
    %v3945 = vadd.f32 %v3943, %v3944
    %s3946 = scalar_lea.vmem [#allocation2], 12
    %v3947 = vld [vmem:[%s3946] sm:$0x3]
    %3948 = vmatprep.subr.mxu0 0.0
    %3949 = vmatpush1.msra.mxu0 %v178
    %3950 = vmatprep.subr.mxu0 0.0
    %3951 = vmatpush1.msra.mxu0 %v179
    %3952 = vmatprep.subr.mxu0 0.0
    %3953 = vmatpush1.msra.mxu0 0.0
    %3954 = vmatprep.subr.mxu0 0.0
    %3955 = vmatpush1.msra.mxu0 0.0
    %3956 = vmatprep.subr.mxu0 0.0
    %3957 = vmatpush1.msra.mxu0 0.0
    %3958 = vmatprep.subr.mxu0 0.0
    %3959 = vmatpush1.msra.mxu0 0.0
    %3960 = vmatprep.subr.mxu0 0.0
    %3961 = vmatpush1.msra.mxu0 0.0
    %3962 = vmatprep.subr.mxu0 0.0
    %3963 = vmatpush1.msra.mxu0 0.0
    %3964 = vmatprep.subr.mxu0 0.0
    %3965 = vmatpush1.msra.mxu0 0.0
    %3966 = vmatprep.subr.mxu0 0.0
    %3967 = vmatpush1.msra.mxu0 0.0
    %3968 = vmatprep.subr.mxu0 0.0
    %3969 = vmatpush1.msra.mxu0 0.0
    %3970 = vmatprep.subr.mxu0 0.0
    %3971 = vmatpush1.msra.mxu0 0.0
    %3972 = vmatprep.subr.mxu0 0.0
    %3973 = vmatpush1.msra.mxu0 0.0
    %3974 = vmatprep.subr.mxu0 0.0
    %3975 = vmatpush1.msra.mxu0 0.0
    %3976 = vmatprep.subr.mxu0 0.0
    %3977 = vmatpush1.msra.mxu0 0.0
    %3978 = vmatprep.subr.mxu0 0.0
    %3979 = vmatpush1.msra.mxu0 0.0
    %3980 = vmatprep.subr.mxu0 0.0
    %3981 = vmatpush1.msra.mxu0 0.0
    %3982 = vmatprep.subr.mxu0 0.0
    %3983 = vmatpush1.msra.mxu0 0.0
    %3984 = vmatprep.subr.mxu0 0.0
    %3985 = vmatpush1.msra.mxu0 0.0
    %3986 = vmatprep.subr.mxu0 0.0
    %3987 = vmatpush1.msra.mxu0 0.0
    %3988 = vmatprep.subr.mxu0 0.0
    %3989 = vmatpush1.msra.mxu0 0.0
    %3990 = vmatprep.subr.mxu0 0.0
    %3991 = vmatpush1.msra.mxu0 0.0
    %3992 = vmatprep.subr.mxu0 0.0
    %3993 = vmatpush1.msra.mxu0 0.0
    %3994 = vmatprep.subr.mxu0 0.0
    %3995 = vmatpush1.msra.mxu0 0.0
    %3996 = vmatprep.subr.mxu0 0.0
    %3997 = vmatpush1.msra.mxu0 0.0
    %3998 = vmatprep.subr.mxu0 0.0
    %3999 = vmatpush1.msra.mxu0 0.0
    %4000 = vmatprep.subr.mxu0 0.0
    %4001 = vmatpush1.msra.mxu0 0.0
    %4002 = vmatprep.subr.mxu0 0.0
    %4003 = vmatpush1.msra.mxu0 0.0
    %4004 = vmatprep.subr.mxu0 0.0
    %4005 = vmatpush1.msra.mxu0 0.0
    %4006 = vmatprep.subr.mxu0 0.0
    %4007 = vmatpush1.msra.mxu0 0.0
    %4008 = vmatprep.subr.mxu0 0.0
    %4009 = vmatpush1.msra.mxu0 0.0
    %4010 = vmatprep.subr.mxu0 0.0
    %4011 = vmatpush1.msra.mxu0 0.0
    %4012 = vmatprep.mubr.f32.mxu0 0.0
    %4013 = vmatmul.mubr.f32.gmra.mrb[0].mxu0 %v3431
    %v4014 = vpop.f32.mrb[0].mxu0
    %v4015 = vadd.f32 %v216, %v4014
    %v4016 = vpop.f32.mrb[0].mxu0
    %4017 = vdwg.mxu0
    %v4018 = vadd.f32 %v3947, %v4015
    %v4019 = vxor.u32 %v4018, 2147483648
    %v4020 = vmul.f32 %v4019, 1.442695
    %v4021 = vpow.pop %v4020
    %v4022 = vadd.f32 %v4021, 1.0
    %v4023 = vrcp.pop %v4022
    %v4024 = vmul.f32 1.0, %v4023
    %4026 = vrot.lane.b32.xlu0 %v4015, 96
    %v4027 = vpop.permute.xlu0 %4026
    %v4029 = vmul.f32 %v4024, %v4027
    %4031 = vrot.lane.b32.xlu0 %v4029, 32
    %v4032 = vpop.permute.xlu0 %4031
    %v4034 = vadd.f32 %v3947, %v4032
    %v4035 = vtanh.pop %v4034
    %v4036 = vsub.f32 1.0, %v4024
    %4038 = vrot.lane.b32.xlu0 %v4035, 112
    %v4039 = vpop.permute.xlu0 %4038
    %v4041 = vmul.f32 %v4036, %v4039
    %v4042 = vmul.f32 %v4024, %v3427
    %v4043 = vadd.f32 %v4041, %v4042
    %4045 = vrot.lane.b32.xlu0 %v4043, 112
    %v4046 = vpop.permute.xlu0 %4045
    %v4047 = vsel %vm93, %v4046, 0
    %4049 = vmatprep.subr.mxu0 0.0
    %4050 = vmatpush1.msra.mxu0 %v190
    %4051 = vmatprep.subr.mxu0 0.0
    %4052 = vmatpush1.msra.mxu0 %v191
    %4053 = vmatprep.subr.mxu0 0.0
    %4054 = vmatpush1.msra.mxu0 0.0
    %4055 = vmatprep.subr.mxu0 0.0
    %4056 = vmatpush1.msra.mxu0 0.0
    %4057 = vmatprep.subr.mxu0 0.0
    %4058 = vmatpush1.msra.mxu0 0.0
    %4059 = vmatprep.subr.mxu0 0.0
    %4060 = vmatpush1.msra.mxu0 0.0
    %4061 = vmatprep.subr.mxu0 0.0
    %4062 = vmatpush1.msra.mxu0 0.0
    %4063 = vmatprep.subr.mxu0 0.0
    %4064 = vmatpush1.msra.mxu0 0.0
    %4065 = vmatprep.subr.mxu0 0.0
    %4066 = vmatpush1.msra.mxu0 0.0
    %4067 = vmatprep.subr.mxu0 0.0
    %4068 = vmatpush1.msra.mxu0 0.0
    %4069 = vmatprep.subr.mxu0 0.0
    %4070 = vmatpush1.msra.mxu0 0.0
    %4071 = vmatprep.subr.mxu0 0.0
    %4072 = vmatpush1.msra.mxu0 0.0
    %4073 = vmatprep.subr.mxu0 0.0
    %4074 = vmatpush1.msra.mxu0 0.0
    %4075 = vmatprep.subr.mxu0 0.0
    %4076 = vmatpush1.msra.mxu0 0.0
    %4077 = vmatprep.subr.mxu0 0.0
    %4078 = vmatpush1.msra.mxu0 0.0
    %4079 = vmatprep.subr.mxu0 0.0
    %4080 = vmatpush1.msra.mxu0 0.0
    %4081 = vmatprep.subr.mxu0 0.0
    %4082 = vmatpush1.msra.mxu0 0.0
    %4083 = vmatprep.subr.mxu0 0.0
    %4084 = vmatpush1.msra.mxu0 0.0
    %4085 = vmatprep.subr.mxu0 0.0
    %4086 = vmatpush1.msra.mxu0 0.0
    %4087 = vmatprep.subr.mxu0 0.0
    %4088 = vmatpush1.msra.mxu0 0.0
    %4089 = vmatprep.subr.mxu0 0.0
    %4090 = vmatpush1.msra.mxu0 0.0
    %4091 = vmatprep.subr.mxu0 0.0
    %4092 = vmatpush1.msra.mxu0 0.0
    %4093 = vmatprep.subr.mxu0 0.0
    %4094 = vmatpush1.msra.mxu0 0.0
    %4095 = vmatprep.subr.mxu0 0.0
    %4096 = vmatpush1.msra.mxu0 0.0
    %4097 = vmatprep.subr.mxu0 0.0
    %4098 = vmatpush1.msra.mxu0 0.0
    %4099 = vmatprep.subr.mxu0 0.0
    %4100 = vmatpush1.msra.mxu0 0.0
    %4101 = vmatprep.subr.mxu0 0.0
    %4102 = vmatpush1.msra.mxu0 0.0
    %4103 = vmatprep.subr.mxu0 0.0
    %4104 = vmatpush1.msra.mxu0 0.0
    %4105 = vmatprep.subr.mxu0 0.0
    %4106 = vmatpush1.msra.mxu0 0.0
    %4107 = vmatprep.subr.mxu0 0.0
    %4108 = vmatpush1.msra.mxu0 0.0
    %4109 = vmatprep.subr.mxu0 0.0
    %4110 = vmatpush1.msra.mxu0 0.0
    %4111 = vmatprep.subr.mxu0 0.0
    %4112 = vmatpush1.msra.mxu0 0.0
    %4113 = vmatprep.mubr.f32.mxu0 0.0
    %4114 = vmatmul.mubr.f32.gmra.mrb[0].mxu0 %v4047
    %v4115 = vpop.f32.mrb[0].mxu0
    %v4116 = vadd.f32 %v321, %v4115
    %v4117 = vpop.f32.mrb[0].mxu0
    %4118 = vdwg.mxu0
    %4119 = vmatprep.subr.mxu0 0.0
    %4120 = vmatpush1.msra.mxu0 %v181
    %4121 = vmatprep.subr.mxu0 0.0
    %4122 = vmatpush1.msra.mxu0 %v182
    %4123 = vmatprep.subr.mxu0 0.0
    %4124 = vmatpush1.msra.mxu0 0.0
    %4125 = vmatprep.subr.mxu0 0.0
    %4126 = vmatpush1.msra.mxu0 0.0
    %4127 = vmatprep.subr.mxu0 0.0
    %4128 = vmatpush1.msra.mxu0 0.0
    %4129 = vmatprep.subr.mxu0 0.0
    %4130 = vmatpush1.msra.mxu0 0.0
    %4131 = vmatprep.subr.mxu0 0.0
    %4132 = vmatpush1.msra.mxu0 0.0
    %4133 = vmatprep.subr.mxu0 0.0
    %4134 = vmatpush1.msra.mxu0 0.0
    %4135 = vmatprep.subr.mxu0 0.0
    %4136 = vmatpush1.msra.mxu0 0.0
    %4137 = vmatprep.subr.mxu0 0.0
    %4138 = vmatpush1.msra.mxu0 0.0
    %4139 = vmatprep.subr.mxu0 0.0
    %4140 = vmatpush1.msra.mxu0 0.0
    %4141 = vmatprep.subr.mxu0 0.0
    %4142 = vmatpush1.msra.mxu0 0.0
    %4143 = vmatprep.subr.mxu0 0.0
    %4144 = vmatpush1.msra.mxu0 0.0
    %4145 = vmatprep.subr.mxu0 0.0
    %4146 = vmatpush1.msra.mxu0 0.0
    %4147 = vmatprep.subr.mxu0 0.0
    %4148 = vmatpush1.msra.mxu0 0.0
    %4149 = vmatprep.subr.mxu0 0.0
    %4150 = vmatpush1.msra.mxu0 0.0
    %4151 = vmatprep.subr.mxu0 0.0
    %4152 = vmatpush1.msra.mxu0 0.0
    %4153 = vmatprep.subr.mxu0 0.0
    %4154 = vmatpush1.msra.mxu0 0.0
    %4155 = vmatprep.subr.mxu0 0.0
    %4156 = vmatpush1.msra.mxu0 0.0
    %4157 = vmatprep.subr.mxu0 0.0
    %4158 = vmatpush1.msra.mxu0 0.0
    %4159 = vmatprep.subr.mxu0 0.0
    %4160 = vmatpush1.msra.mxu0 0.0
    %4161 = vmatprep.subr.mxu0 0.0
    %4162 = vmatpush1.msra.mxu0 0.0
    %4163 = vmatprep.subr.mxu0 0.0
    %4164 = vmatpush1.msra.mxu0 0.0
    %4165 = vmatprep.subr.mxu0 0.0
    %4166 = vmatpush1.msra.mxu0 0.0
    %4167 = vmatprep.subr.mxu0 0.0
    %4168 = vmatpush1.msra.mxu0 0.0
    %4169 = vmatprep.subr.mxu0 0.0
    %4170 = vmatpush1.msra.mxu0 0.0
    %4171 = vmatprep.subr.mxu0 0.0
    %4172 = vmatpush1.msra.mxu0 0.0
    %4173 = vmatprep.subr.mxu0 0.0
    %4174 = vmatpush1.msra.mxu0 0.0
    %4175 = vmatprep.subr.mxu0 0.0
    %4176 = vmatpush1.msra.mxu0 0.0
    %4177 = vmatprep.subr.mxu0 0.0
    %4178 = vmatpush1.msra.mxu0 0.0
    %4179 = vmatprep.subr.mxu0 0.0
    %4180 = vmatpush1.msra.mxu0 0.0
    %4181 = vmatprep.subr.mxu0 0.0
    %4182 = vmatpush1.msra.mxu0 0.0
    %4183 = vmatprep.mubr.f32.mxu0 0.0
    %4184 = vmatmul.mubr.f32.gmra.mrb[0].mxu0 %v3602
    %v4185 = vpop.f32.mrb[0].mxu0
    %v4186 = vadd.f32 %v402, %v4185
    %v4187 = vpop.f32.mrb[0].mxu0
    %4188 = vdwg.mxu0
    %v4189 = vadd.f32 %v4116, %v4186
    %v4190 = vxor.u32 %v4189, 2147483648
    %v4191 = vmul.f32 %v4190, 1.442695
    %v4192 = vpow.pop %v4191
    %v4193 = vadd.f32 %v4192, 1.0
    %v4194 = vrcp.pop %v4193
    %v4195 = vmul.f32 1.0, %v4194
    %4197 = vrot.lane.b32.xlu0 %v4186, 96
    %v4198 = vpop.permute.xlu0 %4197
    %v4200 = vmul.f32 %v4195, %v4198
    %4202 = vrot.lane.b32.xlu0 %v4200, 32
    %v4203 = vpop.permute.xlu0 %4202
    %v4205 = vadd.f32 %v4116, %v4203
    %v4206 = vtanh.pop %v4205
    %v4207 = vsub.f32 1.0, %v4195
    %4209 = vrot.lane.b32.xlu0 %v4206, 112
    %v4210 = vpop.permute.xlu0 %4209
    %v4212 = vmul.f32 %v4207, %v4210
    %v4213 = vmul.f32 %v4195, %v3598
    %v4214 = vadd.f32 %v4212, %v4213
    %4216 = vrot.lane.b32.xlu0 %v4214, 112
    %v4217 = vpop.permute.xlu0 %4216
    %v4218 = vsel %vm93, %v4217, 0
    %4220 = vmatprep.subr.mxu0 0.0
    %4221 = vmatpush1.msra.mxu0 %v193
    %4222 = vmatprep.subr.mxu0 0.0
    %4223 = vmatpush1.msra.mxu0 %v194
    %4224 = vmatprep.subr.mxu0 0.0
    %4225 = vmatpush1.msra.mxu0 0.0
    %4226 = vmatprep.subr.mxu0 0.0
    %4227 = vmatpush1.msra.mxu0 0.0
    %4228 = vmatprep.subr.mxu0 0.0
    %4229 = vmatpush1.msra.mxu0 0.0
    %4230 = vmatprep.subr.mxu0 0.0
    %4231 = vmatpush1.msra.mxu0 0.0
    %4232 = vmatprep.subr.mxu0 0.0
    %4233 = vmatpush1.msra.mxu0 0.0
    %4234 = vmatprep.subr.mxu0 0.0
    %4235 = vmatpush1.msra.mxu0 0.0
    %4236 = vmatprep.subr.mxu0 0.0
    %4237 = vmatpush1.msra.mxu0 0.0
    %4238 = vmatprep.subr.mxu0 0.0
    %4239 = vmatpush1.msra.mxu0 0.0
    %4240 = vmatprep.subr.mxu0 0.0
    %4241 = vmatpush1.msra.mxu0 0.0
    %4242 = vmatprep.subr.mxu0 0.0
    %4243 = vmatpush1.msra.mxu0 0.0
    %4244 = vmatprep.subr.mxu0 0.0
    %4245 = vmatpush1.msra.mxu0 0.0
    %4246 = vmatprep.subr.mxu0 0.0
    %4247 = vmatpush1.msra.mxu0 0.0
    %4248 = vmatprep.subr.mxu0 0.0
    %4249 = vmatpush1.msra.mxu0 0.0
    %4250 = vmatprep.subr.mxu0 0.0
    %4251 = vmatpush1.msra.mxu0 0.0
    %4252 = vmatprep.subr.mxu0 0.0
    %4253 = vmatpush1.msra.mxu0 0.0
    %4254 = vmatprep.subr.mxu0 0.0
    %4255 = vmatpush1.msra.mxu0 0.0
    %4256 = vmatprep.subr.mxu0 0.0
    %4257 = vmatpush1.msra.mxu0 0.0
    %4258 = vmatprep.subr.mxu0 0.0
    %4259 = vmatpush1.msra.mxu0 0.0
    %4260 = vmatprep.subr.mxu0 0.0
    %4261 = vmatpush1.msra.mxu0 0.0
    %4262 = vmatprep.subr.mxu0 0.0
    %4263 = vmatpush1.msra.mxu0 0.0
    %4264 = vmatprep.subr.mxu0 0.0
    %4265 = vmatpush1.msra.mxu0 0.0
    %4266 = vmatprep.subr.mxu0 0.0
    %4267 = vmatpush1.msra.mxu0 0.0
    %4268 = vmatprep.subr.mxu0 0.0
    %4269 = vmatpush1.msra.mxu0 0.0
    %4270 = vmatprep.subr.mxu0 0.0
    %4271 = vmatpush1.msra.mxu0 0.0
    %4272 = vmatprep.subr.mxu0 0.0
    %4273 = vmatpush1.msra.mxu0 0.0
    %4274 = vmatprep.subr.mxu0 0.0
    %4275 = vmatpush1.msra.mxu0 0.0
    %4276 = vmatprep.subr.mxu0 0.0
    %4277 = vmatpush1.msra.mxu0 0.0
    %4278 = vmatprep.subr.mxu0 0.0
    %4279 = vmatpush1.msra.mxu0 0.0
    %4280 = vmatprep.subr.mxu0 0.0
    %4281 = vmatpush1.msra.mxu0 0.0
    %4282 = vmatprep.subr.mxu0 0.0
    %4283 = vmatpush1.msra.mxu0 0.0
    %4284 = vmatprep.mubr.f32.mxu0 0.0
    %4285 = vmatmul.mubr.f32.gmra.mrb[0].mxu0 %v4218
    %v4286 = vpop.f32.mrb[0].mxu0
    %v4287 = vadd.f32 %v504, %v4286
    %v4288 = vpop.f32.mrb[0].mxu0
    %4289 = vdwg.mxu0
    %4290 = vmatprep.subr.mxu0 0.0
    %4291 = vmatpush1.msra.mxu0 %v184
    %4292 = vmatprep.subr.mxu0 0.0
    %4293 = vmatpush1.msra.mxu0 %v185
    %4294 = vmatprep.subr.mxu0 0.0
    %4295 = vmatpush1.msra.mxu0 0.0
    %4296 = vmatprep.subr.mxu0 0.0
    %4297 = vmatpush1.msra.mxu0 0.0
    %4298 = vmatprep.subr.mxu0 0.0
    %4299 = vmatpush1.msra.mxu0 0.0
    %4300 = vmatprep.subr.mxu0 0.0
    %4301 = vmatpush1.msra.mxu0 0.0
    %4302 = vmatprep.subr.mxu0 0.0
    %4303 = vmatpush1.msra.mxu0 0.0
    %4304 = vmatprep.subr.mxu0 0.0
    %4305 = vmatpush1.msra.mxu0 0.0
    %4306 = vmatprep.subr.mxu0 0.0
    %4307 = vmatpush1.msra.mxu0 0.0
    %4308 = vmatprep.subr.mxu0 0.0
    %4309 = vmatpush1.msra.mxu0 0.0
    %4310 = vmatprep.subr.mxu0 0.0
    %4311 = vmatpush1.msra.mxu0 0.0
    %4312 = vmatprep.subr.mxu0 0.0
    %4313 = vmatpush1.msra.mxu0 0.0
    %4314 = vmatprep.subr.mxu0 0.0
    %4315 = vmatpush1.msra.mxu0 0.0
    %4316 = vmatprep.subr.mxu0 0.0
    %4317 = vmatpush1.msra.mxu0 0.0
    %4318 = vmatprep.subr.mxu0 0.0
    %4319 = vmatpush1.msra.mxu0 0.0
    %4320 = vmatprep.subr.mxu0 0.0
    %4321 = vmatpush1.msra.mxu0 0.0
    %4322 = vmatprep.subr.mxu0 0.0
    %4323 = vmatpush1.msra.mxu0 0.0
    %4324 = vmatprep.subr.mxu0 0.0
    %4325 = vmatpush1.msra.mxu0 0.0
    %4326 = vmatprep.subr.mxu0 0.0
    %4327 = vmatpush1.msra.mxu0 0.0
    %4328 = vmatprep.subr.mxu0 0.0
    %4329 = vmatpush1.msra.mxu0 0.0
    %4330 = vmatprep.subr.mxu0 0.0
    %4331 = vmatpush1.msra.mxu0 0.0
    %4332 = vmatprep.subr.mxu0 0.0
    %4333 = vmatpush1.msra.mxu0 0.0
    %4334 = vmatprep.subr.mxu0 0.0
    %4335 = vmatpush1.msra.mxu0 0.0
    %4336 = vmatprep.subr.mxu0 0.0
    %4337 = vmatpush1.msra.mxu0 0.0
    %4338 = vmatprep.subr.mxu0 0.0
    %4339 = vmatpush1.msra.mxu0 0.0
    %4340 = vmatprep.subr.mxu0 0.0
    %4341 = vmatpush1.msra.mxu0 0.0
    %4342 = vmatprep.subr.mxu0 0.0
    %4343 = vmatpush1.msra.mxu0 0.0
    %4344 = vmatprep.subr.mxu0 0.0
    %4345 = vmatpush1.msra.mxu0 0.0
    %4346 = vmatprep.subr.mxu0 0.0
    %4347 = vmatpush1.msra.mxu0 0.0
    %4348 = vmatprep.subr.mxu0 0.0
    %4349 = vmatpush1.msra.mxu0 0.0
    %4350 = vmatprep.subr.mxu0 0.0
    %4351 = vmatpush1.msra.mxu0 0.0
    %4352 = vmatprep.subr.mxu0 0.0
    %4353 = vmatpush1.msra.mxu0 0.0
    %4354 = vmatprep.mubr.f32.mxu0 0.0
    %4355 = vmatmul.mubr.f32.gmra.mrb[0].mxu0 %v3773
    %v4356 = vpop.f32.mrb[0].mxu0
    %v4357 = vadd.f32 %v585, %v4356
    %v4358 = vpop.f32.mrb[0].mxu0
    %4359 = vdwg.mxu0
    %v4360 = vadd.f32 %v4287, %v4357
    %v4361 = vxor.u32 %v4360, 2147483648
    %v4362 = vmul.f32 %v4361, 1.442695
    %v4363 = vpow.pop %v4362
    %v4364 = vadd.f32 %v4363, 1.0
    %v4365 = vrcp.pop %v4364
    %v4366 = vmul.f32 1.0, %v4365
    %4368 = vrot.lane.b32.xlu0 %v4357, 96
    %v4369 = vpop.permute.xlu0 %4368
    %v4371 = vmul.f32 %v4366, %v4369
    %4373 = vrot.lane.b32.xlu0 %v4371, 32
    %v4374 = vpop.permute.xlu0 %4373
    %v4376 = vadd.f32 %v4287, %v4374
    %v4377 = vtanh.pop %v4376
    %v4378 = vsub.f32 1.0, %v4366
    %4380 = vrot.lane.b32.xlu0 %v4377, 112
    %v4381 = vpop.permute.xlu0 %4380
    %v4383 = vmul.f32 %v4378, %v4381
    %v4384 = vmul.f32 %v4366, %v3769
    %v4385 = vadd.f32 %v4383, %v4384
    %4387 = vrot.lane.b32.xlu0 %v4385, 112
    %v4388 = vpop.permute.xlu0 %4387
    %v4389 = vsel %vm93, %v4388, 0
    %4391 = vmatprep.subr.mxu0 0.0
    %4392 = vmatpush1.msra.mxu0 %v196
    %4393 = vmatprep.subr.mxu0 0.0
    %4394 = vmatpush1.msra.mxu0 %v197
    %4395 = vmatprep.subr.mxu0 0.0
    %4396 = vmatpush1.msra.mxu0 0.0
    %4397 = vmatprep.subr.mxu0 0.0
    %4398 = vmatpush1.msra.mxu0 0.0
    %4399 = vmatprep.subr.mxu0 0.0
    %4400 = vmatpush1.msra.mxu0 0.0
    %4401 = vmatprep.subr.mxu0 0.0
    %4402 = vmatpush1.msra.mxu0 0.0
    %4403 = vmatprep.subr.mxu0 0.0
    %4404 = vmatpush1.msra.mxu0 0.0
    %4405 = vmatprep.subr.mxu0 0.0
    %4406 = vmatpush1.msra.mxu0 0.0
    %4407 = vmatprep.subr.mxu0 0.0
    %4408 = vmatpush1.msra.mxu0 0.0
    %4409 = vmatprep.subr.mxu0 0.0
    %4410 = vmatpush1.msra.mxu0 0.0
    %4411 = vmatprep.subr.mxu0 0.0
    %4412 = vmatpush1.msra.mxu0 0.0
    %4413 = vmatprep.subr.mxu0 0.0
    %4414 = vmatpush1.msra.mxu0 0.0
    %4415 = vmatprep.subr.mxu0 0.0
    %4416 = vmatpush1.msra.mxu0 0.0
    %4417 = vmatprep.subr.mxu0 0.0
    %4418 = vmatpush1.msra.mxu0 0.0
    %4419 = vmatprep.subr.mxu0 0.0
    %4420 = vmatpush1.msra.mxu0 0.0
    %4421 = vmatprep.subr.mxu0 0.0
    %4422 = vmatpush1.msra.mxu0 0.0
    %4423 = vmatprep.subr.mxu0 0.0
    %4424 = vmatpush1.msra.mxu0 0.0
    %4425 = vmatprep.subr.mxu0 0.0
    %4426 = vmatpush1.msra.mxu0 0.0
    %4427 = vmatprep.subr.mxu0 0.0
    %4428 = vmatpush1.msra.mxu0 0.0
    %4429 = vmatprep.subr.mxu0 0.0
    %4430 = vmatpush1.msra.mxu0 0.0
    %4431 = vmatprep.subr.mxu0 0.0
    %4432 = vmatpush1.msra.mxu0 0.0
    %4433 = vmatprep.subr.mxu0 0.0
    %4434 = vmatpush1.msra.mxu0 0.0
    %4435 = vmatprep.subr.mxu0 0.0
    %4436 = vmatpush1.msra.mxu0 0.0
    %4437 = vmatprep.subr.mxu0 0.0
    %4438 = vmatpush1.msra.mxu0 0.0
    %4439 = vmatprep.subr.mxu0 0.0
    %4440 = vmatpush1.msra.mxu0 0.0
    %4441 = vmatprep.subr.mxu0 0.0
    %4442 = vmatpush1.msra.mxu0 0.0
    %4443 = vmatprep.subr.mxu0 0.0
    %4444 = vmatpush1.msra.mxu0 0.0
    %4445 = vmatprep.subr.mxu0 0.0
    %4446 = vmatpush1.msra.mxu0 0.0
    %4447 = vmatprep.subr.mxu0 0.0
    %4448 = vmatpush1.msra.mxu0 0.0
    %4449 = vmatprep.subr.mxu0 0.0
    %4450 = vmatpush1.msra.mxu0 0.0
    %4451 = vmatprep.subr.mxu0 0.0
    %4452 = vmatpush1.msra.mxu0 0.0
    %4453 = vmatprep.subr.mxu0 0.0
    %4454 = vmatpush1.msra.mxu0 0.0
    %4455 = vmatprep.mubr.f32.mxu0 0.0
    %4456 = vmatmul.mubr.f32.gmra.mrb[0].mxu0 %v4389
    %v4457 = vpop.f32.mrb[0].mxu0
    %v4458 = vadd.f32 %v687, %v4457
    %v4459 = vpop.f32.mrb[0].mxu0
    %4460 = vdwg.mxu0
    %4462 = vrot.lane.b32.xlu0 %v3945, 112
    %v4463 = vpop.permute.xlu0 %4462
    %v4464 = vsel %vm93, %v4463, 0
    %4466 = vmatprep.subr.mxu0 0.0
    %4467 = vmatpush1.msra.mxu0 %v187
    %4468 = vmatprep.subr.mxu0 0.0
    %4469 = vmatpush1.msra.mxu0 %v188
    %4470 = vmatprep.subr.mxu0 0.0
    %4471 = vmatpush1.msra.mxu0 0.0
    %4472 = vmatprep.subr.mxu0 0.0
    %4473 = vmatpush1.msra.mxu0 0.0
    %4474 = vmatprep.subr.mxu0 0.0
    %4475 = vmatpush1.msra.mxu0 0.0
    %4476 = vmatprep.subr.mxu0 0.0
    %4477 = vmatpush1.msra.mxu0 0.0
    %4478 = vmatprep.subr.mxu0 0.0
    %4479 = vmatpush1.msra.mxu0 0.0
    %4480 = vmatprep.subr.mxu0 0.0
    %4481 = vmatpush1.msra.mxu0 0.0
    %4482 = vmatprep.subr.mxu0 0.0
    %4483 = vmatpush1.msra.mxu0 0.0
    %4484 = vmatprep.subr.mxu0 0.0
    %4485 = vmatpush1.msra.mxu0 0.0
    %4486 = vmatprep.subr.mxu0 0.0
    %4487 = vmatpush1.msra.mxu0 0.0
    %4488 = vmatprep.subr.mxu0 0.0
    %4489 = vmatpush1.msra.mxu0 0.0
    %4490 = vmatprep.subr.mxu0 0.0
    %4491 = vmatpush1.msra.mxu0 0.0
    %4492 = vmatprep.subr.mxu0 0.0
    %4493 = vmatpush1.msra.mxu0 0.0
    %4494 = vmatprep.subr.mxu0 0.0
    %4495 = vmatpush1.msra.mxu0 0.0
    %4496 = vmatprep.subr.mxu0 0.0
    %4497 = vmatpush1.msra.mxu0 0.0
    %4498 = vmatprep.subr.mxu0 0.0
    %4499 = vmatpush1.msra.mxu0 0.0
    %4500 = vmatprep.subr.mxu0 0.0
    %4501 = vmatpush1.msra.mxu0 0.0
    %4502 = vmatprep.subr.mxu0 0.0
    %4503 = vmatpush1.msra.mxu0 0.0
    %4504 = vmatprep.subr.mxu0 0.0
    %4505 = vmatpush1.msra.mxu0 0.0
    %4506 = vmatprep.subr.mxu0 0.0
    %4507 = vmatpush1.msra.mxu0 0.0
    %4508 = vmatprep.subr.mxu0 0.0
    %4509 = vmatpush1.msra.mxu0 0.0
    %4510 = vmatprep.subr.mxu0 0.0
    %4511 = vmatpush1.msra.mxu0 0.0
    %4512 = vmatprep.subr.mxu0 0.0
    %4513 = vmatpush1.msra.mxu0 0.0
    %4514 = vmatprep.subr.mxu0 0.0
    %4515 = vmatpush1.msra.mxu0 0.0
    %4516 = vmatprep.subr.mxu0 0.0
    %4517 = vmatpush1.msra.mxu0 0.0
    %4518 = vmatprep.subr.mxu0 0.0
    %4519 = vmatpush1.msra.mxu0 0.0
    %4520 = vmatprep.subr.mxu0 0.0
    %4521 = vmatpush1.msra.mxu0 0.0
    %4522 = vmatprep.subr.mxu0 0.0
    %4523 = vmatpush1.msra.mxu0 0.0
    %4524 = vmatprep.subr.mxu0 0.0
    %4525 = vmatpush1.msra.mxu0 0.0
    %4526 = vmatprep.subr.mxu0 0.0
    %4527 = vmatpush1.msra.mxu0 0.0
    %4528 = vmatprep.subr.mxu0 0.0
    %4529 = vmatpush1.msra.mxu0 0.0
    %4530 = vmatprep.mubr.f32.mxu0 0.0
    %4531 = vmatmul.mubr.f32.gmra.mrb[0].mxu0 %v4464
    %v4532 = vpop.f32.mrb[0].mxu0
    %v4533 = vadd.f32 %v768, %v4532
    %v4534 = vpop.f32.mrb[0].mxu0
    %4535 = vdwg.mxu0
    %v4536 = vadd.f32 %v4458, %v4533
    %v4537 = vxor.u32 %v4536, 2147483648
    %v4538 = vmul.f32 %v4537, 1.442695
    %v4539 = vpow.pop %v4538
    %v4540 = vadd.f32 %v4539, 1.0
    %v4541 = vrcp.pop %v4540
    %v4542 = vmul.f32 1.0, %v4541
    %4544 = vrot.lane.b32.xlu0 %v4533, 96
    %v4545 = vpop.permute.xlu0 %4544
    %v4547 = vmul.f32 %v4542, %v4545
    %4549 = vrot.lane.b32.xlu0 %v4547, 32
    %v4550 = vpop.permute.xlu0 %4549
    %v4552 = vadd.f32 %v4458, %v4550
    %v4553 = vtanh.pop %v4552
    %v4554 = vsub.f32 1.0, %v4542
    %4556 = vrot.lane.b32.xlu0 %v4553, 112
    %v4557 = vpop.permute.xlu0 %4556
    %v4559 = vmul.f32 %v4554, %v4557
    %v4560 = vmul.f32 %v4542, %v3945
    %v4561 = vadd.f32 %v4559, %v4560
    %s4562 = scalar_lea.vmem [#allocation2], 14
    %v4563 = vld [vmem:[%s4562] sm:$0x3]
    %4564 = vmatprep.subr.mxu0 0.0
    %4565 = vmatpush1.msra.mxu0 %v178
    %4566 = vmatprep.subr.mxu0 0.0
    %4567 = vmatpush1.msra.mxu0 %v179
    %4568 = vmatprep.subr.mxu0 0.0
    %4569 = vmatpush1.msra.mxu0 0.0
    %4570 = vmatprep.subr.mxu0 0.0
    %4571 = vmatpush1.msra.mxu0 0.0
    %4572 = vmatprep.subr.mxu0 0.0
    %4573 = vmatpush1.msra.mxu0 0.0
    %4574 = vmatprep.subr.mxu0 0.0
    %4575 = vmatpush1.msra.mxu0 0.0
    %4576 = vmatprep.subr.mxu0 0.0
    %4577 = vmatpush1.msra.mxu0 0.0
    %4578 = vmatprep.subr.mxu0 0.0
    %4579 = vmatpush1.msra.mxu0 0.0
    %4580 = vmatprep.subr.mxu0 0.0
    %4581 = vmatpush1.msra.mxu0 0.0
    %4582 = vmatprep.subr.mxu0 0.0
    %4583 = vmatpush1.msra.mxu0 0.0
    %4584 = vmatprep.subr.mxu0 0.0
    %4585 = vmatpush1.msra.mxu0 0.0
    %4586 = vmatprep.subr.mxu0 0.0
    %4587 = vmatpush1.msra.mxu0 0.0
    %4588 = vmatprep.subr.mxu0 0.0
    %4589 = vmatpush1.msra.mxu0 0.0
    %4590 = vmatprep.subr.mxu0 0.0
    %4591 = vmatpush1.msra.mxu0 0.0
    %4592 = vmatprep.subr.mxu0 0.0
    %4593 = vmatpush1.msra.mxu0 0.0
    %4594 = vmatprep.subr.mxu0 0.0
    %4595 = vmatpush1.msra.mxu0 0.0
    %4596 = vmatprep.subr.mxu0 0.0
    %4597 = vmatpush1.msra.mxu0 0.0
    %4598 = vmatprep.subr.mxu0 0.0
    %4599 = vmatpush1.msra.mxu0 0.0
    %4600 = vmatprep.subr.mxu0 0.0
    %4601 = vmatpush1.msra.mxu0 0.0
    %4602 = vmatprep.subr.mxu0 0.0
    %4603 = vmatpush1.msra.mxu0 0.0
    %4604 = vmatprep.subr.mxu0 0.0
    %4605 = vmatpush1.msra.mxu0 0.0
    %4606 = vmatprep.subr.mxu0 0.0
    %4607 = vmatpush1.msra.mxu0 0.0
    %4608 = vmatprep.subr.mxu0 0.0
    %4609 = vmatpush1.msra.mxu0 0.0
    %4610 = vmatprep.subr.mxu0 0.0
    %4611 = vmatpush1.msra.mxu0 0.0
    %4612 = vmatprep.subr.mxu0 0.0
    %4613 = vmatpush1.msra.mxu0 0.0
    %4614 = vmatprep.subr.mxu0 0.0
    %4615 = vmatpush1.msra.mxu0 0.0
    %4616 = vmatprep.subr.mxu0 0.0
    %4617 = vmatpush1.msra.mxu0 0.0
    %4618 = vmatprep.subr.mxu0 0.0
    %4619 = vmatpush1.msra.mxu0 0.0
    %4620 = vmatprep.subr.mxu0 0.0
    %4621 = vmatpush1.msra.mxu0 0.0
    %4622 = vmatprep.subr.mxu0 0.0
    %4623 = vmatpush1.msra.mxu0 0.0
    %4624 = vmatprep.subr.mxu0 0.0
    %4625 = vmatpush1.msra.mxu0 0.0
    %4626 = vmatprep.subr.mxu0 0.0
    %4627 = vmatpush1.msra.mxu0 0.0
    %4628 = vmatprep.mubr.f32.mxu0 0.0
    %4629 = vmatmul.mubr.f32.gmra.mrb[0].mxu0 %v4047
    %v4630 = vpop.f32.mrb[0].mxu0
    %v4631 = vadd.f32 %v216, %v4630
    %v4632 = vpop.f32.mrb[0].mxu0
    %4633 = vdwg.mxu0
    %v4634 = vadd.f32 %v4563, %v4631
    %v4635 = vxor.u32 %v4634, 2147483648
    %v4636 = vmul.f32 %v4635, 1.442695
    %v4637 = vpow.pop %v4636
    %v4638 = vadd.f32 %v4637, 1.0
    %v4639 = vrcp.pop %v4638
    %v4640 = vmul.f32 1.0, %v4639
    %4642 = vrot.lane.b32.xlu0 %v4631, 96
    %v4643 = vpop.permute.xlu0 %4642
    %v4645 = vmul.f32 %v4640, %v4643
    %4647 = vrot.lane.b32.xlu0 %v4645, 32
    %v4648 = vpop.permute.xlu0 %4647
    %v4650 = vadd.f32 %v4563, %v4648
    %v4651 = vtanh.pop %v4650
    %v4652 = vsub.f32 1.0, %v4640
    %4654 = vrot.lane.b32.xlu0 %v4651, 112
    %v4655 = vpop.permute.xlu0 %4654
    %v4657 = vmul.f32 %v4652, %v4655
    %v4658 = vmul.f32 %v4640, %v4043
    %v4659 = vadd.f32 %v4657, %v4658
    %4661 = vrot.lane.b32.xlu0 %v4659, 112
    %v4662 = vpop.permute.xlu0 %4661
    %v4663 = vsel %vm93, %v4662, 0
    %4665 = vmatprep.subr.mxu0 0.0
    %4666 = vmatpush1.msra.mxu0 %v190
    %4667 = vmatprep.subr.mxu0 0.0
    %4668 = vmatpush1.msra.mxu0 %v191
    %4669 = vmatprep.subr.mxu0 0.0
    %4670 = vmatpush1.msra.mxu0 0.0
    %4671 = vmatprep.subr.mxu0 0.0
    %4672 = vmatpush1.msra.mxu0 0.0
    %4673 = vmatprep.subr.mxu0 0.0
    %4674 = vmatpush1.msra.mxu0 0.0
    %4675 = vmatprep.subr.mxu0 0.0
    %4676 = vmatpush1.msra.mxu0 0.0
    %4677 = vmatprep.subr.mxu0 0.0
    %4678 = vmatpush1.msra.mxu0 0.0
    %4679 = vmatprep.subr.mxu0 0.0
    %4680 = vmatpush1.msra.mxu0 0.0
    %4681 = vmatprep.subr.mxu0 0.0
    %4682 = vmatpush1.msra.mxu0 0.0
    %4683 = vmatprep.subr.mxu0 0.0
    %4684 = vmatpush1.msra.mxu0 0.0
    %4685 = vmatprep.subr.mxu0 0.0
    %4686 = vmatpush1.msra.mxu0 0.0
    %4687 = vmatprep.subr.mxu0 0.0
    %4688 = vmatpush1.msra.mxu0 0.0
    %4689 = vmatprep.subr.mxu0 0.0
    %4690 = vmatpush1.msra.mxu0 0.0
    %4691 = vmatprep.subr.mxu0 0.0
    %4692 = vmatpush1.msra.mxu0 0.0
    %4693 = vmatprep.subr.mxu0 0.0
    %4694 = vmatpush1.msra.mxu0 0.0
    %4695 = vmatprep.subr.mxu0 0.0
    %4696 = vmatpush1.msra.mxu0 0.0
    %4697 = vmatprep.subr.mxu0 0.0
    %4698 = vmatpush1.msra.mxu0 0.0
    %4699 = vmatprep.subr.mxu0 0.0
    %4700 = vmatpush1.msra.mxu0 0.0
    %4701 = vmatprep.subr.mxu0 0.0
    %4702 = vmatpush1.msra.mxu0 0.0
    %4703 = vmatprep.subr.mxu0 0.0
    %4704 = vmatpush1.msra.mxu0 0.0
    %4705 = vmatprep.subr.mxu0 0.0
    %4706 = vmatpush1.msra.mxu0 0.0
    %4707 = vmatprep.subr.mxu0 0.0
    %4708 = vmatpush1.msra.mxu0 0.0
    %4709 = vmatprep.subr.mxu0 0.0
    %4710 = vmatpush1.msra.mxu0 0.0
    %4711 = vmatprep.subr.mxu0 0.0
    %4712 = vmatpush1.msra.mxu0 0.0
    %4713 = vmatprep.subr.mxu0 0.0
    %4714 = vmatpush1.msra.mxu0 0.0
    %4715 = vmatprep.subr.mxu0 0.0
    %4716 = vmatpush1.msra.mxu0 0.0
    %4717 = vmatprep.subr.mxu0 0.0
    %4718 = vmatpush1.msra.mxu0 0.0
    %4719 = vmatprep.subr.mxu0 0.0
    %4720 = vmatpush1.msra.mxu0 0.0
    %4721 = vmatprep.subr.mxu0 0.0
    %4722 = vmatpush1.msra.mxu0 0.0
    %4723 = vmatprep.subr.mxu0 0.0
    %4724 = vmatpush1.msra.mxu0 0.0
    %4725 = vmatprep.subr.mxu0 0.0
    %4726 = vmatpush1.msra.mxu0 0.0
    %4727 = vmatprep.subr.mxu0 0.0
    %4728 = vmatpush1.msra.mxu0 0.0
    %4729 = vmatprep.mubr.f32.mxu0 0.0
    %4730 = vmatmul.mubr.f32.gmra.mrb[0].mxu0 %v4663
    %v4731 = vpop.f32.mrb[0].mxu0
    %v4732 = vadd.f32 %v321, %v4731
    %v4733 = vpop.f32.mrb[0].mxu0
    %4734 = vdwg.mxu0
    %4735 = vmatprep.subr.mxu0 0.0
    %4736 = vmatpush1.msra.mxu0 %v181
    %4737 = vmatprep.subr.mxu0 0.0
    %4738 = vmatpush1.msra.mxu0 %v182
    %4739 = vmatprep.subr.mxu0 0.0
    %4740 = vmatpush1.msra.mxu0 0.0
    %4741 = vmatprep.subr.mxu0 0.0
    %4742 = vmatpush1.msra.mxu0 0.0
    %4743 = vmatprep.subr.mxu0 0.0
    %4744 = vmatpush1.msra.mxu0 0.0
    %4745 = vmatprep.subr.mxu0 0.0
    %4746 = vmatpush1.msra.mxu0 0.0
    %4747 = vmatprep.subr.mxu0 0.0
    %4748 = vmatpush1.msra.mxu0 0.0
    %4749 = vmatprep.subr.mxu0 0.0
    %4750 = vmatpush1.msra.mxu0 0.0
    %4751 = vmatprep.subr.mxu0 0.0
    %4752 = vmatpush1.msra.mxu0 0.0
    %4753 = vmatprep.subr.mxu0 0.0
    %4754 = vmatpush1.msra.mxu0 0.0
    %4755 = vmatprep.subr.mxu0 0.0
    %4756 = vmatpush1.msra.mxu0 0.0
    %4757 = vmatprep.subr.mxu0 0.0
    %4758 = vmatpush1.msra.mxu0 0.0
    %4759 = vmatprep.subr.mxu0 0.0
    %4760 = vmatpush1.msra.mxu0 0.0
    %4761 = vmatprep.subr.mxu0 0.0
    %4762 = vmatpush1.msra.mxu0 0.0
    %4763 = vmatprep.subr.mxu0 0.0
    %4764 = vmatpush1.msra.mxu0 0.0
    %4765 = vmatprep.subr.mxu0 0.0
    %4766 = vmatpush1.msra.mxu0 0.0
    %4767 = vmatprep.subr.mxu0 0.0
    %4768 = vmatpush1.msra.mxu0 0.0
    %4769 = vmatprep.subr.mxu0 0.0
    %4770 = vmatpush1.msra.mxu0 0.0
    %4771 = vmatprep.subr.mxu0 0.0
    %4772 = vmatpush1.msra.mxu0 0.0
    %4773 = vmatprep.subr.mxu0 0.0
    %4774 = vmatpush1.msra.mxu0 0.0
    %4775 = vmatprep.subr.mxu0 0.0
    %4776 = vmatpush1.msra.mxu0 0.0
    %4777 = vmatprep.subr.mxu0 0.0
    %4778 = vmatpush1.msra.mxu0 0.0
    %4779 = vmatprep.subr.mxu0 0.0
    %4780 = vmatpush1.msra.mxu0 0.0
    %4781 = vmatprep.subr.mxu0 0.0
    %4782 = vmatpush1.msra.mxu0 0.0
    %4783 = vmatprep.subr.mxu0 0.0
    %4784 = vmatpush1.msra.mxu0 0.0
    %4785 = vmatprep.subr.mxu0 0.0
    %4786 = vmatpush1.msra.mxu0 0.0
    %4787 = vmatprep.subr.mxu0 0.0
    %4788 = vmatpush1.msra.mxu0 0.0
    %4789 = vmatprep.subr.mxu0 0.0
    %4790 = vmatpush1.msra.mxu0 0.0
    %4791 = vmatprep.subr.mxu0 0.0
    %4792 = vmatpush1.msra.mxu0 0.0
    %4793 = vmatprep.subr.mxu0 0.0
    %4794 = vmatpush1.msra.mxu0 0.0
    %4795 = vmatprep.subr.mxu0 0.0
    %4796 = vmatpush1.msra.mxu0 0.0
    %4797 = vmatprep.subr.mxu0 0.0
    %4798 = vmatpush1.msra.mxu0 0.0
    %4799 = vmatprep.mubr.f32.mxu0 0.0
    %4800 = vmatmul.mubr.f32.gmra.mrb[0].mxu0 %v4218
    %v4801 = vpop.f32.mrb[0].mxu0
    %v4802 = vadd.f32 %v402, %v4801
    %v4803 = vpop.f32.mrb[0].mxu0
    %4804 = vdwg.mxu0
    %v4805 = vadd.f32 %v4732, %v4802
    %v4806 = vxor.u32 %v4805, 2147483648
    %v4807 = vmul.f32 %v4806, 1.442695
    %v4808 = vpow.pop %v4807
    %v4809 = vadd.f32 %v4808, 1.0
    %v4810 = vrcp.pop %v4809
    %v4811 = vmul.f32 1.0, %v4810
    %4813 = vrot.lane.b32.xlu0 %v4802, 96
    %v4814 = vpop.permute.xlu0 %4813
    %v4816 = vmul.f32 %v4811, %v4814
    %4818 = vrot.lane.b32.xlu0 %v4816, 32
    %v4819 = vpop.permute.xlu0 %4818
    %v4821 = vadd.f32 %v4732, %v4819
    %v4822 = vtanh.pop %v4821
    %v4823 = vsub.f32 1.0, %v4811
    %4825 = vrot.lane.b32.xlu0 %v4822, 112
    %v4826 = vpop.permute.xlu0 %4825
    %v4828 = vmul.f32 %v4823, %v4826
    %v4829 = vmul.f32 %v4811, %v4214
    %v4830 = vadd.f32 %v4828, %v4829
    %4832 = vrot.lane.b32.xlu0 %v4830, 112
    %v4833 = vpop.permute.xlu0 %4832
    %v4834 = vsel %vm93, %v4833, 0
    %4836 = vmatprep.subr.mxu0 0.0
    %4837 = vmatpush1.msra.mxu0 %v193
    %4838 = vmatprep.subr.mxu0 0.0
    %4839 = vmatpush1.msra.mxu0 %v194
    %4840 = vmatprep.subr.mxu0 0.0
    %4841 = vmatpush1.msra.mxu0 0.0
    %4842 = vmatprep.subr.mxu0 0.0
    %4843 = vmatpush1.msra.mxu0 0.0
    %4844 = vmatprep.subr.mxu0 0.0
    %4845 = vmatpush1.msra.mxu0 0.0
    %4846 = vmatprep.subr.mxu0 0.0
    %4847 = vmatpush1.msra.mxu0 0.0
    %4848 = vmatprep.subr.mxu0 0.0
    %4849 = vmatpush1.msra.mxu0 0.0
    %4850 = vmatprep.subr.mxu0 0.0
    %4851 = vmatpush1.msra.mxu0 0.0
    %4852 = vmatprep.subr.mxu0 0.0
    %4853 = vmatpush1.msra.mxu0 0.0
    %4854 = vmatprep.subr.mxu0 0.0
    %4855 = vmatpush1.msra.mxu0 0.0
    %4856 = vmatprep.subr.mxu0 0.0
    %4857 = vmatpush1.msra.mxu0 0.0
    %4858 = vmatprep.subr.mxu0 0.0
    %4859 = vmatpush1.msra.mxu0 0.0
    %4860 = vmatprep.subr.mxu0 0.0
    %4861 = vmatpush1.msra.mxu0 0.0
    %4862 = vmatprep.subr.mxu0 0.0
    %4863 = vmatpush1.msra.mxu0 0.0
    %4864 = vmatprep.subr.mxu0 0.0
    %4865 = vmatpush1.msra.mxu0 0.0
    %4866 = vmatprep.subr.mxu0 0.0
    %4867 = vmatpush1.msra.mxu0 0.0
    %4868 = vmatprep.subr.mxu0 0.0
    %4869 = vmatpush1.msra.mxu0 0.0
    %4870 = vmatprep.subr.mxu0 0.0
    %4871 = vmatpush1.msra.mxu0 0.0
    %4872 = vmatprep.subr.mxu0 0.0
    %4873 = vmatpush1.msra.mxu0 0.0
    %4874 = vmatprep.subr.mxu0 0.0
    %4875 = vmatpush1.msra.mxu0 0.0
    %4876 = vmatprep.subr.mxu0 0.0
    %4877 = vmatpush1.msra.mxu0 0.0
    %4878 = vmatprep.subr.mxu0 0.0
    %4879 = vmatpush1.msra.mxu0 0.0
    %4880 = vmatprep.subr.mxu0 0.0
    %4881 = vmatpush1.msra.mxu0 0.0
    %4882 = vmatprep.subr.mxu0 0.0
    %4883 = vmatpush1.msra.mxu0 0.0
    %4884 = vmatprep.subr.mxu0 0.0
    %4885 = vmatpush1.msra.mxu0 0.0
    %4886 = vmatprep.subr.mxu0 0.0
    %4887 = vmatpush1.msra.mxu0 0.0
    %4888 = vmatprep.subr.mxu0 0.0
    %4889 = vmatpush1.msra.mxu0 0.0
    %4890 = vmatprep.subr.mxu0 0.0
    %4891 = vmatpush1.msra.mxu0 0.0
    %4892 = vmatprep.subr.mxu0 0.0
    %4893 = vmatpush1.msra.mxu0 0.0
    %4894 = vmatprep.subr.mxu0 0.0
    %4895 = vmatpush1.msra.mxu0 0.0
    %4896 = vmatprep.subr.mxu0 0.0
    %4897 = vmatpush1.msra.mxu0 0.0
    %4898 = vmatprep.subr.mxu0 0.0
    %4899 = vmatpush1.msra.mxu0 0.0
    %4900 = vmatprep.mubr.f32.mxu0 0.0
    %4901 = vmatmul.mubr.f32.gmra.mrb[0].mxu0 %v4834
    %v4902 = vpop.f32.mrb[0].mxu0
    %v4903 = vadd.f32 %v504, %v4902
    %v4904 = vpop.f32.mrb[0].mxu0
    %4905 = vdwg.mxu0
    %4906 = vmatprep.subr.mxu0 0.0
    %4907 = vmatpush1.msra.mxu0 %v184
    %4908 = vmatprep.subr.mxu0 0.0
    %4909 = vmatpush1.msra.mxu0 %v185
    %4910 = vmatprep.subr.mxu0 0.0
    %4911 = vmatpush1.msra.mxu0 0.0
    %4912 = vmatprep.subr.mxu0 0.0
    %4913 = vmatpush1.msra.mxu0 0.0
    %4914 = vmatprep.subr.mxu0 0.0
    %4915 = vmatpush1.msra.mxu0 0.0
    %4916 = vmatprep.subr.mxu0 0.0
    %4917 = vmatpush1.msra.mxu0 0.0
    %4918 = vmatprep.subr.mxu0 0.0
    %4919 = vmatpush1.msra.mxu0 0.0
    %4920 = vmatprep.subr.mxu0 0.0
    %4921 = vmatpush1.msra.mxu0 0.0
    %4922 = vmatprep.subr.mxu0 0.0
    %4923 = vmatpush1.msra.mxu0 0.0
    %4924 = vmatprep.subr.mxu0 0.0
    %4925 = vmatpush1.msra.mxu0 0.0
    %4926 = vmatprep.subr.mxu0 0.0
    %4927 = vmatpush1.msra.mxu0 0.0
    %4928 = vmatprep.subr.mxu0 0.0
    %4929 = vmatpush1.msra.mxu0 0.0
    %4930 = vmatprep.subr.mxu0 0.0
    %4931 = vmatpush1.msra.mxu0 0.0
    %4932 = vmatprep.subr.mxu0 0.0
    %4933 = vmatpush1.msra.mxu0 0.0
    %4934 = vmatprep.subr.mxu0 0.0
    %4935 = vmatpush1.msra.mxu0 0.0
    %4936 = vmatprep.subr.mxu0 0.0
    %4937 = vmatpush1.msra.mxu0 0.0
    %4938 = vmatprep.subr.mxu0 0.0
    %4939 = vmatpush1.msra.mxu0 0.0
    %4940 = vmatprep.subr.mxu0 0.0
    %4941 = vmatpush1.msra.mxu0 0.0
    %4942 = vmatprep.subr.mxu0 0.0
    %4943 = vmatpush1.msra.mxu0 0.0
    %4944 = vmatprep.subr.mxu0 0.0
    %4945 = vmatpush1.msra.mxu0 0.0
    %4946 = vmatprep.subr.mxu0 0.0
    %4947 = vmatpush1.msra.mxu0 0.0
    %4948 = vmatprep.subr.mxu0 0.0
    %4949 = vmatpush1.msra.mxu0 0.0
    %4950 = vmatprep.subr.mxu0 0.0
    %4951 = vmatpush1.msra.mxu0 0.0
    %4952 = vmatprep.subr.mxu0 0.0
    %4953 = vmatpush1.msra.mxu0 0.0
    %4954 = vmatprep.subr.mxu0 0.0
    %4955 = vmatpush1.msra.mxu0 0.0
    %4956 = vmatprep.subr.mxu0 0.0
    %4957 = vmatpush1.msra.mxu0 0.0
    %4958 = vmatprep.subr.mxu0 0.0
    %4959 = vmatpush1.msra.mxu0 0.0
    %4960 = vmatprep.subr.mxu0 0.0
    %4961 = vmatpush1.msra.mxu0 0.0
    %4962 = vmatprep.subr.mxu0 0.0
    %4963 = vmatpush1.msra.mxu0 0.0
    %4964 = vmatprep.subr.mxu0 0.0
    %4965 = vmatpush1.msra.mxu0 0.0
    %4966 = vmatprep.subr.mxu0 0.0
    %4967 = vmatpush1.msra.mxu0 0.0
    %4968 = vmatprep.subr.mxu0 0.0
    %4969 = vmatpush1.msra.mxu0 0.0
    %4970 = vmatprep.mubr.f32.mxu0 0.0
    %4971 = vmatmul.mubr.f32.gmra.mrb[0].mxu0 %v4389
    %v4972 = vpop.f32.mrb[0].mxu0
    %v4973 = vadd.f32 %v585, %v4972
    %v4974 = vpop.f32.mrb[0].mxu0
    %4975 = vdwg.mxu0
    %v4976 = vadd.f32 %v4903, %v4973
    %v4977 = vxor.u32 %v4976, 2147483648
    %v4978 = vmul.f32 %v4977, 1.442695
    %v4979 = vpow.pop %v4978
    %v4980 = vadd.f32 %v4979, 1.0
    %v4981 = vrcp.pop %v4980
    %v4982 = vmul.f32 1.0, %v4981
    %4984 = vrot.lane.b32.xlu0 %v4973, 96
    %v4985 = vpop.permute.xlu0 %4984
    %v4987 = vmul.f32 %v4982, %v4985
    %4989 = vrot.lane.b32.xlu0 %v4987, 32
    %v4990 = vpop.permute.xlu0 %4989
    %v4992 = vadd.f32 %v4903, %v4990
    %v4993 = vtanh.pop %v4992
    %v4994 = vsub.f32 1.0, %v4982
    %4996 = vrot.lane.b32.xlu0 %v4993, 112
    %v4997 = vpop.permute.xlu0 %4996
    %v4999 = vmul.f32 %v4994, %v4997
    %v5000 = vmul.f32 %v4982, %v4385
    %v5001 = vadd.f32 %v4999, %v5000
    %5003 = vrot.lane.b32.xlu0 %v5001, 112
    %v5004 = vpop.permute.xlu0 %5003
    %v5005 = vsel %vm93, %v5004, 0
    %5007 = vmatprep.subr.mxu0 0.0
    %5008 = vmatpush1.msra.mxu0 %v196
    %5009 = vmatprep.subr.mxu0 0.0
    %5010 = vmatpush1.msra.mxu0 %v197
    %5011 = vmatprep.subr.mxu0 0.0
    %5012 = vmatpush1.msra.mxu0 0.0
    %5013 = vmatprep.subr.mxu0 0.0
    %5014 = vmatpush1.msra.mxu0 0.0
    %5015 = vmatprep.subr.mxu0 0.0
    %5016 = vmatpush1.msra.mxu0 0.0
    %5017 = vmatprep.subr.mxu0 0.0
    %5018 = vmatpush1.msra.mxu0 0.0
    %5019 = vmatprep.subr.mxu0 0.0
    %5020 = vmatpush1.msra.mxu0 0.0
    %5021 = vmatprep.subr.mxu0 0.0
    %5022 = vmatpush1.msra.mxu0 0.0
    %5023 = vmatprep.subr.mxu0 0.0
    %5024 = vmatpush1.msra.mxu0 0.0
    %5025 = vmatprep.subr.mxu0 0.0
    %5026 = vmatpush1.msra.mxu0 0.0
    %5027 = vmatprep.subr.mxu0 0.0
    %5028 = vmatpush1.msra.mxu0 0.0
    %5029 = vmatprep.subr.mxu0 0.0
    %5030 = vmatpush1.msra.mxu0 0.0
    %5031 = vmatprep.subr.mxu0 0.0
    %5032 = vmatpush1.msra.mxu0 0.0
    %5033 = vmatprep.subr.mxu0 0.0
    %5034 = vmatpush1.msra.mxu0 0.0
    %5035 = vmatprep.subr.mxu0 0.0
    %5036 = vmatpush1.msra.mxu0 0.0
    %5037 = vmatprep.subr.mxu0 0.0
    %5038 = vmatpush1.msra.mxu0 0.0
    %5039 = vmatprep.subr.mxu0 0.0
    %5040 = vmatpush1.msra.mxu0 0.0
    %5041 = vmatprep.subr.mxu0 0.0
    %5042 = vmatpush1.msra.mxu0 0.0
    %5043 = vmatprep.subr.mxu0 0.0
    %5044 = vmatpush1.msra.mxu0 0.0
    %5045 = vmatprep.subr.mxu0 0.0
    %5046 = vmatpush1.msra.mxu0 0.0
    %5047 = vmatprep.subr.mxu0 0.0
    %5048 = vmatpush1.msra.mxu0 0.0
    %5049 = vmatprep.subr.mxu0 0.0
    %5050 = vmatpush1.msra.mxu0 0.0
    %5051 = vmatprep.subr.mxu0 0.0
    %5052 = vmatpush1.msra.mxu0 0.0
    %5053 = vmatprep.subr.mxu0 0.0
    %5054 = vmatpush1.msra.mxu0 0.0
    %5055 = vmatprep.subr.mxu0 0.0
    %5056 = vmatpush1.msra.mxu0 0.0
    %5057 = vmatprep.subr.mxu0 0.0
    %5058 = vmatpush1.msra.mxu0 0.0
    %5059 = vmatprep.subr.mxu0 0.0
    %5060 = vmatpush1.msra.mxu0 0.0
    %5061 = vmatprep.subr.mxu0 0.0
    %5062 = vmatpush1.msra.mxu0 0.0
    %5063 = vmatprep.subr.mxu0 0.0
    %5064 = vmatpush1.msra.mxu0 0.0
    %5065 = vmatprep.subr.mxu0 0.0
    %5066 = vmatpush1.msra.mxu0 0.0
    %5067 = vmatprep.subr.mxu0 0.0
    %5068 = vmatpush1.msra.mxu0 0.0
    %5069 = vmatprep.subr.mxu0 0.0
    %5070 = vmatpush1.msra.mxu0 0.0
    %5071 = vmatprep.mubr.f32.mxu0 0.0
    %5072 = vmatmul.mubr.f32.gmra.mrb[0].mxu0 %v5005
    %v5073 = vpop.f32.mrb[0].mxu0
    %v5074 = vadd.f32 %v687, %v5073
    %v5075 = vpop.f32.mrb[0].mxu0
    %5076 = vdwg.mxu0
    %5078 = vrot.lane.b32.xlu0 %v4561, 112
    %v5079 = vpop.permute.xlu0 %5078
    %v5080 = vsel %vm93, %v5079, 0
    %5082 = vmatprep.subr.mxu0 0.0
    %5083 = vmatpush1.msra.mxu0 %v187
    %5084 = vmatprep.subr.mxu0 0.0
    %5085 = vmatpush1.msra.mxu0 %v188
    %5086 = vmatprep.subr.mxu0 0.0
    %5087 = vmatpush1.msra.mxu0 0.0
    %5088 = vmatprep.subr.mxu0 0.0
    %5089 = vmatpush1.msra.mxu0 0.0
    %5090 = vmatprep.subr.mxu0 0.0
    %5091 = vmatpush1.msra.mxu0 0.0
    %5092 = vmatprep.subr.mxu0 0.0
    %5093 = vmatpush1.msra.mxu0 0.0
    %5094 = vmatprep.subr.mxu0 0.0
    %5095 = vmatpush1.msra.mxu0 0.0
    %5096 = vmatprep.subr.mxu0 0.0
    %5097 = vmatpush1.msra.mxu0 0.0
    %5098 = vmatprep.subr.mxu0 0.0
    %5099 = vmatpush1.msra.mxu0 0.0
    %5100 = vmatprep.subr.mxu0 0.0
    %5101 = vmatpush1.msra.mxu0 0.0
    %5102 = vmatprep.subr.mxu0 0.0
    %5103 = vmatpush1.msra.mxu0 0.0
    %5104 = vmatprep.subr.mxu0 0.0
    %5105 = vmatpush1.msra.mxu0 0.0
    %5106 = vmatprep.subr.mxu0 0.0
    %5107 = vmatpush1.msra.mxu0 0.0
    %5108 = vmatprep.subr.mxu0 0.0
    %5109 = vmatpush1.msra.mxu0 0.0
    %5110 = vmatprep.subr.mxu0 0.0
    %5111 = vmatpush1.msra.mxu0 0.0
    %5112 = vmatprep.subr.mxu0 0.0
    %5113 = vmatpush1.msra.mxu0 0.0
    %5114 = vmatprep.subr.mxu0 0.0
    %5115 = vmatpush1.msra.mxu0 0.0
    %5116 = vmatprep.subr.mxu0 0.0
    %5117 = vmatpush1.msra.mxu0 0.0
    %5118 = vmatprep.subr.mxu0 0.0
    %5119 = vmatpush1.msra.mxu0 0.0
    %5120 = vmatprep.subr.mxu0 0.0
    %5121 = vmatpush1.msra.mxu0 0.0
    %5122 = vmatprep.subr.mxu0 0.0
    %5123 = vmatpush1.msra.mxu0 0.0
    %5124 = vmatprep.subr.mxu0 0.0
    %5125 = vmatpush1.msra.mxu0 0.0
    %5126 = vmatprep.subr.mxu0 0.0
    %5127 = vmatpush1.msra.mxu0 0.0
    %5128 = vmatprep.subr.mxu0 0.0
    %5129 = vmatpush1.msra.mxu0 0.0
    %5130 = vmatprep.subr.mxu0 0.0
    %5131 = vmatpush1.msra.mxu0 0.0
    %5132 = vmatprep.subr.mxu0 0.0
    %5133 = vmatpush1.msra.mxu0 0.0
    %5134 = vmatprep.subr.mxu0 0.0
    %5135 = vmatpush1.msra.mxu0 0.0
    %5136 = vmatprep.subr.mxu0 0.0
    %5137 = vmatpush1.msra.mxu0 0.0
    %5138 = vmatprep.subr.mxu0 0.0
    %5139 = vmatpush1.msra.mxu0 0.0
    %5140 = vmatprep.subr.mxu0 0.0
    %5141 = vmatpush1.msra.mxu0 0.0
    %5142 = vmatprep.subr.mxu0 0.0
    %5143 = vmatpush1.msra.mxu0 0.0
    %5144 = vmatprep.subr.mxu0 0.0
    %5145 = vmatpush1.msra.mxu0 0.0
    %5146 = vmatprep.mubr.f32.mxu0 0.0
    %5147 = vmatmul.mubr.f32.gmra.mrb[0].mxu0 %v5080
    %v5148 = vpop.f32.mrb[0].mxu0
    %v5149 = vadd.f32 %v768, %v5148
    %v5150 = vpop.f32.mrb[0].mxu0
    %5151 = vdwg.mxu0
    %v5152 = vadd.f32 %v5074, %v5149
    %v5153 = vxor.u32 %v5152, 2147483648
    %v5154 = vmul.f32 %v5153, 1.442695
    %v5155 = vpow.pop %v5154
    %v5156 = vadd.f32 %v5155, 1.0
    %v5157 = vrcp.pop %v5156
    %v5158 = vmul.f32 1.0, %v5157
    %5160 = vrot.lane.b32.xlu0 %v5149, 96
    %v5161 = vpop.permute.xlu0 %5160
    %v5163 = vmul.f32 %v5158, %v5161
    %5165 = vrot.lane.b32.xlu0 %v5163, 32
    %v5166 = vpop.permute.xlu0 %5165
    %v5168 = vadd.f32 %v5074, %v5166
    %v5169 = vtanh.pop %v5168
    %v5170 = vsub.f32 1.0, %v5158
    %5172 = vrot.lane.b32.xlu0 %v5169, 112
    %v5173 = vpop.permute.xlu0 %5172
    %v5175 = vmul.f32 %v5170, %v5173
    %v5176 = vmul.f32 %v5158, %v4561
    %v5177 = vadd.f32 %v5175, %v5176
    %5179 = vrot.lane.b32.xlu0 %v5001, 16
    %v5180 = vpop.permute.xlu0 %5179
    %5183 = vrot.lane.b32.xlu0 %v5177, 32
    %v5184 = vpop.permute.xlu0 %5183
    %v5186 = vsel %vm93, %v4662, %v4830
    %vm5187 = vcmask 261120
    %v5188 = vsel %vm5187, %v5186, %v5180
    %v5189 = vsel %vm175, %v5188, %v5184
    %v5190 = vld [vmem:[#allocation9] sm:$0xff]
    %v5191 = vld [vmem:[#allocation9 + $0x8] sm:$0xff]
    %v5192 = vld [vmem:[#allocation9 + $0x10] sm:$0xff]
    %v5193 = vld [vmem:[#allocation9 + $0x18] sm:$0xff]
    %v5194 = vld [vmem:[#allocation9 + $0x20] sm:$0xff]
    %v5195 = vld [vmem:[#allocation9 + $0x28] sm:$0xff]
    %v5196 = vld [vmem:[#allocation9 + $0x30] sm:$0xff]
    %v5197 = vld [vmem:[#allocation9 + $0x38] sm:$0xff]
    %v5198 = vld [vmem:[#allocation9 + $0x40] sm:$0xff]
    %v5199 = vld [vmem:[#allocation9 + $0x48] sm:$0xff]
    %v5200 = vld [vmem:[#allocation9 + $0x50] sm:$0xff]
    %v5201 = vld [vmem:[#allocation9 + $0x58] sm:$0xff]
    %v5202 = vld [vmem:[#allocation9 + $0x60] sm:$0xff]
    %v5203 = vld [vmem:[#allocation9 + $0x68] sm:$0xff]
    %v5204 = vld [vmem:[#allocation9 + $0x70] sm:$0xff]
    %v5205 = vld [vmem:[#allocation9 + $0x78] sm:$0xff]
    %v5206 = vld [vmem:[%s6] sm:$0x3]
    %v5208 = vlaneseq
    %v5209 = vshrl.u32 %v5208, 7
    %v5210 = vsub.s32 0, %v5209
    %v5211 = vrot.slane %v5206, %v5210
    %v5212 = vlaneseq
    %v5213 = vshrl.u32 %v5212, 7
    %v5214 = vsub.s32 1, %v5213
    %v5215 = vrot.slane %v5206, %v5214
    %vm5218 = vcmask 523264
    %v5220 = vsel %vm5218, %v5189, 0
    %5222 = vmatprep.subr.mxu0 %v5191
    %5223 = vmatpush1.msra.mxu0 %v5190
    %5224 = vmatprep.subr.mxu0 %v5193
    %5225 = vmatpush1.msra.mxu0 %v5192
    %5226 = vmatprep.subr.mxu0 %v5195
    %5227 = vmatpush1.msra.mxu0 %v5194
    %5228 = vmatprep.subr.mxu0 %v5197
    %5229 = vmatpush1.msra.mxu0 %v5196
    %5230 = vmatprep.subr.mxu0 %v5199
    %5231 = vmatpush1.msra.mxu0 %v5198
    %5232 = vmatprep.subr.mxu0 %v5201
    %5233 = vmatpush1.msra.mxu0 %v5200
    %5234 = vmatprep.subr.mxu0 %v5203
    %5235 = vmatpush1.msra.mxu0 %v5202
    %5236 = vmatprep.subr.mxu0 %v5205
    %5237 = vmatpush1.msra.mxu0 %v5204
    %5238 = vmatprep.subr.mxu0 0.0
    %5239 = vmatpush1.msra.mxu0 0.0
    %5240 = vmatprep.subr.mxu0 0.0
    %5241 = vmatpush1.msra.mxu0 0.0
    %5242 = vmatprep.subr.mxu0 0.0
    %5243 = vmatpush1.msra.mxu0 0.0
    %5244 = vmatprep.subr.mxu0 0.0
    %5245 = vmatpush1.msra.mxu0 0.0
    %5246 = vmatprep.subr.mxu0 0.0
    %5247 = vmatpush1.msra.mxu0 0.0
    %5248 = vmatprep.subr.mxu0 0.0
    %5249 = vmatpush1.msra.mxu0 0.0
    %5250 = vmatprep.subr.mxu0 0.0
    %5251 = vmatpush1.msra.mxu0 0.0
    %5252 = vmatprep.subr.mxu0 0.0
    %5253 = vmatpush1.msra.mxu0 0.0
    %5254 = vmatprep.subr.mxu0 0.0
    %5255 = vmatpush1.msra.mxu0 0.0
    %5256 = vmatprep.subr.mxu0 0.0
    %5257 = vmatpush1.msra.mxu0 0.0
    %5258 = vmatprep.subr.mxu0 0.0
    %5259 = vmatpush1.msra.mxu0 0.0
    %5260 = vmatprep.subr.mxu0 0.0
    %5261 = vmatpush1.msra.mxu0 0.0
    %5262 = vmatprep.subr.mxu0 0.0
    %5263 = vmatpush1.msra.mxu0 0.0
    %5264 = vmatprep.subr.mxu0 0.0
    %5265 = vmatpush1.msra.mxu0 0.0
    %5266 = vmatprep.subr.mxu0 0.0
    %5267 = vmatpush1.msra.mxu0 0.0
    %5268 = vmatprep.subr.mxu0 0.0
    %5269 = vmatpush1.msra.mxu0 0.0
    %5270 = vmatprep.subr.mxu0 0.0
    %5271 = vmatpush1.msra.mxu0 0.0
    %5272 = vmatprep.subr.mxu0 0.0
    %5273 = vmatpush1.msra.mxu0 0.0
    %5274 = vmatprep.subr.mxu0 0.0
    %5275 = vmatpush1.msra.mxu0 0.0
    %5276 = vmatprep.subr.mxu0 0.0
    %5277 = vmatpush1.msra.mxu0 0.0
    %5278 = vmatprep.subr.mxu0 0.0
    %5279 = vmatpush1.msra.mxu0 0.0
    %5280 = vmatprep.subr.mxu0 0.0
    %5281 = vmatpush1.msra.mxu0 0.0
    %5282 = vmatprep.subr.mxu0 0.0
    %5283 = vmatpush1.msra.mxu0 0.0
    %5284 = vmatprep.subr.mxu0 0.0
    %5285 = vmatpush1.msra.mxu0 0.0
    %5286 = vmatprep.mubr.f32.mxu0 0.0
    %5287 = vmatmul.mubr.f32.gmra.mrb[0].mxu0 %v5220
    %v5288 = vpop.f32.mrb[0].mxu0
    %v5289 = vadd.f32 %v5211, %v5288
    %v5290 = vpop.f32.mrb[0].mxu0
    %v5291 = vadd.f32 %v5215, %v5290
    %5292 = vdwg.mxu0
    %v5295 = vcombine.low %v5289, %v5291
    %v5297 = vunpack.c.l.s4 1983009808
    %v5298 = vunpack.c.0.s8 %v5297
    %v5299 = vlaneseq
    %v5300 = vshrl.u32 %v5299, 7
    %v5301 = vsub.s32 %v5298, %v5300
    %v5302 = vrot.slane %v5295, %v5301
    %vm5304 = vcmask 1041408
    %vm5305 = vcmask 175106
    %vm5306 = vmor %vm5305, %vm5304
    %5307 = vst.msk [vmem:[#allocation11] sm:$0xf] %vm5306, %v5302
    // Predicated region
    $region46: #{tpu_custom_call.1} parent=1 // pred_check
      _
    $region47: #{tpu_custom_call.1} parent=1 // pred_check_branch
      %5309 = sbr.rel (0) target = $region49
    $region48: #{tpu_custom_call.1} parent=1 // pred_region
      %s5311 = ssub.s32 64, 64
      %5312 = vsyncadd [#allocation5], %s5311
      %s5314 = sshll.u32 [#allocation11], 4
      %s5315 = int_to_ptr.vmem [resolvable:$true] %s5314
      %5317 = dma.vmem_to_hbm [thread:$0]  %s5315, 64, %s7, [#allocation5]
    $region49: #{tpu_custom_call.1} parent=1 // pred_fallthru
      _
    // Predicated region
    $region50: #{tpu_custom_call.1} parent=1 // pred_check
      _
    $region51: #{tpu_custom_call.1} parent=1 // pred_check_branch
      %5319 = sbr.rel (0) target = $region53
    $region52: #{tpu_custom_call.1} parent=1 // pred_region
      %5320 = dma.done [#allocation5], 64
    $region53: #{tpu_custom_call.1} parent=1 // pred_fallthru
      _
    %5321 = vsyncpa [#allocation4], 1
    %5322 = vsyncpa [#allocation7], 1
    %5323 = vsyncpa [#allocation10], 1
    %5324 = vsyncpa [#allocation5], 1

</llo_original>
